<compile_context>
chip_gen: v7x
topology: tpu7x:2x2x1
jax: 0.10.0
libtpu: 0.0.40
codegen_flags: <defaults>
</compile_context>

<pallas_src>
import functools

import numpy as np

import jax
import jax.numpy as jnp
from jax.experimental import pallas as pl
from jax.experimental.pallas import tpu as pltpu

LANES = 128          # lane-dense width of the fused actor|critic head output
BN_EPS = 1e-5

# Order of the prepared-parameter inputs to the fused kernel.
PARAM_ORDER = (
    "sel1", "wconv1", "shift1",
    "sel2", "wconv2", "shift2",
    "sel3", "wconv3", "shift3",
    "fc1_sel", "fc1_w", "fc1_b",
    "fc2_w", "fc2_b",
    "head_w", "head_b",
)


# --------------------------------------------------------------------------
# The fused kernel: conv1 -> conv2 -> conv3 -> fc1 -> fc2 -> [actor|critic]
# One grid step == one batch element; all weights are VMEM-resident.
# --------------------------------------------------------------------------
def _actor_critic_kernel(
    x_ref,
    sel1_ref, wc1_ref, sh1_ref,
    sel2_ref, wc2_ref, sh2_ref,
    sel3_ref, wc3_ref, sh3_ref,
    fsel_ref, fw1_ref, fb1_ref,
    fw2_ref, fb2_ref,
    hw_ref, hb_ref,
    o_ref,
):
    def conv(x, sel_ref, w_ref, shift_ref):
        """Strided VALID conv + folded-BN shift + ReLU, per image.

        x: (H, W*Cin) bf16 scanline matrix.
        sel_ref[i]: (oh, H) one-hot row selector for tap row i (stride-2 row
            gather executed on the MXU, no sublane-strided slicing).
        w_ref[i]: (W*Cin, ow*Cout) structured weight with the column taps and
            column stride folded in; BN scale already folded into columns.
        shift_ref: (1, ow*Cout) folded BN shift.
        Returns (oh, ow*Cout) bf16.
        """
        acc = None
        for i in range(sel_ref.shape[0]):          # kh is small (5, 5, 3)
            rows = jnp.dot(sel_ref[i], x, preferred_element_type=jnp.float32)
            part = jnp.dot(rows.astype(jnp.bfloat16), w_ref[i],
                           preferred_element_type=jnp.float32)
            acc = part if acc is None else acc + part
        return jnp.maximum(acc + shift_ref[...], 0.0).astype(jnp.bfloat16)

    x = x_ref[0]                                   # (H, W*C) bf16, one image
    x = conv(x, sel1_ref, wc1_ref, sh1_ref)        # (14, 14*32)
    x = conv(x, sel2_ref, wc2_ref, sh2_ref)        # (5, 5*64)
    x = conv(x, sel3_ref, wc3_ref, sh3_ref)        # (2, 2*128)

    # fc1: the "flatten" is a per-row matmul against the row-sliced fc1 weight
    # (fc1_w is permuted once at init to this NHWC-scanline ordering); the row
    # gather again uses a one-hot matmul instead of sublane slicing.
    h = None
    for r in range(fsel_ref.shape[0]):             # h3 = 2
        row = jnp.dot(fsel_ref[r], x, preferred_element_type=jnp.float32)
        part = jnp.dot(row.astype(jnp.bfloat16), fw1_ref[r],
                       preferred_element_type=jnp.float32)
        h = part if h is None else h + part
    h = jnp.maximum(h + fb1_ref[...], 0.0)         # (1, 256)
    # dropout(p=0.5): identity in eval-mode forward
    h = jnp.dot(h.astype(jnp.bfloat16), fw2_ref[...],
                preferred_element_type=jnp.float32)
    h = jnp.maximum(h + fb2_ref[...], 0.0)         # (1, 128)
    # dropout: identity
    o = jnp.dot(h.astype(jnp.bfloat16), hw_ref[...],
                preferred_element_type=jnp.float32)
    o_ref[0] = o + hb_ref[...]                     # (1, 128) f32, lane-dense


# --------------------------------------------------------------------------
# Forward wrapper: one pallas_call, grid over batch ("parallel")
# --------------------------------------------------------------------------
def _const_map(ndim):
    return lambda b: (0,) * ndim


def actor_critic_forward(prep, x, *, action_space):
    if x.ndim == 5:                        # matches torch: squeeze(1)
        x = jnp.squeeze(x, axis=1)
    N, C, H, W = x.shape
    # One layout change at the input boundary: NCHW -> per-image scanline
    # matrix (H, W*C), cast to bf16 once (no replicated-patch casts).
    x2d = jnp.transpose(x, (0, 2, 3, 1)).reshape(N, H, W * C).astype(jnp.bfloat16)

    params = [prep[k] for k in PARAM_ORDER]
    in_specs = [pl.BlockSpec((1, H, W * C), lambda b: (b, 0, 0))]
    # Weights / selectors / shifts: full-array blocks on constant index maps
    # (DMA'd once, stay VMEM-resident across the batch grid).
    in_specs += [pl.BlockSpec(p.shape, _const_map(p.ndim)) for p in params]

    out = pl.pallas_call(
        _actor_critic_kernel,
        out_shape=jax.ShapeDtypeStruct((N, 1, LANES), jnp.float32),
        grid=(N,),
        in_specs=in_specs,
        out_specs=pl.BlockSpec((1, 1, LANES), lambda b: (b, 0, 0)),
        compiler_params=pltpu.CompilerParams(
            dimension_semantics=("parallel",)),
    )(x2d, *params)

    out = out.reshape(N, LANES)
    action_mean = out[:, :action_space]
    value = out[:, action_space:action_space + 1]
    action_std = jnp.broadcast_to(jnp.exp(prep["actor_log_std"]),
                                  action_mean.shape)
    return action_mean, action_std, value


# --------------------------------------------------------------------------
# Parameters: PyTorch-layout init, then one-time conversion for the kernel
# --------------------------------------------------------------------------
def conv_out(n, k, s):
    return (n - k) // s + 1


def init_torch_params(key, observation_space, action_space):
    """Deterministic synthetic parameters in the PyTorch layouts."""
    C, H, W = observation_space
    h1, w1 = conv_out(H, 5, 2), conv_out(W, 5, 2)
    h2, w2 = conv_out(h1, 5, 2), conv_out(w1, 5, 2)
    h3, w3 = conv_out(h2, 3, 2), conv_out(w2, 3, 2)
    to_linear = 128 * h3 * w3

    ks = jax.random.split(key, 16)
    f32 = jnp.float32

    def w_init(k, shape, scale=0.05):
        return (scale * jax.random.normal(k, shape)).astype(f32)

    def b_init(k, ch):
        return (0.05 * jax.random.normal(k, (ch,))).astype(f32)

    def bn_init(k, ch):
        k1, k2, k3, k4 = jax.random.split(k, 4)
        return dict(
            gamma=(1.0 + 0.1 * jax.random.normal(k1, (ch,))).astype(f32),
            beta=(0.05 * jax.random.normal(k2, (ch,))).astype(f32),
            mean=(0.05 * jax.random.normal(k3, (ch,))).astype(f32),
            var=(1.0 + 0.1 * jax.random.uniform(k4, (ch,))).astype(f32))

    params = {
        "conv1_w": w_init(ks[0], (32, C, 5, 5)),  "conv1_b": b_init(ks[7], 32),
        "bn1": bn_init(ks[10], 32),
        "conv2_w": w_init(ks[1], (64, 32, 5, 5)), "conv2_b": b_init(ks[8], 64),
        "bn2": bn_init(ks[11], 64),
        "conv3_w": w_init(ks[2], (128, 64, 3, 3)), "conv3_b": b_init(ks[9], 128),
        "bn3": bn_init(ks[12], 128),
        "fc1_w": w_init(ks[3], (256, to_linear)), "fc1_b": b_init(ks[13], 256),
        "fc2_w": w_init(ks[4], (128, 256)),       "fc2_b": b_init(ks[14], 128),
        "actor_w": w_init(ks[5], (action_space, 128)),
        "actor_b": b_init(ks[15], action_space),
        "critic_w": w_init(ks[6], (1, 128)),      "critic_b": jnp.zeros((1,), f32),
        "actor_log_std": jnp.zeros((1, action_space), f32),
    }
    return params


def prepare_params(tp, observation_space, action_space):
    """One-time conversion: fold BN into weights/shift, build the structured
    per-tap-row conv weights + row selectors, permute fc1, fuse the heads."""
    C, H, W = observation_space
    assert action_space + 1 <= LANES, (
        "fused actor|critic head requires action_space + 1 <= 128")

    def np_(a):
        return np.asarray(jax.device_get(a), dtype=np.float32)

    prep = {}
    h_in, w_in, c_in = H, W, C
    for idx, (name, k, s) in enumerate(
            [("conv1", 5, 2), ("conv2", 5, 2), ("conv3", 3, 2)], start=1):
        w_t, b = np_(tp[f"{name}_w"]), np_(tp[f"{name}_b"])
        bn = tp[f"bn{idx}"]
        gamma, beta = np_(bn["gamma"]), np_(bn["beta"])
        mean, var = np_(bn["mean"]), np_(bn["var"])
        scale = gamma / np.sqrt(var + BN_EPS)
        shift = beta + (b - mean) * scale
        c_out = w_t.shape[0]
        oh, ow = (h_in - k) // s + 1, (w_in - k) // s + 1

        # [R7] fold BN scale into the weight columns (epilogue = relu(acc+shift))
        w_f = w_t * scale[:, None, None, None]            # (Cout, Cin, kh, kw)

        # [R1] structured per-tap-row weight: column taps + column stride folded
        # into the matmul so the kernel never needs strided slicing.
        wrow = np.zeros((k, w_in * c_in, ow * c_out), np.float32)
        for i in range(k):
            for j in range(k):
                blk = w_f[:, :, i, j].T                   # (Cin, Cout)
                for c in range(ow):
                    col = s * c + j
                    wrow[i, col * c_in:(col + 1) * c_in,
                         c * c_out:(c + 1) * c_out] = blk

        # one-hot row selectors for the stride-2 row gather (runs on the MXU)
        sel = np.zeros((k, oh, h_in), np.float32)
        for i in range(k):
            sel[i, np.arange(oh), s * np.arange(oh) + i] = 1.0

        prep[f"sel{idx}"] = jnp.asarray(sel, jnp.bfloat16)
        prep[f"wconv{idx}"] = jnp.asarray(wrow, jnp.bfloat16)
        prep[f"shift{idx}"] = jnp.asarray(np.tile(shift, ow)[None, :], jnp.float32)
        h_in, w_in, c_in = oh, ow, c_out

    h3, w3, c3 = h_in, w_in, c_in                          # (2, 2, 128)

    # fc1: permute the torch NCHW-flatten input ordering to our per-row
    # (scanline) NHWC flatten, split per conv3 output row.
    fc1 = np_(tp["fc1_w"])                                 # (256, c3*h3*w3)
    w1 = fc1.reshape(256, c3, h3, w3).transpose(2, 3, 1, 0).reshape(
        h3, w3 * c3, 256)
    prep["fc1_sel"] = jnp.asarray(np.eye(h3, dtype=np.float32)[:, None, :],
                                  jnp.bfloat16)            # (h3, 1, h3)
    prep["fc1_w"] = jnp.asarray(w1, jnp.bfloat16)
    prep["fc1_b"] = jnp.asarray(np_(tp["fc1_b"])[None, :], jnp.float32)
    prep["fc2_w"] = jnp.asarray(np_(tp["fc2_w"]).T, jnp.bfloat16)   # (256,128)
    prep["fc2_b"] = jnp.asarray(np_(tp["fc2_b"])[None, :], jnp.float32)

    # actor + critic fused into one lane-dense (128-col) head.
    a = np_(tp["actor_w"]).shape[0]
    head_w = np.zeros((128, LANES), np.float32)
    head_w[:, :a] = np_(tp["actor_w"]).T
    head_w[:, a] = np_(tp["critic_w"])[0]
    head_b = np.zeros((LANES,), np.float32)
    head_b[:a] = np_(tp["actor_b"])
    head_b[a] = np_(tp["critic_b"])[0]
    prep["head_w"] = jnp.asarray(head_w, jnp.bfloat16)
    prep["head_b"] = jnp.asarray(head_b[None, :], jnp.float32)

    prep["actor_log_std"] = jnp.asarray(np_(tp["actor_log_std"]), jnp.float32)
    return prep


# --------------------------------------------------------------------------
# Pure-JAX f32 reference (mirrors the PyTorch module) for a tolerance check
# --------------------------------------------------------------------------
def reference_forward(tp, x):
    if x.ndim == 5:
        x = jnp.squeeze(x, axis=1)

    def conv_bn_relu(x, w, b, bn, stride):
        y = jax.lax.conv_general_dilated(
            x, w, window_strides=(stride, stride), padding="VALID",
            dimension_numbers=("NCHW", "OIHW", "NCHW"))
        y = y + b.reshape(1, -1, 1, 1)
        scale = (bn["gamma"] / jnp.sqrt(bn["var"] + BN_EPS)).reshape(1, -1, 1, 1)
        y = (y - bn["mean"].reshape(1, -1, 1, 1)) * scale + bn["beta"].reshape(1, -1, 1, 1)
        return jnp.maximum(y, 0.0)

    x = conv_bn_relu(x, tp["conv1_w"], tp["conv1_b"], tp["bn1"], 2)
    x = conv_bn_relu(x, tp["conv2_w"], tp["conv2_b"], tp["bn2"], 2)
    x = conv_bn_relu(x, tp["conv3_w"], tp["conv3_b"], tp["bn3"], 2)
    x = x.reshape(x.shape[0], -1)
    x = jnp.maximum(x @ tp["fc1_w"].T + tp["fc1_b"], 0.0)
    x = jnp.maximum(x @ tp["fc2_w"].T + tp["fc2_b"], 0.0)
    action_mean = x @ tp["actor_w"].T + tp["actor_b"]
    value = x @ tp["critic_w"].T + tp["critic_b"]
    action_std = jnp.exp(jnp.broadcast_to(tp["actor_log_std"], action_mean.shape))
    return action_mean, action_std, value


# --------------------------------------------------------------------------
if __name__ == "__main__":
    observation_space = (3, 32, 32)       # smallest spatial size that survives
    action_space = 2                      # the 3 strided convs (32->14->5->2)
    batch = 2

    key = jax.random.PRNGKey(0)
    pkey, xkey = jax.random.split(key)
    torch_params = init_torch_params(pkey, observation_space, action_space)
    prep = prepare_params(torch_params, observation_space, action_space)
    x = jax.random.normal(xkey, (batch, *observation_space), dtype=jnp.float32)

    fwd = jax.jit(functools.partial(actor_critic_forward,
                                    action_space=action_space))
    action_mean, action_std, value = fwd(prep, x)
    jax.block_until_ready((action_mean, action_std, value))

    assert action_mean.shape == (batch, action_space)
    assert action_std.shape == (batch, action_space)
    assert value.shape == (batch, 1)

    # Tolerance check vs a pure-JAX f32 reference (kernel uses bf16 matmul
    # operands with f32 accumulation => expect ~1e-2 relative deviation).
    ref_mean, ref_std, ref_value = reference_forward(torch_params, x)

    def nerr(a, b):
        return float(jnp.max(jnp.abs(a - b)) / (jnp.max(jnp.abs(b)) + 1e-6))

    assert nerr(action_mean, ref_mean) < 0.15, nerr(action_mean, ref_mean)
    assert nerr(value, ref_value) < 0.15, nerr(value, ref_value)
    assert bool(jnp.allclose(action_std, ref_std))

    print("KERNEL_OK")
</pallas_src>

<mosaic_0001>
module attributes {stable_mosaic.version = 11 : i64} {
  func.func @_actor_critic_kernel(%arg0: i32, %arg1: memref<1x32x96xbf16, #tpu.memory_space<vmem>>, %arg2: memref<5x14x32xbf16, #tpu.memory_space<vmem>>, %arg3: memref<5x96x448xbf16, #tpu.memory_space<vmem>>, %arg4: memref<1x448xf32, #tpu.memory_space<vmem>>, %arg5: memref<5x5x14xbf16, #tpu.memory_space<vmem>>, %arg6: memref<5x448x320xbf16, #tpu.memory_space<vmem>>, %arg7: memref<1x320xf32, #tpu.memory_space<vmem>>, %arg8: memref<3x2x5xbf16, #tpu.memory_space<vmem>>, %arg9: memref<3x320x256xbf16, #tpu.memory_space<vmem>>, %arg10: memref<1x256xf32, #tpu.memory_space<vmem>>, %arg11: memref<2x1x2xbf16, #tpu.memory_space<vmem>>, %arg12: memref<2x256x256xbf16, #tpu.memory_space<vmem>>, %arg13: memref<1x256xf32, #tpu.memory_space<vmem>>, %arg14: memref<256x128xbf16, #tpu.memory_space<vmem>>, %arg15: memref<1x128xf32, #tpu.memory_space<vmem>>, %arg16: memref<128x128xbf16, #tpu.memory_space<vmem>>, %arg17: memref<1x128xf32, #tpu.memory_space<vmem>>, %arg18: memref<1x1x128xf32, #tpu.memory_space<vmem>>) attributes {dimension_semantics = [#tpu.dimension_semantics<parallel>], iteration_bounds = array<i64: 2>, scalar_prefetch = 0 : i64, scratch_operands = 0 : i64, tpu.core_type = #tpu.core_type<tc>, window_params = [{transform_indices = @transform_0, window_bounds = array<i64: 1, 32, 96>}, {pipeline_mode = #tpu.pipeline_mode<synchronous>, transform_indices = @transform_1, window_bounds = array<i64: 5, 14, 32>}, {pipeline_mode = #tpu.pipeline_mode<synchronous>, transform_indices = @transform_2, window_bounds = array<i64: 5, 96, 448>}, {pipeline_mode = #tpu.pipeline_mode<synchronous>, transform_indices = @transform_3, window_bounds = array<i64: 1, 448>}, {pipeline_mode = #tpu.pipeline_mode<synchronous>, transform_indices = @transform_4, window_bounds = array<i64: 5, 5, 14>}, {pipeline_mode = #tpu.pipeline_mode<synchronous>, transform_indices = @transform_5, window_bounds = array<i64: 5, 448, 320>}, {pipeline_mode = #tpu.pipeline_mode<synchronous>, transform_indices = @transform_6, window_bounds = array<i64: 1, 320>}, {pipeline_mode = #tpu.pipeline_mode<synchronous>, transform_indices = @transform_7, window_bounds = array<i64: 3, 2, 5>}, {pipeline_mode = #tpu.pipeline_mode<synchronous>, transform_indices = @transform_8, window_bounds = array<i64: 3, 320, 256>}, {pipeline_mode = #tpu.pipeline_mode<synchronous>, transform_indices = @transform_9, window_bounds = array<i64: 1, 256>}, {pipeline_mode = #tpu.pipeline_mode<synchronous>, transform_indices = @transform_10, window_bounds = array<i64: 2, 1, 2>}, {pipeline_mode = #tpu.pipeline_mode<synchronous>, transform_indices = @transform_11, window_bounds = array<i64: 2, 256, 256>}, {pipeline_mode = #tpu.pipeline_mode<synchronous>, transform_indices = @transform_12, window_bounds = array<i64: 1, 256>}, {pipeline_mode = #tpu.pipeline_mode<synchronous>, transform_indices = @transform_13, window_bounds = array<i64: 256, 128>}, {pipeline_mode = #tpu.pipeline_mode<synchronous>, transform_indices = @transform_14, window_bounds = array<i64: 1, 128>}, {pipeline_mode = #tpu.pipeline_mode<synchronous>, transform_indices = @transform_15, window_bounds = array<i64: 128, 128>}, {pipeline_mode = #tpu.pipeline_mode<synchronous>, transform_indices = @transform_16, window_bounds = array<i64: 1, 128>}, {transform_indices = @transform_17, window_bounds = array<i64: 1, 1, 128>}]} {
    %c0 = arith.constant 0 : index
    %c0_0 = arith.constant 0 : index
    %c0_1 = arith.constant 0 : index
    %0 = vector.load %arg1[%c0, %c0_0, %c0_1] : memref<1x32x96xbf16, #tpu.memory_space<vmem>>, vector<1x32x96xbf16>
    %1 = vector.shape_cast %0 : vector<1x32x96xbf16> to vector<32x96xbf16>
    %c0_2 = arith.constant 0 : index
    %c0_3 = arith.constant 0 : index
    %c0_4 = arith.constant 0 : index
    %2 = vector.load %arg2[%c0_2, %c0_3, %c0_4] : memref<5x14x32xbf16, #tpu.memory_space<vmem>>, vector<1x14x32xbf16>
    %3 = vector.shape_cast %2 : vector<1x14x32xbf16> to vector<14x32xbf16>
    %cst = arith.constant dense<0.000000e+00> : vector<14x96xf32>
    %4 = tpu.matmul %3, %1, %cst {dimension_numbers = #tpu.dot_dimension_numbers<[1], [0], [0], [1], [0, 0, 1, 1], [], []>} : vector<14x32xbf16>, vector<32x96xbf16>, vector<14x96xf32> -> vector<14x96xf32>
    %5 = arith.truncf %4 : vector<14x96xf32> to vector<14x96xbf16>
    %c0_5 = arith.constant 0 : index
    %c0_6 = arith.constant 0 : index
    %c0_7 = arith.constant 0 : index
    %6 = vector.load %arg3[%c0_5, %c0_6, %c0_7] : memref<5x96x448xbf16, #tpu.memory_space<vmem>>, vector<1x96x448xbf16>
    %7 = vector.shape_cast %6 : vector<1x96x448xbf16> to vector<96x448xbf16>
    %cst_8 = arith.constant dense<0.000000e+00> : vector<14x448xf32>
    %8 = tpu.matmul %5, %7, %cst_8 {dimension_numbers = #tpu.dot_dimension_numbers<[1], [0], [0], [1], [0, 0, 1, 1], [], []>} : vector<14x96xbf16>, vector<96x448xbf16>, vector<14x448xf32> -> vector<14x448xf32>
    %c1 = arith.constant 1 : index
    %c0_9 = arith.constant 0 : index
    %c0_10 = arith.constant 0 : index
    %9 = vector.load %arg2[%c1, %c0_9, %c0_10] : memref<5x14x32xbf16, #tpu.memory_space<vmem>>, vector<1x14x32xbf16>
    %10 = vector.shape_cast %9 : vector<1x14x32xbf16> to vector<14x32xbf16>
    %cst_11 = arith.constant dense<0.000000e+00> : vector<14x96xf32>
    %11 = tpu.matmul %10, %1, %cst_11 {dimension_numbers = #tpu.dot_dimension_numbers<[1], [0], [0], [1], [0, 0, 1, 1], [], []>} : vector<14x32xbf16>, vector<32x96xbf16>, vector<14x96xf32> -> vector<14x96xf32>
    %12 = arith.truncf %11 : vector<14x96xf32> to vector<14x96xbf16>
    %c1_12 = arith.constant 1 : index
    %c0_13 = arith.constant 0 : index
    %c0_14 = arith.constant 0 : index
    %13 = vector.load %arg3[%c1_12, %c0_13, %c0_14] : memref<5x96x448xbf16, #tpu.memory_space<vmem>>, vector<1x96x448xbf16>
    %14 = vector.shape_cast %13 : vector<1x96x448xbf16> to vector<96x448xbf16>
    %cst_15 = arith.constant dense<0.000000e+00> : vector<14x448xf32>
    %15 = tpu.matmul %12, %14, %cst_15 {dimension_numbers = #tpu.dot_dimension_numbers<[1], [0], [0], [1], [0, 0, 1, 1], [], []>} : vector<14x96xbf16>, vector<96x448xbf16>, vector<14x448xf32> -> vector<14x448xf32>
    %16 = arith.addf %8, %15 : vector<14x448xf32>
    %c2 = arith.constant 2 : index
    %c0_16 = arith.constant 0 : index
    %c0_17 = arith.constant 0 : index
    %17 = vector.load %arg2[%c2, %c0_16, %c0_17] : memref<5x14x32xbf16, #tpu.memory_space<vmem>>, vector<1x14x32xbf16>
    %18 = vector.shape_cast %17 : vector<1x14x32xbf16> to vector<14x32xbf16>
    %cst_18 = arith.constant dense<0.000000e+00> : vector<14x96xf32>
    %19 = tpu.matmul %18, %1, %cst_18 {dimension_numbers = #tpu.dot_dimension_numbers<[1], [0], [0], [1], [0, 0, 1, 1], [], []>} : vector<14x32xbf16>, vector<32x96xbf16>, vector<14x96xf32> -> vector<14x96xf32>
    %20 = arith.truncf %19 : vector<14x96xf32> to vector<14x96xbf16>
    %c2_19 = arith.constant 2 : index
    %c0_20 = arith.constant 0 : index
    %c0_21 = arith.constant 0 : index
    %21 = vector.load %arg3[%c2_19, %c0_20, %c0_21] : memref<5x96x448xbf16, #tpu.memory_space<vmem>>, vector<1x96x448xbf16>
    %22 = vector.shape_cast %21 : vector<1x96x448xbf16> to vector<96x448xbf16>
    %cst_22 = arith.constant dense<0.000000e+00> : vector<14x448xf32>
    %23 = tpu.matmul %20, %22, %cst_22 {dimension_numbers = #tpu.dot_dimension_numbers<[1], [0], [0], [1], [0, 0, 1, 1], [], []>} : vector<14x96xbf16>, vector<96x448xbf16>, vector<14x448xf32> -> vector<14x448xf32>
    %24 = arith.addf %16, %23 : vector<14x448xf32>
    %c3 = arith.constant 3 : index
    %c0_23 = arith.constant 0 : index
    %c0_24 = arith.constant 0 : index
    %25 = vector.load %arg2[%c3, %c0_23, %c0_24] : memref<5x14x32xbf16, #tpu.memory_space<vmem>>, vector<1x14x32xbf16>
    %26 = vector.shape_cast %25 : vector<1x14x32xbf16> to vector<14x32xbf16>
    %cst_25 = arith.constant dense<0.000000e+00> : vector<14x96xf32>
    %27 = tpu.matmul %26, %1, %cst_25 {dimension_numbers = #tpu.dot_dimension_numbers<[1], [0], [0], [1], [0, 0, 1, 1], [], []>} : vector<14x32xbf16>, vector<32x96xbf16>, vector<14x96xf32> -> vector<14x96xf32>
    %28 = arith.truncf %27 : vector<14x96xf32> to vector<14x96xbf16>
    %c3_26 = arith.constant 3 : index
    %c0_27 = arith.constant 0 : index
    %c0_28 = arith.constant 0 : index
    %29 = vector.load %arg3[%c3_26, %c0_27, %c0_28] : memref<5x96x448xbf16, #tpu.memory_space<vmem>>, vector<1x96x448xbf16>
    %30 = vector.shape_cast %29 : vector<1x96x448xbf16> to vector<96x448xbf16>
    %cst_29 = arith.constant dense<0.000000e+00> : vector<14x448xf32>
    %31 = tpu.matmul %28, %30, %cst_29 {dimension_numbers = #tpu.dot_dimension_numbers<[1], [0], [0], [1], [0, 0, 1, 1], [], []>} : vector<14x96xbf16>, vector<96x448xbf16>, vector<14x448xf32> -> vector<14x448xf32>
    %32 = arith.addf %24, %31 : vector<14x448xf32>
    %c4 = arith.constant 4 : index
    %c0_30 = arith.constant 0 : index
    %c0_31 = arith.constant 0 : index
    %33 = vector.load %arg2[%c4, %c0_30, %c0_31] : memref<5x14x32xbf16, #tpu.memory_space<vmem>>, vector<1x14x32xbf16>
    %34 = vector.shape_cast %33 : vector<1x14x32xbf16> to vector<14x32xbf16>
    %cst_32 = arith.constant dense<0.000000e+00> : vector<14x96xf32>
    %35 = tpu.matmul %34, %1, %cst_32 {dimension_numbers = #tpu.dot_dimension_numbers<[1], [0], [0], [1], [0, 0, 1, 1], [], []>} : vector<14x32xbf16>, vector<32x96xbf16>, vector<14x96xf32> -> vector<14x96xf32>
    %36 = arith.truncf %35 : vector<14x96xf32> to vector<14x96xbf16>
    %c4_33 = arith.constant 4 : index
    %c0_34 = arith.constant 0 : index
    %c0_35 = arith.constant 0 : index
    %37 = vector.load %arg3[%c4_33, %c0_34, %c0_35] : memref<5x96x448xbf16, #tpu.memory_space<vmem>>, vector<1x96x448xbf16>
    %38 = vector.shape_cast %37 : vector<1x96x448xbf16> to vector<96x448xbf16>
    %cst_36 = arith.constant dense<0.000000e+00> : vector<14x448xf32>
    %39 = tpu.matmul %36, %38, %cst_36 {dimension_numbers = #tpu.dot_dimension_numbers<[1], [0], [0], [1], [0, 0, 1, 1], [], []>} : vector<14x96xbf16>, vector<96x448xbf16>, vector<14x448xf32> -> vector<14x448xf32>
    %40 = arith.addf %32, %39 : vector<14x448xf32>
    %c0_37 = arith.constant 0 : index
    %c0_38 = arith.constant 0 : index
    %41 = vector.load %arg4[%c0_37, %c0_38] : memref<1x448xf32, #tpu.memory_space<vmem>>, vector<1x448xf32>
    %42 = vector.broadcast %41 : vector<1x448xf32> to vector<14x448xf32>
    %43 = arith.addf %40, %42 : vector<14x448xf32>
    %cst_39 = arith.constant 0.000000e+00 : f32
    %44 = vector.broadcast %cst_39 : f32 to vector<14x448xf32>
    %45 = arith.maximumf %43, %44 : vector<14x448xf32>
    %46 = arith.truncf %45 : vector<14x448xf32> to vector<14x448xbf16>
    %c0_40 = arith.constant 0 : index
    %c0_41 = arith.constant 0 : index
    %c0_42 = arith.constant 0 : index
    %47 = vector.load %arg5[%c0_40, %c0_41, %c0_42] : memref<5x5x14xbf16, #tpu.memory_space<vmem>>, vector<1x5x14xbf16>
    %48 = vector.shape_cast %47 : vector<1x5x14xbf16> to vector<5x14xbf16>
    %cst_43 = arith.constant dense<0.000000e+00> : vector<5x448xf32>
    %49 = tpu.matmul %48, %46, %cst_43 {dimension_numbers = #tpu.dot_dimension_numbers<[1], [0], [0], [1], [0, 0, 1, 1], [], []>} : vector<5x14xbf16>, vector<14x448xbf16>, vector<5x448xf32> -> vector<5x448xf32>
    %50 = arith.truncf %49 : vector<5x448xf32> to vector<5x448xbf16>
    %c0_44 = arith.constant 0 : index
    %c0_45 = arith.constant 0 : index
    %c0_46 = arith.constant 0 : index
    %51 = vector.load %arg6[%c0_44, %c0_45, %c0_46] : memref<5x448x320xbf16, #tpu.memory_space<vmem>>, vector<1x448x320xbf16>
    %52 = vector.shape_cast %51 : vector<1x448x320xbf16> to vector<448x320xbf16>
    %cst_47 = arith.constant dense<0.000000e+00> : vector<5x320xf32>
    %53 = tpu.matmul %50, %52, %cst_47 {dimension_numbers = #tpu.dot_dimension_numbers<[1], [0], [0], [1], [0, 0, 1, 1], [], []>} : vector<5x448xbf16>, vector<448x320xbf16>, vector<5x320xf32> -> vector<5x320xf32>
    %c1_48 = arith.constant 1 : index
    %c0_49 = arith.constant 0 : index
    %c0_50 = arith.constant 0 : index
    %54 = vector.load %arg5[%c1_48, %c0_49, %c0_50] : memref<5x5x14xbf16, #tpu.memory_space<vmem>>, vector<1x5x14xbf16>
    %55 = vector.shape_cast %54 : vector<1x5x14xbf16> to vector<5x14xbf16>
    %cst_51 = arith.constant dense<0.000000e+00> : vector<5x448xf32>
    %56 = tpu.matmul %55, %46, %cst_51 {dimension_numbers = #tpu.dot_dimension_numbers<[1], [0], [0], [1], [0, 0, 1, 1], [], []>} : vector<5x14xbf16>, vector<14x448xbf16>, vector<5x448xf32> -> vector<5x448xf32>
    %57 = arith.truncf %56 : vector<5x448xf32> to vector<5x448xbf16>
    %c1_52 = arith.constant 1 : index
    %c0_53 = arith.constant 0 : index
    %c0_54 = arith.constant 0 : index
    %58 = vector.load %arg6[%c1_52, %c0_53, %c0_54] : memref<5x448x320xbf16, #tpu.memory_space<vmem>>, vector<1x448x320xbf16>
    %59 = vector.shape_cast %58 : vector<1x448x320xbf16> to vector<448x320xbf16>
    %cst_55 = arith.constant dense<0.000000e+00> : vector<5x320xf32>
    %60 = tpu.matmul %57, %59, %cst_55 {dimension_numbers = #tpu.dot_dimension_numbers<[1], [0], [0], [1], [0, 0, 1, 1], [], []>} : vector<5x448xbf16>, vector<448x320xbf16>, vector<5x320xf32> -> vector<5x320xf32>
    %61 = arith.addf %53, %60 : vector<5x320xf32>
    %c2_56 = arith.constant 2 : index
    %c0_57 = arith.constant 0 : index
    %c0_58 = arith.constant 0 : index
    %62 = vector.load %arg5[%c2_56, %c0_57, %c0_58] : memref<5x5x14xbf16, #tpu.memory_space<vmem>>, vector<1x5x14xbf16>
    %63 = vector.shape_cast %62 : vector<1x5x14xbf16> to vector<5x14xbf16>
    %cst_59 = arith.constant dense<0.000000e+00> : vector<5x448xf32>
    %64 = tpu.matmul %63, %46, %cst_59 {dimension_numbers = #tpu.dot_dimension_numbers<[1], [0], [0], [1], [0, 0, 1, 1], [], []>} : vector<5x14xbf16>, vector<14x448xbf16>, vector<5x448xf32> -> vector<5x448xf32>
    %65 = arith.truncf %64 : vector<5x448xf32> to vector<5x448xbf16>
    %c2_60 = arith.constant 2 : index
    %c0_61 = arith.constant 0 : index
    %c0_62 = arith.constant 0 : index
    %66 = vector.load %arg6[%c2_60, %c0_61, %c0_62] : memref<5x448x320xbf16, #tpu.memory_space<vmem>>, vector<1x448x320xbf16>
    %67 = vector.shape_cast %66 : vector<1x448x320xbf16> to vector<448x320xbf16>
    %cst_63 = arith.constant dense<0.000000e+00> : vector<5x320xf32>
    %68 = tpu.matmul %65, %67, %cst_63 {dimension_numbers = #tpu.dot_dimension_numbers<[1], [0], [0], [1], [0, 0, 1, 1], [], []>} : vector<5x448xbf16>, vector<448x320xbf16>, vector<5x320xf32> -> vector<5x320xf32>
    %69 = arith.addf %61, %68 : vector<5x320xf32>
    %c3_64 = arith.constant 3 : index
    %c0_65 = arith.constant 0 : index
    %c0_66 = arith.constant 0 : index
    %70 = vector.load %arg5[%c3_64, %c0_65, %c0_66] : memref<5x5x14xbf16, #tpu.memory_space<vmem>>, vector<1x5x14xbf16>
    %71 = vector.shape_cast %70 : vector<1x5x14xbf16> to vector<5x14xbf16>
    %cst_67 = arith.constant dense<0.000000e+00> : vector<5x448xf32>
    %72 = tpu.matmul %71, %46, %cst_67 {dimension_numbers = #tpu.dot_dimension_numbers<[1], [0], [0], [1], [0, 0, 1, 1], [], []>} : vector<5x14xbf16>, vector<14x448xbf16>, vector<5x448xf32> -> vector<5x448xf32>
    %73 = arith.truncf %72 : vector<5x448xf32> to vector<5x448xbf16>
    %c3_68 = arith.constant 3 : index
    %c0_69 = arith.constant 0 : index
    %c0_70 = arith.constant 0 : index
    %74 = vector.load %arg6[%c3_68, %c0_69, %c0_70] : memref<5x448x320xbf16, #tpu.memory_space<vmem>>, vector<1x448x320xbf16>
    %75 = vector.shape_cast %74 : vector<1x448x320xbf16> to vector<448x320xbf16>
    %cst_71 = arith.constant dense<0.000000e+00> : vector<5x320xf32>
    %76 = tpu.matmul %73, %75, %cst_71 {dimension_numbers = #tpu.dot_dimension_numbers<[1], [0], [0], [1], [0, 0, 1, 1], [], []>} : vector<5x448xbf16>, vector<448x320xbf16>, vector<5x320xf32> -> vector<5x320xf32>
    %77 = arith.addf %69, %76 : vector<5x320xf32>
    %c4_72 = arith.constant 4 : index
    %c0_73 = arith.constant 0 : index
    %c0_74 = arith.constant 0 : index
    %78 = vector.load %arg5[%c4_72, %c0_73, %c0_74] : memref<5x5x14xbf16, #tpu.memory_space<vmem>>, vector<1x5x14xbf16>
    %79 = vector.shape_cast %78 : vector<1x5x14xbf16> to vector<5x14xbf16>
    %cst_75 = arith.constant dense<0.000000e+00> : vector<5x448xf32>
    %80 = tpu.matmul %79, %46, %cst_75 {dimension_numbers = #tpu.dot_dimension_numbers<[1], [0], [0], [1], [0, 0, 1, 1], [], []>} : vector<5x14xbf16>, vector<14x448xbf16>, vector<5x448xf32> -> vector<5x448xf32>
    %81 = arith.truncf %80 : vector<5x448xf32> to vector<5x448xbf16>
    %c4_76 = arith.constant 4 : index
    %c0_77 = arith.constant 0 : index
    %c0_78 = arith.constant 0 : index
    %82 = vector.load %arg6[%c4_76, %c0_77, %c0_78] : memref<5x448x320xbf16, #tpu.memory_space<vmem>>, vector<1x448x320xbf16>
    %83 = vector.shape_cast %82 : vector<1x448x320xbf16> to vector<448x320xbf16>
    %cst_79 = arith.constant dense<0.000000e+00> : vector<5x320xf32>
    %84 = tpu.matmul %81, %83, %cst_79 {dimension_numbers = #tpu.dot_dimension_numbers<[1], [0], [0], [1], [0, 0, 1, 1], [], []>} : vector<5x448xbf16>, vector<448x320xbf16>, vector<5x320xf32> -> vector<5x320xf32>
    %85 = arith.addf %77, %84 : vector<5x320xf32>
    %c0_80 = arith.constant 0 : index
    %c0_81 = arith.constant 0 : index
    %86 = vector.load %arg7[%c0_80, %c0_81] : memref<1x320xf32, #tpu.memory_space<vmem>>, vector<1x320xf32>
    %87 = vector.broadcast %86 : vector<1x320xf32> to vector<5x320xf32>
    %88 = arith.addf %85, %87 : vector<5x320xf32>
    %cst_82 = arith.constant 0.000000e+00 : f32
    %89 = vector.broadcast %cst_82 : f32 to vector<5x320xf32>
    %90 = arith.maximumf %88, %89 : vector<5x320xf32>
    %91 = arith.truncf %90 : vector<5x320xf32> to vector<5x320xbf16>
    %c0_83 = arith.constant 0 : index
    %c0_84 = arith.constant 0 : index
    %c0_85 = arith.constant 0 : index
    %92 = vector.load %arg8[%c0_83, %c0_84, %c0_85] : memref<3x2x5xbf16, #tpu.memory_space<vmem>>, vector<1x2x5xbf16>
    %93 = vector.shape_cast %92 : vector<1x2x5xbf16> to vector<2x5xbf16>
    %cst_86 = arith.constant dense<0.000000e+00> : vector<2x320xf32>
    %94 = tpu.matmul %93, %91, %cst_86 {dimension_numbers = #tpu.dot_dimension_numbers<[1], [0], [0], [1], [0, 0, 1, 1], [], []>} : vector<2x5xbf16>, vector<5x320xbf16>, vector<2x320xf32> -> vector<2x320xf32>
    %95 = arith.truncf %94 : vector<2x320xf32> to vector<2x320xbf16>
    %c0_87 = arith.constant 0 : index
    %c0_88 = arith.constant 0 : index
    %c0_89 = arith.constant 0 : index
    %96 = vector.load %arg9[%c0_87, %c0_88, %c0_89] : memref<3x320x256xbf16, #tpu.memory_space<vmem>>, vector<1x320x256xbf16>
    %97 = vector.shape_cast %96 : vector<1x320x256xbf16> to vector<320x256xbf16>
    %cst_90 = arith.constant dense<0.000000e+00> : vector<2x256xf32>
    %98 = tpu.matmul %95, %97, %cst_90 {dimension_numbers = #tpu.dot_dimension_numbers<[1], [0], [0], [1], [0, 0, 1, 1], [], []>} : vector<2x320xbf16>, vector<320x256xbf16>, vector<2x256xf32> -> vector<2x256xf32>
    %c1_91 = arith.constant 1 : index
    %c0_92 = arith.constant 0 : index
    %c0_93 = arith.constant 0 : index
    %99 = vector.load %arg8[%c1_91, %c0_92, %c0_93] : memref<3x2x5xbf16, #tpu.memory_space<vmem>>, vector<1x2x5xbf16>
    %100 = vector.shape_cast %99 : vector<1x2x5xbf16> to vector<2x5xbf16>
    %cst_94 = arith.constant dense<0.000000e+00> : vector<2x320xf32>
    %101 = tpu.matmul %100, %91, %cst_94 {dimension_numbers = #tpu.dot_dimension_numbers<[1], [0], [0], [1], [0, 0, 1, 1], [], []>} : vector<2x5xbf16>, vector<5x320xbf16>, vector<2x320xf32> -> vector<2x320xf32>
    %102 = arith.truncf %101 : vector<2x320xf32> to vector<2x320xbf16>
    %c1_95 = arith.constant 1 : index
    %c0_96 = arith.constant 0 : index
    %c0_97 = arith.constant 0 : index
    %103 = vector.load %arg9[%c1_95, %c0_96, %c0_97] : memref<3x320x256xbf16, #tpu.memory_space<vmem>>, vector<1x320x256xbf16>
    %104 = vector.shape_cast %103 : vector<1x320x256xbf16> to vector<320x256xbf16>
    %cst_98 = arith.constant dense<0.000000e+00> : vector<2x256xf32>
    %105 = tpu.matmul %102, %104, %cst_98 {dimension_numbers = #tpu.dot_dimension_numbers<[1], [0], [0], [1], [0, 0, 1, 1], [], []>} : vector<2x320xbf16>, vector<320x256xbf16>, vector<2x256xf32> -> vector<2x256xf32>
    %106 = arith.addf %98, %105 : vector<2x256xf32>
    %c2_99 = arith.constant 2 : index
    %c0_100 = arith.constant 0 : index
    %c0_101 = arith.constant 0 : index
    %107 = vector.load %arg8[%c2_99, %c0_100, %c0_101] : memref<3x2x5xbf16, #tpu.memory_space<vmem>>, vector<1x2x5xbf16>
    %108 = vector.shape_cast %107 : vector<1x2x5xbf16> to vector<2x5xbf16>
    %cst_102 = arith.constant dense<0.000000e+00> : vector<2x320xf32>
    %109 = tpu.matmul %108, %91, %cst_102 {dimension_numbers = #tpu.dot_dimension_numbers<[1], [0], [0], [1], [0, 0, 1, 1], [], []>} : vector<2x5xbf16>, vector<5x320xbf16>, vector<2x320xf32> -> vector<2x320xf32>
    %110 = arith.truncf %109 : vector<2x320xf32> to vector<2x320xbf16>
    %c2_103 = arith.constant 2 : index
    %c0_104 = arith.constant 0 : index
    %c0_105 = arith.constant 0 : index
    %111 = vector.load %arg9[%c2_103, %c0_104, %c0_105] : memref<3x320x256xbf16, #tpu.memory_space<vmem>>, vector<1x320x256xbf16>
    %112 = vector.shape_cast %111 : vector<1x320x256xbf16> to vector<320x256xbf16>
    %cst_106 = arith.constant dense<0.000000e+00> : vector<2x256xf32>
    %113 = tpu.matmul %110, %112, %cst_106 {dimension_numbers = #tpu.dot_dimension_numbers<[1], [0], [0], [1], [0, 0, 1, 1], [], []>} : vector<2x320xbf16>, vector<320x256xbf16>, vector<2x256xf32> -> vector<2x256xf32>
    %114 = arith.addf %106, %113 : vector<2x256xf32>
    %c0_107 = arith.constant 0 : index
    %c0_108 = arith.constant 0 : index
    %115 = vector.load %arg10[%c0_107, %c0_108] : memref<1x256xf32, #tpu.memory_space<vmem>>, vector<1x256xf32>
    %116 = vector.broadcast %115 : vector<1x256xf32> to vector<2x256xf32>
    %117 = arith.addf %114, %116 : vector<2x256xf32>
    %cst_109 = arith.constant 0.000000e+00 : f32
    %118 = vector.broadcast %cst_109 : f32 to vector<2x256xf32>
    %119 = arith.maximumf %117, %118 : vector<2x256xf32>
    %120 = arith.truncf %119 : vector<2x256xf32> to vector<2x256xbf16>
    %c0_110 = arith.constant 0 : index
    %c0_111 = arith.constant 0 : index
    %c0_112 = arith.constant 0 : index
    %121 = vector.load %arg11[%c0_110, %c0_111, %c0_112] : memref<2x1x2xbf16, #tpu.memory_space<vmem>>, vector<1x1x2xbf16>
    %122 = vector.shape_cast %121 : vector<1x1x2xbf16> to vector<1x2xbf16>
    %cst_113 = arith.constant dense<0.000000e+00> : vector<1x256xf32>
    %123 = tpu.matmul %122, %120, %cst_113 {dimension_numbers = #tpu.dot_dimension_numbers<[1], [0], [0], [1], [0, 0, 1, 1], [], []>} : vector<1x2xbf16>, vector<2x256xbf16>, vector<1x256xf32> -> vector<1x256xf32>
    %124 = arith.truncf %123 : vector<1x256xf32> to vector<1x256xbf16>
    %c0_114 = arith.constant 0 : index
    %c0_115 = arith.constant 0 : index
    %c0_116 = arith.constant 0 : index
    %125 = vector.load %arg12[%c0_114, %c0_115, %c0_116] : memref<2x256x256xbf16, #tpu.memory_space<vmem>>, vector<1x256x256xbf16>
    %126 = vector.shape_cast %125 : vector<1x256x256xbf16> to vector<256x256xbf16>
    %cst_117 = arith.constant dense<0.000000e+00> : vector<1x256xf32>
    %127 = tpu.matmul %124, %126, %cst_117 {dimension_numbers = #tpu.dot_dimension_numbers<[1], [0], [0], [1], [0, 0, 1, 1], [], []>} : vector<1x256xbf16>, vector<256x256xbf16>, vector<1x256xf32> -> vector<1x256xf32>
    %c1_118 = arith.constant 1 : index
    %c0_119 = arith.constant 0 : index
    %c0_120 = arith.constant 0 : index
    %128 = vector.load %arg11[%c1_118, %c0_119, %c0_120] : memref<2x1x2xbf16, #tpu.memory_space<vmem>>, vector<1x1x2xbf16>
    %129 = vector.shape_cast %128 : vector<1x1x2xbf16> to vector<1x2xbf16>
    %cst_121 = arith.constant dense<0.000000e+00> : vector<1x256xf32>
    %130 = tpu.matmul %129, %120, %cst_121 {dimension_numbers = #tpu.dot_dimension_numbers<[1], [0], [0], [1], [0, 0, 1, 1], [], []>} : vector<1x2xbf16>, vector<2x256xbf16>, vector<1x256xf32> -> vector<1x256xf32>
    %131 = arith.truncf %130 : vector<1x256xf32> to vector<1x256xbf16>
    %c1_122 = arith.constant 1 : index
    %c0_123 = arith.constant 0 : index
    %c0_124 = arith.constant 0 : index
    %132 = vector.load %arg12[%c1_122, %c0_123, %c0_124] : memref<2x256x256xbf16, #tpu.memory_space<vmem>>, vector<1x256x256xbf16>
    %133 = vector.shape_cast %132 : vector<1x256x256xbf16> to vector<256x256xbf16>
    %cst_125 = arith.constant dense<0.000000e+00> : vector<1x256xf32>
    %134 = tpu.matmul %131, %133, %cst_125 {dimension_numbers = #tpu.dot_dimension_numbers<[1], [0], [0], [1], [0, 0, 1, 1], [], []>} : vector<1x256xbf16>, vector<256x256xbf16>, vector<1x256xf32> -> vector<1x256xf32>
    %135 = arith.addf %127, %134 : vector<1x256xf32>
    %c0_126 = arith.constant 0 : index
    %c0_127 = arith.constant 0 : index
    %136 = vector.load %arg13[%c0_126, %c0_127] : memref<1x256xf32, #tpu.memory_space<vmem>>, vector<1x256xf32>
    %137 = arith.addf %135, %136 : vector<1x256xf32>
    %cst_128 = arith.constant 0.000000e+00 : f32
    %138 = vector.broadcast %cst_128 : f32 to vector<1x256xf32>
    %139 = arith.maximumf %137, %138 : vector<1x256xf32>
    %140 = arith.truncf %139 : vector<1x256xf32> to vector<1x256xbf16>
    %c0_129 = arith.constant 0 : index
    %c0_130 = arith.constant 0 : index
    %141 = vector.load %arg14[%c0_129, %c0_130] : memref<256x128xbf16, #tpu.memory_space<vmem>>, vector<256x128xbf16>
    %cst_131 = arith.constant dense<0.000000e+00> : vector<1x128xf32>
    %142 = tpu.matmul %140, %141, %cst_131 {dimension_numbers = #tpu.dot_dimension_numbers<[1], [0], [0], [1], [0, 0, 1, 1], [], []>} : vector<1x256xbf16>, vector<256x128xbf16>, vector<1x128xf32> -> vector<1x128xf32>
    %c0_132 = arith.constant 0 : index
    %c0_133 = arith.constant 0 : index
    %143 = vector.load %arg15[%c0_132, %c0_133] : memref<1x128xf32, #tpu.memory_space<vmem>>, vector<1x128xf32>
    %144 = arith.addf %142, %143 : vector<1x128xf32>
    %cst_134 = arith.constant 0.000000e+00 : f32
    %145 = vector.broadcast %cst_134 : f32 to vector<1x128xf32>
    %146 = arith.maximumf %144, %145 : vector<1x128xf32>
    %147 = arith.truncf %146 : vector<1x128xf32> to vector<1x128xbf16>
    %c0_135 = arith.constant 0 : index
    %c0_136 = arith.constant 0 : index
    %148 = vector.load %arg16[%c0_135, %c0_136] : memref<128x128xbf16, #tpu.memory_space<vmem>>, vector<128x128xbf16>
    %cst_137 = arith.constant dense<0.000000e+00> : vector<1x128xf32>
    %149 = tpu.matmul %147, %148, %cst_137 {dimension_numbers = #tpu.dot_dimension_numbers<[1], [0], [0], [1], [0, 0, 1, 1], [], []>} : vector<1x128xbf16>, vector<128x128xbf16>, vector<1x128xf32> -> vector<1x128xf32>
    %c0_138 = arith.constant 0 : index
    %c0_139 = arith.constant 0 : index
    %150 = vector.load %arg17[%c0_138, %c0_139] : memref<1x128xf32, #tpu.memory_space<vmem>>, vector<1x128xf32>
    %151 = arith.addf %149, %150 : vector<1x128xf32>
    %c0_140 = arith.constant 0 : index
    %c0_141 = arith.constant 0 : index
    %c0_142 = arith.constant 0 : index
    %152 = vector.load %arg18[%c0_140, %c0_141, %c0_142] : memref<1x1x128xf32, #tpu.memory_space<vmem>>, vector<1x1x128xf32>
    %153 = vector.shape_cast %152 : vector<1x1x128xf32> to vector<1x128xf32>
    %154 = vector.shape_cast %151 : vector<1x128xf32> to vector<1x1x128xf32>
    tpu.vector_store %arg18[%c0_140, %c0_141, %c0_142], %154 {strides = array<i32>} : memref<1x1x128xf32, #tpu.memory_space<vmem>>, vector<1x1x128xf32>,
    return
  }
  func.func @transform_0(%arg0: i32) -> (i32, i32, i32) {
    %c0_i32 = arith.constant 0 : i32
    %c0_i32_0 = arith.constant 0 : i32
    %c0_i32_1 = arith.constant 0 : i32
    return %arg0, %c0_i32, %c0_i32_0 : i32, i32, i32
  }
  func.func @transform_1(%arg0: i32) -> (i32, i32, i32) {
    %c0_i32 = arith.constant 0 : i32
    %c0_i32_0 = arith.constant 0 : i32
    %c0_i32_1 = arith.constant 0 : i32
    %c0_i32_2 = arith.constant 0 : i32
    return %c0_i32, %c0_i32_0, %c0_i32_1 : i32, i32, i32
  }
  func.func @transform_2(%arg0: i32) -> (i32, i32, i32) {
    %c0_i32 = arith.constant 0 : i32
    %c0_i32_0 = arith.constant 0 : i32
    %c0_i32_1 = arith.constant 0 : i32
    %c0_i32_2 = arith.constant 0 : i32
    return %c0_i32, %c0_i32_0, %c0_i32_1 : i32, i32, i32
  }
  func.func @transform_3(%arg0: i32) -> (i32, i32) {
    %c0_i32 = arith.constant 0 : i32
    %c0_i32_0 = arith.constant 0 : i32
    %c0_i32_1 = arith.constant 0 : i32
    return %c0_i32, %c0_i32_0 : i32, i32
  }
  func.func @transform_4(%arg0: i32) -> (i32, i32, i32) {
    %c0_i32 = arith.constant 0 : i32
    %c0_i32_0 = arith.constant 0 : i32
    %c0_i32_1 = arith.constant 0 : i32
    %c0_i32_2 = arith.constant 0 : i32
    return %c0_i32, %c0_i32_0, %c0_i32_1 : i32, i32, i32
  }
  func.func @transform_5(%arg0: i32) -> (i32, i32, i32) {
    %c0_i32 = arith.constant 0 : i32
    %c0_i32_0 = arith.constant 0 : i32
    %c0_i32_1 = arith.constant 0 : i32
    %c0_i32_2 = arith.constant 0 : i32
    return %c0_i32, %c0_i32_0, %c0_i32_1 : i32, i32, i32
  }
  func.func @transform_6(%arg0: i32) -> (i32, i32) {
    %c0_i32 = arith.constant 0 : i32
    %c0_i32_0 = arith.constant 0 : i32
    %c0_i32_1 = arith.constant 0 : i32
    return %c0_i32, %c0_i32_0 : i32, i32
  }
  func.func @transform_7(%arg0: i32) -> (i32, i32, i32) {
    %c0_i32 = arith.constant 0 : i32
    %c0_i32_0 = arith.constant 0 : i32
    %c0_i32_1 = arith.constant 0 : i32
    %c0_i32_2 = arith.constant 0 : i32
    return %c0_i32, %c0_i32_0, %c0_i32_1 : i32, i32, i32
  }
  func.func @transform_8(%arg0: i32) -> (i32, i32, i32) {
    %c0_i32 = arith.constant 0 : i32
    %c0_i32_0 = arith.constant 0 : i32
    %c0_i32_1 = arith.constant 0 : i32
    %c0_i32_2 = arith.constant 0 : i32
    return %c0_i32, %c0_i32_0, %c0_i32_1 : i32, i32, i32
  }
  func.func @transform_9(%arg0: i32) -> (i32, i32) {
    %c0_i32 = arith.constant 0 : i32
    %c0_i32_0 = arith.constant 0 : i32
    %c0_i32_1 = arith.constant 0 : i32
    return %c0_i32, %c0_i32_0 : i32, i32
  }
  func.func @transform_10(%arg0: i32) -> (i32, i32, i32) {
    %c0_i32 = arith.constant 0 : i32
    %c0_i32_0 = arith.constant 0 : i32
    %c0_i32_1 = arith.constant 0 : i32
    %c0_i32_2 = arith.constant 0 : i32
    return %c0_i32, %c0_i32_0, %c0_i32_1 : i32, i32, i32
  }
  func.func @transform_11(%arg0: i32) -> (i32, i32, i32) {
    %c0_i32 = arith.constant 0 : i32
    %c0_i32_0 = arith.constant 0 : i32
    %c0_i32_1 = arith.constant 0 : i32
    %c0_i32_2 = arith.constant 0 : i32
    return %c0_i32, %c0_i32_0, %c0_i32_1 : i32, i32, i32
  }
  func.func @transform_12(%arg0: i32) -> (i32, i32) {
    %c0_i32 = arith.constant 0 : i32
    %c0_i32_0 = arith.constant 0 : i32
    %c0_i32_1 = arith.constant 0 : i32
    return %c0_i32, %c0_i32_0 : i32, i32
  }
  func.func @transform_13(%arg0: i32) -> (i32, i32) {
    %c0_i32 = arith.constant 0 : i32
    %c0_i32_0 = arith.constant 0 : i32
    %c0_i32_1 = arith.constant 0 : i32
    return %c0_i32, %c0_i32_0 : i32, i32
  }
  func.func @transform_14(%arg0: i32) -> (i32, i32) {
    %c0_i32 = arith.constant 0 : i32
    %c0_i32_0 = arith.constant 0 : i32
    %c0_i32_1 = arith.constant 0 : i32
    return %c0_i32, %c0_i32_0 : i32, i32
  }
  func.func @transform_15(%arg0: i32) -> (i32, i32) {
    %c0_i32 = arith.constant 0 : i32
    %c0_i32_0 = arith.constant 0 : i32
    %c0_i32_1 = arith.constant 0 : i32
    return %c0_i32, %c0_i32_0 : i32, i32
  }
  func.func @transform_16(%arg0: i32) -> (i32, i32) {
    %c0_i32 = arith.constant 0 : i32
    %c0_i32_0 = arith.constant 0 : i32
    %c0_i32_1 = arith.constant 0 : i32
    return %c0_i32, %c0_i32_0 : i32, i32
  }
  func.func @transform_17(%arg0: i32) -> (i32, i32, i32) {
    %c0_i32 = arith.constant 0 : i32
    %c0_i32_0 = arith.constant 0 : i32
    %c0_i32_1 = arith.constant 0 : i32
    return %arg0, %c0_i32, %c0_i32_0 : i32, i32, i32
  }
}

</mosaic_0001>

<llo_original>
// kernel: actor_critic_forward.1
$region0: #{actor_critic_forward.1}
  #allocation0 [shape = 'u32[]', space=smem, size = 0x4, offset = 0x4, fixed_abs, tag = 'smem constant byte address 0x4 - core index']
  #allocation1 [shape = 'u32[144,128]{1,0:T(1,128)}', space=vmem, size = 0x12000, scoped, tag = 'internal scratch']
  %s0 = inlined_call_operand.vmem [shape: bf16[2,32,96], index: 0, kind: input, shape index: {}]
  %s1 = inlined_call_operand.vmem [shape: bf16[5,14,32], index: 1, kind: input, shape index: {}]
  %s2 = inlined_call_operand.vmem [shape: bf16[5,96,448], index: 2, kind: input, shape index: {}]
  %s3 = inlined_call_operand.vmem [shape: f32[1,448], index: 3, kind: input, shape index: {}]
  %s4 = inlined_call_operand.vmem [shape: bf16[5,5,14], index: 4, kind: input, shape index: {}]
  %s5 = inlined_call_operand.vmem [shape: bf16[5,448,320], index: 5, kind: input, shape index: {}]
  %s6 = inlined_call_operand.vmem [shape: f32[1,320], index: 6, kind: input, shape index: {}]
  %s7 = inlined_call_operand.vmem [shape: bf16[3,2,5], index: 7, kind: input, shape index: {}]
  %s8 = inlined_call_operand.vmem [shape: bf16[3,320,256], index: 8, kind: input, shape index: {}]
  %s9 = inlined_call_operand.vmem [shape: f32[1,256], index: 9, kind: input, shape index: {}]
  %s10 = inlined_call_operand.vmem [shape: bf16[2,1,2], index: 10, kind: input, shape index: {}]
  %s11 = inlined_call_operand.vmem [shape: bf16[2,256,256], index: 11, kind: input, shape index: {}]
  %s12 = inlined_call_operand.vmem [shape: f32[1,256], index: 12, kind: input, shape index: {}]
  %s13 = inlined_call_operand.vmem [shape: bf16[256,128], index: 13, kind: input, shape index: {}]
  %s14 = inlined_call_operand.vmem [shape: f32[1,128], index: 14, kind: input, shape index: {}]
  %s15 = inlined_call_operand.vmem [shape: bf16[128,128], index: 15, kind: input, shape index: {}]
  %s16 = inlined_call_operand.vmem [shape: f32[1,128], index: 16, kind: input, shape index: {}]
  %s17 = inlined_call_operand.vmem [shape: f32[2,1,128], index: 17, kind: output, shape index: {}]
  %s18 = sld [smem:[#allocation0]]
  $region101: #{actor_critic_forward.1} parent=0
    _
  %s20 = ssub.s32 1, %s18
  %s21 = scalar_select 0, %s20, %s18
  loop: start=0, step=1, limit=4
  $region2: #{actor_critic_forward.1} parent=0 // loop_pre_header
    _
  $region3: #{actor_critic_forward.1} parent=0 // loop_header
    %s23 = sphi 0, %s27
    %p24 = scmp.ge.s32.totalorder %s23, 4
    %s33 = sphi 0, %s35
    %s36 = sphi 0, %s33
    %s37 = sphi 0, %s36
    %s53 = sphi 0, %s37
    %s57 = sphi 0, %s57
    %s59 = sphi 0, %s57
    %s60 = sphi 0, %s59
    %s74 = sphi 0, %s60
    %s78 = sphi 0, %s78
    %s80 = sphi 0, %s78
    %s81 = sphi 0, %s80
    %s95 = sphi 0, %s81
    %s99 = sphi 0, %s99
    %s101 = sphi 0, %s99
    %s102 = sphi 0, %s101
    %s116 = sphi 0, %s102
    %s120 = sphi 0, %s120
    %s122 = sphi 0, %s120
    %s123 = sphi 0, %s122
    %s137 = sphi 0, %s123
    %s141 = sphi 0, %s141
    %s143 = sphi 0, %s141
    %s144 = sphi 0, %s143
    %s158 = sphi 0, %s144
    %s162 = sphi 0, %s162
    %s164 = sphi 0, %s162
    %s165 = sphi 0, %s164
    %s179 = sphi 0, %s165
    %s183 = sphi 0, %s183
    %s185 = sphi 0, %s183
    %s186 = sphi 0, %s185
    %s200 = sphi 0, %s186
    %s204 = sphi 0, %s204
    %s206 = sphi 0, %s204
    %s207 = sphi 0, %s206
    %s221 = sphi 0, %s207
    %s225 = sphi 0, %s225
    %s227 = sphi 0, %s225
    %s228 = sphi 0, %s227
    %s242 = sphi 0, %s228
    %s246 = sphi 0, %s246
    %s248 = sphi 0, %s246
    %s249 = sphi 0, %s248
    %s263 = sphi 0, %s249
    %s267 = sphi 0, %s267
    %s269 = sphi 0, %s267
    %s270 = sphi 0, %s269
    %s284 = sphi 0, %s270
    %s288 = sphi 0, %s288
    %s290 = sphi 0, %s288
    %s291 = sphi 0, %s290
    %s305 = sphi 0, %s291
    %s309 = sphi 0, %s309
    %s311 = sphi 0, %s309
    %s312 = sphi 0, %s311
    %s326 = sphi 0, %s312
    %s330 = sphi 0, %s330
    %s332 = sphi 0, %s330
    %s333 = sphi 0, %s332
    %s347 = sphi 0, %s333
    %s351 = sphi 0, %s351
    %s353 = sphi 0, %s351
    %s354 = sphi 0, %s353
    %s368 = sphi 0, %s354
    %s372 = sphi 0, %s372
    %s374 = sphi 0, %s372
    %s375 = sphi 0, %s374
    %s389 = sphi 0, %s375
    %s395 = sphi 0, %s397
    %s398 = sphi 0, %s395
    %s399 = sphi 0, %s398
    %s415 = sphi 0, %s399
  $region4: #{actor_critic_forward.1} parent=0 // loop_header_branch
    %26 = sbr.rel (%p24) target = $region8
  $region5: #{actor_critic_forward.1} parent=0 // loop_body
    %s28 = ssub.s32 %s23, 1
    %s29 = ssub.s32 %s23, 2
    %s30 = sadd.s32 %s23, 1
    %s31 = ssub.s32 %s23, %s30
    %p32 = scmp.eq.s32.totalorder %s31, 0
    %s34 = sadd.s32 %s33, 1
    %s35 = scalar_select %p32, %s33, %s34
    %p38 = pneg %p32
    %p39 = scmp.eq.s32.totalorder %s23, 1
    %p40 = por %p38, %p39
    %p41 = scmp.ne.s32.totalorder %s33, %s36
    %p42 = scmp.eq.s32.totalorder %s23, 0
    %p43 = por %p41, %p42
    %p44 = scmp.ne.s32.totalorder %s33, %s36
    %p45 = scmp.eq.s32.totalorder %s28, 1
    %p46 = por %p44, %p45
    %p47 = scmp.ne.s32.totalorder %s36, %s37
    %p48 = scmp.eq.s32.totalorder %s28, 0
    %p49 = por %p47, %p48
    %p50 = scmp.ne.s32.totalorder %s36, %s37
    %p51 = scmp.eq.s32.totalorder %s29, 1
    %p52 = por %p50, %p51
    %p54 = scmp.ne.s32.totalorder %s37, %s53
    %p55 = scmp.eq.s32.totalorder %s29, 0
    %p56 = por %p54, %p55
    %s58 = sadd.s32 %s57, 1
    %p61 = scmp.eq.s32.totalorder %s23, 1
    %p62 = scmp.ne.s32.totalorder %s57, %s59
    %p63 = scmp.eq.s32.totalorder %s23, 0
    %p64 = por %p62, %p63
    %p65 = scmp.ne.s32.totalorder %s57, %s59
    %p66 = scmp.eq.s32.totalorder %s28, 1
    %p67 = por %p65, %p66
    %p68 = scmp.ne.s32.totalorder %s59, %s60
    %p69 = scmp.eq.s32.totalorder %s28, 0
    %p70 = por %p68, %p69
    %p71 = scmp.ne.s32.totalorder %s59, %s60
    %p72 = scmp.eq.s32.totalorder %s29, 1
    %p73 = por %p71, %p72
    %p75 = scmp.ne.s32.totalorder %s60, %s74
    %p76 = scmp.eq.s32.totalorder %s29, 0
    %p77 = por %p75, %p76
    %s79 = sadd.s32 %s78, 1
    %p82 = scmp.eq.s32.totalorder %s23, 1
    %p83 = scmp.ne.s32.totalorder %s78, %s80
    %p84 = scmp.eq.s32.totalorder %s23, 0
    %p85 = por %p83, %p84
    %p86 = scmp.ne.s32.totalorder %s78, %s80
    %p87 = scmp.eq.s32.totalorder %s28, 1
    %p88 = por %p86, %p87
    %p89 = scmp.ne.s32.totalorder %s80, %s81
    %p90 = scmp.eq.s32.totalorder %s28, 0
    %p91 = por %p89, %p90
    %p92 = scmp.ne.s32.totalorder %s80, %s81
    %p93 = scmp.eq.s32.totalorder %s29, 1
    %p94 = por %p92, %p93
    %p96 = scmp.ne.s32.totalorder %s81, %s95
    %p97 = scmp.eq.s32.totalorder %s29, 0
    %p98 = por %p96, %p97
    %s100 = sadd.s32 %s99, 1
    %p103 = scmp.eq.s32.totalorder %s23, 1
    %p104 = scmp.ne.s32.totalorder %s99, %s101
    %p105 = scmp.eq.s32.totalorder %s23, 0
    %p106 = por %p104, %p105
    %p107 = scmp.ne.s32.totalorder %s99, %s101
    %p108 = scmp.eq.s32.totalorder %s28, 1
    %p109 = por %p107, %p108
    %p110 = scmp.ne.s32.totalorder %s101, %s102
    %p111 = scmp.eq.s32.totalorder %s28, 0
    %p112 = por %p110, %p111
    %p113 = scmp.ne.s32.totalorder %s101, %s102
    %p114 = scmp.eq.s32.totalorder %s29, 1
    %p115 = por %p113, %p114
    %p117 = scmp.ne.s32.totalorder %s102, %s116
    %p118 = scmp.eq.s32.totalorder %s29, 0
    %p119 = por %p117, %p118
    %s121 = sadd.s32 %s120, 1
    %p124 = scmp.eq.s32.totalorder %s23, 1
    %p125 = scmp.ne.s32.totalorder %s120, %s122
    %p126 = scmp.eq.s32.totalorder %s23, 0
    %p127 = por %p125, %p126
    %p128 = scmp.ne.s32.totalorder %s120, %s122
    %p129 = scmp.eq.s32.totalorder %s28, 1
    %p130 = por %p128, %p129
    %p131 = scmp.ne.s32.totalorder %s122, %s123
    %p132 = scmp.eq.s32.totalorder %s28, 0
    %p133 = por %p131, %p132
    %p134 = scmp.ne.s32.totalorder %s122, %s123
    %p135 = scmp.eq.s32.totalorder %s29, 1
    %p136 = por %p134, %p135
    %p138 = scmp.ne.s32.totalorder %s123, %s137
    %p139 = scmp.eq.s32.totalorder %s29, 0
    %p140 = por %p138, %p139
    %s142 = sadd.s32 %s141, 1
    %p145 = scmp.eq.s32.totalorder %s23, 1
    %p146 = scmp.ne.s32.totalorder %s141, %s143
    %p147 = scmp.eq.s32.totalorder %s23, 0
    %p148 = por %p146, %p147
    %p149 = scmp.ne.s32.totalorder %s141, %s143
    %p150 = scmp.eq.s32.totalorder %s28, 1
    %p151 = por %p149, %p150
    %p152 = scmp.ne.s32.totalorder %s143, %s144
    %p153 = scmp.eq.s32.totalorder %s28, 0
    %p154 = por %p152, %p153
    %p155 = scmp.ne.s32.totalorder %s143, %s144
    %p156 = scmp.eq.s32.totalorder %s29, 1
    %p157 = por %p155, %p156
    %p159 = scmp.ne.s32.totalorder %s144, %s158
    %p160 = scmp.eq.s32.totalorder %s29, 0
    %p161 = por %p159, %p160
    %s163 = sadd.s32 %s162, 1
    %p166 = scmp.eq.s32.totalorder %s23, 1
    %p167 = scmp.ne.s32.totalorder %s162, %s164
    %p168 = scmp.eq.s32.totalorder %s23, 0
    %p169 = por %p167, %p168
    %p170 = scmp.ne.s32.totalorder %s162, %s164
    %p171 = scmp.eq.s32.totalorder %s28, 1
    %p172 = por %p170, %p171
    %p173 = scmp.ne.s32.totalorder %s164, %s165
    %p174 = scmp.eq.s32.totalorder %s28, 0
    %p175 = por %p173, %p174
    %p176 = scmp.ne.s32.totalorder %s164, %s165
    %p177 = scmp.eq.s32.totalorder %s29, 1
    %p178 = por %p176, %p177
    %p180 = scmp.ne.s32.totalorder %s165, %s179
    %p181 = scmp.eq.s32.totalorder %s29, 0
    %p182 = por %p180, %p181
    %s184 = sadd.s32 %s183, 1
    %p187 = scmp.eq.s32.totalorder %s23, 1
    %p188 = scmp.ne.s32.totalorder %s183, %s185
    %p189 = scmp.eq.s32.totalorder %s23, 0
    %p190 = por %p188, %p189
    %p191 = scmp.ne.s32.totalorder %s183, %s185
    %p192 = scmp.eq.s32.totalorder %s28, 1
    %p193 = por %p191, %p192
    %p194 = scmp.ne.s32.totalorder %s185, %s186
    %p195 = scmp.eq.s32.totalorder %s28, 0
    %p196 = por %p194, %p195
    %p197 = scmp.ne.s32.totalorder %s185, %s186
    %p198 = scmp.eq.s32.totalorder %s29, 1
    %p199 = por %p197, %p198
    %p201 = scmp.ne.s32.totalorder %s186, %s200
    %p202 = scmp.eq.s32.totalorder %s29, 0
    %p203 = por %p201, %p202
    %s205 = sadd.s32 %s204, 1
    %p208 = scmp.eq.s32.totalorder %s23, 1
    %p209 = scmp.ne.s32.totalorder %s204, %s206
    %p210 = scmp.eq.s32.totalorder %s23, 0
    %p211 = por %p209, %p210
    %p212 = scmp.ne.s32.totalorder %s204, %s206
    %p213 = scmp.eq.s32.totalorder %s28, 1
    %p214 = por %p212, %p213
    %p215 = scmp.ne.s32.totalorder %s206, %s207
    %p216 = scmp.eq.s32.totalorder %s28, 0
    %p217 = por %p215, %p216
    %p218 = scmp.ne.s32.totalorder %s206, %s207
    %p219 = scmp.eq.s32.totalorder %s29, 1
    %p220 = por %p218, %p219
    %p222 = scmp.ne.s32.totalorder %s207, %s221
    %p223 = scmp.eq.s32.totalorder %s29, 0
    %p224 = por %p222, %p223
    %s226 = sadd.s32 %s225, 1
    %p229 = scmp.eq.s32.totalorder %s23, 1
    %p230 = scmp.ne.s32.totalorder %s225, %s227
    %p231 = scmp.eq.s32.totalorder %s23, 0
    %p232 = por %p230, %p231
    %p233 = scmp.ne.s32.totalorder %s225, %s227
    %p234 = scmp.eq.s32.totalorder %s28, 1
    %p235 = por %p233, %p234
    %p236 = scmp.ne.s32.totalorder %s227, %s228
    %p237 = scmp.eq.s32.totalorder %s28, 0
    %p238 = por %p236, %p237
    %p239 = scmp.ne.s32.totalorder %s227, %s228
    %p240 = scmp.eq.s32.totalorder %s29, 1
    %p241 = por %p239, %p240
    %p243 = scmp.ne.s32.totalorder %s228, %s242
    %p244 = scmp.eq.s32.totalorder %s29, 0
    %p245 = por %p243, %p244
    %s247 = sadd.s32 %s246, 1
    %p250 = scmp.eq.s32.totalorder %s23, 1
    %p251 = scmp.ne.s32.totalorder %s246, %s248
    %p252 = scmp.eq.s32.totalorder %s23, 0
    %p253 = por %p251, %p252
    %p254 = scmp.ne.s32.totalorder %s246, %s248
    %p255 = scmp.eq.s32.totalorder %s28, 1
    %p256 = por %p254, %p255
    %p257 = scmp.ne.s32.totalorder %s248, %s249
    %p258 = scmp.eq.s32.totalorder %s28, 0
    %p259 = por %p257, %p258
    %p260 = scmp.ne.s32.totalorder %s248, %s249
    %p261 = scmp.eq.s32.totalorder %s29, 1
    %p262 = por %p260, %p261
    %p264 = scmp.ne.s32.totalorder %s249, %s263
    %p265 = scmp.eq.s32.totalorder %s29, 0
    %p266 = por %p264, %p265
    %s268 = sadd.s32 %s267, 1
    %p271 = scmp.eq.s32.totalorder %s23, 1
    %p272 = scmp.ne.s32.totalorder %s267, %s269
    %p273 = scmp.eq.s32.totalorder %s23, 0
    %p274 = por %p272, %p273
    %p275 = scmp.ne.s32.totalorder %s267, %s269
    %p276 = scmp.eq.s32.totalorder %s28, 1
    %p277 = por %p275, %p276
    %p278 = scmp.ne.s32.totalorder %s269, %s270
    %p279 = scmp.eq.s32.totalorder %s28, 0
    %p280 = por %p278, %p279
    %p281 = scmp.ne.s32.totalorder %s269, %s270
    %p282 = scmp.eq.s32.totalorder %s29, 1
    %p283 = por %p281, %p282
    %p285 = scmp.ne.s32.totalorder %s270, %s284
    %p286 = scmp.eq.s32.totalorder %s29, 0
    %p287 = por %p285, %p286
    %s289 = sadd.s32 %s288, 1
    %p292 = scmp.eq.s32.totalorder %s23, 1
    %p293 = scmp.ne.s32.totalorder %s288, %s290
    %p294 = scmp.eq.s32.totalorder %s23, 0
    %p295 = por %p293, %p294
    %p296 = scmp.ne.s32.totalorder %s288, %s290
    %p297 = scmp.eq.s32.totalorder %s28, 1
    %p298 = por %p296, %p297
    %p299 = scmp.ne.s32.totalorder %s290, %s291
    %p300 = scmp.eq.s32.totalorder %s28, 0
    %p301 = por %p299, %p300
    %p302 = scmp.ne.s32.totalorder %s290, %s291
    %p303 = scmp.eq.s32.totalorder %s29, 1
    %p304 = por %p302, %p303
    %p306 = scmp.ne.s32.totalorder %s291, %s305
    %p307 = scmp.eq.s32.totalorder %s29, 0
    %p308 = por %p306, %p307
    %s310 = sadd.s32 %s309, 1
    %p313 = scmp.eq.s32.totalorder %s23, 1
    %p314 = scmp.ne.s32.totalorder %s309, %s311
    %p315 = scmp.eq.s32.totalorder %s23, 0
    %p316 = por %p314, %p315
    %p317 = scmp.ne.s32.totalorder %s309, %s311
    %p318 = scmp.eq.s32.totalorder %s28, 1
    %p319 = por %p317, %p318
    %p320 = scmp.ne.s32.totalorder %s311, %s312
    %p321 = scmp.eq.s32.totalorder %s28, 0
    %p322 = por %p320, %p321
    %p323 = scmp.ne.s32.totalorder %s311, %s312
    %p324 = scmp.eq.s32.totalorder %s29, 1
    %p325 = por %p323, %p324
    %p327 = scmp.ne.s32.totalorder %s312, %s326
    %p328 = scmp.eq.s32.totalorder %s29, 0
    %p329 = por %p327, %p328
    %s331 = sadd.s32 %s330, 1
    %p334 = scmp.eq.s32.totalorder %s23, 1
    %p335 = scmp.ne.s32.totalorder %s330, %s332
    %p336 = scmp.eq.s32.totalorder %s23, 0
    %p337 = por %p335, %p336
    %p338 = scmp.ne.s32.totalorder %s330, %s332
    %p339 = scmp.eq.s32.totalorder %s28, 1
    %p340 = por %p338, %p339
    %p341 = scmp.ne.s32.totalorder %s332, %s333
    %p342 = scmp.eq.s32.totalorder %s28, 0
    %p343 = por %p341, %p342
    %p344 = scmp.ne.s32.totalorder %s332, %s333
    %p345 = scmp.eq.s32.totalorder %s29, 1
    %p346 = por %p344, %p345
    %p348 = scmp.ne.s32.totalorder %s333, %s347
    %p349 = scmp.eq.s32.totalorder %s29, 0
    %p350 = por %p348, %p349
    %s352 = sadd.s32 %s351, 1
    %p355 = scmp.eq.s32.totalorder %s23, 1
    %p356 = scmp.ne.s32.totalorder %s351, %s353
    %p357 = scmp.eq.s32.totalorder %s23, 0
    %p358 = por %p356, %p357
    %p359 = scmp.ne.s32.totalorder %s351, %s353
    %p360 = scmp.eq.s32.totalorder %s28, 1
    %p361 = por %p359, %p360
    %p362 = scmp.ne.s32.totalorder %s353, %s354
    %p363 = scmp.eq.s32.totalorder %s28, 0
    %p364 = por %p362, %p363
    %p365 = scmp.ne.s32.totalorder %s353, %s354
    %p366 = scmp.eq.s32.totalorder %s29, 1
    %p367 = por %p365, %p366
    %p369 = scmp.ne.s32.totalorder %s354, %s368
    %p370 = scmp.eq.s32.totalorder %s29, 0
    %p371 = por %p369, %p370
    %s373 = sadd.s32 %s372, 1
    %p376 = scmp.eq.s32.totalorder %s23, 1
    %p377 = scmp.ne.s32.totalorder %s372, %s374
    %p378 = scmp.eq.s32.totalorder %s23, 0
    %p379 = por %p377, %p378
    %p380 = scmp.ne.s32.totalorder %s372, %s374
    %p381 = scmp.eq.s32.totalorder %s28, 1
    %p382 = por %p380, %p381
    %p383 = scmp.ne.s32.totalorder %s374, %s375
    %p384 = scmp.eq.s32.totalorder %s28, 0
    %p385 = por %p383, %p384
    %p386 = scmp.ne.s32.totalorder %s374, %s375
    %p387 = scmp.eq.s32.totalorder %s29, 1
    %p388 = por %p386, %p387
    %p390 = scmp.ne.s32.totalorder %s375, %s389
    %p391 = scmp.eq.s32.totalorder %s29, 0
    %p392 = por %p390, %p391
    %s393 = ssub.s32 %s23, %s30
    %p394 = scmp.eq.s32.totalorder %s393, 0
    %s396 = sadd.s32 %s395, 1
    %s397 = scalar_select %p394, %s395, %s396
    %p400 = pneg %p394
    %p401 = scmp.eq.s32.totalorder %s23, 1
    %p402 = por %p400, %p401
    %p403 = scmp.ne.s32.totalorder %s395, %s398
    %p404 = scmp.eq.s32.totalorder %s23, 0
    %p405 = por %p403, %p404
    %p406 = scmp.ne.s32.totalorder %s395, %s398
    %p407 = scmp.eq.s32.totalorder %s28, 1
    %p408 = por %p406, %p407
    %p409 = scmp.ne.s32.totalorder %s398, %s399
    %p410 = scmp.eq.s32.totalorder %s28, 0
    %p411 = por %p409, %p410
    %p412 = scmp.ne.s32.totalorder %s398, %s399
    %p413 = scmp.eq.s32.totalorder %s29, 1
    %p414 = por %p412, %p413
    %p416 = scmp.ne.s32.totalorder %s399, %s415
    %p417 = scmp.eq.s32.totalorder %s29, 0
    %p418 = por %p416, %p417
    %p419 = scmp.le.s32.totalorder 1, %s23
    %p420 = scmp.lt.s32.totalorder %s23, 3
    %p421 = pnand %p419, %p420
    %p422 = pneg %p421
    // Predicated region
    $region9: #{actor_critic_forward.1} parent=5 // pred_check
      _
    $region10: #{actor_critic_forward.1} parent=5 // pred_check_branch
      %424 = sbr.rel (%p421) target = $region12
    $region11: #{actor_critic_forward.1} parent=5 // pred_region
      %s425 = ssub.s32 %s23, 1
      // Predicated region
      $region13: #{actor_critic_forward.1} parent=11 // pred_check
        %p426 = pneg %p70
      $region14: #{actor_critic_forward.1} parent=11 // pred_check_branch
        %428 = sbr.rel (%p426) target = $region16
      $region15: #{actor_critic_forward.1} parent=11 // pred_region
        _
      $region16: #{actor_critic_forward.1} parent=11 // pred_fallthru
        _
      // Predicated region
      $region17: #{actor_critic_forward.1} parent=11 // pred_check
        %p429 = pneg %p91
      $region18: #{actor_critic_forward.1} parent=11 // pred_check_branch
        %431 = sbr.rel (%p429) target = $region20
      $region19: #{actor_critic_forward.1} parent=11 // pred_region
        _
      $region20: #{actor_critic_forward.1} parent=11 // pred_fallthru
        _
      // Predicated region
      $region21: #{actor_critic_forward.1} parent=11 // pred_check
        %p432 = pneg %p112
      $region22: #{actor_critic_forward.1} parent=11 // pred_check_branch
        %434 = sbr.rel (%p432) target = $region24
      $region23: #{actor_critic_forward.1} parent=11 // pred_region
        _
      $region24: #{actor_critic_forward.1} parent=11 // pred_fallthru
        _
      // Predicated region
      $region25: #{actor_critic_forward.1} parent=11 // pred_check
        %p435 = pneg %p133
      $region26: #{actor_critic_forward.1} parent=11 // pred_check_branch
        %437 = sbr.rel (%p435) target = $region28
      $region27: #{actor_critic_forward.1} parent=11 // pred_region
        _
      $region28: #{actor_critic_forward.1} parent=11 // pred_fallthru
        _
      // Predicated region
      $region29: #{actor_critic_forward.1} parent=11 // pred_check
        %p438 = pneg %p154
      $region30: #{actor_critic_forward.1} parent=11 // pred_check_branch
        %440 = sbr.rel (%p438) target = $region32
      $region31: #{actor_critic_forward.1} parent=11 // pred_region
        _
      $region32: #{actor_critic_forward.1} parent=11 // pred_fallthru
        _
      // Predicated region
      $region33: #{actor_critic_forward.1} parent=11 // pred_check
        %p441 = pneg %p175
      $region34: #{actor_critic_forward.1} parent=11 // pred_check_branch
        %443 = sbr.rel (%p441) target = $region36
      $region35: #{actor_critic_forward.1} parent=11 // pred_region
        _
      $region36: #{actor_critic_forward.1} parent=11 // pred_fallthru
        _
      // Predicated region
      $region37: #{actor_critic_forward.1} parent=11 // pred_check
        %p444 = pneg %p196
      $region38: #{actor_critic_forward.1} parent=11 // pred_check_branch
        %446 = sbr.rel (%p444) target = $region40
      $region39: #{actor_critic_forward.1} parent=11 // pred_region
        _
      $region40: #{actor_critic_forward.1} parent=11 // pred_fallthru
        _
      // Predicated region
      $region41: #{actor_critic_forward.1} parent=11 // pred_check
        %p447 = pneg %p217
      $region42: #{actor_critic_forward.1} parent=11 // pred_check_branch
        %449 = sbr.rel (%p447) target = $region44
      $region43: #{actor_critic_forward.1} parent=11 // pred_region
        _
      $region44: #{actor_critic_forward.1} parent=11 // pred_fallthru
        _
      // Predicated region
      $region45: #{actor_critic_forward.1} parent=11 // pred_check
        %p450 = pneg %p238
      $region46: #{actor_critic_forward.1} parent=11 // pred_check_branch
        %452 = sbr.rel (%p450) target = $region48
      $region47: #{actor_critic_forward.1} parent=11 // pred_region
        _
      $region48: #{actor_critic_forward.1} parent=11 // pred_fallthru
        _
      // Predicated region
      $region49: #{actor_critic_forward.1} parent=11 // pred_check
        %p453 = pneg %p259
      $region50: #{actor_critic_forward.1} parent=11 // pred_check_branch
        %455 = sbr.rel (%p453) target = $region52
      $region51: #{actor_critic_forward.1} parent=11 // pred_region
        _
      $region52: #{actor_critic_forward.1} parent=11 // pred_fallthru
        _
      // Predicated region
      $region53: #{actor_critic_forward.1} parent=11 // pred_check
        %p456 = pneg %p280
      $region54: #{actor_critic_forward.1} parent=11 // pred_check_branch
        %458 = sbr.rel (%p456) target = $region56
      $region55: #{actor_critic_forward.1} parent=11 // pred_region
        _
      $region56: #{actor_critic_forward.1} parent=11 // pred_fallthru
        _
      // Predicated region
      $region57: #{actor_critic_forward.1} parent=11 // pred_check
        %p459 = pneg %p301
      $region58: #{actor_critic_forward.1} parent=11 // pred_check_branch
        %461 = sbr.rel (%p459) target = $region60
      $region59: #{actor_critic_forward.1} parent=11 // pred_region
        _
      $region60: #{actor_critic_forward.1} parent=11 // pred_fallthru
        _
      // Predicated region
      $region61: #{actor_critic_forward.1} parent=11 // pred_check
        %p462 = pneg %p322
      $region62: #{actor_critic_forward.1} parent=11 // pred_check_branch
        %464 = sbr.rel (%p462) target = $region64
      $region63: #{actor_critic_forward.1} parent=11 // pred_region
        _
      $region64: #{actor_critic_forward.1} parent=11 // pred_fallthru
        _
      // Predicated region
      $region65: #{actor_critic_forward.1} parent=11 // pred_check
        %p465 = pneg %p343
      $region66: #{actor_critic_forward.1} parent=11 // pred_check_branch
        %467 = sbr.rel (%p465) target = $region68
      $region67: #{actor_critic_forward.1} parent=11 // pred_region
        _
      $region68: #{actor_critic_forward.1} parent=11 // pred_fallthru
        _
      // Predicated region
      $region69: #{actor_critic_forward.1} parent=11 // pred_check
        %p468 = pneg %p364
      $region70: #{actor_critic_forward.1} parent=11 // pred_check_branch
        %470 = sbr.rel (%p468) target = $region72
      $region71: #{actor_critic_forward.1} parent=11 // pred_region
        _
      $region72: #{actor_critic_forward.1} parent=11 // pred_fallthru
        _
      // Predicated region
      $region73: #{actor_critic_forward.1} parent=11 // pred_check
        %p471 = pneg %p385
      $region74: #{actor_critic_forward.1} parent=11 // pred_check_branch
        %473 = sbr.rel (%p471) target = $region76
      $region75: #{actor_critic_forward.1} parent=11 // pred_region
        _
      $region76: #{actor_critic_forward.1} parent=11 // pred_fallthru
        _
    $region12: #{actor_critic_forward.1} parent=5 // pred_fallthru
      _
    %p474 = scmp.lt.s32.totalorder %s23, 2
    // Predicated region
    $region77: #{actor_critic_forward.1} parent=5 // pred_check
      %p475 = pneg %p474
    $region78: #{actor_critic_forward.1} parent=5 // pred_check_branch
      %477 = sbr.rel (%p475) target = $region80
    $region79: #{actor_critic_forward.1} parent=5 // pred_region
      // Predicated region
      $region81: #{actor_critic_forward.1} parent=79 // pred_check
        %p478 = pneg %p43
      $region82: #{actor_critic_forward.1} parent=79 // pred_check_branch
        %480 = sbr.rel (%p478) target = $region84
      $region83: #{actor_critic_forward.1} parent=79 // pred_region
        %p481 = scmp.lt.s32.totalorder %s23, 1
        %s482 = scalar_select %p481, %s23, 1
        %s483 = smul.addr %s482, 4
        %s484 = smul.addr %s483, 4
        %s485 = scalar_lea.vmem %s0, %s484
      $region84: #{actor_critic_forward.1} parent=79 // pred_fallthru
        _
    $region80: #{actor_critic_forward.1} parent=5 // pred_fallthru
      _
    %p486 = scmp.le.s32.totalorder 1, %s23
    %p487 = scmp.lt.s32.totalorder %s23, 3
    %p488 = pnand %p486, %p487
    %p489 = pneg %p488
    // Predicated region
    $region85: #{actor_critic_forward.1} parent=5 // pred_check
      _
    $region86: #{actor_critic_forward.1} parent=5 // pred_check_branch
      %491 = sbr.rel (%p488) target = $region88
    $region87: #{actor_critic_forward.1} parent=5 // pred_region
      %s492 = ssub.s32 %s23, 1
      %p493 = scmp.lt.s32.totalorder %s28, 1
      %s494 = scalar_select %p493, %s28, 1
      %s495 = smul.addr %s494, 4
      %s496 = smul.addr %s495, 4
      %s497 = scalar_lea.vmem %s0, %s496
      %p498 = pneg %p49
      %p499 = pneg %p46
      %p500 = pneg %p70
      %p501 = pneg %p67
      %p502 = pneg %p91
      %p503 = pneg %p88
      %p504 = pneg %p112
      %p505 = pneg %p109
      %p506 = pneg %p133
      %p507 = pneg %p130
      %p508 = pneg %p154
      %p509 = pneg %p151
      %p510 = pneg %p175
      %p511 = pneg %p172
      %p512 = pneg %p196
      %p513 = pneg %p193
      %p514 = pneg %p217
      %p515 = pneg %p214
      %p516 = pneg %p238
      %p517 = pneg %p235
      %p518 = pneg %p259
      %p519 = pneg %p256
      %p520 = pneg %p280
      %p521 = pneg %p277
      %p522 = pneg %p301
      %p523 = pneg %p298
      %p524 = pneg %p322
      %p525 = pneg %p319
      %p526 = pneg %p343
      %p527 = pneg %p340
      %p528 = pneg %p364
      %p529 = pneg %p361
      %p530 = pneg %p385
      %p531 = pneg %p382
      %p532 = pneg %p411
      %p533 = pneg %p408
      %p534 = scmp.lt.s32.totalorder %s28, 1
      %s535 = scalar_select %p534, %s28, 1
      %s536 = scalar_lea.vmem %s17, %s535
      %p537 = scmp.lt.s32.totalorder %s28, 1
      %s538 = scalar_select %p537, %s28, 1
      %s539 = smul.addr %s538, 4
      %s540 = smul.addr %s539, 4
      %s541 = scalar_lea.vmem %s0, %s540
      %p542 = scmp.lt.s32.totalorder %s28, 1
      %s543 = scalar_select %p542, %s28, 1
      %s544 = scalar_lea.vmem %s17, %s543
      %v546 = vld [vmem:[%s541] sm:$0xf]
      %v547 = vld [vmem:[%s541 + $0x4] sm:$0xf]
      %v548 = vld [vmem:[%s541 + $0x8] sm:$0xf]
      %v549 = vld [vmem:[%s541 + $0xc] sm:$0xf]
      %v550 = vld [vmem:[%s1] sm:$0xf]
      %v551 = vld [vmem:[%s1 + $0x4] sm:$0x7]
      %v554 = vunpack.c.l.b16 %v550
      %v555 = vunpack.c.l.b16 %v551
      %v556 = vpack.c.b16 %v555, %v554
      %v561 = vunpack.c.l.b16 %v546
      %v562 = vunpack.c.l.b16 %v547
      %v563 = vunpack.c.l.b16 %v548
      %v564 = vunpack.c.l.b16 %v549
      %v565 = vpack.c.b16 %v562, %v561
      %v566 = vpack.c.b16 %v564, %v563
      %vm569 = vcmask 261120
      %v571 = vsel %vm569, %v556, 0
      %573 = vmatprep.subr.bf16.mxu0 0
      %574 = vmatpush1.bf16.msra.mxu0 %v565
      %575 = vmatprep.subr.bf16.mxu0 0
      %576 = vmatpush1.bf16.msra.mxu0 %v566
      %577 = vmatprep.subr.bf16.mxu0 0
      %578 = vmatpush1.bf16.msra.mxu0 0
      %579 = vmatprep.subr.bf16.mxu0 0
      %580 = vmatpush1.bf16.msra.mxu0 0
      %581 = vmatprep.subr.bf16.mxu0 0
      %582 = vmatpush1.bf16.msra.mxu0 0
      %583 = vmatprep.subr.bf16.mxu0 0
      %584 = vmatpush1.bf16.msra.mxu0 0
      %585 = vmatprep.subr.bf16.mxu0 0
      %586 = vmatpush1.bf16.msra.mxu0 0
      %587 = vmatprep.subr.bf16.mxu0 0
      %588 = vmatpush1.bf16.msra.mxu0 0
      %589 = vmatprep.subr.bf16.mxu0 0
      %590 = vmatpush1.bf16.msra.mxu0 0
      %591 = vmatprep.subr.bf16.mxu0 0
      %592 = vmatpush1.bf16.msra.mxu0 0
      %593 = vmatprep.subr.bf16.mxu0 0
      %594 = vmatpush1.bf16.msra.mxu0 0
      %595 = vmatprep.subr.bf16.mxu0 0
      %596 = vmatpush1.bf16.msra.mxu0 0
      %597 = vmatprep.subr.bf16.mxu0 0
      %598 = vmatpush1.bf16.msra.mxu0 0
      %599 = vmatprep.subr.bf16.mxu0 0
      %600 = vmatpush1.bf16.msra.mxu0 0
      %601 = vmatprep.subr.bf16.mxu0 0
      %602 = vmatpush1.bf16.msra.mxu0 0
      %603 = vmatprep.subr.bf16.mxu0 0
      %604 = vmatpush1.bf16.msra.mxu0 0
      %605 = vmatprep.mubr.bf16.mxu0 0
      %606 = vmatmul.mubr.bf16.gmra.mrb[0].mxu0 %v571
      %v607 = vpop.f32.mrb[0].mxu0
      %v608 = vadd.f32 0.0, %v607
      %v609 = vpop.f32.mrb[0].mxu0
      %v610 = vpop.f32.mrb[0].mxu0
      %v611 = vadd.f32 0.0, %v610
      %v612 = vpop.f32.mrb[0].mxu0
      %613 = vdwg.mxu0
      %v614 = vpack.c.bf16 %v611, %v608
      %v615 = vld [vmem:[%s2] sm:$0xff]
      %v616 = vld [vmem:[%s2 + $0x8] sm:$0xff]
      %v617 = vld [vmem:[%s2 + $0x10] sm:$0xff]
      %v618 = vld [vmem:[%s2 + $0x18] sm:$0xff]
      %v619 = vld [vmem:[%s2 + $0x20] sm:$0xff]
      %v620 = vld [vmem:[%s2 + $0x28] sm:$0xff]
      %v621 = vld [vmem:[%s2 + $0x30] sm:$0xff]
      %v622 = vld [vmem:[%s2 + $0x38] sm:$0xff]
      %v623 = vld [vmem:[%s2 + $0x40] sm:$0xff]
      %v624 = vld [vmem:[%s2 + $0x48] sm:$0xff]
      %v625 = vld [vmem:[%s2 + $0x50] sm:$0xff]
      %v626 = vld [vmem:[%s2 + $0x58] sm:$0xff]
      %v627 = vld [vmem:[%s2 + $0x60] sm:$0xff]
      %v628 = vld [vmem:[%s2 + $0x68] sm:$0xff]
      %v629 = vld [vmem:[%s2 + $0x70] sm:$0xff]
      %v630 = vld [vmem:[%s2 + $0x78] sm:$0xff]
      %v631 = vld [vmem:[%s2 + $0x80] sm:$0xff]
      %v632 = vld [vmem:[%s2 + $0x88] sm:$0xff]
      %v633 = vld [vmem:[%s2 + $0x90] sm:$0xff]
      %v634 = vld [vmem:[%s2 + $0x98] sm:$0xff]
      %v635 = vld [vmem:[%s2 + $0xa0] sm:$0xff]
      %v636 = vld [vmem:[%s2 + $0xa8] sm:$0xff]
      %v637 = vld [vmem:[%s2 + $0xb0] sm:$0xff]
      %v638 = vld [vmem:[%s2 + $0xb8] sm:$0xff]
      %s639 = scalar_lea.vmem %s1, 8
      %v640 = vld [vmem:[%s639] sm:$0xf]
      %v641 = vld [vmem:[%s639 + $0x4] sm:$0x7]
      %v644 = vunpack.c.l.b16 %v640
      %v645 = vunpack.c.l.b16 %v641
      %v646 = vpack.c.b16 %v645, %v644
      %v648 = vsel %vm569, %v646, 0
      %650 = vmatprep.subr.bf16.mxu0 0
      %651 = vmatpush1.bf16.msra.mxu0 %v565
      %652 = vmatprep.subr.bf16.mxu0 0
      %653 = vmatpush1.bf16.msra.mxu0 %v566
      %654 = vmatprep.subr.bf16.mxu0 0
      %655 = vmatpush1.bf16.msra.mxu0 0
      %656 = vmatprep.subr.bf16.mxu0 0
      %657 = vmatpush1.bf16.msra.mxu0 0
      %658 = vmatprep.subr.bf16.mxu0 0
      %659 = vmatpush1.bf16.msra.mxu0 0
      %660 = vmatprep.subr.bf16.mxu0 0
      %661 = vmatpush1.bf16.msra.mxu0 0
      %662 = vmatprep.subr.bf16.mxu0 0
      %663 = vmatpush1.bf16.msra.mxu0 0
      %664 = vmatprep.subr.bf16.mxu0 0
      %665 = vmatpush1.bf16.msra.mxu0 0
      %666 = vmatprep.subr.bf16.mxu0 0
      %667 = vmatpush1.bf16.msra.mxu0 0
      %668 = vmatprep.subr.bf16.mxu0 0
      %669 = vmatpush1.bf16.msra.mxu0 0
      %670 = vmatprep.subr.bf16.mxu0 0
      %671 = vmatpush1.bf16.msra.mxu0 0
      %672 = vmatprep.subr.bf16.mxu0 0
      %673 = vmatpush1.bf16.msra.mxu0 0
      %674 = vmatprep.subr.bf16.mxu0 0
      %675 = vmatpush1.bf16.msra.mxu0 0
      %676 = vmatprep.subr.bf16.mxu0 0
      %677 = vmatpush1.bf16.msra.mxu0 0
      %678 = vmatprep.subr.bf16.mxu0 0
      %679 = vmatpush1.bf16.msra.mxu0 0
      %680 = vmatprep.subr.bf16.mxu0 0
      %681 = vmatpush1.bf16.msra.mxu0 0
      %682 = vmatprep.mubr.bf16.mxu0 0
      %683 = vmatmul.mubr.bf16.gmra.mrb[0].mxu0 %v648
      %v684 = vpop.f32.mrb[0].mxu0
      %v685 = vadd.f32 0.0, %v684
      %v686 = vpop.f32.mrb[0].mxu0
      %v687 = vpop.f32.mrb[0].mxu0
      %v688 = vadd.f32 0.0, %v687
      %v689 = vpop.f32.mrb[0].mxu0
      %690 = vdwg.mxu0
      %v691 = vpack.c.bf16 %v688, %v685
      %s692 = scalar_lea.vmem %s2, 192
      %v693 = vld [vmem:[%s692] sm:$0xff]
      %v694 = vld [vmem:[%s692 + $0x8] sm:$0xff]
      %v695 = vld [vmem:[%s692 + $0x10] sm:$0xff]
      %v696 = vld [vmem:[%s692 + $0x18] sm:$0xff]
      %v697 = vld [vmem:[%s692 + $0x20] sm:$0xff]
      %v698 = vld [vmem:[%s692 + $0x28] sm:$0xff]
      %v699 = vld [vmem:[%s692 + $0x30] sm:$0xff]
      %v700 = vld [vmem:[%s692 + $0x38] sm:$0xff]
      %v701 = vld [vmem:[%s692 + $0x40] sm:$0xff]
      %v702 = vld [vmem:[%s692 + $0x48] sm:$0xff]
      %v703 = vld [vmem:[%s692 + $0x50] sm:$0xff]
      %v704 = vld [vmem:[%s692 + $0x58] sm:$0xff]
      %v705 = vld [vmem:[%s692 + $0x60] sm:$0xff]
      %v706 = vld [vmem:[%s692 + $0x68] sm:$0xff]
      %v707 = vld [vmem:[%s692 + $0x70] sm:$0xff]
      %v708 = vld [vmem:[%s692 + $0x78] sm:$0xff]
      %v709 = vld [vmem:[%s692 + $0x80] sm:$0xff]
      %v710 = vld [vmem:[%s692 + $0x88] sm:$0xff]
      %v711 = vld [vmem:[%s692 + $0x90] sm:$0xff]
      %v712 = vld [vmem:[%s692 + $0x98] sm:$0xff]
      %v713 = vld [vmem:[%s692 + $0xa0] sm:$0xff]
      %v714 = vld [vmem:[%s692 + $0xa8] sm:$0xff]
      %v715 = vld [vmem:[%s692 + $0xb0] sm:$0xff]
      %v716 = vld [vmem:[%s692 + $0xb8] sm:$0xff]
      %v741 = vunpack.c.l.b16 %v693
      %v742 = vunpack.c.h.b16 %v693
      %v743 = vunpack.c.l.b16 %v694
      %v744 = vunpack.c.h.b16 %v694
      %v745 = vunpack.c.l.b16 %v695
      %v746 = vunpack.c.h.b16 %v695
      %v747 = vunpack.c.l.b16 %v696
      %v748 = vunpack.c.h.b16 %v696
      %v749 = vunpack.c.l.b16 %v697
      %v750 = vunpack.c.h.b16 %v697
      %v751 = vunpack.c.l.b16 %v698
      %v752 = vunpack.c.h.b16 %v698
      %v753 = vunpack.c.l.b16 %v699
      %v754 = vunpack.c.h.b16 %v699
      %v755 = vunpack.c.l.b16 %v700
      %v756 = vunpack.c.h.b16 %v700
      %v757 = vunpack.c.l.b16 %v701
      %v758 = vunpack.c.h.b16 %v701
      %v759 = vunpack.c.l.b16 %v702
      %v760 = vunpack.c.h.b16 %v702
      %v761 = vunpack.c.l.b16 %v703
      %v762 = vunpack.c.h.b16 %v703
      %v763 = vunpack.c.l.b16 %v704
      %v764 = vunpack.c.h.b16 %v704
      %v765 = vunpack.c.l.b16 %v705
      %v766 = vunpack.c.h.b16 %v705
      %v767 = vunpack.c.l.b16 %v706
      %v768 = vunpack.c.h.b16 %v706
      %v769 = vunpack.c.l.b16 %v707
      %v770 = vunpack.c.h.b16 %v707
      %v771 = vunpack.c.l.b16 %v708
      %v772 = vunpack.c.h.b16 %v708
      %v773 = vunpack.c.l.b16 %v709
      %v774 = vunpack.c.h.b16 %v709
      %v775 = vunpack.c.l.b16 %v710
      %v776 = vunpack.c.h.b16 %v710
      %v777 = vunpack.c.l.b16 %v711
      %v778 = vunpack.c.h.b16 %v711
      %v779 = vunpack.c.l.b16 %v712
      %v780 = vunpack.c.h.b16 %v712
      %v781 = vunpack.c.l.b16 %v713
      %v782 = vunpack.c.h.b16 %v713
      %v783 = vunpack.c.l.b16 %v714
      %v784 = vunpack.c.h.b16 %v714
      %v785 = vunpack.c.l.b16 %v715
      %v786 = vunpack.c.h.b16 %v715
      %v787 = vunpack.c.l.b16 %v716
      %v788 = vunpack.c.h.b16 %v716
      %v789 = vpack.c.b16 %v745, %v741
      %v790 = vpack.c.b16 %v746, %v742
      %v791 = vpack.c.b16 %v747, %v743
      %v792 = vpack.c.b16 %v748, %v744
      %v793 = vpack.c.b16 %v753, %v749
      %v794 = vpack.c.b16 %v754, %v750
      %v795 = vpack.c.b16 %v755, %v751
      %v796 = vpack.c.b16 %v756, %v752
      %v797 = vpack.c.b16 %v761, %v757
      %v798 = vpack.c.b16 %v762, %v758
      %v799 = vpack.c.b16 %v763, %v759
      %v800 = vpack.c.b16 %v764, %v760
      %v801 = vpack.c.b16 %v769, %v765
      %v802 = vpack.c.b16 %v770, %v766
      %v803 = vpack.c.b16 %v771, %v767
      %v804 = vpack.c.b16 %v772, %v768
      %v805 = vpack.c.b16 %v777, %v773
      %v806 = vpack.c.b16 %v778, %v774
      %v807 = vpack.c.b16 %v779, %v775
      %v808 = vpack.c.b16 %v780, %v776
      %v809 = vpack.c.b16 %v785, %v781
      %v810 = vpack.c.b16 %v786, %v782
      %v811 = vpack.c.b16 %v787, %v783
      %v812 = vpack.c.b16 %v788, %v784
      %vm837 = vcmask 785408
      %v839 = vsel %vm837, %v691, 0
      %841 = vmatprep.subr.bf16.mxu0 %v790
      %842 = vmatpush1.bf16.msra.mxu0 %v789
      %843 = vmatprep.subr.bf16.mxu0 %v794
      %844 = vmatpush1.bf16.msra.mxu0 %v793
      %845 = vmatprep.subr.bf16.mxu0 %v798
      %846 = vmatpush1.bf16.msra.mxu0 %v797
      %847 = vmatprep.subr.bf16.mxu0 %v802
      %848 = vmatpush1.bf16.msra.mxu0 %v801
      %849 = vmatprep.subr.bf16.mxu0 %v806
      %850 = vmatpush1.bf16.msra.mxu0 %v805
      %851 = vmatprep.subr.bf16.mxu0 %v810
      %852 = vmatpush1.bf16.msra.mxu0 %v809
      %853 = vmatprep.subr.bf16.mxu0 0
      %854 = vmatpush1.bf16.msra.mxu0 0
      %855 = vmatprep.subr.bf16.mxu0 0
      %856 = vmatpush1.bf16.msra.mxu0 0
      %857 = vmatprep.subr.bf16.mxu0 0
      %858 = vmatpush1.bf16.msra.mxu0 0
      %859 = vmatprep.subr.bf16.mxu0 0
      %860 = vmatpush1.bf16.msra.mxu0 0
      %861 = vmatprep.subr.bf16.mxu0 0
      %862 = vmatpush1.bf16.msra.mxu0 0
      %863 = vmatprep.subr.bf16.mxu0 0
      %864 = vmatpush1.bf16.msra.mxu0 0
      %865 = vmatprep.subr.bf16.mxu0 0
      %866 = vmatpush1.bf16.msra.mxu0 0
      %867 = vmatprep.subr.bf16.mxu0 0
      %868 = vmatpush1.bf16.msra.mxu0 0
      %869 = vmatprep.subr.bf16.mxu0 0
      %870 = vmatpush1.bf16.msra.mxu0 0
      %871 = vmatprep.subr.bf16.mxu0 0
      %872 = vmatpush1.bf16.msra.mxu0 0
      %873 = vmatprep.mubr.bf16.mxu0 0
      %874 = vmatmul.mubr.bf16.gmra.mrb[0].mxu0 %v839
      %v875 = vpop.f32.mrb[0].mxu0
      %v876 = vadd.f32 0.0, %v875
      %v877 = vpop.f32.mrb[0].mxu0
      %v878 = vadd.f32 0.0, %v877
      %v879 = vpop.f32.mrb[0].mxu0
      %v880 = vadd.f32 0.0, %v879
      %v881 = vpop.f32.mrb[0].mxu0
      %v882 = vadd.f32 0.0, %v881
      %883 = vdwg.mxu0
      %884 = vmatprep.subr.bf16.mxu0 %v792
      %885 = vmatpush1.bf16.msra.mxu0 %v791
      %886 = vmatprep.subr.bf16.mxu0 %v796
      %887 = vmatpush1.bf16.msra.mxu0 %v795
      %888 = vmatprep.subr.bf16.mxu0 %v800
      %889 = vmatpush1.bf16.msra.mxu0 %v799
      %890 = vmatprep.subr.bf16.mxu0 %v804
      %891 = vmatpush1.bf16.msra.mxu0 %v803
      %892 = vmatprep.subr.bf16.mxu0 %v808
      %893 = vmatpush1.bf16.msra.mxu0 %v807
      %894 = vmatprep.subr.bf16.mxu0 %v812
      %895 = vmatpush1.bf16.msra.mxu0 %v811
      %896 = vmatprep.subr.bf16.mxu0 0
      %897 = vmatpush1.bf16.msra.mxu0 0
      %898 = vmatprep.subr.bf16.mxu0 0
      %899 = vmatpush1.bf16.msra.mxu0 0
      %900 = vmatprep.subr.bf16.mxu0 0
      %901 = vmatpush1.bf16.msra.mxu0 0
      %902 = vmatprep.subr.bf16.mxu0 0
      %903 = vmatpush1.bf16.msra.mxu0 0
      %904 = vmatprep.subr.bf16.mxu0 0
      %905 = vmatpush1.bf16.msra.mxu0 0
      %906 = vmatprep.subr.bf16.mxu0 0
      %907 = vmatpush1.bf16.msra.mxu0 0
      %908 = vmatprep.subr.bf16.mxu0 0
      %909 = vmatpush1.bf16.msra.mxu0 0
      %910 = vmatprep.subr.bf16.mxu0 0
      %911 = vmatpush1.bf16.msra.mxu0 0
      %912 = vmatprep.subr.bf16.mxu0 0
      %913 = vmatpush1.bf16.msra.mxu0 0
      %914 = vmatprep.subr.bf16.mxu0 0
      %915 = vmatpush1.bf16.msra.mxu0 0
      %916 = vmatprep.mubr.bf16.mxu0 0
      %917 = vmatmul.mubr.bf16.gmra.mrb[0].mxu0 %v839
      %v918 = vpop.f32.mrb[0].mxu0
      %v919 = vadd.f32 0.0, %v918
      %v920 = vpop.f32.mrb[0].mxu0
      %v921 = vadd.f32 0.0, %v920
      %v922 = vpop.f32.mrb[0].mxu0
      %v923 = vadd.f32 0.0, %v922
      %v924 = vpop.f32.mrb[0].mxu0
      %v925 = vadd.f32 0.0, %v924
      %926 = vdwg.mxu0
      %v951 = vunpack.c.l.b16 %v615
      %v952 = vunpack.c.h.b16 %v615
      %v953 = vunpack.c.l.b16 %v616
      %v954 = vunpack.c.h.b16 %v616
      %v955 = vunpack.c.l.b16 %v617
      %v956 = vunpack.c.h.b16 %v617
      %v957 = vunpack.c.l.b16 %v618
      %v958 = vunpack.c.h.b16 %v618
      %v959 = vunpack.c.l.b16 %v619
      %v960 = vunpack.c.h.b16 %v619
      %v961 = vunpack.c.l.b16 %v620
      %v962 = vunpack.c.h.b16 %v620
      %v963 = vunpack.c.l.b16 %v621
      %v964 = vunpack.c.h.b16 %v621
      %v965 = vunpack.c.l.b16 %v622
      %v966 = vunpack.c.h.b16 %v622
      %v967 = vunpack.c.l.b16 %v623
      %v968 = vunpack.c.h.b16 %v623
      %v969 = vunpack.c.l.b16 %v624
      %v970 = vunpack.c.h.b16 %v624
      %v971 = vunpack.c.l.b16 %v625
      %v972 = vunpack.c.h.b16 %v625
      %v973 = vunpack.c.l.b16 %v626
      %v974 = vunpack.c.h.b16 %v626
      %v975 = vunpack.c.l.b16 %v627
      %v976 = vunpack.c.h.b16 %v627
      %v977 = vunpack.c.l.b16 %v628
      %v978 = vunpack.c.h.b16 %v628
      %v979 = vunpack.c.l.b16 %v629
      %v980 = vunpack.c.h.b16 %v629
      %v981 = vunpack.c.l.b16 %v630
      %v982 = vunpack.c.h.b16 %v630
      %v983 = vunpack.c.l.b16 %v631
      %v984 = vunpack.c.h.b16 %v631
      %v985 = vunpack.c.l.b16 %v632
      %v986 = vunpack.c.h.b16 %v632
      %v987 = vunpack.c.l.b16 %v633
      %v988 = vunpack.c.h.b16 %v633
      %v989 = vunpack.c.l.b16 %v634
      %v990 = vunpack.c.h.b16 %v634
      %v991 = vunpack.c.l.b16 %v635
      %v992 = vunpack.c.h.b16 %v635
      %v993 = vunpack.c.l.b16 %v636
      %v994 = vunpack.c.h.b16 %v636
      %v995 = vunpack.c.l.b16 %v637
      %v996 = vunpack.c.h.b16 %v637
      %v997 = vunpack.c.l.b16 %v638
      %v998 = vunpack.c.h.b16 %v638
      %v999 = vpack.c.b16 %v955, %v951
      %v1000 = vpack.c.b16 %v956, %v952
      %v1001 = vpack.c.b16 %v957, %v953
      %v1002 = vpack.c.b16 %v958, %v954
      %v1003 = vpack.c.b16 %v963, %v959
      %v1004 = vpack.c.b16 %v964, %v960
      %v1005 = vpack.c.b16 %v965, %v961
      %v1006 = vpack.c.b16 %v966, %v962
      %v1007 = vpack.c.b16 %v971, %v967
      %v1008 = vpack.c.b16 %v972, %v968
      %v1009 = vpack.c.b16 %v973, %v969
      %v1010 = vpack.c.b16 %v974, %v970
      %v1011 = vpack.c.b16 %v979, %v975
      %v1012 = vpack.c.b16 %v980, %v976
      %v1013 = vpack.c.b16 %v981, %v977
      %v1014 = vpack.c.b16 %v982, %v978
      %v1015 = vpack.c.b16 %v987, %v983
      %v1016 = vpack.c.b16 %v988, %v984
      %v1017 = vpack.c.b16 %v989, %v985
      %v1018 = vpack.c.b16 %v990, %v986
      %v1019 = vpack.c.b16 %v995, %v991
      %v1020 = vpack.c.b16 %v996, %v992
      %v1021 = vpack.c.b16 %v997, %v993
      %v1022 = vpack.c.b16 %v998, %v994
      %v1048 = vsel %vm837, %v614, 0
      %1050 = vmatprep.subr.bf16.mxu0 %v1000
      %1051 = vmatpush1.bf16.msra.mxu0 %v999
      %1052 = vmatprep.subr.bf16.mxu0 %v1004
      %1053 = vmatpush1.bf16.msra.mxu0 %v1003
      %1054 = vmatprep.subr.bf16.mxu0 %v1008
      %1055 = vmatpush1.bf16.msra.mxu0 %v1007
      %1056 = vmatprep.subr.bf16.mxu0 %v1012
      %1057 = vmatpush1.bf16.msra.mxu0 %v1011
      %1058 = vmatprep.subr.bf16.mxu0 %v1016
      %1059 = vmatpush1.bf16.msra.mxu0 %v1015
      %1060 = vmatprep.subr.bf16.mxu0 %v1020
      %1061 = vmatpush1.bf16.msra.mxu0 %v1019
      %1062 = vmatprep.subr.bf16.mxu0 0
      %1063 = vmatpush1.bf16.msra.mxu0 0
      %1064 = vmatprep.subr.bf16.mxu0 0
      %1065 = vmatpush1.bf16.msra.mxu0 0
      %1066 = vmatprep.subr.bf16.mxu0 0
      %1067 = vmatpush1.bf16.msra.mxu0 0
      %1068 = vmatprep.subr.bf16.mxu0 0
      %1069 = vmatpush1.bf16.msra.mxu0 0
      %1070 = vmatprep.subr.bf16.mxu0 0
      %1071 = vmatpush1.bf16.msra.mxu0 0
      %1072 = vmatprep.subr.bf16.mxu0 0
      %1073 = vmatpush1.bf16.msra.mxu0 0
      %1074 = vmatprep.subr.bf16.mxu0 0
      %1075 = vmatpush1.bf16.msra.mxu0 0
      %1076 = vmatprep.subr.bf16.mxu0 0
      %1077 = vmatpush1.bf16.msra.mxu0 0
      %1078 = vmatprep.subr.bf16.mxu0 0
      %1079 = vmatpush1.bf16.msra.mxu0 0
      %1080 = vmatprep.subr.bf16.mxu0 0
      %1081 = vmatpush1.bf16.msra.mxu0 0
      %1082 = vmatprep.mubr.bf16.mxu0 0
      %1083 = vmatmul.mubr.bf16.gmra.mrb[0].mxu0 %v1048
      %v1084 = vpop.f32.mrb[0].mxu0
      %v1085 = vadd.f32 %v876, %v1084
      %v1086 = vpop.f32.mrb[0].mxu0
      %v1087 = vadd.f32 %v878, %v1086
      %v1088 = vpop.f32.mrb[0].mxu0
      %v1089 = vadd.f32 %v880, %v1088
      %v1090 = vpop.f32.mrb[0].mxu0
      %v1091 = vadd.f32 %v882, %v1090
      %1092 = vdwg.mxu0
      %1093 = vmatprep.subr.bf16.mxu0 %v1002
      %1094 = vmatpush1.bf16.msra.mxu0 %v1001
      %1095 = vmatprep.subr.bf16.mxu0 %v1006
      %1096 = vmatpush1.bf16.msra.mxu0 %v1005
      %1097 = vmatprep.subr.bf16.mxu0 %v1010
      %1098 = vmatpush1.bf16.msra.mxu0 %v1009
      %1099 = vmatprep.subr.bf16.mxu0 %v1014
      %1100 = vmatpush1.bf16.msra.mxu0 %v1013
      %1101 = vmatprep.subr.bf16.mxu0 %v1018
      %1102 = vmatpush1.bf16.msra.mxu0 %v1017
      %1103 = vmatprep.subr.bf16.mxu0 %v1022
      %1104 = vmatpush1.bf16.msra.mxu0 %v1021
      %1105 = vmatprep.subr.bf16.mxu0 0
      %1106 = vmatpush1.bf16.msra.mxu0 0
      %1107 = vmatprep.subr.bf16.mxu0 0
      %1108 = vmatpush1.bf16.msra.mxu0 0
      %1109 = vmatprep.subr.bf16.mxu0 0
      %1110 = vmatpush1.bf16.msra.mxu0 0
      %1111 = vmatprep.subr.bf16.mxu0 0
      %1112 = vmatpush1.bf16.msra.mxu0 0
      %1113 = vmatprep.subr.bf16.mxu0 0
      %1114 = vmatpush1.bf16.msra.mxu0 0
      %1115 = vmatprep.subr.bf16.mxu0 0
      %1116 = vmatpush1.bf16.msra.mxu0 0
      %1117 = vmatprep.subr.bf16.mxu0 0
      %1118 = vmatpush1.bf16.msra.mxu0 0
      %1119 = vmatprep.subr.bf16.mxu0 0
      %1120 = vmatpush1.bf16.msra.mxu0 0
      %1121 = vmatprep.subr.bf16.mxu0 0
      %1122 = vmatpush1.bf16.msra.mxu0 0
      %1123 = vmatprep.subr.bf16.mxu0 0
      %1124 = vmatpush1.bf16.msra.mxu0 0
      %1125 = vmatprep.mubr.bf16.mxu0 0
      %1126 = vmatmul.mubr.bf16.gmra.mrb[0].mxu0 %v1048
      %v1127 = vpop.f32.mrb[0].mxu0
      %v1128 = vadd.f32 %v919, %v1127
      %v1129 = vpop.f32.mrb[0].mxu0
      %v1130 = vadd.f32 %v921, %v1129
      %v1131 = vpop.f32.mrb[0].mxu0
      %v1132 = vadd.f32 %v923, %v1131
      %v1133 = vpop.f32.mrb[0].mxu0
      %v1134 = vadd.f32 %v925, %v1133
      %1135 = vdwg.mxu0
      %s1136 = scalar_lea.vmem %s1, 16
      %v1137 = vld [vmem:[%s1136] sm:$0xf]
      %v1138 = vld [vmem:[%s1136 + $0x4] sm:$0x7]
      %v1141 = vunpack.c.l.b16 %v1137
      %v1142 = vunpack.c.l.b16 %v1138
      %v1143 = vpack.c.b16 %v1142, %v1141
      %v1145 = vsel %vm569, %v1143, 0
      %1147 = vmatprep.subr.bf16.mxu0 0
      %1148 = vmatpush1.bf16.msra.mxu0 %v565
      %1149 = vmatprep.subr.bf16.mxu0 0
      %1150 = vmatpush1.bf16.msra.mxu0 %v566
      %1151 = vmatprep.subr.bf16.mxu0 0
      %1152 = vmatpush1.bf16.msra.mxu0 0
      %1153 = vmatprep.subr.bf16.mxu0 0
      %1154 = vmatpush1.bf16.msra.mxu0 0
      %1155 = vmatprep.subr.bf16.mxu0 0
      %1156 = vmatpush1.bf16.msra.mxu0 0
      %1157 = vmatprep.subr.bf16.mxu0 0
      %1158 = vmatpush1.bf16.msra.mxu0 0
      %1159 = vmatprep.subr.bf16.mxu0 0
      %1160 = vmatpush1.bf16.msra.mxu0 0
      %1161 = vmatprep.subr.bf16.mxu0 0
      %1162 = vmatpush1.bf16.msra.mxu0 0
      %1163 = vmatprep.subr.bf16.mxu0 0
      %1164 = vmatpush1.bf16.msra.mxu0 0
      %1165 = vmatprep.subr.bf16.mxu0 0
      %1166 = vmatpush1.bf16.msra.mxu0 0
      %1167 = vmatprep.subr.bf16.mxu0 0
      %1168 = vmatpush1.bf16.msra.mxu0 0
      %1169 = vmatprep.subr.bf16.mxu0 0
      %1170 = vmatpush1.bf16.msra.mxu0 0
      %1171 = vmatprep.subr.bf16.mxu0 0
      %1172 = vmatpush1.bf16.msra.mxu0 0
      %1173 = vmatprep.subr.bf16.mxu0 0
      %1174 = vmatpush1.bf16.msra.mxu0 0
      %1175 = vmatprep.subr.bf16.mxu0 0
      %1176 = vmatpush1.bf16.msra.mxu0 0
      %1177 = vmatprep.subr.bf16.mxu0 0
      %1178 = vmatpush1.bf16.msra.mxu0 0
      %1179 = vmatprep.mubr.bf16.mxu0 0
      %1180 = vmatmul.mubr.bf16.gmra.mrb[0].mxu0 %v1145
      %v1181 = vpop.f32.mrb[0].mxu0
      %v1182 = vadd.f32 0.0, %v1181
      %v1183 = vpop.f32.mrb[0].mxu0
      %v1184 = vpop.f32.mrb[0].mxu0
      %v1185 = vadd.f32 0.0, %v1184
      %v1186 = vpop.f32.mrb[0].mxu0
      %1187 = vdwg.mxu0
      %v1188 = vpack.c.bf16 %v1185, %v1182
      %s1189 = scalar_lea.vmem %s2, 384
      %v1190 = vld [vmem:[%s1189] sm:$0xff]
      %v1191 = vld [vmem:[%s1189 + $0x8] sm:$0xff]
      %v1192 = vld [vmem:[%s1189 + $0x10] sm:$0xff]
      %v1193 = vld [vmem:[%s1189 + $0x18] sm:$0xff]
      %v1194 = vld [vmem:[%s1189 + $0x20] sm:$0xff]
      %v1195 = vld [vmem:[%s1189 + $0x28] sm:$0xff]
      %v1196 = vld [vmem:[%s1189 + $0x30] sm:$0xff]
      %v1197 = vld [vmem:[%s1189 + $0x38] sm:$0xff]
      %v1198 = vld [vmem:[%s1189 + $0x40] sm:$0xff]
      %v1199 = vld [vmem:[%s1189 + $0x48] sm:$0xff]
      %v1200 = vld [vmem:[%s1189 + $0x50] sm:$0xff]
      %v1201 = vld [vmem:[%s1189 + $0x58] sm:$0xff]
      %v1202 = vld [vmem:[%s1189 + $0x60] sm:$0xff]
      %v1203 = vld [vmem:[%s1189 + $0x68] sm:$0xff]
      %v1204 = vld [vmem:[%s1189 + $0x70] sm:$0xff]
      %v1205 = vld [vmem:[%s1189 + $0x78] sm:$0xff]
      %v1206 = vld [vmem:[%s1189 + $0x80] sm:$0xff]
      %v1207 = vld [vmem:[%s1189 + $0x88] sm:$0xff]
      %v1208 = vld [vmem:[%s1189 + $0x90] sm:$0xff]
      %v1209 = vld [vmem:[%s1189 + $0x98] sm:$0xff]
      %v1210 = vld [vmem:[%s1189 + $0xa0] sm:$0xff]
      %v1211 = vld [vmem:[%s1189 + $0xa8] sm:$0xff]
      %v1212 = vld [vmem:[%s1189 + $0xb0] sm:$0xff]
      %v1213 = vld [vmem:[%s1189 + $0xb8] sm:$0xff]
      %v1238 = vunpack.c.l.b16 %v1190
      %v1239 = vunpack.c.h.b16 %v1190
      %v1240 = vunpack.c.l.b16 %v1191
      %v1241 = vunpack.c.h.b16 %v1191
      %v1242 = vunpack.c.l.b16 %v1192
      %v1243 = vunpack.c.h.b16 %v1192
      %v1244 = vunpack.c.l.b16 %v1193
      %v1245 = vunpack.c.h.b16 %v1193
      %v1246 = vunpack.c.l.b16 %v1194
      %v1247 = vunpack.c.h.b16 %v1194
      %v1248 = vunpack.c.l.b16 %v1195
      %v1249 = vunpack.c.h.b16 %v1195
      %v1250 = vunpack.c.l.b16 %v1196
      %v1251 = vunpack.c.h.b16 %v1196
      %v1252 = vunpack.c.l.b16 %v1197
      %v1253 = vunpack.c.h.b16 %v1197
      %v1254 = vunpack.c.l.b16 %v1198
      %v1255 = vunpack.c.h.b16 %v1198
      %v1256 = vunpack.c.l.b16 %v1199
      %v1257 = vunpack.c.h.b16 %v1199
      %v1258 = vunpack.c.l.b16 %v1200
      %v1259 = vunpack.c.h.b16 %v1200
      %v1260 = vunpack.c.l.b16 %v1201
      %v1261 = vunpack.c.h.b16 %v1201
      %v1262 = vunpack.c.l.b16 %v1202
      %v1263 = vunpack.c.h.b16 %v1202
      %v1264 = vunpack.c.l.b16 %v1203
      %v1265 = vunpack.c.h.b16 %v1203
      %v1266 = vunpack.c.l.b16 %v1204
      %v1267 = vunpack.c.h.b16 %v1204
      %v1268 = vunpack.c.l.b16 %v1205
      %v1269 = vunpack.c.h.b16 %v1205
      %v1270 = vunpack.c.l.b16 %v1206
      %v1271 = vunpack.c.h.b16 %v1206
      %v1272 = vunpack.c.l.b16 %v1207
      %v1273 = vunpack.c.h.b16 %v1207
      %v1274 = vunpack.c.l.b16 %v1208
      %v1275 = vunpack.c.h.b16 %v1208
      %v1276 = vunpack.c.l.b16 %v1209
      %v1277 = vunpack.c.h.b16 %v1209
      %v1278 = vunpack.c.l.b16 %v1210
      %v1279 = vunpack.c.h.b16 %v1210
      %v1280 = vunpack.c.l.b16 %v1211
      %v1281 = vunpack.c.h.b16 %v1211
      %v1282 = vunpack.c.l.b16 %v1212
      %v1283 = vunpack.c.h.b16 %v1212
      %v1284 = vunpack.c.l.b16 %v1213
      %v1285 = vunpack.c.h.b16 %v1213
      %v1286 = vpack.c.b16 %v1242, %v1238
      %v1287 = vpack.c.b16 %v1243, %v1239
      %v1288 = vpack.c.b16 %v1244, %v1240
      %v1289 = vpack.c.b16 %v1245, %v1241
      %v1290 = vpack.c.b16 %v1250, %v1246
      %v1291 = vpack.c.b16 %v1251, %v1247
      %v1292 = vpack.c.b16 %v1252, %v1248
      %v1293 = vpack.c.b16 %v1253, %v1249
      %v1294 = vpack.c.b16 %v1258, %v1254
      %v1295 = vpack.c.b16 %v1259, %v1255
      %v1296 = vpack.c.b16 %v1260, %v1256
      %v1297 = vpack.c.b16 %v1261, %v1257
      %v1298 = vpack.c.b16 %v1266, %v1262
      %v1299 = vpack.c.b16 %v1267, %v1263
      %v1300 = vpack.c.b16 %v1268, %v1264
      %v1301 = vpack.c.b16 %v1269, %v1265
      %v1302 = vpack.c.b16 %v1274, %v1270
      %v1303 = vpack.c.b16 %v1275, %v1271
      %v1304 = vpack.c.b16 %v1276, %v1272
      %v1305 = vpack.c.b16 %v1277, %v1273
      %v1306 = vpack.c.b16 %v1282, %v1278
      %v1307 = vpack.c.b16 %v1283, %v1279
      %v1308 = vpack.c.b16 %v1284, %v1280
      %v1309 = vpack.c.b16 %v1285, %v1281
      %v1335 = vsel %vm837, %v1188, 0
      %1337 = vmatprep.subr.bf16.mxu0 %v1287
      %1338 = vmatpush1.bf16.msra.mxu0 %v1286
      %1339 = vmatprep.subr.bf16.mxu0 %v1291
      %1340 = vmatpush1.bf16.msra.mxu0 %v1290
      %1341 = vmatprep.subr.bf16.mxu0 %v1295
      %1342 = vmatpush1.bf16.msra.mxu0 %v1294
      %1343 = vmatprep.subr.bf16.mxu0 %v1299
      %1344 = vmatpush1.bf16.msra.mxu0 %v1298
      %1345 = vmatprep.subr.bf16.mxu0 %v1303
      %1346 = vmatpush1.bf16.msra.mxu0 %v1302
      %1347 = vmatprep.subr.bf16.mxu0 %v1307
      %1348 = vmatpush1.bf16.msra.mxu0 %v1306
      %1349 = vmatprep.subr.bf16.mxu0 0
      %1350 = vmatpush1.bf16.msra.mxu0 0
      %1351 = vmatprep.subr.bf16.mxu0 0
      %1352 = vmatpush1.bf16.msra.mxu0 0
      %1353 = vmatprep.subr.bf16.mxu0 0
      %1354 = vmatpush1.bf16.msra.mxu0 0
      %1355 = vmatprep.subr.bf16.mxu0 0
      %1356 = vmatpush1.bf16.msra.mxu0 0
      %1357 = vmatprep.subr.bf16.mxu0 0
      %1358 = vmatpush1.bf16.msra.mxu0 0
      %1359 = vmatprep.subr.bf16.mxu0 0
      %1360 = vmatpush1.bf16.msra.mxu0 0
      %1361 = vmatprep.subr.bf16.mxu0 0
      %1362 = vmatpush1.bf16.msra.mxu0 0
      %1363 = vmatprep.subr.bf16.mxu0 0
      %1364 = vmatpush1.bf16.msra.mxu0 0
      %1365 = vmatprep.subr.bf16.mxu0 0
      %1366 = vmatpush1.bf16.msra.mxu0 0
      %1367 = vmatprep.subr.bf16.mxu0 0
      %1368 = vmatpush1.bf16.msra.mxu0 0
      %1369 = vmatprep.mubr.bf16.mxu0 0
      %1370 = vmatmul.mubr.bf16.gmra.mrb[0].mxu0 %v1335
      %v1371 = vpop.f32.mrb[0].mxu0
      %v1372 = vadd.f32 0.0, %v1371
      %v1373 = vpop.f32.mrb[0].mxu0
      %v1374 = vadd.f32 0.0, %v1373
      %v1375 = vpop.f32.mrb[0].mxu0
      %v1376 = vadd.f32 0.0, %v1375
      %v1377 = vpop.f32.mrb[0].mxu0
      %v1378 = vadd.f32 0.0, %v1377
      %1379 = vdwg.mxu0
      %1380 = vmatprep.subr.bf16.mxu0 %v1289
      %1381 = vmatpush1.bf16.msra.mxu0 %v1288
      %1382 = vmatprep.subr.bf16.mxu0 %v1293
      %1383 = vmatpush1.bf16.msra.mxu0 %v1292
      %1384 = vmatprep.subr.bf16.mxu0 %v1297
      %1385 = vmatpush1.bf16.msra.mxu0 %v1296
      %1386 = vmatprep.subr.bf16.mxu0 %v1301
      %1387 = vmatpush1.bf16.msra.mxu0 %v1300
      %1388 = vmatprep.subr.bf16.mxu0 %v1305
      %1389 = vmatpush1.bf16.msra.mxu0 %v1304
      %1390 = vmatprep.subr.bf16.mxu0 %v1309
      %1391 = vmatpush1.bf16.msra.mxu0 %v1308
      %1392 = vmatprep.subr.bf16.mxu0 0
      %1393 = vmatpush1.bf16.msra.mxu0 0
      %1394 = vmatprep.subr.bf16.mxu0 0
      %1395 = vmatpush1.bf16.msra.mxu0 0
      %1396 = vmatprep.subr.bf16.mxu0 0
      %1397 = vmatpush1.bf16.msra.mxu0 0
      %1398 = vmatprep.subr.bf16.mxu0 0
      %1399 = vmatpush1.bf16.msra.mxu0 0
      %1400 = vmatprep.subr.bf16.mxu0 0
      %1401 = vmatpush1.bf16.msra.mxu0 0
      %1402 = vmatprep.subr.bf16.mxu0 0
      %1403 = vmatpush1.bf16.msra.mxu0 0
      %1404 = vmatprep.subr.bf16.mxu0 0
      %1405 = vmatpush1.bf16.msra.mxu0 0
      %1406 = vmatprep.subr.bf16.mxu0 0
      %1407 = vmatpush1.bf16.msra.mxu0 0
      %1408 = vmatprep.subr.bf16.mxu0 0
      %1409 = vmatpush1.bf16.msra.mxu0 0
      %1410 = vmatprep.subr.bf16.mxu0 0
      %1411 = vmatpush1.bf16.msra.mxu0 0
      %1412 = vmatprep.mubr.bf16.mxu0 0
      %1413 = vmatmul.mubr.bf16.gmra.mrb[0].mxu0 %v1335
      %v1414 = vpop.f32.mrb[0].mxu0
      %v1415 = vadd.f32 0.0, %v1414
      %v1416 = vpop.f32.mrb[0].mxu0
      %v1417 = vadd.f32 0.0, %v1416
      %v1418 = vpop.f32.mrb[0].mxu0
      %v1419 = vadd.f32 0.0, %v1418
      %v1420 = vpop.f32.mrb[0].mxu0
      %v1421 = vadd.f32 0.0, %v1420
      %1422 = vdwg.mxu0
      %v1423 = vadd.f32 %v1085, %v1372
      %v1424 = vadd.f32 %v1087, %v1374
      %v1425 = vadd.f32 %v1128, %v1415
      %v1426 = vadd.f32 %v1130, %v1417
      %v1427 = vadd.f32 %v1089, %v1376
      %v1428 = vadd.f32 %v1091, %v1378
      %v1429 = vadd.f32 %v1132, %v1419
      %v1430 = vadd.f32 %v1134, %v1421
      %s1431 = scalar_lea.vmem %s1, 24
      %v1432 = vld [vmem:[%s1431] sm:$0xf]
      %v1433 = vld [vmem:[%s1431 + $0x4] sm:$0x7]
      %v1436 = vunpack.c.l.b16 %v1432
      %v1437 = vunpack.c.l.b16 %v1433
      %v1438 = vpack.c.b16 %v1437, %v1436
      %v1440 = vsel %vm569, %v1438, 0
      %1442 = vmatprep.subr.bf16.mxu0 0
      %1443 = vmatpush1.bf16.msra.mxu0 %v565
      %1444 = vmatprep.subr.bf16.mxu0 0
      %1445 = vmatpush1.bf16.msra.mxu0 %v566
      %1446 = vmatprep.subr.bf16.mxu0 0
      %1447 = vmatpush1.bf16.msra.mxu0 0
      %1448 = vmatprep.subr.bf16.mxu0 0
      %1449 = vmatpush1.bf16.msra.mxu0 0
      %1450 = vmatprep.subr.bf16.mxu0 0
      %1451 = vmatpush1.bf16.msra.mxu0 0
      %1452 = vmatprep.subr.bf16.mxu0 0
      %1453 = vmatpush1.bf16.msra.mxu0 0
      %1454 = vmatprep.subr.bf16.mxu0 0
      %1455 = vmatpush1.bf16.msra.mxu0 0
      %1456 = vmatprep.subr.bf16.mxu0 0
      %1457 = vmatpush1.bf16.msra.mxu0 0
      %1458 = vmatprep.subr.bf16.mxu0 0
      %1459 = vmatpush1.bf16.msra.mxu0 0
      %1460 = vmatprep.subr.bf16.mxu0 0
      %1461 = vmatpush1.bf16.msra.mxu0 0
      %1462 = vmatprep.subr.bf16.mxu0 0
      %1463 = vmatpush1.bf16.msra.mxu0 0
      %1464 = vmatprep.subr.bf16.mxu0 0
      %1465 = vmatpush1.bf16.msra.mxu0 0
      %1466 = vmatprep.subr.bf16.mxu0 0
      %1467 = vmatpush1.bf16.msra.mxu0 0
      %1468 = vmatprep.subr.bf16.mxu0 0
      %1469 = vmatpush1.bf16.msra.mxu0 0
      %1470 = vmatprep.subr.bf16.mxu0 0
      %1471 = vmatpush1.bf16.msra.mxu0 0
      %1472 = vmatprep.subr.bf16.mxu0 0
      %1473 = vmatpush1.bf16.msra.mxu0 0
      %1474 = vmatprep.mubr.bf16.mxu0 0
      %1475 = vmatmul.mubr.bf16.gmra.mrb[0].mxu0 %v1440
      %v1476 = vpop.f32.mrb[0].mxu0
      %v1477 = vadd.f32 0.0, %v1476
      %v1478 = vpop.f32.mrb[0].mxu0
      %v1479 = vpop.f32.mrb[0].mxu0
      %v1480 = vadd.f32 0.0, %v1479
      %v1481 = vpop.f32.mrb[0].mxu0
      %1482 = vdwg.mxu0
      %v1483 = vpack.c.bf16 %v1480, %v1477
      %s1484 = scalar_lea.vmem %s2, 576
      %v1485 = vld [vmem:[%s1484] sm:$0xff]
      %v1486 = vld [vmem:[%s1484 + $0x8] sm:$0xff]
      %v1487 = vld [vmem:[%s1484 + $0x10] sm:$0xff]
      %v1488 = vld [vmem:[%s1484 + $0x18] sm:$0xff]
      %v1489 = vld [vmem:[%s1484 + $0x20] sm:$0xff]
      %v1490 = vld [vmem:[%s1484 + $0x28] sm:$0xff]
      %v1491 = vld [vmem:[%s1484 + $0x30] sm:$0xff]
      %v1492 = vld [vmem:[%s1484 + $0x38] sm:$0xff]
      %v1493 = vld [vmem:[%s1484 + $0x40] sm:$0xff]
      %v1494 = vld [vmem:[%s1484 + $0x48] sm:$0xff]
      %v1495 = vld [vmem:[%s1484 + $0x50] sm:$0xff]
      %v1496 = vld [vmem:[%s1484 + $0x58] sm:$0xff]
      %v1497 = vld [vmem:[%s1484 + $0x60] sm:$0xff]
      %v1498 = vld [vmem:[%s1484 + $0x68] sm:$0xff]
      %v1499 = vld [vmem:[%s1484 + $0x70] sm:$0xff]
      %v1500 = vld [vmem:[%s1484 + $0x78] sm:$0xff]
      %v1501 = vld [vmem:[%s1484 + $0x80] sm:$0xff]
      %v1502 = vld [vmem:[%s1484 + $0x88] sm:$0xff]
      %v1503 = vld [vmem:[%s1484 + $0x90] sm:$0xff]
      %v1504 = vld [vmem:[%s1484 + $0x98] sm:$0xff]
      %v1505 = vld [vmem:[%s1484 + $0xa0] sm:$0xff]
      %v1506 = vld [vmem:[%s1484 + $0xa8] sm:$0xff]
      %v1507 = vld [vmem:[%s1484 + $0xb0] sm:$0xff]
      %v1508 = vld [vmem:[%s1484 + $0xb8] sm:$0xff]
      %v1533 = vunpack.c.l.b16 %v1485
      %v1534 = vunpack.c.h.b16 %v1485
      %v1535 = vunpack.c.l.b16 %v1486
      %v1536 = vunpack.c.h.b16 %v1486
      %v1537 = vunpack.c.l.b16 %v1487
      %v1538 = vunpack.c.h.b16 %v1487
      %v1539 = vunpack.c.l.b16 %v1488
      %v1540 = vunpack.c.h.b16 %v1488
      %v1541 = vunpack.c.l.b16 %v1489
      %v1542 = vunpack.c.h.b16 %v1489
      %v1543 = vunpack.c.l.b16 %v1490
      %v1544 = vunpack.c.h.b16 %v1490
      %v1545 = vunpack.c.l.b16 %v1491
      %v1546 = vunpack.c.h.b16 %v1491
      %v1547 = vunpack.c.l.b16 %v1492
      %v1548 = vunpack.c.h.b16 %v1492
      %v1549 = vunpack.c.l.b16 %v1493
      %v1550 = vunpack.c.h.b16 %v1493
      %v1551 = vunpack.c.l.b16 %v1494
      %v1552 = vunpack.c.h.b16 %v1494
      %v1553 = vunpack.c.l.b16 %v1495
      %v1554 = vunpack.c.h.b16 %v1495
      %v1555 = vunpack.c.l.b16 %v1496
      %v1556 = vunpack.c.h.b16 %v1496
      %v1557 = vunpack.c.l.b16 %v1497
      %v1558 = vunpack.c.h.b16 %v1497
      %v1559 = vunpack.c.l.b16 %v1498
      %v1560 = vunpack.c.h.b16 %v1498
      %v1561 = vunpack.c.l.b16 %v1499
      %v1562 = vunpack.c.h.b16 %v1499
      %v1563 = vunpack.c.l.b16 %v1500
      %v1564 = vunpack.c.h.b16 %v1500
      %v1565 = vunpack.c.l.b16 %v1501
      %v1566 = vunpack.c.h.b16 %v1501
      %v1567 = vunpack.c.l.b16 %v1502
      %v1568 = vunpack.c.h.b16 %v1502
      %v1569 = vunpack.c.l.b16 %v1503
      %v1570 = vunpack.c.h.b16 %v1503
      %v1571 = vunpack.c.l.b16 %v1504
      %v1572 = vunpack.c.h.b16 %v1504
      %v1573 = vunpack.c.l.b16 %v1505
      %v1574 = vunpack.c.h.b16 %v1505
      %v1575 = vunpack.c.l.b16 %v1506
      %v1576 = vunpack.c.h.b16 %v1506
      %v1577 = vunpack.c.l.b16 %v1507
      %v1578 = vunpack.c.h.b16 %v1507
      %v1579 = vunpack.c.l.b16 %v1508
      %v1580 = vunpack.c.h.b16 %v1508
      %v1581 = vpack.c.b16 %v1537, %v1533
      %v1582 = vpack.c.b16 %v1538, %v1534
      %v1583 = vpack.c.b16 %v1539, %v1535
      %v1584 = vpack.c.b16 %v1540, %v1536
      %v1585 = vpack.c.b16 %v1545, %v1541
      %v1586 = vpack.c.b16 %v1546, %v1542
      %v1587 = vpack.c.b16 %v1547, %v1543
      %v1588 = vpack.c.b16 %v1548, %v1544
      %v1589 = vpack.c.b16 %v1553, %v1549
      %v1590 = vpack.c.b16 %v1554, %v1550
      %v1591 = vpack.c.b16 %v1555, %v1551
      %v1592 = vpack.c.b16 %v1556, %v1552
      %v1593 = vpack.c.b16 %v1561, %v1557
      %v1594 = vpack.c.b16 %v1562, %v1558
      %v1595 = vpack.c.b16 %v1563, %v1559
      %v1596 = vpack.c.b16 %v1564, %v1560
      %v1597 = vpack.c.b16 %v1569, %v1565
      %v1598 = vpack.c.b16 %v1570, %v1566
      %v1599 = vpack.c.b16 %v1571, %v1567
      %v1600 = vpack.c.b16 %v1572, %v1568
      %v1601 = vpack.c.b16 %v1577, %v1573
      %v1602 = vpack.c.b16 %v1578, %v1574
      %v1603 = vpack.c.b16 %v1579, %v1575
      %v1604 = vpack.c.b16 %v1580, %v1576
      %v1630 = vsel %vm837, %v1483, 0
      %1632 = vmatprep.subr.bf16.mxu0 %v1582
      %1633 = vmatpush1.bf16.msra.mxu0 %v1581
      %1634 = vmatprep.subr.bf16.mxu0 %v1586
      %1635 = vmatpush1.bf16.msra.mxu0 %v1585
      %1636 = vmatprep.subr.bf16.mxu0 %v1590
      %1637 = vmatpush1.bf16.msra.mxu0 %v1589
      %1638 = vmatprep.subr.bf16.mxu0 %v1594
      %1639 = vmatpush1.bf16.msra.mxu0 %v1593
      %1640 = vmatprep.subr.bf16.mxu0 %v1598
      %1641 = vmatpush1.bf16.msra.mxu0 %v1597
      %1642 = vmatprep.subr.bf16.mxu0 %v1602
      %1643 = vmatpush1.bf16.msra.mxu0 %v1601
      %1644 = vmatprep.subr.bf16.mxu0 0
      %1645 = vmatpush1.bf16.msra.mxu0 0
      %1646 = vmatprep.subr.bf16.mxu0 0
      %1647 = vmatpush1.bf16.msra.mxu0 0
      %1648 = vmatprep.subr.bf16.mxu0 0
      %1649 = vmatpush1.bf16.msra.mxu0 0
      %1650 = vmatprep.subr.bf16.mxu0 0
      %1651 = vmatpush1.bf16.msra.mxu0 0
      %1652 = vmatprep.subr.bf16.mxu0 0
      %1653 = vmatpush1.bf16.msra.mxu0 0
      %1654 = vmatprep.subr.bf16.mxu0 0
      %1655 = vmatpush1.bf16.msra.mxu0 0
      %1656 = vmatprep.subr.bf16.mxu0 0
      %1657 = vmatpush1.bf16.msra.mxu0 0
      %1658 = vmatprep.subr.bf16.mxu0 0
      %1659 = vmatpush1.bf16.msra.mxu0 0
      %1660 = vmatprep.subr.bf16.mxu0 0
      %1661 = vmatpush1.bf16.msra.mxu0 0
      %1662 = vmatprep.subr.bf16.mxu0 0
      %1663 = vmatpush1.bf16.msra.mxu0 0
      %1664 = vmatprep.mubr.bf16.mxu0 0
      %1665 = vmatmul.mubr.bf16.gmra.mrb[0].mxu0 %v1630
      %v1666 = vpop.f32.mrb[0].mxu0
      %v1667 = vadd.f32 0.0, %v1666
      %v1668 = vpop.f32.mrb[0].mxu0
      %v1669 = vadd.f32 0.0, %v1668
      %v1670 = vpop.f32.mrb[0].mxu0
      %v1671 = vadd.f32 0.0, %v1670
      %v1672 = vpop.f32.mrb[0].mxu0
      %v1673 = vadd.f32 0.0, %v1672
      %1674 = vdwg.mxu0
      %1675 = vmatprep.subr.bf16.mxu0 %v1584
      %1676 = vmatpush1.bf16.msra.mxu0 %v1583
      %1677 = vmatprep.subr.bf16.mxu0 %v1588
      %1678 = vmatpush1.bf16.msra.mxu0 %v1587
      %1679 = vmatprep.subr.bf16.mxu0 %v1592
      %1680 = vmatpush1.bf16.msra.mxu0 %v1591
      %1681 = vmatprep.subr.bf16.mxu0 %v1596
      %1682 = vmatpush1.bf16.msra.mxu0 %v1595
      %1683 = vmatprep.subr.bf16.mxu0 %v1600
      %1684 = vmatpush1.bf16.msra.mxu0 %v1599
      %1685 = vmatprep.subr.bf16.mxu0 %v1604
      %1686 = vmatpush1.bf16.msra.mxu0 %v1603
      %1687 = vmatprep.subr.bf16.mxu0 0
      %1688 = vmatpush1.bf16.msra.mxu0 0
      %1689 = vmatprep.subr.bf16.mxu0 0
      %1690 = vmatpush1.bf16.msra.mxu0 0
      %1691 = vmatprep.subr.bf16.mxu0 0
      %1692 = vmatpush1.bf16.msra.mxu0 0
      %1693 = vmatprep.subr.bf16.mxu0 0
      %1694 = vmatpush1.bf16.msra.mxu0 0
      %1695 = vmatprep.subr.bf16.mxu0 0
      %1696 = vmatpush1.bf16.msra.mxu0 0
      %1697 = vmatprep.subr.bf16.mxu0 0
      %1698 = vmatpush1.bf16.msra.mxu0 0
      %1699 = vmatprep.subr.bf16.mxu0 0
      %1700 = vmatpush1.bf16.msra.mxu0 0
      %1701 = vmatprep.subr.bf16.mxu0 0
      %1702 = vmatpush1.bf16.msra.mxu0 0
      %1703 = vmatprep.subr.bf16.mxu0 0
      %1704 = vmatpush1.bf16.msra.mxu0 0
      %1705 = vmatprep.subr.bf16.mxu0 0
      %1706 = vmatpush1.bf16.msra.mxu0 0
      %1707 = vmatprep.mubr.bf16.mxu0 0
      %1708 = vmatmul.mubr.bf16.gmra.mrb[0].mxu0 %v1630
      %v1709 = vpop.f32.mrb[0].mxu0
      %v1710 = vadd.f32 0.0, %v1709
      %v1711 = vpop.f32.mrb[0].mxu0
      %v1712 = vadd.f32 0.0, %v1711
      %v1713 = vpop.f32.mrb[0].mxu0
      %v1714 = vadd.f32 0.0, %v1713
      %v1715 = vpop.f32.mrb[0].mxu0
      %v1716 = vadd.f32 0.0, %v1715
      %1717 = vdwg.mxu0
      %v1718 = vadd.f32 %v1423, %v1667
      %v1719 = vadd.f32 %v1424, %v1669
      %v1720 = vadd.f32 %v1425, %v1710
      %v1721 = vadd.f32 %v1426, %v1712
      %v1722 = vadd.f32 %v1427, %v1671
      %v1723 = vadd.f32 %v1428, %v1673
      %v1724 = vadd.f32 %v1429, %v1714
      %v1725 = vadd.f32 %v1430, %v1716
      %s1726 = scalar_lea.vmem %s1, 32
      %v1727 = vld [vmem:[%s1726] sm:$0xf]
      %v1728 = vld [vmem:[%s1726 + $0x4] sm:$0x7]
      %v1731 = vunpack.c.l.b16 %v1727
      %v1732 = vunpack.c.l.b16 %v1728
      %v1733 = vpack.c.b16 %v1732, %v1731
      %v1735 = vsel %vm569, %v1733, 0
      %1737 = vmatprep.subr.bf16.mxu0 0
      %1738 = vmatpush1.bf16.msra.mxu0 %v565
      %1739 = vmatprep.subr.bf16.mxu0 0
      %1740 = vmatpush1.bf16.msra.mxu0 %v566
      %1741 = vmatprep.subr.bf16.mxu0 0
      %1742 = vmatpush1.bf16.msra.mxu0 0
      %1743 = vmatprep.subr.bf16.mxu0 0
      %1744 = vmatpush1.bf16.msra.mxu0 0
      %1745 = vmatprep.subr.bf16.mxu0 0
      %1746 = vmatpush1.bf16.msra.mxu0 0
      %1747 = vmatprep.subr.bf16.mxu0 0
      %1748 = vmatpush1.bf16.msra.mxu0 0
      %1749 = vmatprep.subr.bf16.mxu0 0
      %1750 = vmatpush1.bf16.msra.mxu0 0
      %1751 = vmatprep.subr.bf16.mxu0 0
      %1752 = vmatpush1.bf16.msra.mxu0 0
      %1753 = vmatprep.subr.bf16.mxu0 0
      %1754 = vmatpush1.bf16.msra.mxu0 0
      %1755 = vmatprep.subr.bf16.mxu0 0
      %1756 = vmatpush1.bf16.msra.mxu0 0
      %1757 = vmatprep.subr.bf16.mxu0 0
      %1758 = vmatpush1.bf16.msra.mxu0 0
      %1759 = vmatprep.subr.bf16.mxu0 0
      %1760 = vmatpush1.bf16.msra.mxu0 0
      %1761 = vmatprep.subr.bf16.mxu0 0
      %1762 = vmatpush1.bf16.msra.mxu0 0
      %1763 = vmatprep.subr.bf16.mxu0 0
      %1764 = vmatpush1.bf16.msra.mxu0 0
      %1765 = vmatprep.subr.bf16.mxu0 0
      %1766 = vmatpush1.bf16.msra.mxu0 0
      %1767 = vmatprep.subr.bf16.mxu0 0
      %1768 = vmatpush1.bf16.msra.mxu0 0
      %1769 = vmatprep.mubr.bf16.mxu0 0
      %1770 = vmatmul.mubr.bf16.gmra.mrb[0].mxu0 %v1735
      %v1771 = vpop.f32.mrb[0].mxu0
      %v1772 = vadd.f32 0.0, %v1771
      %v1773 = vpop.f32.mrb[0].mxu0
      %v1774 = vpop.f32.mrb[0].mxu0
      %v1775 = vadd.f32 0.0, %v1774
      %v1776 = vpop.f32.mrb[0].mxu0
      %1777 = vdwg.mxu0
      %v1778 = vpack.c.bf16 %v1775, %v1772
      %s1779 = scalar_lea.vmem %s2, 768
      %v1780 = vld [vmem:[%s1779] sm:$0xff]
      %v1781 = vld [vmem:[%s1779 + $0x8] sm:$0xff]
      %v1782 = vld [vmem:[%s1779 + $0x10] sm:$0xff]
      %v1783 = vld [vmem:[%s1779 + $0x18] sm:$0xff]
      %v1784 = vld [vmem:[%s1779 + $0x20] sm:$0xff]
      %v1785 = vld [vmem:[%s1779 + $0x28] sm:$0xff]
      %v1786 = vld [vmem:[%s1779 + $0x30] sm:$0xff]
      %v1787 = vld [vmem:[%s1779 + $0x38] sm:$0xff]
      %v1788 = vld [vmem:[%s1779 + $0x40] sm:$0xff]
      %v1789 = vld [vmem:[%s1779 + $0x48] sm:$0xff]
      %v1790 = vld [vmem:[%s1779 + $0x50] sm:$0xff]
      %v1791 = vld [vmem:[%s1779 + $0x58] sm:$0xff]
      %v1792 = vld [vmem:[%s1779 + $0x60] sm:$0xff]
      %v1793 = vld [vmem:[%s1779 + $0x68] sm:$0xff]
      %v1794 = vld [vmem:[%s1779 + $0x70] sm:$0xff]
      %v1795 = vld [vmem:[%s1779 + $0x78] sm:$0xff]
      %v1796 = vld [vmem:[%s1779 + $0x80] sm:$0xff]
      %v1797 = vld [vmem:[%s1779 + $0x88] sm:$0xff]
      %v1798 = vld [vmem:[%s1779 + $0x90] sm:$0xff]
      %v1799 = vld [vmem:[%s1779 + $0x98] sm:$0xff]
      %v1800 = vld [vmem:[%s1779 + $0xa0] sm:$0xff]
      %v1801 = vld [vmem:[%s1779 + $0xa8] sm:$0xff]
      %v1802 = vld [vmem:[%s1779 + $0xb0] sm:$0xff]
      %v1803 = vld [vmem:[%s1779 + $0xb8] sm:$0xff]
      %v1828 = vunpack.c.l.b16 %v1780
      %v1829 = vunpack.c.h.b16 %v1780
      %v1830 = vunpack.c.l.b16 %v1781
      %v1831 = vunpack.c.h.b16 %v1781
      %v1832 = vunpack.c.l.b16 %v1782
      %v1833 = vunpack.c.h.b16 %v1782
      %v1834 = vunpack.c.l.b16 %v1783
      %v1835 = vunpack.c.h.b16 %v1783
      %v1836 = vunpack.c.l.b16 %v1784
      %v1837 = vunpack.c.h.b16 %v1784
      %v1838 = vunpack.c.l.b16 %v1785
      %v1839 = vunpack.c.h.b16 %v1785
      %v1840 = vunpack.c.l.b16 %v1786
      %v1841 = vunpack.c.h.b16 %v1786
      %v1842 = vunpack.c.l.b16 %v1787
      %v1843 = vunpack.c.h.b16 %v1787
      %v1844 = vunpack.c.l.b16 %v1788
      %v1845 = vunpack.c.h.b16 %v1788
      %v1846 = vunpack.c.l.b16 %v1789
      %v1847 = vunpack.c.h.b16 %v1789
      %v1848 = vunpack.c.l.b16 %v1790
      %v1849 = vunpack.c.h.b16 %v1790
      %v1850 = vunpack.c.l.b16 %v1791
      %v1851 = vunpack.c.h.b16 %v1791
      %v1852 = vunpack.c.l.b16 %v1792
      %v1853 = vunpack.c.h.b16 %v1792
      %v1854 = vunpack.c.l.b16 %v1793
      %v1855 = vunpack.c.h.b16 %v1793
      %v1856 = vunpack.c.l.b16 %v1794
      %v1857 = vunpack.c.h.b16 %v1794
      %v1858 = vunpack.c.l.b16 %v1795
      %v1859 = vunpack.c.h.b16 %v1795
      %v1860 = vunpack.c.l.b16 %v1796
      %v1861 = vunpack.c.h.b16 %v1796
      %v1862 = vunpack.c.l.b16 %v1797
      %v1863 = vunpack.c.h.b16 %v1797
      %v1864 = vunpack.c.l.b16 %v1798
      %v1865 = vunpack.c.h.b16 %v1798
      %v1866 = vunpack.c.l.b16 %v1799
      %v1867 = vunpack.c.h.b16 %v1799
      %v1868 = vunpack.c.l.b16 %v1800
      %v1869 = vunpack.c.h.b16 %v1800
      %v1870 = vunpack.c.l.b16 %v1801
      %v1871 = vunpack.c.h.b16 %v1801
      %v1872 = vunpack.c.l.b16 %v1802
      %v1873 = vunpack.c.h.b16 %v1802
      %v1874 = vunpack.c.l.b16 %v1803
      %v1875 = vunpack.c.h.b16 %v1803
      %v1876 = vpack.c.b16 %v1832, %v1828
      %v1877 = vpack.c.b16 %v1833, %v1829
      %v1878 = vpack.c.b16 %v1834, %v1830
      %v1879 = vpack.c.b16 %v1835, %v1831
      %v1880 = vpack.c.b16 %v1840, %v1836
      %v1881 = vpack.c.b16 %v1841, %v1837
      %v1882 = vpack.c.b16 %v1842, %v1838
      %v1883 = vpack.c.b16 %v1843, %v1839
      %v1884 = vpack.c.b16 %v1848, %v1844
      %v1885 = vpack.c.b16 %v1849, %v1845
      %v1886 = vpack.c.b16 %v1850, %v1846
      %v1887 = vpack.c.b16 %v1851, %v1847
      %v1888 = vpack.c.b16 %v1856, %v1852
      %v1889 = vpack.c.b16 %v1857, %v1853
      %v1890 = vpack.c.b16 %v1858, %v1854
      %v1891 = vpack.c.b16 %v1859, %v1855
      %v1892 = vpack.c.b16 %v1864, %v1860
      %v1893 = vpack.c.b16 %v1865, %v1861
      %v1894 = vpack.c.b16 %v1866, %v1862
      %v1895 = vpack.c.b16 %v1867, %v1863
      %v1896 = vpack.c.b16 %v1872, %v1868
      %v1897 = vpack.c.b16 %v1873, %v1869
      %v1898 = vpack.c.b16 %v1874, %v1870
      %v1899 = vpack.c.b16 %v1875, %v1871
      %v1925 = vsel %vm837, %v1778, 0
      %1927 = vmatprep.subr.bf16.mxu0 %v1877
      %1928 = vmatpush1.bf16.msra.mxu0 %v1876
      %1929 = vmatprep.subr.bf16.mxu0 %v1881
      %1930 = vmatpush1.bf16.msra.mxu0 %v1880
      %1931 = vmatprep.subr.bf16.mxu0 %v1885
      %1932 = vmatpush1.bf16.msra.mxu0 %v1884
      %1933 = vmatprep.subr.bf16.mxu0 %v1889
      %1934 = vmatpush1.bf16.msra.mxu0 %v1888
      %1935 = vmatprep.subr.bf16.mxu0 %v1893
      %1936 = vmatpush1.bf16.msra.mxu0 %v1892
      %1937 = vmatprep.subr.bf16.mxu0 %v1897
      %1938 = vmatpush1.bf16.msra.mxu0 %v1896
      %1939 = vmatprep.subr.bf16.mxu0 0
      %1940 = vmatpush1.bf16.msra.mxu0 0
      %1941 = vmatprep.subr.bf16.mxu0 0
      %1942 = vmatpush1.bf16.msra.mxu0 0
      %1943 = vmatprep.subr.bf16.mxu0 0
      %1944 = vmatpush1.bf16.msra.mxu0 0
      %1945 = vmatprep.subr.bf16.mxu0 0
      %1946 = vmatpush1.bf16.msra.mxu0 0
      %1947 = vmatprep.subr.bf16.mxu0 0
      %1948 = vmatpush1.bf16.msra.mxu0 0
      %1949 = vmatprep.subr.bf16.mxu0 0
      %1950 = vmatpush1.bf16.msra.mxu0 0
      %1951 = vmatprep.subr.bf16.mxu0 0
      %1952 = vmatpush1.bf16.msra.mxu0 0
      %1953 = vmatprep.subr.bf16.mxu0 0
      %1954 = vmatpush1.bf16.msra.mxu0 0
      %1955 = vmatprep.subr.bf16.mxu0 0
      %1956 = vmatpush1.bf16.msra.mxu0 0
      %1957 = vmatprep.subr.bf16.mxu0 0
      %1958 = vmatpush1.bf16.msra.mxu0 0
      %1959 = vmatprep.mubr.bf16.mxu0 0
      %1960 = vmatmul.mubr.bf16.gmra.mrb[0].mxu0 %v1925
      %v1961 = vpop.f32.mrb[0].mxu0
      %v1962 = vadd.f32 0.0, %v1961
      %v1963 = vpop.f32.mrb[0].mxu0
      %v1964 = vadd.f32 0.0, %v1963
      %v1965 = vpop.f32.mrb[0].mxu0
      %v1966 = vadd.f32 0.0, %v1965
      %v1967 = vpop.f32.mrb[0].mxu0
      %v1968 = vadd.f32 0.0, %v1967
      %1969 = vdwg.mxu0
      %1970 = vmatprep.subr.bf16.mxu0 %v1879
      %1971 = vmatpush1.bf16.msra.mxu0 %v1878
      %1972 = vmatprep.subr.bf16.mxu0 %v1883
      %1973 = vmatpush1.bf16.msra.mxu0 %v1882
      %1974 = vmatprep.subr.bf16.mxu0 %v1887
      %1975 = vmatpush1.bf16.msra.mxu0 %v1886
      %1976 = vmatprep.subr.bf16.mxu0 %v1891
      %1977 = vmatpush1.bf16.msra.mxu0 %v1890
      %1978 = vmatprep.subr.bf16.mxu0 %v1895
      %1979 = vmatpush1.bf16.msra.mxu0 %v1894
      %1980 = vmatprep.subr.bf16.mxu0 %v1899
      %1981 = vmatpush1.bf16.msra.mxu0 %v1898
      %1982 = vmatprep.subr.bf16.mxu0 0
      %1983 = vmatpush1.bf16.msra.mxu0 0
      %1984 = vmatprep.subr.bf16.mxu0 0
      %1985 = vmatpush1.bf16.msra.mxu0 0
      %1986 = vmatprep.subr.bf16.mxu0 0
      %1987 = vmatpush1.bf16.msra.mxu0 0
      %1988 = vmatprep.subr.bf16.mxu0 0
      %1989 = vmatpush1.bf16.msra.mxu0 0
      %1990 = vmatprep.subr.bf16.mxu0 0
      %1991 = vmatpush1.bf16.msra.mxu0 0
      %1992 = vmatprep.subr.bf16.mxu0 0
      %1993 = vmatpush1.bf16.msra.mxu0 0
      %1994 = vmatprep.subr.bf16.mxu0 0
      %1995 = vmatpush1.bf16.msra.mxu0 0
      %1996 = vmatprep.subr.bf16.mxu0 0
      %1997 = vmatpush1.bf16.msra.mxu0 0
      %1998 = vmatprep.subr.bf16.mxu0 0
      %1999 = vmatpush1.bf16.msra.mxu0 0
      %2000 = vmatprep.subr.bf16.mxu0 0
      %2001 = vmatpush1.bf16.msra.mxu0 0
      %2002 = vmatprep.mubr.bf16.mxu0 0
      %2003 = vmatmul.mubr.bf16.gmra.mrb[0].mxu0 %v1925
      %v2004 = vpop.f32.mrb[0].mxu0
      %v2005 = vadd.f32 0.0, %v2004
      %v2006 = vpop.f32.mrb[0].mxu0
      %v2007 = vadd.f32 0.0, %v2006
      %v2008 = vpop.f32.mrb[0].mxu0
      %v2009 = vadd.f32 0.0, %v2008
      %v2010 = vpop.f32.mrb[0].mxu0
      %v2011 = vadd.f32 0.0, %v2010
      %2012 = vdwg.mxu0
      %v2013 = vadd.f32 %v1718, %v1962
      %v2014 = vadd.f32 %v1719, %v1964
      %v2015 = vadd.f32 %v1720, %v2005
      %v2016 = vadd.f32 %v1721, %v2007
      %v2017 = vadd.f32 %v1722, %v1966
      %v2018 = vadd.f32 %v1723, %v1968
      %v2019 = vadd.f32 %v1724, %v2009
      %v2020 = vadd.f32 %v1725, %v2011
      %v2021 = vld [vmem:[%s3] sm:$0xf]
      %v2023 = vlaneseq
      %v2024 = vshrl.u32 %v2023, 7
      %v2025 = vsub.s32 0, %v2024
      %v2026 = vrot.slane %v2021, %v2025
      %v2027 = vlaneseq
      %v2028 = vshrl.u32 %v2027, 7
      %v2029 = vsub.s32 1, %v2028
      %v2030 = vrot.slane %v2021, %v2029
      %v2031 = vlaneseq
      %v2032 = vshrl.u32 %v2031, 7
      %v2033 = vsub.s32 2, %v2032
      %v2034 = vrot.slane %v2021, %v2033
      %v2035 = vlaneseq
      %v2036 = vshrl.u32 %v2035, 7
      %v2037 = vsub.s32 3, %v2036
      %v2038 = vrot.slane %v2021, %v2037
      %v2043 = vadd.f32 %v2013, %v2026
      %v2044 = vadd.f32 %v2014, %v2030
      %v2045 = vadd.f32 %v2015, %v2034
      %v2046 = vadd.f32 %v2016, %v2038
      %v2047 = vadd.f32 %v2017, %v2026
      %v2048 = vadd.f32 %v2018, %v2030
      %v2049 = vadd.f32 %v2019, %v2034
      %v2050 = vadd.f32 %v2020, %v2038
      %v2051 = vmax.f32 %v2043, 0.0
      %v2052 = vmax.f32 %v2044, 0.0
      %v2053 = vmax.f32 %v2045, 0.0
      %v2054 = vmax.f32 %v2046, 0.0
      %v2055 = vmax.f32 %v2047, 0.0
      %v2056 = vmax.f32 %v2048, 0.0
      %v2057 = vmax.f32 %v2049, 0.0
      %v2058 = vmax.f32 %v2050, 0.0
      %v2059 = vpack.c.bf16 %v2055, %v2051
      %v2060 = vpack.c.bf16 %v2056, %v2052
      %v2061 = vpack.c.bf16 %v2057, %v2053
      %v2062 = vpack.c.bf16 %v2058, %v2054
      %v2063 = vld [vmem:[%s4] sm:$0x7]
      %vm2064 = vcmask 113664
      %v2066 = vsel %vm2064, %v2063, 0
      %vm2068 = vcmask 1046528
      %v2070 = vsel %vm2068, %v2059, 0
      %v2073 = vsel %vm2068, %v2060, 0
      %v2076 = vsel %vm2068, %v2061, 0
      %v2079 = vsel %vm2068, %v2062, 0
      %2081 = vmatprep.subr.bf16.mxu0 %v2073
      %2082 = vmatpush1.bf16.msra.mxu0 %v2070
      %2083 = vmatprep.subr.bf16.mxu0 0
      %2084 = vmatpush1.bf16.msra.mxu0 0
      %2085 = vmatprep.subr.bf16.mxu0 0
      %2086 = vmatpush1.bf16.msra.mxu0 0
      %2087 = vmatprep.subr.bf16.mxu0 0
      %2088 = vmatpush1.bf16.msra.mxu0 0
      %2089 = vmatprep.subr.bf16.mxu0 0
      %2090 = vmatpush1.bf16.msra.mxu0 0
      %2091 = vmatprep.subr.bf16.mxu0 0
      %2092 = vmatpush1.bf16.msra.mxu0 0
      %2093 = vmatprep.subr.bf16.mxu0 0
      %2094 = vmatpush1.bf16.msra.mxu0 0
      %2095 = vmatprep.subr.bf16.mxu0 0
      %2096 = vmatpush1.bf16.msra.mxu0 0
      %2097 = vmatprep.subr.bf16.mxu0 0
      %2098 = vmatpush1.bf16.msra.mxu0 0
      %2099 = vmatprep.subr.bf16.mxu0 0
      %2100 = vmatpush1.bf16.msra.mxu0 0
      %2101 = vmatprep.subr.bf16.mxu0 0
      %2102 = vmatpush1.bf16.msra.mxu0 0
      %2103 = vmatprep.subr.bf16.mxu0 0
      %2104 = vmatpush1.bf16.msra.mxu0 0
      %2105 = vmatprep.subr.bf16.mxu0 0
      %2106 = vmatpush1.bf16.msra.mxu0 0
      %2107 = vmatprep.subr.bf16.mxu0 0
      %2108 = vmatpush1.bf16.msra.mxu0 0
      %2109 = vmatprep.subr.bf16.mxu0 0
      %2110 = vmatpush1.bf16.msra.mxu0 0
      %2111 = vmatprep.subr.bf16.mxu0 0
      %2112 = vmatpush1.bf16.msra.mxu0 0
      %2113 = vmatprep.mubr.bf16.mxu0 0
      %2114 = vmatmul.mubr.bf16.gmra.mrb[0].mxu0 %v2066
      %v2115 = vpop.f32.mrb[0].mxu0
      %v2116 = vadd.f32 0.0, %v2115
      %v2117 = vpop.f32.mrb[0].mxu0
      %v2118 = vadd.f32 0.0, %v2117
      %v2119 = vpop.f32.mrb[0].mxu0
      %v2120 = vpop.f32.mrb[0].mxu0
      %2121 = vdwg.mxu0
      %2122 = vmatprep.subr.bf16.mxu0 %v2079
      %2123 = vmatpush1.bf16.msra.mxu0 %v2076
      %2124 = vmatprep.subr.bf16.mxu0 0
      %2125 = vmatpush1.bf16.msra.mxu0 0
      %2126 = vmatprep.subr.bf16.mxu0 0
      %2127 = vmatpush1.bf16.msra.mxu0 0
      %2128 = vmatprep.subr.bf16.mxu0 0
      %2129 = vmatpush1.bf16.msra.mxu0 0
      %2130 = vmatprep.subr.bf16.mxu0 0
      %2131 = vmatpush1.bf16.msra.mxu0 0
      %2132 = vmatprep.subr.bf16.mxu0 0
      %2133 = vmatpush1.bf16.msra.mxu0 0
      %2134 = vmatprep.subr.bf16.mxu0 0
      %2135 = vmatpush1.bf16.msra.mxu0 0
      %2136 = vmatprep.subr.bf16.mxu0 0
      %2137 = vmatpush1.bf16.msra.mxu0 0
      %2138 = vmatprep.subr.bf16.mxu0 0
      %2139 = vmatpush1.bf16.msra.mxu0 0
      %2140 = vmatprep.subr.bf16.mxu0 0
      %2141 = vmatpush1.bf16.msra.mxu0 0
      %2142 = vmatprep.subr.bf16.mxu0 0
      %2143 = vmatpush1.bf16.msra.mxu0 0
      %2144 = vmatprep.subr.bf16.mxu0 0
      %2145 = vmatpush1.bf16.msra.mxu0 0
      %2146 = vmatprep.subr.bf16.mxu0 0
      %2147 = vmatpush1.bf16.msra.mxu0 0
      %2148 = vmatprep.subr.bf16.mxu0 0
      %2149 = vmatpush1.bf16.msra.mxu0 0
      %2150 = vmatprep.subr.bf16.mxu0 0
      %2151 = vmatpush1.bf16.msra.mxu0 0
      %2152 = vmatprep.subr.bf16.mxu0 0
      %2153 = vmatpush1.bf16.msra.mxu0 0
      %2154 = vmatprep.mubr.bf16.mxu0 0
      %2155 = vmatmul.mubr.bf16.gmra.mrb[0].mxu0 %v2066
      %v2156 = vpop.f32.mrb[0].mxu0
      %v2157 = vadd.f32 0.0, %v2156
      %v2158 = vpop.f32.mrb[0].mxu0
      %v2159 = vadd.f32 0.0, %v2158
      %v2160 = vpop.f32.mrb[0].mxu0
      %v2161 = vpop.f32.mrb[0].mxu0
      %2162 = vdwg.mxu0
      %v2163 = vpack.c.bf16 %v2116, %v2116
      %v2164 = vpack.c.bf16 %v2118, %v2118
      %v2165 = vpack.c.bf16 %v2157, %v2157
      %v2166 = vpack.c.bf16 %v2159, %v2159
      %v2167 = vld [vmem:[%s5] sm:$0xff]
      %v2168 = vld [vmem:[%s5 + $0x8] sm:$0xf]
      %v2169 = vld [vmem:[%s5 + $0xc] sm:$0xff]
      %v2170 = vld [vmem:[%s5 + $0x14] sm:$0xf]
      %v2171 = vld [vmem:[%s5 + $0x18] sm:$0xff]
      %v2172 = vld [vmem:[%s5 + $0x20] sm:$0xf]
      %v2173 = vld [vmem:[%s5 + $0x24] sm:$0xff]
      %v2174 = vld [vmem:[%s5 + $0x2c] sm:$0xf]
      %v2175 = vld [vmem:[%s5 + $0x30] sm:$0xff]
      %v2176 = vld [vmem:[%s5 + $0x38] sm:$0xf]
      %v2177 = vld [vmem:[%s5 + $0x3c] sm:$0xff]
      %v2178 = vld [vmem:[%s5 + $0x44] sm:$0xf]
      %v2179 = vld [vmem:[%s5 + $0x48] sm:$0xff]
      %v2180 = vld [vmem:[%s5 + $0x50] sm:$0xf]
      %v2181 = vld [vmem:[%s5 + $0x54] sm:$0xff]
      %v2182 = vld [vmem:[%s5 + $0x5c] sm:$0xf]
      %v2183 = vld [vmem:[%s5 + $0x60] sm:$0xff]
      %v2184 = vld [vmem:[%s5 + $0x68] sm:$0xf]
      %v2185 = vld [vmem:[%s5 + $0x6c] sm:$0xff]
      %v2186 = vld [vmem:[%s5 + $0x74] sm:$0xf]
      %v2187 = vld [vmem:[%s5 + $0x78] sm:$0xff]
      %v2188 = vld [vmem:[%s5 + $0x80] sm:$0xf]
      %v2189 = vld [vmem:[%s5 + $0x84] sm:$0xff]
      %v2190 = vld [vmem:[%s5 + $0x8c] sm:$0xf]
      %v2191 = vld [vmem:[%s5 + $0x90] sm:$0xff]
      %v2192 = vld [vmem:[%s5 + $0x98] sm:$0xf]
      %v2193 = vld [vmem:[%s5 + $0x9c] sm:$0xff]
      %v2194 = vld [vmem:[%s5 + $0xa4] sm:$0xf]
      %v2195 = vld [vmem:[%s5 + $0xa8] sm:$0xff]
      %v2196 = vld [vmem:[%s5 + $0xb0] sm:$0xf]
      %v2197 = vld [vmem:[%s5 + $0xb4] sm:$0xff]
      %v2198 = vld [vmem:[%s5 + $0xbc] sm:$0xf]
      %v2199 = vld [vmem:[%s5 + $0xc0] sm:$0xff]
      %v2200 = vld [vmem:[%s5 + $0xc8] sm:$0xf]
      %v2201 = vld [vmem:[%s5 + $0xcc] sm:$0xff]
      %v2202 = vld [vmem:[%s5 + $0xd4] sm:$0xf]
      %v2203 = vld [vmem:[%s5 + $0xd8] sm:$0xff]
      %v2204 = vld [vmem:[%s5 + $0xe0] sm:$0xf]
      %v2205 = vld [vmem:[%s5 + $0xe4] sm:$0xff]
      %v2206 = vld [vmem:[%s5 + $0xec] sm:$0xf]
      %v2207 = vld [vmem:[%s5 + $0xf0] sm:$0xff]
      %v2208 = vld [vmem:[%s5 + $0xf8] sm:$0xf]
      %v2209 = vld [vmem:[%s5 + $0xfc] sm:$0xff]
      %v2210 = vld [vmem:[%s5 + $0x104] sm:$0xf]
      %v2211 = vld [vmem:[%s5 + $0x108] sm:$0xff]
      %v2212 = vld [vmem:[%s5 + $0x110] sm:$0xf]
      %v2213 = vld [vmem:[%s5 + $0x114] sm:$0xff]
      %v2214 = vld [vmem:[%s5 + $0x11c] sm:$0xf]
      %v2215 = vld [vmem:[%s5 + $0x120] sm:$0xff]
      %v2216 = vld [vmem:[%s5 + $0x128] sm:$0xf]
      %v2217 = vld [vmem:[%s5 + $0x12c] sm:$0xff]
      %v2218 = vld [vmem:[%s5 + $0x134] sm:$0xf]
      %v2219 = vld [vmem:[%s5 + $0x138] sm:$0xff]
      %v2220 = vld [vmem:[%s5 + $0x140] sm:$0xf]
      %v2221 = vld [vmem:[%s5 + $0x144] sm:$0xff]
      %v2222 = vld [vmem:[%s5 + $0x14c] sm:$0xf]
      %v2223 = vld [vmem:[%s5 + $0x150] sm:$0xff]
      %v2224 = vld [vmem:[%s5 + $0x158] sm:$0xf]
      %v2225 = vld [vmem:[%s5 + $0x15c] sm:$0xff]
      %v2226 = vld [vmem:[%s5 + $0x164] sm:$0xf]
      %v2227 = vld [vmem:[%s5 + $0x168] sm:$0xff]
      %v2228 = vld [vmem:[%s5 + $0x170] sm:$0xf]
      %v2229 = vld [vmem:[%s5 + $0x174] sm:$0xff]
      %v2230 = vld [vmem:[%s5 + $0x17c] sm:$0xf]
      %v2231 = vld [vmem:[%s5 + $0x180] sm:$0xff]
      %v2232 = vld [vmem:[%s5 + $0x188] sm:$0xf]
      %v2233 = vld [vmem:[%s5 + $0x18c] sm:$0xff]
      %v2234 = vld [vmem:[%s5 + $0x194] sm:$0xf]
      %v2235 = vld [vmem:[%s5 + $0x198] sm:$0xff]
      %v2236 = vld [vmem:[%s5 + $0x1a0] sm:$0xf]
      %v2237 = vld [vmem:[%s5 + $0x1a4] sm:$0xff]
      %v2238 = vld [vmem:[%s5 + $0x1ac] sm:$0xf]
      %v2239 = vld [vmem:[%s5 + $0x1b0] sm:$0xff]
      %v2240 = vld [vmem:[%s5 + $0x1b8] sm:$0xf]
      %v2241 = vld [vmem:[%s5 + $0x1bc] sm:$0xff]
      %v2242 = vld [vmem:[%s5 + $0x1c4] sm:$0xf]
      %v2243 = vld [vmem:[%s5 + $0x1c8] sm:$0xff]
      %v2244 = vld [vmem:[%s5 + $0x1d0] sm:$0xf]
      %v2245 = vld [vmem:[%s5 + $0x1d4] sm:$0xff]
      %v2246 = vld [vmem:[%s5 + $0x1dc] sm:$0xf]
      %v2247 = vld [vmem:[%s5 + $0x1e0] sm:$0xff]
      %v2248 = vld [vmem:[%s5 + $0x1e8] sm:$0xf]
      %v2249 = vld [vmem:[%s5 + $0x1ec] sm:$0xff]
      %v2250 = vld [vmem:[%s5 + $0x1f4] sm:$0xf]
      %v2251 = vld [vmem:[%s5 + $0x1f8] sm:$0xff]
      %v2252 = vld [vmem:[%s5 + $0x200] sm:$0xf]
      %v2253 = vld [vmem:[%s5 + $0x204] sm:$0xff]
      %v2254 = vld [vmem:[%s5 + $0x20c] sm:$0xf]
      %v2255 = vld [vmem:[%s5 + $0x210] sm:$0xff]
      %v2256 = vld [vmem:[%s5 + $0x218] sm:$0xf]
      %v2257 = vld [vmem:[%s5 + $0x21c] sm:$0xff]
      %v2258 = vld [vmem:[%s5 + $0x224] sm:$0xf]
      %v2259 = vld [vmem:[%s5 + $0x228] sm:$0xff]
      %v2260 = vld [vmem:[%s5 + $0x230] sm:$0xf]
      %v2261 = vld [vmem:[%s5 + $0x234] sm:$0xff]
      %v2262 = vld [vmem:[%s5 + $0x23c] sm:$0xf]
      %v2263 = vld [vmem:[%s5 + $0x240] sm:$0xff]
      %v2264 = vld [vmem:[%s5 + $0x248] sm:$0xf]
      %v2265 = vld [vmem:[%s5 + $0x24c] sm:$0xff]
      %v2266 = vld [vmem:[%s5 + $0x254] sm:$0xf]
      %v2267 = vld [vmem:[%s5 + $0x258] sm:$0xff]
      %v2268 = vld [vmem:[%s5 + $0x260] sm:$0xf]
      %v2269 = vld [vmem:[%s5 + $0x264] sm:$0xff]
      %v2270 = vld [vmem:[%s5 + $0x26c] sm:$0xf]
      %v2271 = vld [vmem:[%s5 + $0x270] sm:$0xff]
      %v2272 = vld [vmem:[%s5 + $0x278] sm:$0xf]
      %v2273 = vld [vmem:[%s5 + $0x27c] sm:$0xff]
      %v2274 = vld [vmem:[%s5 + $0x284] sm:$0xf]
      %v2275 = vld [vmem:[%s5 + $0x288] sm:$0xff]
      %v2276 = vld [vmem:[%s5 + $0x290] sm:$0xf]
      %v2277 = vld [vmem:[%s5 + $0x294] sm:$0xff]
      %v2278 = vld [vmem:[%s5 + $0x29c] sm:$0xf]
      %s2279 = scalar_lea.vmem %s4, 4
      %v2280 = vld [vmem:[%s2279] sm:$0x7]
      %v2282 = vsel %vm2064, %v2280, 0
      %2284 = vmatprep.subr.bf16.mxu0 %v2073
      %2285 = vmatpush1.bf16.msra.mxu0 %v2070
      %2286 = vmatprep.subr.bf16.mxu0 0
      %2287 = vmatpush1.bf16.msra.mxu0 0
      %2288 = vmatprep.subr.bf16.mxu0 0
      %2289 = vmatpush1.bf16.msra.mxu0 0
      %2290 = vmatprep.subr.bf16.mxu0 0
      %2291 = vmatpush1.bf16.msra.mxu0 0
      %2292 = vmatprep.subr.bf16.mxu0 0
      %2293 = vmatpush1.bf16.msra.mxu0 0
      %2294 = vmatprep.subr.bf16.mxu0 0
      %2295 = vmatpush1.bf16.msra.mxu0 0
      %2296 = vmatprep.subr.bf16.mxu0 0
      %2297 = vmatpush1.bf16.msra.mxu0 0
      %2298 = vmatprep.subr.bf16.mxu0 0
      %2299 = vmatpush1.bf16.msra.mxu0 0
      %2300 = vmatprep.subr.bf16.mxu0 0
      %2301 = vmatpush1.bf16.msra.mxu0 0
      %2302 = vmatprep.subr.bf16.mxu0 0
      %2303 = vmatpush1.bf16.msra.mxu0 0
      %2304 = vmatprep.subr.bf16.mxu0 0
      %2305 = vmatpush1.bf16.msra.mxu0 0
      %2306 = vmatprep.subr.bf16.mxu0 0
      %2307 = vmatpush1.bf16.msra.mxu0 0
      %2308 = vmatprep.subr.bf16.mxu0 0
      %2309 = vmatpush1.bf16.msra.mxu0 0
      %2310 = vmatprep.subr.bf16.mxu0 0
      %2311 = vmatpush1.bf16.msra.mxu0 0
      %2312 = vmatprep.subr.bf16.mxu0 0
      %2313 = vmatpush1.bf16.msra.mxu0 0
      %2314 = vmatprep.subr.bf16.mxu0 0
      %2315 = vmatpush1.bf16.msra.mxu0 0
      %2316 = vmatprep.mubr.bf16.mxu0 0
      %2317 = vmatmul.mubr.bf16.gmra.mrb[0].mxu0 %v2282
      %v2318 = vpop.f32.mrb[0].mxu0
      %v2319 = vadd.f32 0.0, %v2318
      %v2320 = vpop.f32.mrb[0].mxu0
      %v2321 = vadd.f32 0.0, %v2320
      %v2322 = vpop.f32.mrb[0].mxu0
      %v2323 = vpop.f32.mrb[0].mxu0
      %2324 = vdwg.mxu0
      %2325 = vmatprep.subr.bf16.mxu0 %v2079
      %2326 = vmatpush1.bf16.msra.mxu0 %v2076
      %2327 = vmatprep.subr.bf16.mxu0 0
      %2328 = vmatpush1.bf16.msra.mxu0 0
      %2329 = vmatprep.subr.bf16.mxu0 0
      %2330 = vmatpush1.bf16.msra.mxu0 0
      %2331 = vmatprep.subr.bf16.mxu0 0
      %2332 = vmatpush1.bf16.msra.mxu0 0
      %2333 = vmatprep.subr.bf16.mxu0 0
      %2334 = vmatpush1.bf16.msra.mxu0 0
      %2335 = vmatprep.subr.bf16.mxu0 0
      %2336 = vmatpush1.bf16.msra.mxu0 0
      %2337 = vmatprep.subr.bf16.mxu0 0
      %2338 = vmatpush1.bf16.msra.mxu0 0
      %2339 = vmatprep.subr.bf16.mxu0 0
      %2340 = vmatpush1.bf16.msra.mxu0 0
      %2341 = vmatprep.subr.bf16.mxu0 0
      %2342 = vmatpush1.bf16.msra.mxu0 0
      %2343 = vmatprep.subr.bf16.mxu0 0
      %2344 = vmatpush1.bf16.msra.mxu0 0
      %2345 = vmatprep.subr.bf16.mxu0 0
      %2346 = vmatpush1.bf16.msra.mxu0 0
      %2347 = vmatprep.subr.bf16.mxu0 0
      %2348 = vmatpush1.bf16.msra.mxu0 0
      %2349 = vmatprep.subr.bf16.mxu0 0
      %2350 = vmatpush1.bf16.msra.mxu0 0
      %2351 = vmatprep.subr.bf16.mxu0 0
      %2352 = vmatpush1.bf16.msra.mxu0 0
      %2353 = vmatprep.subr.bf16.mxu0 0
      %2354 = vmatpush1.bf16.msra.mxu0 0
      %2355 = vmatprep.subr.bf16.mxu0 0
      %2356 = vmatpush1.bf16.msra.mxu0 0
      %2357 = vmatprep.mubr.bf16.mxu0 0
      %2358 = vmatmul.mubr.bf16.gmra.mrb[0].mxu0 %v2282
      %v2359 = vpop.f32.mrb[0].mxu0
      %v2360 = vadd.f32 0.0, %v2359
      %v2361 = vpop.f32.mrb[0].mxu0
      %v2362 = vadd.f32 0.0, %v2361
      %v2363 = vpop.f32.mrb[0].mxu0
      %v2364 = vpop.f32.mrb[0].mxu0
      %2365 = vdwg.mxu0
      %v2366 = vpack.c.bf16 %v2319, %v2319
      %v2367 = vpack.c.bf16 %v2321, %v2321
      %v2368 = vpack.c.bf16 %v2360, %v2360
      %v2369 = vpack.c.bf16 %v2362, %v2362
      %s2370 = scalar_lea.vmem %s5, 672
      %v2371 = vld [vmem:[%s2370] sm:$0xff]
      %v2372 = vld [vmem:[%s2370 + $0x8] sm:$0xf]
      %v2373 = vld [vmem:[%s2370 + $0xc] sm:$0xff]
      %v2374 = vld [vmem:[%s2370 + $0x14] sm:$0xf]
      %v2375 = vld [vmem:[%s2370 + $0x18] sm:$0xff]
      %v2376 = vld [vmem:[%s2370 + $0x20] sm:$0xf]
      %v2377 = vld [vmem:[%s2370 + $0x24] sm:$0xff]
      %v2378 = vld [vmem:[%s2370 + $0x2c] sm:$0xf]
      %v2379 = vld [vmem:[%s2370 + $0x30] sm:$0xff]
      %v2380 = vld [vmem:[%s2370 + $0x38] sm:$0xf]
      %v2381 = vld [vmem:[%s2370 + $0x3c] sm:$0xff]
      %v2382 = vld [vmem:[%s2370 + $0x44] sm:$0xf]
      %v2383 = vld [vmem:[%s2370 + $0x48] sm:$0xff]
      %v2384 = vld [vmem:[%s2370 + $0x50] sm:$0xf]
      %v2385 = vld [vmem:[%s2370 + $0x54] sm:$0xff]
      %v2386 = vld [vmem:[%s2370 + $0x5c] sm:$0xf]
      %v2387 = vld [vmem:[%s2370 + $0x60] sm:$0xff]
      %v2388 = vld [vmem:[%s2370 + $0x68] sm:$0xf]
      %v2389 = vld [vmem:[%s2370 + $0x6c] sm:$0xff]
      %v2390 = vld [vmem:[%s2370 + $0x74] sm:$0xf]
      %v2391 = vld [vmem:[%s2370 + $0x78] sm:$0xff]
      %v2392 = vld [vmem:[%s2370 + $0x80] sm:$0xf]
      %v2393 = vld [vmem:[%s2370 + $0x84] sm:$0xff]
      %v2394 = vld [vmem:[%s2370 + $0x8c] sm:$0xf]
      %v2395 = vld [vmem:[%s2370 + $0x90] sm:$0xff]
      %v2396 = vld [vmem:[%s2370 + $0x98] sm:$0xf]
      %v2397 = vld [vmem:[%s2370 + $0x9c] sm:$0xff]
      %v2398 = vld [vmem:[%s2370 + $0xa4] sm:$0xf]
      %v2399 = vld [vmem:[%s2370 + $0xa8] sm:$0xff]
      %v2400 = vld [vmem:[%s2370 + $0xb0] sm:$0xf]
      %v2401 = vld [vmem:[%s2370 + $0xb4] sm:$0xff]
      %v2402 = vld [vmem:[%s2370 + $0xbc] sm:$0xf]
      %v2403 = vld [vmem:[%s2370 + $0xc0] sm:$0xff]
      %v2404 = vld [vmem:[%s2370 + $0xc8] sm:$0xf]
      %v2405 = vld [vmem:[%s2370 + $0xcc] sm:$0xff]
      %v2406 = vld [vmem:[%s2370 + $0xd4] sm:$0xf]
      %v2407 = vld [vmem:[%s2370 + $0xd8] sm:$0xff]
      %v2408 = vld [vmem:[%s2370 + $0xe0] sm:$0xf]
      %v2409 = vld [vmem:[%s2370 + $0xe4] sm:$0xff]
      %v2410 = vld [vmem:[%s2370 + $0xec] sm:$0xf]
      %v2411 = vld [vmem:[%s2370 + $0xf0] sm:$0xff]
      %v2412 = vld [vmem:[%s2370 + $0xf8] sm:$0xf]
      %v2413 = vld [vmem:[%s2370 + $0xfc] sm:$0xff]
      %v2414 = vld [vmem:[%s2370 + $0x104] sm:$0xf]
      %v2415 = vld [vmem:[%s2370 + $0x108] sm:$0xff]
      %v2416 = vld [vmem:[%s2370 + $0x110] sm:$0xf]
      %v2417 = vld [vmem:[%s2370 + $0x114] sm:$0xff]
      %v2418 = vld [vmem:[%s2370 + $0x11c] sm:$0xf]
      %v2419 = vld [vmem:[%s2370 + $0x120] sm:$0xff]
      %v2420 = vld [vmem:[%s2370 + $0x128] sm:$0xf]
      %v2421 = vld [vmem:[%s2370 + $0x12c] sm:$0xff]
      %v2422 = vld [vmem:[%s2370 + $0x134] sm:$0xf]
      %v2423 = vld [vmem:[%s2370 + $0x138] sm:$0xff]
      %v2424 = vld [vmem:[%s2370 + $0x140] sm:$0xf]
      %v2425 = vld [vmem:[%s2370 + $0x144] sm:$0xff]
      %v2426 = vld [vmem:[%s2370 + $0x14c] sm:$0xf]
      %v2427 = vld [vmem:[%s2370 + $0x150] sm:$0xff]
      %v2428 = vld [vmem:[%s2370 + $0x158] sm:$0xf]
      %v2429 = vld [vmem:[%s2370 + $0x15c] sm:$0xff]
      %v2430 = vld [vmem:[%s2370 + $0x164] sm:$0xf]
      %v2431 = vld [vmem:[%s2370 + $0x168] sm:$0xff]
      %v2432 = vld [vmem:[%s2370 + $0x170] sm:$0xf]
      %v2433 = vld [vmem:[%s2370 + $0x174] sm:$0xff]
      %v2434 = vld [vmem:[%s2370 + $0x17c] sm:$0xf]
      %v2435 = vld [vmem:[%s2370 + $0x180] sm:$0xff]
      %v2436 = vld [vmem:[%s2370 + $0x188] sm:$0xf]
      %v2437 = vld [vmem:[%s2370 + $0x18c] sm:$0xff]
      %v2438 = vld [vmem:[%s2370 + $0x194] sm:$0xf]
      %v2439 = vld [vmem:[%s2370 + $0x198] sm:$0xff]
      %v2440 = vld [vmem:[%s2370 + $0x1a0] sm:$0xf]
      %v2441 = vld [vmem:[%s2370 + $0x1a4] sm:$0xff]
      %v2442 = vld [vmem:[%s2370 + $0x1ac] sm:$0xf]
      %v2443 = vld [vmem:[%s2370 + $0x1b0] sm:$0xff]
      %v2444 = vld [vmem:[%s2370 + $0x1b8] sm:$0xf]
      %v2445 = vld [vmem:[%s2370 + $0x1bc] sm:$0xff]
      %v2446 = vld [vmem:[%s2370 + $0x1c4] sm:$0xf]
      %v2447 = vld [vmem:[%s2370 + $0x1c8] sm:$0xff]
      %v2448 = vld [vmem:[%s2370 + $0x1d0] sm:$0xf]
      %v2449 = vld [vmem:[%s2370 + $0x1d4] sm:$0xff]
      %v2450 = vld [vmem:[%s2370 + $0x1dc] sm:$0xf]
      %v2451 = vld [vmem:[%s2370 + $0x1e0] sm:$0xff]
      %v2452 = vld [vmem:[%s2370 + $0x1e8] sm:$0xf]
      %v2453 = vld [vmem:[%s2370 + $0x1ec] sm:$0xff]
      %v2454 = vld [vmem:[%s2370 + $0x1f4] sm:$0xf]
      %v2455 = vld [vmem:[%s2370 + $0x1f8] sm:$0xff]
      %v2456 = vld [vmem:[%s2370 + $0x200] sm:$0xf]
      %v2457 = vld [vmem:[%s2370 + $0x204] sm:$0xff]
      %v2458 = vld [vmem:[%s2370 + $0x20c] sm:$0xf]
      %v2459 = vld [vmem:[%s2370 + $0x210] sm:$0xff]
      %v2460 = vld [vmem:[%s2370 + $0x218] sm:$0xf]
      %v2461 = vld [vmem:[%s2370 + $0x21c] sm:$0xff]
      %v2462 = vld [vmem:[%s2370 + $0x224] sm:$0xf]
      %v2463 = vld [vmem:[%s2370 + $0x228] sm:$0xff]
      %v2464 = vld [vmem:[%s2370 + $0x230] sm:$0xf]
      %v2465 = vld [vmem:[%s2370 + $0x234] sm:$0xff]
      %v2466 = vld [vmem:[%s2370 + $0x23c] sm:$0xf]
      %v2467 = vld [vmem:[%s2370 + $0x240] sm:$0xff]
      %v2468 = vld [vmem:[%s2370 + $0x248] sm:$0xf]
      %v2469 = vld [vmem:[%s2370 + $0x24c] sm:$0xff]
      %v2470 = vld [vmem:[%s2370 + $0x254] sm:$0xf]
      %v2471 = vld [vmem:[%s2370 + $0x258] sm:$0xff]
      %v2472 = vld [vmem:[%s2370 + $0x260] sm:$0xf]
      %v2473 = vld [vmem:[%s2370 + $0x264] sm:$0xff]
      %v2474 = vld [vmem:[%s2370 + $0x26c] sm:$0xf]
      %v2475 = vld [vmem:[%s2370 + $0x270] sm:$0xff]
      %v2476 = vld [vmem:[%s2370 + $0x278] sm:$0xf]
      %v2477 = vld [vmem:[%s2370 + $0x27c] sm:$0xff]
      %v2478 = vld [vmem:[%s2370 + $0x284] sm:$0xf]
      %v2479 = vld [vmem:[%s2370 + $0x288] sm:$0xff]
      %v2480 = vld [vmem:[%s2370 + $0x290] sm:$0xf]
      %v2481 = vld [vmem:[%s2370 + $0x294] sm:$0xff]
      %v2482 = vld [vmem:[%s2370 + $0x29c] sm:$0xf]
      %v2595 = vunpack.c.l.b16 %v2371
      %v2596 = vunpack.c.h.b16 %v2371
      %v2597 = vunpack.c.l.b16 %v2372
      %v2598 = vunpack.c.l.b16 %v2373
      %v2599 = vunpack.c.h.b16 %v2373
      %v2600 = vunpack.c.l.b16 %v2374
      %v2601 = vunpack.c.l.b16 %v2375
      %v2602 = vunpack.c.h.b16 %v2375
      %v2603 = vunpack.c.l.b16 %v2376
      %v2604 = vunpack.c.l.b16 %v2377
      %v2605 = vunpack.c.h.b16 %v2377
      %v2606 = vunpack.c.l.b16 %v2378
      %v2607 = vunpack.c.l.b16 %v2379
      %v2608 = vunpack.c.h.b16 %v2379
      %v2609 = vunpack.c.l.b16 %v2380
      %v2610 = vunpack.c.l.b16 %v2381
      %v2611 = vunpack.c.h.b16 %v2381
      %v2612 = vunpack.c.l.b16 %v2382
      %v2613 = vunpack.c.l.b16 %v2383
      %v2614 = vunpack.c.h.b16 %v2383
      %v2615 = vunpack.c.l.b16 %v2384
      %v2616 = vunpack.c.l.b16 %v2385
      %v2617 = vunpack.c.h.b16 %v2385
      %v2618 = vunpack.c.l.b16 %v2386
      %v2619 = vunpack.c.l.b16 %v2387
      %v2620 = vunpack.c.h.b16 %v2387
      %v2621 = vunpack.c.l.b16 %v2388
      %v2622 = vunpack.c.l.b16 %v2389
      %v2623 = vunpack.c.h.b16 %v2389
      %v2624 = vunpack.c.l.b16 %v2390
      %v2625 = vunpack.c.l.b16 %v2391
      %v2626 = vunpack.c.h.b16 %v2391
      %v2627 = vunpack.c.l.b16 %v2392
      %v2628 = vunpack.c.l.b16 %v2393
      %v2629 = vunpack.c.h.b16 %v2393
      %v2630 = vunpack.c.l.b16 %v2394
      %v2631 = vunpack.c.l.b16 %v2395
      %v2632 = vunpack.c.h.b16 %v2395
      %v2633 = vunpack.c.l.b16 %v2396
      %v2634 = vunpack.c.l.b16 %v2397
      %v2635 = vunpack.c.h.b16 %v2397
      %v2636 = vunpack.c.l.b16 %v2398
      %v2637 = vunpack.c.l.b16 %v2399
      %v2638 = vunpack.c.h.b16 %v2399
      %v2639 = vunpack.c.l.b16 %v2400
      %v2640 = vunpack.c.l.b16 %v2401
      %v2641 = vunpack.c.h.b16 %v2401
      %v2642 = vunpack.c.l.b16 %v2402
      %v2643 = vunpack.c.l.b16 %v2403
      %v2644 = vunpack.c.h.b16 %v2403
      %v2645 = vunpack.c.l.b16 %v2404
      %v2646 = vunpack.c.l.b16 %v2405
      %v2647 = vunpack.c.h.b16 %v2405
      %v2648 = vunpack.c.l.b16 %v2406
      %v2649 = vunpack.c.l.b16 %v2407
      %v2650 = vunpack.c.h.b16 %v2407
      %v2651 = vunpack.c.l.b16 %v2408
      %v2652 = vunpack.c.l.b16 %v2409
      %v2653 = vunpack.c.h.b16 %v2409
      %v2654 = vunpack.c.l.b16 %v2410
      %v2655 = vunpack.c.l.b16 %v2411
      %v2656 = vunpack.c.h.b16 %v2411
      %v2657 = vunpack.c.l.b16 %v2412
      %v2658 = vunpack.c.l.b16 %v2413
      %v2659 = vunpack.c.h.b16 %v2413
      %v2660 = vunpack.c.l.b16 %v2414
      %v2661 = vunpack.c.l.b16 %v2415
      %v2662 = vunpack.c.h.b16 %v2415
      %v2663 = vunpack.c.l.b16 %v2416
      %v2664 = vunpack.c.l.b16 %v2417
      %v2665 = vunpack.c.h.b16 %v2417
      %v2666 = vunpack.c.l.b16 %v2418
      %v2667 = vunpack.c.l.b16 %v2419
      %v2668 = vunpack.c.h.b16 %v2419
      %v2669 = vunpack.c.l.b16 %v2420
      %v2670 = vunpack.c.l.b16 %v2421
      %v2671 = vunpack.c.h.b16 %v2421
      %v2672 = vunpack.c.l.b16 %v2422
      %v2673 = vunpack.c.l.b16 %v2423
      %v2674 = vunpack.c.h.b16 %v2423
      %v2675 = vunpack.c.l.b16 %v2424
      %v2676 = vunpack.c.l.b16 %v2425
      %v2677 = vunpack.c.h.b16 %v2425
      %v2678 = vunpack.c.l.b16 %v2426
      %v2679 = vunpack.c.l.b16 %v2427
      %v2680 = vunpack.c.h.b16 %v2427
      %v2681 = vunpack.c.l.b16 %v2428
      %v2682 = vunpack.c.l.b16 %v2429
      %v2683 = vunpack.c.h.b16 %v2429
      %v2684 = vunpack.c.l.b16 %v2430
      %v2685 = vunpack.c.l.b16 %v2431
      %v2686 = vunpack.c.h.b16 %v2431
      %v2687 = vunpack.c.l.b16 %v2432
      %v2688 = vunpack.c.l.b16 %v2433
      %v2689 = vunpack.c.h.b16 %v2433
      %v2690 = vunpack.c.l.b16 %v2434
      %v2691 = vunpack.c.l.b16 %v2435
      %v2692 = vunpack.c.h.b16 %v2435
      %v2693 = vunpack.c.l.b16 %v2436
      %v2694 = vunpack.c.l.b16 %v2437
      %v2695 = vunpack.c.h.b16 %v2437
      %v2696 = vunpack.c.l.b16 %v2438
      %v2697 = vunpack.c.l.b16 %v2439
      %v2698 = vunpack.c.h.b16 %v2439
      %v2699 = vunpack.c.l.b16 %v2440
      %v2700 = vunpack.c.l.b16 %v2441
      %v2701 = vunpack.c.h.b16 %v2441
      %v2702 = vunpack.c.l.b16 %v2442
      %v2703 = vunpack.c.l.b16 %v2443
      %v2704 = vunpack.c.h.b16 %v2443
      %v2705 = vunpack.c.l.b16 %v2444
      %v2706 = vunpack.c.l.b16 %v2445
      %v2707 = vunpack.c.h.b16 %v2445
      %v2708 = vunpack.c.l.b16 %v2446
      %v2709 = vunpack.c.l.b16 %v2447
      %v2710 = vunpack.c.h.b16 %v2447
      %v2711 = vunpack.c.l.b16 %v2448
      %v2712 = vunpack.c.l.b16 %v2449
      %v2713 = vunpack.c.h.b16 %v2449
      %v2714 = vunpack.c.l.b16 %v2450
      %v2715 = vunpack.c.l.b16 %v2451
      %v2716 = vunpack.c.h.b16 %v2451
      %v2717 = vunpack.c.l.b16 %v2452
      %v2718 = vunpack.c.l.b16 %v2453
      %v2719 = vunpack.c.h.b16 %v2453
      %v2720 = vunpack.c.l.b16 %v2454
      %v2721 = vunpack.c.l.b16 %v2455
      %v2722 = vunpack.c.h.b16 %v2455
      %v2723 = vunpack.c.l.b16 %v2456
      %v2724 = vunpack.c.l.b16 %v2457
      %v2725 = vunpack.c.h.b16 %v2457
      %v2726 = vunpack.c.l.b16 %v2458
      %v2727 = vunpack.c.l.b16 %v2459
      %v2728 = vunpack.c.h.b16 %v2459
      %v2729 = vunpack.c.l.b16 %v2460
      %v2730 = vunpack.c.l.b16 %v2461
      %v2731 = vunpack.c.h.b16 %v2461
      %v2732 = vunpack.c.l.b16 %v2462
      %v2733 = vunpack.c.l.b16 %v2463
      %v2734 = vunpack.c.h.b16 %v2463
      %v2735 = vunpack.c.l.b16 %v2464
      %v2736 = vunpack.c.l.b16 %v2465
      %v2737 = vunpack.c.h.b16 %v2465
      %v2738 = vunpack.c.l.b16 %v2466
      %v2739 = vunpack.c.l.b16 %v2467
      %v2740 = vunpack.c.h.b16 %v2467
      %v2741 = vunpack.c.l.b16 %v2468
      %v2742 = vunpack.c.l.b16 %v2469
      %v2743 = vunpack.c.h.b16 %v2469
      %v2744 = vunpack.c.l.b16 %v2470
      %v2745 = vunpack.c.l.b16 %v2471
      %v2746 = vunpack.c.h.b16 %v2471
      %v2747 = vunpack.c.l.b16 %v2472
      %v2748 = vunpack.c.l.b16 %v2473
      %v2749 = vunpack.c.h.b16 %v2473
      %v2750 = vunpack.c.l.b16 %v2474
      %v2751 = vunpack.c.l.b16 %v2475
      %v2752 = vunpack.c.h.b16 %v2475
      %v2753 = vunpack.c.l.b16 %v2476
      %v2754 = vunpack.c.l.b16 %v2477
      %v2755 = vunpack.c.h.b16 %v2477
      %v2756 = vunpack.c.l.b16 %v2478
      %v2757 = vunpack.c.l.b16 %v2479
      %v2758 = vunpack.c.h.b16 %v2479
      %v2759 = vunpack.c.l.b16 %v2480
      %v2760 = vunpack.c.l.b16 %v2481
      %v2761 = vunpack.c.h.b16 %v2481
      %v2762 = vunpack.c.l.b16 %v2482
      %v2763 = vpack.c.b16 %v2598, %v2595
      %v2764 = vpack.c.b16 %v2599, %v2596
      %v2765 = vpack.c.b16 %v2600, %v2597
      %v2766 = vpack.c.b16 %v2604, %v2601
      %v2767 = vpack.c.b16 %v2605, %v2602
      %v2768 = vpack.c.b16 %v2606, %v2603
      %v2769 = vpack.c.b16 %v2610, %v2607
      %v2770 = vpack.c.b16 %v2611, %v2608
      %v2771 = vpack.c.b16 %v2612, %v2609
      %v2772 = vpack.c.b16 %v2616, %v2613
      %v2773 = vpack.c.b16 %v2617, %v2614
      %v2774 = vpack.c.b16 %v2618, %v2615
      %v2775 = vpack.c.b16 %v2622, %v2619
      %v2776 = vpack.c.b16 %v2623, %v2620
      %v2777 = vpack.c.b16 %v2624, %v2621
      %v2778 = vpack.c.b16 %v2628, %v2625
      %v2779 = vpack.c.b16 %v2629, %v2626
      %v2780 = vpack.c.b16 %v2630, %v2627
      %v2781 = vpack.c.b16 %v2634, %v2631
      %v2782 = vpack.c.b16 %v2635, %v2632
      %v2783 = vpack.c.b16 %v2636, %v2633
      %v2784 = vpack.c.b16 %v2640, %v2637
      %v2785 = vpack.c.b16 %v2641, %v2638
      %v2786 = vpack.c.b16 %v2642, %v2639
      %v2787 = vpack.c.b16 %v2646, %v2643
      %v2788 = vpack.c.b16 %v2647, %v2644
      %v2789 = vpack.c.b16 %v2648, %v2645
      %v2790 = vpack.c.b16 %v2652, %v2649
      %v2791 = vpack.c.b16 %v2653, %v2650
      %v2792 = vpack.c.b16 %v2654, %v2651
      %v2793 = vpack.c.b16 %v2658, %v2655
      %v2794 = vpack.c.b16 %v2659, %v2656
      %v2795 = vpack.c.b16 %v2660, %v2657
      %v2796 = vpack.c.b16 %v2664, %v2661
      %v2797 = vpack.c.b16 %v2665, %v2662
      %v2798 = vpack.c.b16 %v2666, %v2663
      %v2799 = vpack.c.b16 %v2670, %v2667
      %v2800 = vpack.c.b16 %v2671, %v2668
      %v2801 = vpack.c.b16 %v2672, %v2669
      %v2802 = vpack.c.b16 %v2676, %v2673
      %v2803 = vpack.c.b16 %v2677, %v2674
      %v2804 = vpack.c.b16 %v2678, %v2675
      %v2805 = vpack.c.b16 %v2682, %v2679
      %v2806 = vpack.c.b16 %v2683, %v2680
      %v2807 = vpack.c.b16 %v2684, %v2681
      %v2808 = vpack.c.b16 %v2688, %v2685
      %v2809 = vpack.c.b16 %v2689, %v2686
      %v2810 = vpack.c.b16 %v2690, %v2687
      %v2811 = vpack.c.b16 %v2694, %v2691
      %v2812 = vpack.c.b16 %v2695, %v2692
      %v2813 = vpack.c.b16 %v2696, %v2693
      %v2814 = vpack.c.b16 %v2700, %v2697
      %v2815 = vpack.c.b16 %v2701, %v2698
      %v2816 = vpack.c.b16 %v2702, %v2699
      %v2817 = vpack.c.b16 %v2706, %v2703
      %v2818 = vpack.c.b16 %v2707, %v2704
      %v2819 = vpack.c.b16 %v2708, %v2705
      %v2820 = vpack.c.b16 %v2712, %v2709
      %v2821 = vpack.c.b16 %v2713, %v2710
      %v2822 = vpack.c.b16 %v2714, %v2711
      %v2823 = vpack.c.b16 %v2718, %v2715
      %v2824 = vpack.c.b16 %v2719, %v2716
      %v2825 = vpack.c.b16 %v2720, %v2717
      %v2826 = vpack.c.b16 %v2724, %v2721
      %v2827 = vpack.c.b16 %v2725, %v2722
      %v2828 = vpack.c.b16 %v2726, %v2723
      %v2829 = vpack.c.b16 %v2730, %v2727
      %v2830 = vpack.c.b16 %v2731, %v2728
      %v2831 = vpack.c.b16 %v2732, %v2729
      %v2832 = vpack.c.b16 %v2736, %v2733
      %v2833 = vpack.c.b16 %v2737, %v2734
      %v2834 = vpack.c.b16 %v2738, %v2735
      %v2835 = vpack.c.b16 %v2742, %v2739
      %v2836 = vpack.c.b16 %v2743, %v2740
      %v2837 = vpack.c.b16 %v2744, %v2741
      %v2838 = vpack.c.b16 %v2748, %v2745
      %v2839 = vpack.c.b16 %v2749, %v2746
      %v2840 = vpack.c.b16 %v2750, %v2747
      %v2841 = vpack.c.b16 %v2754, %v2751
      %v2842 = vpack.c.b16 %v2755, %v2752
      %v2843 = vpack.c.b16 %v2756, %v2753
      %v2844 = vpack.c.b16 %v2760, %v2757
      %v2845 = vpack.c.b16 %v2761, %v2758
      %v2846 = vpack.c.b16 %v2762, %v2759
      %vm2931 = vcmask 523264
      %v2933 = vsel %vm2931, %v2369, 0
      %2935 = vmatprep.subr.bf16.mxu0 %v2764
      %2936 = vmatpush1.bf16.msra.mxu0 %v2763
      %2937 = vmatprep.subr.bf16.mxu0 %v2767
      %2938 = vmatpush1.bf16.msra.mxu0 %v2766
      %2939 = vmatprep.subr.bf16.mxu0 %v2770
      %2940 = vmatpush1.bf16.msra.mxu0 %v2769
      %2941 = vmatprep.subr.bf16.mxu0 %v2773
      %2942 = vmatpush1.bf16.msra.mxu0 %v2772
      %2943 = vmatprep.subr.bf16.mxu0 %v2776
      %2944 = vmatpush1.bf16.msra.mxu0 %v2775
      %2945 = vmatprep.subr.bf16.mxu0 %v2779
      %2946 = vmatpush1.bf16.msra.mxu0 %v2778
      %2947 = vmatprep.subr.bf16.mxu0 %v2782
      %2948 = vmatpush1.bf16.msra.mxu0 %v2781
      %2949 = vmatprep.subr.bf16.mxu0 %v2785
      %2950 = vmatpush1.bf16.msra.mxu0 %v2784
      %2951 = vmatprep.subr.bf16.mxu0 %v2788
      %2952 = vmatpush1.bf16.msra.mxu0 %v2787
      %2953 = vmatprep.subr.bf16.mxu0 %v2791
      %2954 = vmatpush1.bf16.msra.mxu0 %v2790
      %2955 = vmatprep.subr.bf16.mxu0 %v2794
      %2956 = vmatpush1.bf16.msra.mxu0 %v2793
      %2957 = vmatprep.subr.bf16.mxu0 %v2797
      %2958 = vmatpush1.bf16.msra.mxu0 %v2796
      %2959 = vmatprep.subr.bf16.mxu0 %v2800
      %2960 = vmatpush1.bf16.msra.mxu0 %v2799
      %2961 = vmatprep.subr.bf16.mxu0 %v2803
      %2962 = vmatpush1.bf16.msra.mxu0 %v2802
      %2963 = vmatprep.subr.bf16.mxu0 %v2806
      %2964 = vmatpush1.bf16.msra.mxu0 %v2805
      %2965 = vmatprep.subr.bf16.mxu0 %v2809
      %2966 = vmatpush1.bf16.msra.mxu0 %v2808
      %2967 = vmatprep.mubr.bf16.mxu0 %v2367
      %2968 = vmatmul.mubr.bf16.gmra.mrb[0].mxu0 %v2366
      %v2969 = vpop.f32.mrb[0].mxu0
      %v2970 = vadd.f32 0.0, %v2969
      %v2971 = vpop.f32.mrb[0].mxu0
      %v2972 = vadd.f32 0.0, %v2971
      %v2973 = vpop.f32.mrb[0].mxu0
      %v2974 = vpop.f32.mrb[0].mxu0
      %2975 = vdwg.mxu0
      %2976 = vmatprep.subr.bf16.mxu0 %v2812
      %2977 = vmatpush1.bf16.msra.mxu0 %v2811
      %2978 = vmatprep.subr.bf16.mxu0 %v2815
      %2979 = vmatpush1.bf16.msra.mxu0 %v2814
      %2980 = vmatprep.subr.bf16.mxu0 %v2818
      %2981 = vmatpush1.bf16.msra.mxu0 %v2817
      %2982 = vmatprep.subr.bf16.mxu0 %v2821
      %2983 = vmatpush1.bf16.msra.mxu0 %v2820
      %2984 = vmatprep.subr.bf16.mxu0 %v2824
      %2985 = vmatpush1.bf16.msra.mxu0 %v2823
      %2986 = vmatprep.subr.bf16.mxu0 %v2827
      %2987 = vmatpush1.bf16.msra.mxu0 %v2826
      %2988 = vmatprep.subr.bf16.mxu0 %v2830
      %2989 = vmatpush1.bf16.msra.mxu0 %v2829
      %2990 = vmatprep.subr.bf16.mxu0 %v2833
      %2991 = vmatpush1.bf16.msra.mxu0 %v2832
      %2992 = vmatprep.subr.bf16.mxu0 %v2836
      %2993 = vmatpush1.bf16.msra.mxu0 %v2835
      %2994 = vmatprep.subr.bf16.mxu0 %v2839
      %2995 = vmatpush1.bf16.msra.mxu0 %v2838
      %2996 = vmatprep.subr.bf16.mxu0 %v2842
      %2997 = vmatpush1.bf16.msra.mxu0 %v2841
      %2998 = vmatprep.subr.bf16.mxu0 %v2845
      %2999 = vmatpush1.bf16.msra.mxu0 %v2844
      %3000 = vmatprep.subr.bf16.mxu0 0
      %3001 = vmatpush1.bf16.msra.mxu0 0
      %3002 = vmatprep.subr.bf16.mxu0 0
      %3003 = vmatpush1.bf16.msra.mxu0 0
      %3004 = vmatprep.subr.bf16.mxu0 0
      %3005 = vmatpush1.bf16.msra.mxu0 0
      %3006 = vmatprep.subr.bf16.mxu0 0
      %3007 = vmatpush1.bf16.msra.mxu0 0
      %3008 = vmatprep.mubr.bf16.mxu0 %v2933
      %3009 = vmatmul.mubr.bf16.gmra.mrb[0].mxu0 %v2368
      %v3010 = vpop.f32.mrb[0].mxu0
      %v3011 = vadd.f32 %v2970, %v3010
      %v3012 = vpop.f32.mrb[0].mxu0
      %v3013 = vadd.f32 %v2972, %v3012
      %v3014 = vpop.f32.mrb[0].mxu0
      %v3015 = vpop.f32.mrb[0].mxu0
      %3016 = vdwg.mxu0
      %3017 = vmatprep.subr.bf16.mxu0 0
      %3018 = vmatpush1.bf16.msra.mxu0 %v2765
      %3019 = vmatprep.subr.bf16.mxu0 0
      %3020 = vmatpush1.bf16.msra.mxu0 %v2768
      %3021 = vmatprep.subr.bf16.mxu0 0
      %3022 = vmatpush1.bf16.msra.mxu0 %v2771
      %3023 = vmatprep.subr.bf16.mxu0 0
      %3024 = vmatpush1.bf16.msra.mxu0 %v2774
      %3025 = vmatprep.subr.bf16.mxu0 0
      %3026 = vmatpush1.bf16.msra.mxu0 %v2777
      %3027 = vmatprep.subr.bf16.mxu0 0
      %3028 = vmatpush1.bf16.msra.mxu0 %v2780
      %3029 = vmatprep.subr.bf16.mxu0 0
      %3030 = vmatpush1.bf16.msra.mxu0 %v2783
      %3031 = vmatprep.subr.bf16.mxu0 0
      %3032 = vmatpush1.bf16.msra.mxu0 %v2786
      %3033 = vmatprep.subr.bf16.mxu0 0
      %3034 = vmatpush1.bf16.msra.mxu0 %v2789
      %3035 = vmatprep.subr.bf16.mxu0 0
      %3036 = vmatpush1.bf16.msra.mxu0 %v2792
      %3037 = vmatprep.subr.bf16.mxu0 0
      %3038 = vmatpush1.bf16.msra.mxu0 %v2795
      %3039 = vmatprep.subr.bf16.mxu0 0
      %3040 = vmatpush1.bf16.msra.mxu0 %v2798
      %3041 = vmatprep.subr.bf16.mxu0 0
      %3042 = vmatpush1.bf16.msra.mxu0 %v2801
      %3043 = vmatprep.subr.bf16.mxu0 0
      %3044 = vmatpush1.bf16.msra.mxu0 %v2804
      %3045 = vmatprep.subr.bf16.mxu0 0
      %3046 = vmatpush1.bf16.msra.mxu0 %v2807
      %3047 = vmatprep.subr.bf16.mxu0 0
      %3048 = vmatpush1.bf16.msra.mxu0 %v2810
      %3049 = vmatprep.mubr.bf16.mxu0 %v2367
      %3050 = vmatmul.mubr.bf16.gmra.mrb[0].mxu0 %v2366
      %v3051 = vpop.f32.mrb[0].mxu0
      %v3052 = vadd.f32 0.0, %v3051
      %v3053 = vpop.f32.mrb[0].mxu0
      %v3054 = vpop.f32.mrb[0].mxu0
      %v3055 = vpop.f32.mrb[0].mxu0
      %3056 = vdwg.mxu0
      %3057 = vmatprep.subr.bf16.mxu0 0
      %3058 = vmatpush1.bf16.msra.mxu0 %v2813
      %3059 = vmatprep.subr.bf16.mxu0 0
      %3060 = vmatpush1.bf16.msra.mxu0 %v2816
      %3061 = vmatprep.subr.bf16.mxu0 0
      %3062 = vmatpush1.bf16.msra.mxu0 %v2819
      %3063 = vmatprep.subr.bf16.mxu0 0
      %3064 = vmatpush1.bf16.msra.mxu0 %v2822
      %3065 = vmatprep.subr.bf16.mxu0 0
      %3066 = vmatpush1.bf16.msra.mxu0 %v2825
      %3067 = vmatprep.subr.bf16.mxu0 0
      %3068 = vmatpush1.bf16.msra.mxu0 %v2828
      %3069 = vmatprep.subr.bf16.mxu0 0
      %3070 = vmatpush1.bf16.msra.mxu0 %v2831
      %3071 = vmatprep.subr.bf16.mxu0 0
      %3072 = vmatpush1.bf16.msra.mxu0 %v2834
      %3073 = vmatprep.subr.bf16.mxu0 0
      %3074 = vmatpush1.bf16.msra.mxu0 %v2837
      %3075 = vmatprep.subr.bf16.mxu0 0
      %3076 = vmatpush1.bf16.msra.mxu0 %v2840
      %3077 = vmatprep.subr.bf16.mxu0 0
      %3078 = vmatpush1.bf16.msra.mxu0 %v2843
      %3079 = vmatprep.subr.bf16.mxu0 0
      %3080 = vmatpush1.bf16.msra.mxu0 %v2846
      %3081 = vmatprep.subr.bf16.mxu0 0
      %3082 = vmatpush1.bf16.msra.mxu0 0
      %3083 = vmatprep.subr.bf16.mxu0 0
      %3084 = vmatpush1.bf16.msra.mxu0 0
      %3085 = vmatprep.subr.bf16.mxu0 0
      %3086 = vmatpush1.bf16.msra.mxu0 0
      %3087 = vmatprep.subr.bf16.mxu0 0
      %3088 = vmatpush1.bf16.msra.mxu0 0
      %3089 = vmatprep.mubr.bf16.mxu0 %v2933
      %3090 = vmatmul.mubr.bf16.gmra.mrb[0].mxu0 %v2368
      %v3091 = vpop.f32.mrb[0].mxu0
      %v3092 = vadd.f32 %v3052, %v3091
      %v3093 = vpop.f32.mrb[0].mxu0
      %v3094 = vpop.f32.mrb[0].mxu0
      %v3095 = vpop.f32.mrb[0].mxu0
      %3096 = vdwg.mxu0
      %v3209 = vunpack.c.l.b16 %v2167
      %v3210 = vunpack.c.h.b16 %v2167
      %v3211 = vunpack.c.l.b16 %v2168
      %v3212 = vunpack.c.l.b16 %v2169
      %v3213 = vunpack.c.h.b16 %v2169
      %v3214 = vunpack.c.l.b16 %v2170
      %v3215 = vunpack.c.l.b16 %v2171
      %v3216 = vunpack.c.h.b16 %v2171
      %v3217 = vunpack.c.l.b16 %v2172
      %v3218 = vunpack.c.l.b16 %v2173
      %v3219 = vunpack.c.h.b16 %v2173
      %v3220 = vunpack.c.l.b16 %v2174
      %v3221 = vunpack.c.l.b16 %v2175
      %v3222 = vunpack.c.h.b16 %v2175
      %v3223 = vunpack.c.l.b16 %v2176
      %v3224 = vunpack.c.l.b16 %v2177
      %v3225 = vunpack.c.h.b16 %v2177
      %v3226 = vunpack.c.l.b16 %v2178
      %v3227 = vunpack.c.l.b16 %v2179
      %v3228 = vunpack.c.h.b16 %v2179
      %v3229 = vunpack.c.l.b16 %v2180
      %v3230 = vunpack.c.l.b16 %v2181
      %v3231 = vunpack.c.h.b16 %v2181
      %v3232 = vunpack.c.l.b16 %v2182
      %v3233 = vunpack.c.l.b16 %v2183
      %v3234 = vunpack.c.h.b16 %v2183
      %v3235 = vunpack.c.l.b16 %v2184
      %v3236 = vunpack.c.l.b16 %v2185
      %v3237 = vunpack.c.h.b16 %v2185
      %v3238 = vunpack.c.l.b16 %v2186
      %v3239 = vunpack.c.l.b16 %v2187
      %v3240 = vunpack.c.h.b16 %v2187
      %v3241 = vunpack.c.l.b16 %v2188
      %v3242 = vunpack.c.l.b16 %v2189
      %v3243 = vunpack.c.h.b16 %v2189
      %v3244 = vunpack.c.l.b16 %v2190
      %v3245 = vunpack.c.l.b16 %v2191
      %v3246 = vunpack.c.h.b16 %v2191
      %v3247 = vunpack.c.l.b16 %v2192
      %v3248 = vunpack.c.l.b16 %v2193
      %v3249 = vunpack.c.h.b16 %v2193
      %v3250 = vunpack.c.l.b16 %v2194
      %v3251 = vunpack.c.l.b16 %v2195
      %v3252 = vunpack.c.h.b16 %v2195
      %v3253 = vunpack.c.l.b16 %v2196
      %v3254 = vunpack.c.l.b16 %v2197
      %v3255 = vunpack.c.h.b16 %v2197
      %v3256 = vunpack.c.l.b16 %v2198
      %v3257 = vunpack.c.l.b16 %v2199
      %v3258 = vunpack.c.h.b16 %v2199
      %v3259 = vunpack.c.l.b16 %v2200
      %v3260 = vunpack.c.l.b16 %v2201
      %v3261 = vunpack.c.h.b16 %v2201
      %v3262 = vunpack.c.l.b16 %v2202
      %v3263 = vunpack.c.l.b16 %v2203
      %v3264 = vunpack.c.h.b16 %v2203
      %v3265 = vunpack.c.l.b16 %v2204
      %v3266 = vunpack.c.l.b16 %v2205
      %v3267 = vunpack.c.h.b16 %v2205
      %v3268 = vunpack.c.l.b16 %v2206
      %v3269 = vunpack.c.l.b16 %v2207
      %v3270 = vunpack.c.h.b16 %v2207
      %v3271 = vunpack.c.l.b16 %v2208
      %v3272 = vunpack.c.l.b16 %v2209
      %v3273 = vunpack.c.h.b16 %v2209
      %v3274 = vunpack.c.l.b16 %v2210
      %v3275 = vunpack.c.l.b16 %v2211
      %v3276 = vunpack.c.h.b16 %v2211
      %v3277 = vunpack.c.l.b16 %v2212
      %v3278 = vunpack.c.l.b16 %v2213
      %v3279 = vunpack.c.h.b16 %v2213
      %v3280 = vunpack.c.l.b16 %v2214
      %v3281 = vunpack.c.l.b16 %v2215
      %v3282 = vunpack.c.h.b16 %v2215
      %v3283 = vunpack.c.l.b16 %v2216
      %v3284 = vunpack.c.l.b16 %v2217
      %v3285 = vunpack.c.h.b16 %v2217
      %v3286 = vunpack.c.l.b16 %v2218
      %v3287 = vunpack.c.l.b16 %v2219
      %v3288 = vunpack.c.h.b16 %v2219
      %v3289 = vunpack.c.l.b16 %v2220
      %v3290 = vunpack.c.l.b16 %v2221
      %v3291 = vunpack.c.h.b16 %v2221
      %v3292 = vunpack.c.l.b16 %v2222
      %v3293 = vunpack.c.l.b16 %v2223
      %v3294 = vunpack.c.h.b16 %v2223
      %v3295 = vunpack.c.l.b16 %v2224
      %v3296 = vunpack.c.l.b16 %v2225
      %v3297 = vunpack.c.h.b16 %v2225
      %v3298 = vunpack.c.l.b16 %v2226
      %v3299 = vunpack.c.l.b16 %v2227
      %v3300 = vunpack.c.h.b16 %v2227
      %v3301 = vunpack.c.l.b16 %v2228
      %v3302 = vunpack.c.l.b16 %v2229
      %v3303 = vunpack.c.h.b16 %v2229
      %v3304 = vunpack.c.l.b16 %v2230
      %v3305 = vunpack.c.l.b16 %v2231
      %v3306 = vunpack.c.h.b16 %v2231
      %v3307 = vunpack.c.l.b16 %v2232
      %v3308 = vunpack.c.l.b16 %v2233
      %v3309 = vunpack.c.h.b16 %v2233
      %v3310 = vunpack.c.l.b16 %v2234
      %v3311 = vunpack.c.l.b16 %v2235
      %v3312 = vunpack.c.h.b16 %v2235
      %v3313 = vunpack.c.l.b16 %v2236
      %v3314 = vunpack.c.l.b16 %v2237
      %v3315 = vunpack.c.h.b16 %v2237
      %v3316 = vunpack.c.l.b16 %v2238
      %v3317 = vunpack.c.l.b16 %v2239
      %v3318 = vunpack.c.h.b16 %v2239
      %v3319 = vunpack.c.l.b16 %v2240
      %v3320 = vunpack.c.l.b16 %v2241
      %v3321 = vunpack.c.h.b16 %v2241
      %v3322 = vunpack.c.l.b16 %v2242
      %v3323 = vunpack.c.l.b16 %v2243
      %v3324 = vunpack.c.h.b16 %v2243
      %v3325 = vunpack.c.l.b16 %v2244
      %v3326 = vunpack.c.l.b16 %v2245
      %v3327 = vunpack.c.h.b16 %v2245
      %v3328 = vunpack.c.l.b16 %v2246
      %v3329 = vunpack.c.l.b16 %v2247
      %v3330 = vunpack.c.h.b16 %v2247
      %v3331 = vunpack.c.l.b16 %v2248
      %v3332 = vunpack.c.l.b16 %v2249
      %v3333 = vunpack.c.h.b16 %v2249
      %v3334 = vunpack.c.l.b16 %v2250
      %v3335 = vunpack.c.l.b16 %v2251
      %v3336 = vunpack.c.h.b16 %v2251
      %v3337 = vunpack.c.l.b16 %v2252
      %v3338 = vunpack.c.l.b16 %v2253
      %v3339 = vunpack.c.h.b16 %v2253
      %v3340 = vunpack.c.l.b16 %v2254
      %v3341 = vunpack.c.l.b16 %v2255
      %v3342 = vunpack.c.h.b16 %v2255
      %v3343 = vunpack.c.l.b16 %v2256
      %v3344 = vunpack.c.l.b16 %v2257
      %v3345 = vunpack.c.h.b16 %v2257
      %v3346 = vunpack.c.l.b16 %v2258
      %v3347 = vunpack.c.l.b16 %v2259
      %v3348 = vunpack.c.h.b16 %v2259
      %v3349 = vunpack.c.l.b16 %v2260
      %v3350 = vunpack.c.l.b16 %v2261
      %v3351 = vunpack.c.h.b16 %v2261
      %v3352 = vunpack.c.l.b16 %v2262
      %v3353 = vunpack.c.l.b16 %v2263
      %v3354 = vunpack.c.h.b16 %v2263
      %v3355 = vunpack.c.l.b16 %v2264
      %v3356 = vunpack.c.l.b16 %v2265
      %v3357 = vunpack.c.h.b16 %v2265
      %v3358 = vunpack.c.l.b16 %v2266
      %v3359 = vunpack.c.l.b16 %v2267
      %v3360 = vunpack.c.h.b16 %v2267
      %v3361 = vunpack.c.l.b16 %v2268
      %v3362 = vunpack.c.l.b16 %v2269
      %v3363 = vunpack.c.h.b16 %v2269
      %v3364 = vunpack.c.l.b16 %v2270
      %v3365 = vunpack.c.l.b16 %v2271
      %v3366 = vunpack.c.h.b16 %v2271
      %v3367 = vunpack.c.l.b16 %v2272
      %v3368 = vunpack.c.l.b16 %v2273
      %v3369 = vunpack.c.h.b16 %v2273
      %v3370 = vunpack.c.l.b16 %v2274
      %v3371 = vunpack.c.l.b16 %v2275
      %v3372 = vunpack.c.h.b16 %v2275
      %v3373 = vunpack.c.l.b16 %v2276
      %v3374 = vunpack.c.l.b16 %v2277
      %v3375 = vunpack.c.h.b16 %v2277
      %v3376 = vunpack.c.l.b16 %v2278
      %v3377 = vpack.c.b16 %v3212, %v3209
      %v3378 = vpack.c.b16 %v3213, %v3210
      %v3379 = vpack.c.b16 %v3214, %v3211
      %v3380 = vpack.c.b16 %v3218, %v3215
      %v3381 = vpack.c.b16 %v3219, %v3216
      %v3382 = vpack.c.b16 %v3220, %v3217
      %v3383 = vpack.c.b16 %v3224, %v3221
      %v3384 = vpack.c.b16 %v3225, %v3222
      %v3385 = vpack.c.b16 %v3226, %v3223
      %v3386 = vpack.c.b16 %v3230, %v3227
      %v3387 = vpack.c.b16 %v3231, %v3228
      %v3388 = vpack.c.b16 %v3232, %v3229
      %v3389 = vpack.c.b16 %v3236, %v3233
      %v3390 = vpack.c.b16 %v3237, %v3234
      %v3391 = vpack.c.b16 %v3238, %v3235
      %v3392 = vpack.c.b16 %v3242, %v3239
      %v3393 = vpack.c.b16 %v3243, %v3240
      %v3394 = vpack.c.b16 %v3244, %v3241
      %v3395 = vpack.c.b16 %v3248, %v3245
      %v3396 = vpack.c.b16 %v3249, %v3246
      %v3397 = vpack.c.b16 %v3250, %v3247
      %v3398 = vpack.c.b16 %v3254, %v3251
      %v3399 = vpack.c.b16 %v3255, %v3252
      %v3400 = vpack.c.b16 %v3256, %v3253
      %v3401 = vpack.c.b16 %v3260, %v3257
      %v3402 = vpack.c.b16 %v3261, %v3258
      %v3403 = vpack.c.b16 %v3262, %v3259
      %v3404 = vpack.c.b16 %v3266, %v3263
      %v3405 = vpack.c.b16 %v3267, %v3264
      %v3406 = vpack.c.b16 %v3268, %v3265
      %v3407 = vpack.c.b16 %v3272, %v3269
      %v3408 = vpack.c.b16 %v3273, %v3270
      %v3409 = vpack.c.b16 %v3274, %v3271
      %v3410 = vpack.c.b16 %v3278, %v3275
      %v3411 = vpack.c.b16 %v3279, %v3276
      %v3412 = vpack.c.b16 %v3280, %v3277
      %v3413 = vpack.c.b16 %v3284, %v3281
      %v3414 = vpack.c.b16 %v3285, %v3282
      %v3415 = vpack.c.b16 %v3286, %v3283
      %v3416 = vpack.c.b16 %v3290, %v3287
      %v3417 = vpack.c.b16 %v3291, %v3288
      %v3418 = vpack.c.b16 %v3292, %v3289
      %v3419 = vpack.c.b16 %v3296, %v3293
      %v3420 = vpack.c.b16 %v3297, %v3294
      %v3421 = vpack.c.b16 %v3298, %v3295
      %v3422 = vpack.c.b16 %v3302, %v3299
      %v3423 = vpack.c.b16 %v3303, %v3300
      %v3424 = vpack.c.b16 %v3304, %v3301
      %v3425 = vpack.c.b16 %v3308, %v3305
      %v3426 = vpack.c.b16 %v3309, %v3306
      %v3427 = vpack.c.b16 %v3310, %v3307
      %v3428 = vpack.c.b16 %v3314, %v3311
      %v3429 = vpack.c.b16 %v3315, %v3312
      %v3430 = vpack.c.b16 %v3316, %v3313
      %v3431 = vpack.c.b16 %v3320, %v3317
      %v3432 = vpack.c.b16 %v3321, %v3318
      %v3433 = vpack.c.b16 %v3322, %v3319
      %v3434 = vpack.c.b16 %v3326, %v3323
      %v3435 = vpack.c.b16 %v3327, %v3324
      %v3436 = vpack.c.b16 %v3328, %v3325
      %v3437 = vpack.c.b16 %v3332, %v3329
      %v3438 = vpack.c.b16 %v3333, %v3330
      %v3439 = vpack.c.b16 %v3334, %v3331
      %v3440 = vpack.c.b16 %v3338, %v3335
      %v3441 = vpack.c.b16 %v3339, %v3336
      %v3442 = vpack.c.b16 %v3340, %v3337
      %v3443 = vpack.c.b16 %v3344, %v3341
      %v3444 = vpack.c.b16 %v3345, %v3342
      %v3445 = vpack.c.b16 %v3346, %v3343
      %v3446 = vpack.c.b16 %v3350, %v3347
      %v3447 = vpack.c.b16 %v3351, %v3348
      %v3448 = vpack.c.b16 %v3352, %v3349
      %v3449 = vpack.c.b16 %v3356, %v3353
      %v3450 = vpack.c.b16 %v3357, %v3354
      %v3451 = vpack.c.b16 %v3358, %v3355
      %v3452 = vpack.c.b16 %v3362, %v3359
      %v3453 = vpack.c.b16 %v3363, %v3360
      %v3454 = vpack.c.b16 %v3364, %v3361
      %v3455 = vpack.c.b16 %v3368, %v3365
      %v3456 = vpack.c.b16 %v3369, %v3366
      %v3457 = vpack.c.b16 %v3370, %v3367
      %v3458 = vpack.c.b16 %v3374, %v3371
      %v3459 = vpack.c.b16 %v3375, %v3372
      %v3460 = vpack.c.b16 %v3376, %v3373
      %v3546 = vsel %vm2931, %v2166, 0
      %3548 = vmatprep.subr.bf16.mxu0 %v3378
      %3549 = vmatpush1.bf16.msra.mxu0 %v3377
      %3550 = vmatprep.subr.bf16.mxu0 %v3381
      %3551 = vmatpush1.bf16.msra.mxu0 %v3380
      %3552 = vmatprep.subr.bf16.mxu0 %v3384
      %3553 = vmatpush1.bf16.msra.mxu0 %v3383
      %3554 = vmatprep.subr.bf16.mxu0 %v3387
      %3555 = vmatpush1.bf16.msra.mxu0 %v3386
      %3556 = vmatprep.subr.bf16.mxu0 %v3390
      %3557 = vmatpush1.bf16.msra.mxu0 %v3389
      %3558 = vmatprep.subr.bf16.mxu0 %v3393
      %3559 = vmatpush1.bf16.msra.mxu0 %v3392
      %3560 = vmatprep.subr.bf16.mxu0 %v3396
      %3561 = vmatpush1.bf16.msra.mxu0 %v3395
      %3562 = vmatprep.subr.bf16.mxu0 %v3399
      %3563 = vmatpush1.bf16.msra.mxu0 %v3398
      %3564 = vmatprep.subr.bf16.mxu0 %v3402
      %3565 = vmatpush1.bf16.msra.mxu0 %v3401
      %3566 = vmatprep.subr.bf16.mxu0 %v3405
      %3567 = vmatpush1.bf16.msra.mxu0 %v3404
      %3568 = vmatprep.subr.bf16.mxu0 %v3408
      %3569 = vmatpush1.bf16.msra.mxu0 %v3407
      %3570 = vmatprep.subr.bf16.mxu0 %v3411
      %3571 = vmatpush1.bf16.msra.mxu0 %v3410
      %3572 = vmatprep.subr.bf16.mxu0 %v3414
      %3573 = vmatpush1.bf16.msra.mxu0 %v3413
      %3574 = vmatprep.subr.bf16.mxu0 %v3417
      %3575 = vmatpush1.bf16.msra.mxu0 %v3416
      %3576 = vmatprep.subr.bf16.mxu0 %v3420
      %3577 = vmatpush1.bf16.msra.mxu0 %v3419
      %3578 = vmatprep.subr.bf16.mxu0 %v3423
      %3579 = vmatpush1.bf16.msra.mxu0 %v3422
      %3580 = vmatprep.mubr.bf16.mxu0 %v2164
      %3581 = vmatmul.mubr.bf16.gmra.mrb[0].mxu0 %v2163
      %v3582 = vpop.f32.mrb[0].mxu0
      %v3583 = vadd.f32 %v3011, %v3582
      %v3584 = vpop.f32.mrb[0].mxu0
      %v3585 = vadd.f32 %v3013, %v3584
      %v3586 = vpop.f32.mrb[0].mxu0
      %v3587 = vpop.f32.mrb[0].mxu0
      %3588 = vdwg.mxu0
      %3589 = vmatprep.subr.bf16.mxu0 %v3426
      %3590 = vmatpush1.bf16.msra.mxu0 %v3425
      %3591 = vmatprep.subr.bf16.mxu0 %v3429
      %3592 = vmatpush1.bf16.msra.mxu0 %v3428
      %3593 = vmatprep.subr.bf16.mxu0 %v3432
      %3594 = vmatpush1.bf16.msra.mxu0 %v3431
      %3595 = vmatprep.subr.bf16.mxu0 %v3435
      %3596 = vmatpush1.bf16.msra.mxu0 %v3434
      %3597 = vmatprep.subr.bf16.mxu0 %v3438
      %3598 = vmatpush1.bf16.msra.mxu0 %v3437
      %3599 = vmatprep.subr.bf16.mxu0 %v3441
      %3600 = vmatpush1.bf16.msra.mxu0 %v3440
      %3601 = vmatprep.subr.bf16.mxu0 %v3444
      %3602 = vmatpush1.bf16.msra.mxu0 %v3443
      %3603 = vmatprep.subr.bf16.mxu0 %v3447
      %3604 = vmatpush1.bf16.msra.mxu0 %v3446
      %3605 = vmatprep.subr.bf16.mxu0 %v3450
      %3606 = vmatpush1.bf16.msra.mxu0 %v3449
      %3607 = vmatprep.subr.bf16.mxu0 %v3453
      %3608 = vmatpush1.bf16.msra.mxu0 %v3452
      %3609 = vmatprep.subr.bf16.mxu0 %v3456
      %3610 = vmatpush1.bf16.msra.mxu0 %v3455
      %3611 = vmatprep.subr.bf16.mxu0 %v3459
      %3612 = vmatpush1.bf16.msra.mxu0 %v3458
      %3613 = vmatprep.subr.bf16.mxu0 0
      %3614 = vmatpush1.bf16.msra.mxu0 0
      %3615 = vmatprep.subr.bf16.mxu0 0
      %3616 = vmatpush1.bf16.msra.mxu0 0
      %3617 = vmatprep.subr.bf16.mxu0 0
      %3618 = vmatpush1.bf16.msra.mxu0 0
      %3619 = vmatprep.subr.bf16.mxu0 0
      %3620 = vmatpush1.bf16.msra.mxu0 0
      %3621 = vmatprep.mubr.bf16.mxu0 %v3546
      %3622 = vmatmul.mubr.bf16.gmra.mrb[0].mxu0 %v2165
      %v3623 = vpop.f32.mrb[0].mxu0
      %v3624 = vadd.f32 %v3583, %v3623
      %v3625 = vpop.f32.mrb[0].mxu0
      %v3626 = vadd.f32 %v3585, %v3625
      %v3627 = vpop.f32.mrb[0].mxu0
      %v3628 = vpop.f32.mrb[0].mxu0
      %3629 = vdwg.mxu0
      %3630 = vmatprep.subr.bf16.mxu0 0
      %3631 = vmatpush1.bf16.msra.mxu0 %v3379
      %3632 = vmatprep.subr.bf16.mxu0 0
      %3633 = vmatpush1.bf16.msra.mxu0 %v3382
      %3634 = vmatprep.subr.bf16.mxu0 0
      %3635 = vmatpush1.bf16.msra.mxu0 %v3385
      %3636 = vmatprep.subr.bf16.mxu0 0
      %3637 = vmatpush1.bf16.msra.mxu0 %v3388
      %3638 = vmatprep.subr.bf16.mxu0 0
      %3639 = vmatpush1.bf16.msra.mxu0 %v3391
      %3640 = vmatprep.subr.bf16.mxu0 0
      %3641 = vmatpush1.bf16.msra.mxu0 %v3394
      %3642 = vmatprep.subr.bf16.mxu0 0
      %3643 = vmatpush1.bf16.msra.mxu0 %v3397
      %3644 = vmatprep.subr.bf16.mxu0 0
      %3645 = vmatpush1.bf16.msra.mxu0 %v3400
      %3646 = vmatprep.subr.bf16.mxu0 0
      %3647 = vmatpush1.bf16.msra.mxu0 %v3403
      %3648 = vmatprep.subr.bf16.mxu0 0
      %3649 = vmatpush1.bf16.msra.mxu0 %v3406
      %3650 = vmatprep.subr.bf16.mxu0 0
      %3651 = vmatpush1.bf16.msra.mxu0 %v3409
      %3652 = vmatprep.subr.bf16.mxu0 0
      %3653 = vmatpush1.bf16.msra.mxu0 %v3412
      %3654 = vmatprep.subr.bf16.mxu0 0
      %3655 = vmatpush1.bf16.msra.mxu0 %v3415
      %3656 = vmatprep.subr.bf16.mxu0 0
      %3657 = vmatpush1.bf16.msra.mxu0 %v3418
      %3658 = vmatprep.subr.bf16.mxu0 0
      %3659 = vmatpush1.bf16.msra.mxu0 %v3421
      %3660 = vmatprep.subr.bf16.mxu0 0
      %3661 = vmatpush1.bf16.msra.mxu0 %v3424
      %3662 = vmatprep.mubr.bf16.mxu0 %v2164
      %3663 = vmatmul.mubr.bf16.gmra.mrb[0].mxu0 %v2163
      %v3664 = vpop.f32.mrb[0].mxu0
      %v3665 = vadd.f32 %v3092, %v3664
      %v3666 = vpop.f32.mrb[0].mxu0
      %v3667 = vpop.f32.mrb[0].mxu0
      %v3668 = vpop.f32.mrb[0].mxu0
      %3669 = vdwg.mxu0
      %3670 = vmatprep.subr.bf16.mxu0 0
      %3671 = vmatpush1.bf16.msra.mxu0 %v3427
      %3672 = vmatprep.subr.bf16.mxu0 0
      %3673 = vmatpush1.bf16.msra.mxu0 %v3430
      %3674 = vmatprep.subr.bf16.mxu0 0
      %3675 = vmatpush1.bf16.msra.mxu0 %v3433
      %3676 = vmatprep.subr.bf16.mxu0 0
      %3677 = vmatpush1.bf16.msra.mxu0 %v3436
      %3678 = vmatprep.subr.bf16.mxu0 0
      %3679 = vmatpush1.bf16.msra.mxu0 %v3439
      %3680 = vmatprep.subr.bf16.mxu0 0
      %3681 = vmatpush1.bf16.msra.mxu0 %v3442
      %3682 = vmatprep.subr.bf16.mxu0 0
      %3683 = vmatpush1.bf16.msra.mxu0 %v3445
      %3684 = vmatprep.subr.bf16.mxu0 0
      %3685 = vmatpush1.bf16.msra.mxu0 %v3448
      %3686 = vmatprep.subr.bf16.mxu0 0
      %3687 = vmatpush1.bf16.msra.mxu0 %v3451
      %3688 = vmatprep.subr.bf16.mxu0 0
      %3689 = vmatpush1.bf16.msra.mxu0 %v3454
      %3690 = vmatprep.subr.bf16.mxu0 0
      %3691 = vmatpush1.bf16.msra.mxu0 %v3457
      %3692 = vmatprep.subr.bf16.mxu0 0
      %3693 = vmatpush1.bf16.msra.mxu0 %v3460
      %3694 = vmatprep.subr.bf16.mxu0 0
      %3695 = vmatpush1.bf16.msra.mxu0 0
      %3696 = vmatprep.subr.bf16.mxu0 0
      %3697 = vmatpush1.bf16.msra.mxu0 0
      %3698 = vmatprep.subr.bf16.mxu0 0
      %3699 = vmatpush1.bf16.msra.mxu0 0
      %3700 = vmatprep.subr.bf16.mxu0 0
      %3701 = vmatpush1.bf16.msra.mxu0 0
      %3702 = vmatprep.mubr.bf16.mxu0 %v3546
      %3703 = vmatmul.mubr.bf16.gmra.mrb[0].mxu0 %v2165
      %v3704 = vpop.f32.mrb[0].mxu0
      %v3705 = vadd.f32 %v3665, %v3704
      %v3706 = vpop.f32.mrb[0].mxu0
      %v3707 = vpop.f32.mrb[0].mxu0
      %v3708 = vpop.f32.mrb[0].mxu0
      %3709 = vdwg.mxu0
      %s3710 = scalar_lea.vmem %s4, 8
      %v3711 = vld [vmem:[%s3710] sm:$0x7]
      %v3713 = vsel %vm2064, %v3711, 0
      %3715 = vmatprep.subr.bf16.mxu0 %v2073
      %3716 = vmatpush1.bf16.msra.mxu0 %v2070
      %3717 = vmatprep.subr.bf16.mxu0 0
      %3718 = vmatpush1.bf16.msra.mxu0 0
      %3719 = vmatprep.subr.bf16.mxu0 0
      %3720 = vmatpush1.bf16.msra.mxu0 0
      %3721 = vmatprep.subr.bf16.mxu0 0
      %3722 = vmatpush1.bf16.msra.mxu0 0
      %3723 = vmatprep.subr.bf16.mxu0 0
      %3724 = vmatpush1.bf16.msra.mxu0 0
      %3725 = vmatprep.subr.bf16.mxu0 0
      %3726 = vmatpush1.bf16.msra.mxu0 0
      %3727 = vmatprep.subr.bf16.mxu0 0
      %3728 = vmatpush1.bf16.msra.mxu0 0
      %3729 = vmatprep.subr.bf16.mxu0 0
      %3730 = vmatpush1.bf16.msra.mxu0 0
      %3731 = vmatprep.subr.bf16.mxu0 0
      %3732 = vmatpush1.bf16.msra.mxu0 0
      %3733 = vmatprep.subr.bf16.mxu0 0
      %3734 = vmatpush1.bf16.msra.mxu0 0
      %3735 = vmatprep.subr.bf16.mxu0 0
      %3736 = vmatpush1.bf16.msra.mxu0 0
      %3737 = vmatprep.subr.bf16.mxu0 0
      %3738 = vmatpush1.bf16.msra.mxu0 0
      %3739 = vmatprep.subr.bf16.mxu0 0
      %3740 = vmatpush1.bf16.msra.mxu0 0
      %3741 = vmatprep.subr.bf16.mxu0 0
      %3742 = vmatpush1.bf16.msra.mxu0 0
      %3743 = vmatprep.subr.bf16.mxu0 0
      %3744 = vmatpush1.bf16.msra.mxu0 0
      %3745 = vmatprep.subr.bf16.mxu0 0
      %3746 = vmatpush1.bf16.msra.mxu0 0
      %3747 = vmatprep.mubr.bf16.mxu0 0
      %3748 = vmatmul.mubr.bf16.gmra.mrb[0].mxu0 %v3713
      %v3749 = vpop.f32.mrb[0].mxu0
      %v3750 = vadd.f32 0.0, %v3749
      %v3751 = vpop.f32.mrb[0].mxu0
      %v3752 = vadd.f32 0.0, %v3751
      %v3753 = vpop.f32.mrb[0].mxu0
      %v3754 = vpop.f32.mrb[0].mxu0
      %3755 = vdwg.mxu0
      %3756 = vmatprep.subr.bf16.mxu0 %v2079
      %3757 = vmatpush1.bf16.msra.mxu0 %v2076
      %3758 = vmatprep.subr.bf16.mxu0 0
      %3759 = vmatpush1.bf16.msra.mxu0 0
      %3760 = vmatprep.subr.bf16.mxu0 0
      %3761 = vmatpush1.bf16.msra.mxu0 0
      %3762 = vmatprep.subr.bf16.mxu0 0
      %3763 = vmatpush1.bf16.msra.mxu0 0
      %3764 = vmatprep.subr.bf16.mxu0 0
      %3765 = vmatpush1.bf16.msra.mxu0 0
      %3766 = vmatprep.subr.bf16.mxu0 0
      %3767 = vmatpush1.bf16.msra.mxu0 0
      %3768 = vmatprep.subr.bf16.mxu0 0
      %3769 = vmatpush1.bf16.msra.mxu0 0
      %3770 = vmatprep.subr.bf16.mxu0 0
      %3771 = vmatpush1.bf16.msra.mxu0 0
      %3772 = vmatprep.subr.bf16.mxu0 0
      %3773 = vmatpush1.bf16.msra.mxu0 0
      %3774 = vmatprep.subr.bf16.mxu0 0
      %3775 = vmatpush1.bf16.msra.mxu0 0
      %3776 = vmatprep.subr.bf16.mxu0 0
      %3777 = vmatpush1.bf16.msra.mxu0 0
      %3778 = vmatprep.subr.bf16.mxu0 0
      %3779 = vmatpush1.bf16.msra.mxu0 0
      %3780 = vmatprep.subr.bf16.mxu0 0
      %3781 = vmatpush1.bf16.msra.mxu0 0
      %3782 = vmatprep.subr.bf16.mxu0 0
      %3783 = vmatpush1.bf16.msra.mxu0 0
      %3784 = vmatprep.subr.bf16.mxu0 0
      %3785 = vmatpush1.bf16.msra.mxu0 0
      %3786 = vmatprep.subr.bf16.mxu0 0
      %3787 = vmatpush1.bf16.msra.mxu0 0
      %3788 = vmatprep.mubr.bf16.mxu0 0
      %3789 = vmatmul.mubr.bf16.gmra.mrb[0].mxu0 %v3713
      %v3790 = vpop.f32.mrb[0].mxu0
      %v3791 = vadd.f32 0.0, %v3790
      %v3792 = vpop.f32.mrb[0].mxu0
      %v3793 = vadd.f32 0.0, %v3792
      %v3794 = vpop.f32.mrb[0].mxu0
      %v3795 = vpop.f32.mrb[0].mxu0
      %3796 = vdwg.mxu0
      %v3797 = vpack.c.bf16 %v3750, %v3750
      %v3798 = vpack.c.bf16 %v3752, %v3752
      %v3799 = vpack.c.bf16 %v3791, %v3791
      %v3800 = vpack.c.bf16 %v3793, %v3793
      %s3801 = scalar_lea.vmem %s5, 1344
      %v3802 = vld [vmem:[%s3801] sm:$0xff]
      %v3803 = vld [vmem:[%s3801 + $0x8] sm:$0xf]
      %v3804 = vld [vmem:[%s3801 + $0xc] sm:$0xff]
      %v3805 = vld [vmem:[%s3801 + $0x14] sm:$0xf]
      %v3806 = vld [vmem:[%s3801 + $0x18] sm:$0xff]
      %v3807 = vld [vmem:[%s3801 + $0x20] sm:$0xf]
      %v3808 = vld [vmem:[%s3801 + $0x24] sm:$0xff]
      %v3809 = vld [vmem:[%s3801 + $0x2c] sm:$0xf]
      %v3810 = vld [vmem:[%s3801 + $0x30] sm:$0xff]
      %v3811 = vld [vmem:[%s3801 + $0x38] sm:$0xf]
      %v3812 = vld [vmem:[%s3801 + $0x3c] sm:$0xff]
      %v3813 = vld [vmem:[%s3801 + $0x44] sm:$0xf]
      %v3814 = vld [vmem:[%s3801 + $0x48] sm:$0xff]
      %v3815 = vld [vmem:[%s3801 + $0x50] sm:$0xf]
      %v3816 = vld [vmem:[%s3801 + $0x54] sm:$0xff]
      %v3817 = vld [vmem:[%s3801 + $0x5c] sm:$0xf]
      %v3818 = vld [vmem:[%s3801 + $0x60] sm:$0xff]
      %v3819 = vld [vmem:[%s3801 + $0x68] sm:$0xf]
      %v3820 = vld [vmem:[%s3801 + $0x6c] sm:$0xff]
      %v3821 = vld [vmem:[%s3801 + $0x74] sm:$0xf]
      %v3822 = vld [vmem:[%s3801 + $0x78] sm:$0xff]
      %v3823 = vld [vmem:[%s3801 + $0x80] sm:$0xf]
      %v3824 = vld [vmem:[%s3801 + $0x84] sm:$0xff]
      %v3825 = vld [vmem:[%s3801 + $0x8c] sm:$0xf]
      %v3826 = vld [vmem:[%s3801 + $0x90] sm:$0xff]
      %v3827 = vld [vmem:[%s3801 + $0x98] sm:$0xf]
      %v3828 = vld [vmem:[%s3801 + $0x9c] sm:$0xff]
      %v3829 = vld [vmem:[%s3801 + $0xa4] sm:$0xf]
      %v3830 = vld [vmem:[%s3801 + $0xa8] sm:$0xff]
      %v3831 = vld [vmem:[%s3801 + $0xb0] sm:$0xf]
      %v3832 = vld [vmem:[%s3801 + $0xb4] sm:$0xff]
      %v3833 = vld [vmem:[%s3801 + $0xbc] sm:$0xf]
      %v3834 = vld [vmem:[%s3801 + $0xc0] sm:$0xff]
      %v3835 = vld [vmem:[%s3801 + $0xc8] sm:$0xf]
      %v3836 = vld [vmem:[%s3801 + $0xcc] sm:$0xff]
      %v3837 = vld [vmem:[%s3801 + $0xd4] sm:$0xf]
      %v3838 = vld [vmem:[%s3801 + $0xd8] sm:$0xff]
      %v3839 = vld [vmem:[%s3801 + $0xe0] sm:$0xf]
      %v3840 = vld [vmem:[%s3801 + $0xe4] sm:$0xff]
      %v3841 = vld [vmem:[%s3801 + $0xec] sm:$0xf]
      %v3842 = vld [vmem:[%s3801 + $0xf0] sm:$0xff]
      %v3843 = vld [vmem:[%s3801 + $0xf8] sm:$0xf]
      %v3844 = vld [vmem:[%s3801 + $0xfc] sm:$0xff]
      %v3845 = vld [vmem:[%s3801 + $0x104] sm:$0xf]
      %v3846 = vld [vmem:[%s3801 + $0x108] sm:$0xff]
      %v3847 = vld [vmem:[%s3801 + $0x110] sm:$0xf]
      %v3848 = vld [vmem:[%s3801 + $0x114] sm:$0xff]
      %v3849 = vld [vmem:[%s3801 + $0x11c] sm:$0xf]
      %v3850 = vld [vmem:[%s3801 + $0x120] sm:$0xff]
      %v3851 = vld [vmem:[%s3801 + $0x128] sm:$0xf]
      %v3852 = vld [vmem:[%s3801 + $0x12c] sm:$0xff]
      %v3853 = vld [vmem:[%s3801 + $0x134] sm:$0xf]
      %v3854 = vld [vmem:[%s3801 + $0x138] sm:$0xff]
      %v3855 = vld [vmem:[%s3801 + $0x140] sm:$0xf]
      %v3856 = vld [vmem:[%s3801 + $0x144] sm:$0xff]
      %v3857 = vld [vmem:[%s3801 + $0x14c] sm:$0xf]
      %v3858 = vld [vmem:[%s3801 + $0x150] sm:$0xff]
      %v3859 = vld [vmem:[%s3801 + $0x158] sm:$0xf]
      %v3860 = vld [vmem:[%s3801 + $0x15c] sm:$0xff]
      %v3861 = vld [vmem:[%s3801 + $0x164] sm:$0xf]
      %v3862 = vld [vmem:[%s3801 + $0x168] sm:$0xff]
      %v3863 = vld [vmem:[%s3801 + $0x170] sm:$0xf]
      %v3864 = vld [vmem:[%s3801 + $0x174] sm:$0xff]
      %v3865 = vld [vmem:[%s3801 + $0x17c] sm:$0xf]
      %v3866 = vld [vmem:[%s3801 + $0x180] sm:$0xff]
      %v3867 = vld [vmem:[%s3801 + $0x188] sm:$0xf]
      %v3868 = vld [vmem:[%s3801 + $0x18c] sm:$0xff]
      %v3869 = vld [vmem:[%s3801 + $0x194] sm:$0xf]
      %v3870 = vld [vmem:[%s3801 + $0x198] sm:$0xff]
      %v3871 = vld [vmem:[%s3801 + $0x1a0] sm:$0xf]
      %v3872 = vld [vmem:[%s3801 + $0x1a4] sm:$0xff]
      %v3873 = vld [vmem:[%s3801 + $0x1ac] sm:$0xf]
      %v3874 = vld [vmem:[%s3801 + $0x1b0] sm:$0xff]
      %v3875 = vld [vmem:[%s3801 + $0x1b8] sm:$0xf]
      %v3876 = vld [vmem:[%s3801 + $0x1bc] sm:$0xff]
      %v3877 = vld [vmem:[%s3801 + $0x1c4] sm:$0xf]
      %v3878 = vld [vmem:[%s3801 + $0x1c8] sm:$0xff]
      %v3879 = vld [vmem:[%s3801 + $0x1d0] sm:$0xf]
      %v3880 = vld [vmem:[%s3801 + $0x1d4] sm:$0xff]
      %v3881 = vld [vmem:[%s3801 + $0x1dc] sm:$0xf]
      %v3882 = vld [vmem:[%s3801 + $0x1e0] sm:$0xff]
      %v3883 = vld [vmem:[%s3801 + $0x1e8] sm:$0xf]
      %v3884 = vld [vmem:[%s3801 + $0x1ec] sm:$0xff]
      %v3885 = vld [vmem:[%s3801 + $0x1f4] sm:$0xf]
      %v3886 = vld [vmem:[%s3801 + $0x1f8] sm:$0xff]
      %v3887 = vld [vmem:[%s3801 + $0x200] sm:$0xf]
      %v3888 = vld [vmem:[%s3801 + $0x204] sm:$0xff]
      %v3889 = vld [vmem:[%s3801 + $0x20c] sm:$0xf]
      %v3890 = vld [vmem:[%s3801 + $0x210] sm:$0xff]
      %v3891 = vld [vmem:[%s3801 + $0x218] sm:$0xf]
      %v3892 = vld [vmem:[%s3801 + $0x21c] sm:$0xff]
      %v3893 = vld [vmem:[%s3801 + $0x224] sm:$0xf]
      %v3894 = vld [vmem:[%s3801 + $0x228] sm:$0xff]
      %v3895 = vld [vmem:[%s3801 + $0x230] sm:$0xf]
      %v3896 = vld [vmem:[%s3801 + $0x234] sm:$0xff]
      %v3897 = vld [vmem:[%s3801 + $0x23c] sm:$0xf]
      %v3898 = vld [vmem:[%s3801 + $0x240] sm:$0xff]
      %v3899 = vld [vmem:[%s3801 + $0x248] sm:$0xf]
      %v3900 = vld [vmem:[%s3801 + $0x24c] sm:$0xff]
      %v3901 = vld [vmem:[%s3801 + $0x254] sm:$0xf]
      %v3902 = vld [vmem:[%s3801 + $0x258] sm:$0xff]
      %v3903 = vld [vmem:[%s3801 + $0x260] sm:$0xf]
      %v3904 = vld [vmem:[%s3801 + $0x264] sm:$0xff]
      %v3905 = vld [vmem:[%s3801 + $0x26c] sm:$0xf]
      %v3906 = vld [vmem:[%s3801 + $0x270] sm:$0xff]
      %v3907 = vld [vmem:[%s3801 + $0x278] sm:$0xf]
      %v3908 = vld [vmem:[%s3801 + $0x27c] sm:$0xff]
      %v3909 = vld [vmem:[%s3801 + $0x284] sm:$0xf]
      %v3910 = vld [vmem:[%s3801 + $0x288] sm:$0xff]
      %v3911 = vld [vmem:[%s3801 + $0x290] sm:$0xf]
      %v3912 = vld [vmem:[%s3801 + $0x294] sm:$0xff]
      %v3913 = vld [vmem:[%s3801 + $0x29c] sm:$0xf]
      %v4026 = vunpack.c.l.b16 %v3802
      %v4027 = vunpack.c.h.b16 %v3802
      %v4028 = vunpack.c.l.b16 %v3803
      %v4029 = vunpack.c.l.b16 %v3804
      %v4030 = vunpack.c.h.b16 %v3804
      %v4031 = vunpack.c.l.b16 %v3805
      %v4032 = vunpack.c.l.b16 %v3806
      %v4033 = vunpack.c.h.b16 %v3806
      %v4034 = vunpack.c.l.b16 %v3807
      %v4035 = vunpack.c.l.b16 %v3808
      %v4036 = vunpack.c.h.b16 %v3808
      %v4037 = vunpack.c.l.b16 %v3809
      %v4038 = vunpack.c.l.b16 %v3810
      %v4039 = vunpack.c.h.b16 %v3810
      %v4040 = vunpack.c.l.b16 %v3811
      %v4041 = vunpack.c.l.b16 %v3812
      %v4042 = vunpack.c.h.b16 %v3812
      %v4043 = vunpack.c.l.b16 %v3813
      %v4044 = vunpack.c.l.b16 %v3814
      %v4045 = vunpack.c.h.b16 %v3814
      %v4046 = vunpack.c.l.b16 %v3815
      %v4047 = vunpack.c.l.b16 %v3816
      %v4048 = vunpack.c.h.b16 %v3816
      %v4049 = vunpack.c.l.b16 %v3817
      %v4050 = vunpack.c.l.b16 %v3818
      %v4051 = vunpack.c.h.b16 %v3818
      %v4052 = vunpack.c.l.b16 %v3819
      %v4053 = vunpack.c.l.b16 %v3820
      %v4054 = vunpack.c.h.b16 %v3820
      %v4055 = vunpack.c.l.b16 %v3821
      %v4056 = vunpack.c.l.b16 %v3822
      %v4057 = vunpack.c.h.b16 %v3822
      %v4058 = vunpack.c.l.b16 %v3823
      %v4059 = vunpack.c.l.b16 %v3824
      %v4060 = vunpack.c.h.b16 %v3824
      %v4061 = vunpack.c.l.b16 %v3825
      %v4062 = vunpack.c.l.b16 %v3826
      %v4063 = vunpack.c.h.b16 %v3826
      %v4064 = vunpack.c.l.b16 %v3827
      %v4065 = vunpack.c.l.b16 %v3828
      %v4066 = vunpack.c.h.b16 %v3828
      %v4067 = vunpack.c.l.b16 %v3829
      %v4068 = vunpack.c.l.b16 %v3830
      %v4069 = vunpack.c.h.b16 %v3830
      %v4070 = vunpack.c.l.b16 %v3831
      %v4071 = vunpack.c.l.b16 %v3832
      %v4072 = vunpack.c.h.b16 %v3832
      %v4073 = vunpack.c.l.b16 %v3833
      %v4074 = vunpack.c.l.b16 %v3834
      %v4075 = vunpack.c.h.b16 %v3834
      %v4076 = vunpack.c.l.b16 %v3835
      %v4077 = vunpack.c.l.b16 %v3836
      %v4078 = vunpack.c.h.b16 %v3836
      %v4079 = vunpack.c.l.b16 %v3837
      %v4080 = vunpack.c.l.b16 %v3838
      %v4081 = vunpack.c.h.b16 %v3838
      %v4082 = vunpack.c.l.b16 %v3839
      %v4083 = vunpack.c.l.b16 %v3840
      %v4084 = vunpack.c.h.b16 %v3840
      %v4085 = vunpack.c.l.b16 %v3841
      %v4086 = vunpack.c.l.b16 %v3842
      %v4087 = vunpack.c.h.b16 %v3842
      %v4088 = vunpack.c.l.b16 %v3843
      %v4089 = vunpack.c.l.b16 %v3844
      %v4090 = vunpack.c.h.b16 %v3844
      %v4091 = vunpack.c.l.b16 %v3845
      %v4092 = vunpack.c.l.b16 %v3846
      %v4093 = vunpack.c.h.b16 %v3846
      %v4094 = vunpack.c.l.b16 %v3847
      %v4095 = vunpack.c.l.b16 %v3848
      %v4096 = vunpack.c.h.b16 %v3848
      %v4097 = vunpack.c.l.b16 %v3849
      %v4098 = vunpack.c.l.b16 %v3850
      %v4099 = vunpack.c.h.b16 %v3850
      %v4100 = vunpack.c.l.b16 %v3851
      %v4101 = vunpack.c.l.b16 %v3852
      %v4102 = vunpack.c.h.b16 %v3852
      %v4103 = vunpack.c.l.b16 %v3853
      %v4104 = vunpack.c.l.b16 %v3854
      %v4105 = vunpack.c.h.b16 %v3854
      %v4106 = vunpack.c.l.b16 %v3855
      %v4107 = vunpack.c.l.b16 %v3856
      %v4108 = vunpack.c.h.b16 %v3856
      %v4109 = vunpack.c.l.b16 %v3857
      %v4110 = vunpack.c.l.b16 %v3858
      %v4111 = vunpack.c.h.b16 %v3858
      %v4112 = vunpack.c.l.b16 %v3859
      %v4113 = vunpack.c.l.b16 %v3860
      %v4114 = vunpack.c.h.b16 %v3860
      %v4115 = vunpack.c.l.b16 %v3861
      %v4116 = vunpack.c.l.b16 %v3862
      %v4117 = vunpack.c.h.b16 %v3862
      %v4118 = vunpack.c.l.b16 %v3863
      %v4119 = vunpack.c.l.b16 %v3864
      %v4120 = vunpack.c.h.b16 %v3864
      %v4121 = vunpack.c.l.b16 %v3865
      %v4122 = vunpack.c.l.b16 %v3866
      %v4123 = vunpack.c.h.b16 %v3866
      %v4124 = vunpack.c.l.b16 %v3867
      %v4125 = vunpack.c.l.b16 %v3868
      %v4126 = vunpack.c.h.b16 %v3868
      %v4127 = vunpack.c.l.b16 %v3869
      %v4128 = vunpack.c.l.b16 %v3870
      %v4129 = vunpack.c.h.b16 %v3870
      %v4130 = vunpack.c.l.b16 %v3871
      %v4131 = vunpack.c.l.b16 %v3872
      %v4132 = vunpack.c.h.b16 %v3872
      %v4133 = vunpack.c.l.b16 %v3873
      %v4134 = vunpack.c.l.b16 %v3874
      %v4135 = vunpack.c.h.b16 %v3874
      %v4136 = vunpack.c.l.b16 %v3875
      %v4137 = vunpack.c.l.b16 %v3876
      %v4138 = vunpack.c.h.b16 %v3876
      %v4139 = vunpack.c.l.b16 %v3877
      %v4140 = vunpack.c.l.b16 %v3878
      %v4141 = vunpack.c.h.b16 %v3878
      %v4142 = vunpack.c.l.b16 %v3879
      %v4143 = vunpack.c.l.b16 %v3880
      %v4144 = vunpack.c.h.b16 %v3880
      %v4145 = vunpack.c.l.b16 %v3881
      %v4146 = vunpack.c.l.b16 %v3882
      %v4147 = vunpack.c.h.b16 %v3882
      %v4148 = vunpack.c.l.b16 %v3883
      %v4149 = vunpack.c.l.b16 %v3884
      %v4150 = vunpack.c.h.b16 %v3884
      %v4151 = vunpack.c.l.b16 %v3885
      %v4152 = vunpack.c.l.b16 %v3886
      %v4153 = vunpack.c.h.b16 %v3886
      %v4154 = vunpack.c.l.b16 %v3887
      %v4155 = vunpack.c.l.b16 %v3888
      %v4156 = vunpack.c.h.b16 %v3888
      %v4157 = vunpack.c.l.b16 %v3889
      %v4158 = vunpack.c.l.b16 %v3890
      %v4159 = vunpack.c.h.b16 %v3890
      %v4160 = vunpack.c.l.b16 %v3891
      %v4161 = vunpack.c.l.b16 %v3892
      %v4162 = vunpack.c.h.b16 %v3892
      %v4163 = vunpack.c.l.b16 %v3893
      %v4164 = vunpack.c.l.b16 %v3894
      %v4165 = vunpack.c.h.b16 %v3894
      %v4166 = vunpack.c.l.b16 %v3895
      %v4167 = vunpack.c.l.b16 %v3896
      %v4168 = vunpack.c.h.b16 %v3896
      %v4169 = vunpack.c.l.b16 %v3897
      %v4170 = vunpack.c.l.b16 %v3898
      %v4171 = vunpack.c.h.b16 %v3898
      %v4172 = vunpack.c.l.b16 %v3899
      %v4173 = vunpack.c.l.b16 %v3900
      %v4174 = vunpack.c.h.b16 %v3900
      %v4175 = vunpack.c.l.b16 %v3901
      %v4176 = vunpack.c.l.b16 %v3902
      %v4177 = vunpack.c.h.b16 %v3902
      %v4178 = vunpack.c.l.b16 %v3903
      %v4179 = vunpack.c.l.b16 %v3904
      %v4180 = vunpack.c.h.b16 %v3904
      %v4181 = vunpack.c.l.b16 %v3905
      %v4182 = vunpack.c.l.b16 %v3906
      %v4183 = vunpack.c.h.b16 %v3906
      %v4184 = vunpack.c.l.b16 %v3907
      %v4185 = vunpack.c.l.b16 %v3908
      %v4186 = vunpack.c.h.b16 %v3908
      %v4187 = vunpack.c.l.b16 %v3909
      %v4188 = vunpack.c.l.b16 %v3910
      %v4189 = vunpack.c.h.b16 %v3910
      %v4190 = vunpack.c.l.b16 %v3911
      %v4191 = vunpack.c.l.b16 %v3912
      %v4192 = vunpack.c.h.b16 %v3912
      %v4193 = vunpack.c.l.b16 %v3913
      %v4194 = vpack.c.b16 %v4029, %v4026
      %v4195 = vpack.c.b16 %v4030, %v4027
      %v4196 = vpack.c.b16 %v4031, %v4028
      %v4197 = vpack.c.b16 %v4035, %v4032
      %v4198 = vpack.c.b16 %v4036, %v4033
      %v4199 = vpack.c.b16 %v4037, %v4034
      %v4200 = vpack.c.b16 %v4041, %v4038
      %v4201 = vpack.c.b16 %v4042, %v4039
      %v4202 = vpack.c.b16 %v4043, %v4040
      %v4203 = vpack.c.b16 %v4047, %v4044
      %v4204 = vpack.c.b16 %v4048, %v4045
      %v4205 = vpack.c.b16 %v4049, %v4046
      %v4206 = vpack.c.b16 %v4053, %v4050
      %v4207 = vpack.c.b16 %v4054, %v4051
      %v4208 = vpack.c.b16 %v4055, %v4052
      %v4209 = vpack.c.b16 %v4059, %v4056
      %v4210 = vpack.c.b16 %v4060, %v4057
      %v4211 = vpack.c.b16 %v4061, %v4058
      %v4212 = vpack.c.b16 %v4065, %v4062
      %v4213 = vpack.c.b16 %v4066, %v4063
      %v4214 = vpack.c.b16 %v4067, %v4064
      %v4215 = vpack.c.b16 %v4071, %v4068
      %v4216 = vpack.c.b16 %v4072, %v4069
      %v4217 = vpack.c.b16 %v4073, %v4070
      %v4218 = vpack.c.b16 %v4077, %v4074
      %v4219 = vpack.c.b16 %v4078, %v4075
      %v4220 = vpack.c.b16 %v4079, %v4076
      %v4221 = vpack.c.b16 %v4083, %v4080
      %v4222 = vpack.c.b16 %v4084, %v4081
      %v4223 = vpack.c.b16 %v4085, %v4082
      %v4224 = vpack.c.b16 %v4089, %v4086
      %v4225 = vpack.c.b16 %v4090, %v4087
      %v4226 = vpack.c.b16 %v4091, %v4088
      %v4227 = vpack.c.b16 %v4095, %v4092
      %v4228 = vpack.c.b16 %v4096, %v4093
      %v4229 = vpack.c.b16 %v4097, %v4094
      %v4230 = vpack.c.b16 %v4101, %v4098
      %v4231 = vpack.c.b16 %v4102, %v4099
      %v4232 = vpack.c.b16 %v4103, %v4100
      %v4233 = vpack.c.b16 %v4107, %v4104
      %v4234 = vpack.c.b16 %v4108, %v4105
      %v4235 = vpack.c.b16 %v4109, %v4106
      %v4236 = vpack.c.b16 %v4113, %v4110
      %v4237 = vpack.c.b16 %v4114, %v4111
      %v4238 = vpack.c.b16 %v4115, %v4112
      %v4239 = vpack.c.b16 %v4119, %v4116
      %v4240 = vpack.c.b16 %v4120, %v4117
      %v4241 = vpack.c.b16 %v4121, %v4118
      %v4242 = vpack.c.b16 %v4125, %v4122
      %v4243 = vpack.c.b16 %v4126, %v4123
      %v4244 = vpack.c.b16 %v4127, %v4124
      %v4245 = vpack.c.b16 %v4131, %v4128
      %v4246 = vpack.c.b16 %v4132, %v4129
      %v4247 = vpack.c.b16 %v4133, %v4130
      %v4248 = vpack.c.b16 %v4137, %v4134
      %v4249 = vpack.c.b16 %v4138, %v4135
      %v4250 = vpack.c.b16 %v4139, %v4136
      %v4251 = vpack.c.b16 %v4143, %v4140
      %v4252 = vpack.c.b16 %v4144, %v4141
      %v4253 = vpack.c.b16 %v4145, %v4142
      %v4254 = vpack.c.b16 %v4149, %v4146
      %v4255 = vpack.c.b16 %v4150, %v4147
      %v4256 = vpack.c.b16 %v4151, %v4148
      %v4257 = vpack.c.b16 %v4155, %v4152
      %v4258 = vpack.c.b16 %v4156, %v4153
      %v4259 = vpack.c.b16 %v4157, %v4154
      %v4260 = vpack.c.b16 %v4161, %v4158
      %v4261 = vpack.c.b16 %v4162, %v4159
      %v4262 = vpack.c.b16 %v4163, %v4160
      %v4263 = vpack.c.b16 %v4167, %v4164
      %v4264 = vpack.c.b16 %v4168, %v4165
      %v4265 = vpack.c.b16 %v4169, %v4166
      %v4266 = vpack.c.b16 %v4173, %v4170
      %v4267 = vpack.c.b16 %v4174, %v4171
      %v4268 = vpack.c.b16 %v4175, %v4172
      %v4269 = vpack.c.b16 %v4179, %v4176
      %v4270 = vpack.c.b16 %v4180, %v4177
      %v4271 = vpack.c.b16 %v4181, %v4178
      %v4272 = vpack.c.b16 %v4185, %v4182
      %v4273 = vpack.c.b16 %v4186, %v4183
      %v4274 = vpack.c.b16 %v4187, %v4184
      %v4275 = vpack.c.b16 %v4191, %v4188
      %v4276 = vpack.c.b16 %v4192, %v4189
      %v4277 = vpack.c.b16 %v4193, %v4190
      %v4363 = vsel %vm2931, %v3800, 0
      %4365 = vmatprep.subr.bf16.mxu0 %v4195
      %4366 = vmatpush1.bf16.msra.mxu0 %v4194
      %4367 = vmatprep.subr.bf16.mxu0 %v4198
      %4368 = vmatpush1.bf16.msra.mxu0 %v4197
      %4369 = vmatprep.subr.bf16.mxu0 %v4201
      %4370 = vmatpush1.bf16.msra.mxu0 %v4200
      %4371 = vmatprep.subr.bf16.mxu0 %v4204
      %4372 = vmatpush1.bf16.msra.mxu0 %v4203
      %4373 = vmatprep.subr.bf16.mxu0 %v4207
      %4374 = vmatpush1.bf16.msra.mxu0 %v4206
      %4375 = vmatprep.subr.bf16.mxu0 %v4210
      %4376 = vmatpush1.bf16.msra.mxu0 %v4209
      %4377 = vmatprep.subr.bf16.mxu0 %v4213
      %4378 = vmatpush1.bf16.msra.mxu0 %v4212
      %4379 = vmatprep.subr.bf16.mxu0 %v4216
      %4380 = vmatpush1.bf16.msra.mxu0 %v4215
      %4381 = vmatprep.subr.bf16.mxu0 %v4219
      %4382 = vmatpush1.bf16.msra.mxu0 %v4218
      %4383 = vmatprep.subr.bf16.mxu0 %v4222
      %4384 = vmatpush1.bf16.msra.mxu0 %v4221
      %4385 = vmatprep.subr.bf16.mxu0 %v4225
      %4386 = vmatpush1.bf16.msra.mxu0 %v4224
      %4387 = vmatprep.subr.bf16.mxu0 %v4228
      %4388 = vmatpush1.bf16.msra.mxu0 %v4227
      %4389 = vmatprep.subr.bf16.mxu0 %v4231
      %4390 = vmatpush1.bf16.msra.mxu0 %v4230
      %4391 = vmatprep.subr.bf16.mxu0 %v4234
      %4392 = vmatpush1.bf16.msra.mxu0 %v4233
      %4393 = vmatprep.subr.bf16.mxu0 %v4237
      %4394 = vmatpush1.bf16.msra.mxu0 %v4236
      %4395 = vmatprep.subr.bf16.mxu0 %v4240
      %4396 = vmatpush1.bf16.msra.mxu0 %v4239
      %4397 = vmatprep.mubr.bf16.mxu0 %v3798
      %4398 = vmatmul.mubr.bf16.gmra.mrb[0].mxu0 %v3797
      %v4399 = vpop.f32.mrb[0].mxu0
      %v4400 = vadd.f32 0.0, %v4399
      %v4401 = vpop.f32.mrb[0].mxu0
      %v4402 = vadd.f32 0.0, %v4401
      %v4403 = vpop.f32.mrb[0].mxu0
      %v4404 = vpop.f32.mrb[0].mxu0
      %4405 = vdwg.mxu0
      %4406 = vmatprep.subr.bf16.mxu0 %v4243
      %4407 = vmatpush1.bf16.msra.mxu0 %v4242
      %4408 = vmatprep.subr.bf16.mxu0 %v4246
      %4409 = vmatpush1.bf16.msra.mxu0 %v4245
      %4410 = vmatprep.subr.bf16.mxu0 %v4249
      %4411 = vmatpush1.bf16.msra.mxu0 %v4248
      %4412 = vmatprep.subr.bf16.mxu0 %v4252
      %4413 = vmatpush1.bf16.msra.mxu0 %v4251
      %4414 = vmatprep.subr.bf16.mxu0 %v4255
      %4415 = vmatpush1.bf16.msra.mxu0 %v4254
      %4416 = vmatprep.subr.bf16.mxu0 %v4258
      %4417 = vmatpush1.bf16.msra.mxu0 %v4257
      %4418 = vmatprep.subr.bf16.mxu0 %v4261
      %4419 = vmatpush1.bf16.msra.mxu0 %v4260
      %4420 = vmatprep.subr.bf16.mxu0 %v4264
      %4421 = vmatpush1.bf16.msra.mxu0 %v4263
      %4422 = vmatprep.subr.bf16.mxu0 %v4267
      %4423 = vmatpush1.bf16.msra.mxu0 %v4266
      %4424 = vmatprep.subr.bf16.mxu0 %v4270
      %4425 = vmatpush1.bf16.msra.mxu0 %v4269
      %4426 = vmatprep.subr.bf16.mxu0 %v4273
      %4427 = vmatpush1.bf16.msra.mxu0 %v4272
      %4428 = vmatprep.subr.bf16.mxu0 %v4276
      %4429 = vmatpush1.bf16.msra.mxu0 %v4275
      %4430 = vmatprep.subr.bf16.mxu0 0
      %4431 = vmatpush1.bf16.msra.mxu0 0
      %4432 = vmatprep.subr.bf16.mxu0 0
      %4433 = vmatpush1.bf16.msra.mxu0 0
      %4434 = vmatprep.subr.bf16.mxu0 0
      %4435 = vmatpush1.bf16.msra.mxu0 0
      %4436 = vmatprep.subr.bf16.mxu0 0
      %4437 = vmatpush1.bf16.msra.mxu0 0
      %4438 = vmatprep.mubr.bf16.mxu0 %v4363
      %4439 = vmatmul.mubr.bf16.gmra.mrb[0].mxu0 %v3799
      %v4440 = vpop.f32.mrb[0].mxu0
      %v4441 = vadd.f32 %v4400, %v4440
      %v4442 = vpop.f32.mrb[0].mxu0
      %v4443 = vadd.f32 %v4402, %v4442
      %v4444 = vpop.f32.mrb[0].mxu0
      %v4445 = vpop.f32.mrb[0].mxu0
      %4446 = vdwg.mxu0
      %4447 = vmatprep.subr.bf16.mxu0 0
      %4448 = vmatpush1.bf16.msra.mxu0 %v4196
      %4449 = vmatprep.subr.bf16.mxu0 0
      %4450 = vmatpush1.bf16.msra.mxu0 %v4199
      %4451 = vmatprep.subr.bf16.mxu0 0
      %4452 = vmatpush1.bf16.msra.mxu0 %v4202
      %4453 = vmatprep.subr.bf16.mxu0 0
      %4454 = vmatpush1.bf16.msra.mxu0 %v4205
      %4455 = vmatprep.subr.bf16.mxu0 0
      %4456 = vmatpush1.bf16.msra.mxu0 %v4208
      %4457 = vmatprep.subr.bf16.mxu0 0
      %4458 = vmatpush1.bf16.msra.mxu0 %v4211
      %4459 = vmatprep.subr.bf16.mxu0 0
      %4460 = vmatpush1.bf16.msra.mxu0 %v4214
      %4461 = vmatprep.subr.bf16.mxu0 0
      %4462 = vmatpush1.bf16.msra.mxu0 %v4217
      %4463 = vmatprep.subr.bf16.mxu0 0
      %4464 = vmatpush1.bf16.msra.mxu0 %v4220
      %4465 = vmatprep.subr.bf16.mxu0 0
      %4466 = vmatpush1.bf16.msra.mxu0 %v4223
      %4467 = vmatprep.subr.bf16.mxu0 0
      %4468 = vmatpush1.bf16.msra.mxu0 %v4226
      %4469 = vmatprep.subr.bf16.mxu0 0
      %4470 = vmatpush1.bf16.msra.mxu0 %v4229
      %4471 = vmatprep.subr.bf16.mxu0 0
      %4472 = vmatpush1.bf16.msra.mxu0 %v4232
      %4473 = vmatprep.subr.bf16.mxu0 0
      %4474 = vmatpush1.bf16.msra.mxu0 %v4235
      %4475 = vmatprep.subr.bf16.mxu0 0
      %4476 = vmatpush1.bf16.msra.mxu0 %v4238
      %4477 = vmatprep.subr.bf16.mxu0 0
      %4478 = vmatpush1.bf16.msra.mxu0 %v4241
      %4479 = vmatprep.mubr.bf16.mxu0 %v3798
      %4480 = vmatmul.mubr.bf16.gmra.mrb[0].mxu0 %v3797
      %v4481 = vpop.f32.mrb[0].mxu0
      %v4482 = vadd.f32 0.0, %v4481
      %v4483 = vpop.f32.mrb[0].mxu0
      %v4484 = vpop.f32.mrb[0].mxu0
      %v4485 = vpop.f32.mrb[0].mxu0
      %4486 = vdwg.mxu0
      %4487 = vmatprep.subr.bf16.mxu0 0
      %4488 = vmatpush1.bf16.msra.mxu0 %v4244
      %4489 = vmatprep.subr.bf16.mxu0 0
      %4490 = vmatpush1.bf16.msra.mxu0 %v4247
      %4491 = vmatprep.subr.bf16.mxu0 0
      %4492 = vmatpush1.bf16.msra.mxu0 %v4250
      %4493 = vmatprep.subr.bf16.mxu0 0
      %4494 = vmatpush1.bf16.msra.mxu0 %v4253
      %4495 = vmatprep.subr.bf16.mxu0 0
      %4496 = vmatpush1.bf16.msra.mxu0 %v4256
      %4497 = vmatprep.subr.bf16.mxu0 0
      %4498 = vmatpush1.bf16.msra.mxu0 %v4259
      %4499 = vmatprep.subr.bf16.mxu0 0
      %4500 = vmatpush1.bf16.msra.mxu0 %v4262
      %4501 = vmatprep.subr.bf16.mxu0 0
      %4502 = vmatpush1.bf16.msra.mxu0 %v4265
      %4503 = vmatprep.subr.bf16.mxu0 0
      %4504 = vmatpush1.bf16.msra.mxu0 %v4268
      %4505 = vmatprep.subr.bf16.mxu0 0
      %4506 = vmatpush1.bf16.msra.mxu0 %v4271
      %4507 = vmatprep.subr.bf16.mxu0 0
      %4508 = vmatpush1.bf16.msra.mxu0 %v4274
      %4509 = vmatprep.subr.bf16.mxu0 0
      %4510 = vmatpush1.bf16.msra.mxu0 %v4277
      %4511 = vmatprep.subr.bf16.mxu0 0
      %4512 = vmatpush1.bf16.msra.mxu0 0
      %4513 = vmatprep.subr.bf16.mxu0 0
      %4514 = vmatpush1.bf16.msra.mxu0 0
      %4515 = vmatprep.subr.bf16.mxu0 0
      %4516 = vmatpush1.bf16.msra.mxu0 0
      %4517 = vmatprep.subr.bf16.mxu0 0
      %4518 = vmatpush1.bf16.msra.mxu0 0
      %4519 = vmatprep.mubr.bf16.mxu0 %v4363
      %4520 = vmatmul.mubr.bf16.gmra.mrb[0].mxu0 %v3799
      %v4521 = vpop.f32.mrb[0].mxu0
      %v4522 = vadd.f32 %v4482, %v4521
      %v4523 = vpop.f32.mrb[0].mxu0
      %v4524 = vpop.f32.mrb[0].mxu0
      %v4525 = vpop.f32.mrb[0].mxu0
      %4526 = vdwg.mxu0
      %v4527 = vadd.f32 %v3624, %v4441
      %v4528 = vadd.f32 %v3626, %v4443
      %v4529 = vadd.f32 %v3705, %v4522
      %s4530 = scalar_lea.vmem %s4, 12
      %v4531 = vld [vmem:[%s4530] sm:$0x7]
      %v4533 = vsel %vm2064, %v4531, 0
      %4535 = vmatprep.subr.bf16.mxu0 %v2073
      %4536 = vmatpush1.bf16.msra.mxu0 %v2070
      %4537 = vmatprep.subr.bf16.mxu0 0
      %4538 = vmatpush1.bf16.msra.mxu0 0
      %4539 = vmatprep.subr.bf16.mxu0 0
      %4540 = vmatpush1.bf16.msra.mxu0 0
      %4541 = vmatprep.subr.bf16.mxu0 0
      %4542 = vmatpush1.bf16.msra.mxu0 0
      %4543 = vmatprep.subr.bf16.mxu0 0
      %4544 = vmatpush1.bf16.msra.mxu0 0
      %4545 = vmatprep.subr.bf16.mxu0 0
      %4546 = vmatpush1.bf16.msra.mxu0 0
      %4547 = vmatprep.subr.bf16.mxu0 0
      %4548 = vmatpush1.bf16.msra.mxu0 0
      %4549 = vmatprep.subr.bf16.mxu0 0
      %4550 = vmatpush1.bf16.msra.mxu0 0
      %4551 = vmatprep.subr.bf16.mxu0 0
      %4552 = vmatpush1.bf16.msra.mxu0 0
      %4553 = vmatprep.subr.bf16.mxu0 0
      %4554 = vmatpush1.bf16.msra.mxu0 0
      %4555 = vmatprep.subr.bf16.mxu0 0
      %4556 = vmatpush1.bf16.msra.mxu0 0
      %4557 = vmatprep.subr.bf16.mxu0 0
      %4558 = vmatpush1.bf16.msra.mxu0 0
      %4559 = vmatprep.subr.bf16.mxu0 0
      %4560 = vmatpush1.bf16.msra.mxu0 0
      %4561 = vmatprep.subr.bf16.mxu0 0
      %4562 = vmatpush1.bf16.msra.mxu0 0
      %4563 = vmatprep.subr.bf16.mxu0 0
      %4564 = vmatpush1.bf16.msra.mxu0 0
      %4565 = vmatprep.subr.bf16.mxu0 0
      %4566 = vmatpush1.bf16.msra.mxu0 0
      %4567 = vmatprep.mubr.bf16.mxu0 0
      %4568 = vmatmul.mubr.bf16.gmra.mrb[0].mxu0 %v4533
      %v4569 = vpop.f32.mrb[0].mxu0
      %v4570 = vadd.f32 0.0, %v4569
      %v4571 = vpop.f32.mrb[0].mxu0
      %v4572 = vadd.f32 0.0, %v4571
      %v4573 = vpop.f32.mrb[0].mxu0
      %v4574 = vpop.f32.mrb[0].mxu0
      %4575 = vdwg.mxu0
      %4576 = vmatprep.subr.bf16.mxu0 %v2079
      %4577 = vmatpush1.bf16.msra.mxu0 %v2076
      %4578 = vmatprep.subr.bf16.mxu0 0
      %4579 = vmatpush1.bf16.msra.mxu0 0
      %4580 = vmatprep.subr.bf16.mxu0 0
      %4581 = vmatpush1.bf16.msra.mxu0 0
      %4582 = vmatprep.subr.bf16.mxu0 0
      %4583 = vmatpush1.bf16.msra.mxu0 0
      %4584 = vmatprep.subr.bf16.mxu0 0
      %4585 = vmatpush1.bf16.msra.mxu0 0
      %4586 = vmatprep.subr.bf16.mxu0 0
      %4587 = vmatpush1.bf16.msra.mxu0 0
      %4588 = vmatprep.subr.bf16.mxu0 0
      %4589 = vmatpush1.bf16.msra.mxu0 0
      %4590 = vmatprep.subr.bf16.mxu0 0
      %4591 = vmatpush1.bf16.msra.mxu0 0
      %4592 = vmatprep.subr.bf16.mxu0 0
      %4593 = vmatpush1.bf16.msra.mxu0 0
      %4594 = vmatprep.subr.bf16.mxu0 0
      %4595 = vmatpush1.bf16.msra.mxu0 0
      %4596 = vmatprep.subr.bf16.mxu0 0
      %4597 = vmatpush1.bf16.msra.mxu0 0
      %4598 = vmatprep.subr.bf16.mxu0 0
      %4599 = vmatpush1.bf16.msra.mxu0 0
      %4600 = vmatprep.subr.bf16.mxu0 0
      %4601 = vmatpush1.bf16.msra.mxu0 0
      %4602 = vmatprep.subr.bf16.mxu0 0
      %4603 = vmatpush1.bf16.msra.mxu0 0
      %4604 = vmatprep.subr.bf16.mxu0 0
      %4605 = vmatpush1.bf16.msra.mxu0 0
      %4606 = vmatprep.subr.bf16.mxu0 0
      %4607 = vmatpush1.bf16.msra.mxu0 0
      %4608 = vmatprep.mubr.bf16.mxu0 0
      %4609 = vmatmul.mubr.bf16.gmra.mrb[0].mxu0 %v4533
      %v4610 = vpop.f32.mrb[0].mxu0
      %v4611 = vadd.f32 0.0, %v4610
      %v4612 = vpop.f32.mrb[0].mxu0
      %v4613 = vadd.f32 0.0, %v4612
      %v4614 = vpop.f32.mrb[0].mxu0
      %v4615 = vpop.f32.mrb[0].mxu0
      %4616 = vdwg.mxu0
      %v4617 = vpack.c.bf16 %v4570, %v4570
      %v4618 = vpack.c.bf16 %v4572, %v4572
      %v4619 = vpack.c.bf16 %v4611, %v4611
      %v4620 = vpack.c.bf16 %v4613, %v4613
      %s4621 = scalar_lea.vmem %s5, 2016
      %v4622 = vld [vmem:[%s4621] sm:$0xff]
      %v4623 = vld [vmem:[%s4621 + $0x8] sm:$0xf]
      %v4624 = vld [vmem:[%s4621 + $0xc] sm:$0xff]
      %v4625 = vld [vmem:[%s4621 + $0x14] sm:$0xf]
      %v4626 = vld [vmem:[%s4621 + $0x18] sm:$0xff]
      %v4627 = vld [vmem:[%s4621 + $0x20] sm:$0xf]
      %v4628 = vld [vmem:[%s4621 + $0x24] sm:$0xff]
      %v4629 = vld [vmem:[%s4621 + $0x2c] sm:$0xf]
      %v4630 = vld [vmem:[%s4621 + $0x30] sm:$0xff]
      %v4631 = vld [vmem:[%s4621 + $0x38] sm:$0xf]
      %v4632 = vld [vmem:[%s4621 + $0x3c] sm:$0xff]
      %v4633 = vld [vmem:[%s4621 + $0x44] sm:$0xf]
      %v4634 = vld [vmem:[%s4621 + $0x48] sm:$0xff]
      %v4635 = vld [vmem:[%s4621 + $0x50] sm:$0xf]
      %v4636 = vld [vmem:[%s4621 + $0x54] sm:$0xff]
      %v4637 = vld [vmem:[%s4621 + $0x5c] sm:$0xf]
      %v4638 = vld [vmem:[%s4621 + $0x60] sm:$0xff]
      %v4639 = vld [vmem:[%s4621 + $0x68] sm:$0xf]
      %v4640 = vld [vmem:[%s4621 + $0x6c] sm:$0xff]
      %v4641 = vld [vmem:[%s4621 + $0x74] sm:$0xf]
      %v4642 = vld [vmem:[%s4621 + $0x78] sm:$0xff]
      %v4643 = vld [vmem:[%s4621 + $0x80] sm:$0xf]
      %v4644 = vld [vmem:[%s4621 + $0x84] sm:$0xff]
      %v4645 = vld [vmem:[%s4621 + $0x8c] sm:$0xf]
      %v4646 = vld [vmem:[%s4621 + $0x90] sm:$0xff]
      %v4647 = vld [vmem:[%s4621 + $0x98] sm:$0xf]
      %v4648 = vld [vmem:[%s4621 + $0x9c] sm:$0xff]
      %v4649 = vld [vmem:[%s4621 + $0xa4] sm:$0xf]
      %v4650 = vld [vmem:[%s4621 + $0xa8] sm:$0xff]
      %v4651 = vld [vmem:[%s4621 + $0xb0] sm:$0xf]
      %v4652 = vld [vmem:[%s4621 + $0xb4] sm:$0xff]
      %v4653 = vld [vmem:[%s4621 + $0xbc] sm:$0xf]
      %v4654 = vld [vmem:[%s4621 + $0xc0] sm:$0xff]
      %v4655 = vld [vmem:[%s4621 + $0xc8] sm:$0xf]
      %v4656 = vld [vmem:[%s4621 + $0xcc] sm:$0xff]
      %v4657 = vld [vmem:[%s4621 + $0xd4] sm:$0xf]
      %v4658 = vld [vmem:[%s4621 + $0xd8] sm:$0xff]
      %v4659 = vld [vmem:[%s4621 + $0xe0] sm:$0xf]
      %v4660 = vld [vmem:[%s4621 + $0xe4] sm:$0xff]
      %v4661 = vld [vmem:[%s4621 + $0xec] sm:$0xf]
      %v4662 = vld [vmem:[%s4621 + $0xf0] sm:$0xff]
      %v4663 = vld [vmem:[%s4621 + $0xf8] sm:$0xf]
      %v4664 = vld [vmem:[%s4621 + $0xfc] sm:$0xff]
      %v4665 = vld [vmem:[%s4621 + $0x104] sm:$0xf]
      %v4666 = vld [vmem:[%s4621 + $0x108] sm:$0xff]
      %v4667 = vld [vmem:[%s4621 + $0x110] sm:$0xf]
      %v4668 = vld [vmem:[%s4621 + $0x114] sm:$0xff]
      %v4669 = vld [vmem:[%s4621 + $0x11c] sm:$0xf]
      %v4670 = vld [vmem:[%s4621 + $0x120] sm:$0xff]
      %v4671 = vld [vmem:[%s4621 + $0x128] sm:$0xf]
      %v4672 = vld [vmem:[%s4621 + $0x12c] sm:$0xff]
      %v4673 = vld [vmem:[%s4621 + $0x134] sm:$0xf]
      %v4674 = vld [vmem:[%s4621 + $0x138] sm:$0xff]
      %v4675 = vld [vmem:[%s4621 + $0x140] sm:$0xf]
      %v4676 = vld [vmem:[%s4621 + $0x144] sm:$0xff]
      %v4677 = vld [vmem:[%s4621 + $0x14c] sm:$0xf]
      %v4678 = vld [vmem:[%s4621 + $0x150] sm:$0xff]
      %v4679 = vld [vmem:[%s4621 + $0x158] sm:$0xf]
      %v4680 = vld [vmem:[%s4621 + $0x15c] sm:$0xff]
      %v4681 = vld [vmem:[%s4621 + $0x164] sm:$0xf]
      %v4682 = vld [vmem:[%s4621 + $0x168] sm:$0xff]
      %v4683 = vld [vmem:[%s4621 + $0x170] sm:$0xf]
      %v4684 = vld [vmem:[%s4621 + $0x174] sm:$0xff]
      %v4685 = vld [vmem:[%s4621 + $0x17c] sm:$0xf]
      %v4686 = vld [vmem:[%s4621 + $0x180] sm:$0xff]
      %v4687 = vld [vmem:[%s4621 + $0x188] sm:$0xf]
      %v4688 = vld [vmem:[%s4621 + $0x18c] sm:$0xff]
      %v4689 = vld [vmem:[%s4621 + $0x194] sm:$0xf]
      %v4690 = vld [vmem:[%s4621 + $0x198] sm:$0xff]
      %v4691 = vld [vmem:[%s4621 + $0x1a0] sm:$0xf]
      %v4692 = vld [vmem:[%s4621 + $0x1a4] sm:$0xff]
      %v4693 = vld [vmem:[%s4621 + $0x1ac] sm:$0xf]
      %v4694 = vld [vmem:[%s4621 + $0x1b0] sm:$0xff]
      %v4695 = vld [vmem:[%s4621 + $0x1b8] sm:$0xf]
      %v4696 = vld [vmem:[%s4621 + $0x1bc] sm:$0xff]
      %v4697 = vld [vmem:[%s4621 + $0x1c4] sm:$0xf]
      %v4698 = vld [vmem:[%s4621 + $0x1c8] sm:$0xff]
      %v4699 = vld [vmem:[%s4621 + $0x1d0] sm:$0xf]
      %v4700 = vld [vmem:[%s4621 + $0x1d4] sm:$0xff]
      %v4701 = vld [vmem:[%s4621 + $0x1dc] sm:$0xf]
      %v4702 = vld [vmem:[%s4621 + $0x1e0] sm:$0xff]
      %v4703 = vld [vmem:[%s4621 + $0x1e8] sm:$0xf]
      %v4704 = vld [vmem:[%s4621 + $0x1ec] sm:$0xff]
      %v4705 = vld [vmem:[%s4621 + $0x1f4] sm:$0xf]
      %v4706 = vld [vmem:[%s4621 + $0x1f8] sm:$0xff]
      %v4707 = vld [vmem:[%s4621 + $0x200] sm:$0xf]
      %v4708 = vld [vmem:[%s4621 + $0x204] sm:$0xff]
      %v4709 = vld [vmem:[%s4621 + $0x20c] sm:$0xf]
      %v4710 = vld [vmem:[%s4621 + $0x210] sm:$0xff]
      %v4711 = vld [vmem:[%s4621 + $0x218] sm:$0xf]
      %v4712 = vld [vmem:[%s4621 + $0x21c] sm:$0xff]
      %v4713 = vld [vmem:[%s4621 + $0x224] sm:$0xf]
      %v4714 = vld [vmem:[%s4621 + $0x228] sm:$0xff]
      %v4715 = vld [vmem:[%s4621 + $0x230] sm:$0xf]
      %v4716 = vld [vmem:[%s4621 + $0x234] sm:$0xff]
      %v4717 = vld [vmem:[%s4621 + $0x23c] sm:$0xf]
      %v4718 = vld [vmem:[%s4621 + $0x240] sm:$0xff]
      %v4719 = vld [vmem:[%s4621 + $0x248] sm:$0xf]
      %v4720 = vld [vmem:[%s4621 + $0x24c] sm:$0xff]
      %v4721 = vld [vmem:[%s4621 + $0x254] sm:$0xf]
      %v4722 = vld [vmem:[%s4621 + $0x258] sm:$0xff]
      %v4723 = vld [vmem:[%s4621 + $0x260] sm:$0xf]
      %v4724 = vld [vmem:[%s4621 + $0x264] sm:$0xff]
      %v4725 = vld [vmem:[%s4621 + $0x26c] sm:$0xf]
      %v4726 = vld [vmem:[%s4621 + $0x270] sm:$0xff]
      %v4727 = vld [vmem:[%s4621 + $0x278] sm:$0xf]
      %v4728 = vld [vmem:[%s4621 + $0x27c] sm:$0xff]
      %v4729 = vld [vmem:[%s4621 + $0x284] sm:$0xf]
      %v4730 = vld [vmem:[%s4621 + $0x288] sm:$0xff]
      %v4731 = vld [vmem:[%s4621 + $0x290] sm:$0xf]
      %v4732 = vld [vmem:[%s4621 + $0x294] sm:$0xff]
      %v4733 = vld [vmem:[%s4621 + $0x29c] sm:$0xf]
      %v4846 = vunpack.c.l.b16 %v4622
      %v4847 = vunpack.c.h.b16 %v4622
      %v4848 = vunpack.c.l.b16 %v4623
      %v4849 = vunpack.c.l.b16 %v4624
      %v4850 = vunpack.c.h.b16 %v4624
      %v4851 = vunpack.c.l.b16 %v4625
      %v4852 = vunpack.c.l.b16 %v4626
      %v4853 = vunpack.c.h.b16 %v4626
      %v4854 = vunpack.c.l.b16 %v4627
      %v4855 = vunpack.c.l.b16 %v4628
      %v4856 = vunpack.c.h.b16 %v4628
      %v4857 = vunpack.c.l.b16 %v4629
      %v4858 = vunpack.c.l.b16 %v4630
      %v4859 = vunpack.c.h.b16 %v4630
      %v4860 = vunpack.c.l.b16 %v4631
      %v4861 = vunpack.c.l.b16 %v4632
      %v4862 = vunpack.c.h.b16 %v4632
      %v4863 = vunpack.c.l.b16 %v4633
      %v4864 = vunpack.c.l.b16 %v4634
      %v4865 = vunpack.c.h.b16 %v4634
      %v4866 = vunpack.c.l.b16 %v4635
      %v4867 = vunpack.c.l.b16 %v4636
      %v4868 = vunpack.c.h.b16 %v4636
      %v4869 = vunpack.c.l.b16 %v4637
      %v4870 = vunpack.c.l.b16 %v4638
      %v4871 = vunpack.c.h.b16 %v4638
      %v4872 = vunpack.c.l.b16 %v4639
      %v4873 = vunpack.c.l.b16 %v4640
      %v4874 = vunpack.c.h.b16 %v4640
      %v4875 = vunpack.c.l.b16 %v4641
      %v4876 = vunpack.c.l.b16 %v4642
      %v4877 = vunpack.c.h.b16 %v4642
      %v4878 = vunpack.c.l.b16 %v4643
      %v4879 = vunpack.c.l.b16 %v4644
      %v4880 = vunpack.c.h.b16 %v4644
      %v4881 = vunpack.c.l.b16 %v4645
      %v4882 = vunpack.c.l.b16 %v4646
      %v4883 = vunpack.c.h.b16 %v4646
      %v4884 = vunpack.c.l.b16 %v4647
      %v4885 = vunpack.c.l.b16 %v4648
      %v4886 = vunpack.c.h.b16 %v4648
      %v4887 = vunpack.c.l.b16 %v4649
      %v4888 = vunpack.c.l.b16 %v4650
      %v4889 = vunpack.c.h.b16 %v4650
      %v4890 = vunpack.c.l.b16 %v4651
      %v4891 = vunpack.c.l.b16 %v4652
      %v4892 = vunpack.c.h.b16 %v4652
      %v4893 = vunpack.c.l.b16 %v4653
      %v4894 = vunpack.c.l.b16 %v4654
      %v4895 = vunpack.c.h.b16 %v4654
      %v4896 = vunpack.c.l.b16 %v4655
      %v4897 = vunpack.c.l.b16 %v4656
      %v4898 = vunpack.c.h.b16 %v4656
      %v4899 = vunpack.c.l.b16 %v4657
      %v4900 = vunpack.c.l.b16 %v4658
      %v4901 = vunpack.c.h.b16 %v4658
      %v4902 = vunpack.c.l.b16 %v4659
      %v4903 = vunpack.c.l.b16 %v4660
      %v4904 = vunpack.c.h.b16 %v4660
      %v4905 = vunpack.c.l.b16 %v4661
      %v4906 = vunpack.c.l.b16 %v4662
      %v4907 = vunpack.c.h.b16 %v4662
      %v4908 = vunpack.c.l.b16 %v4663
      %v4909 = vunpack.c.l.b16 %v4664
      %v4910 = vunpack.c.h.b16 %v4664
      %v4911 = vunpack.c.l.b16 %v4665
      %v4912 = vunpack.c.l.b16 %v4666
      %v4913 = vunpack.c.h.b16 %v4666
      %v4914 = vunpack.c.l.b16 %v4667
      %v4915 = vunpack.c.l.b16 %v4668
      %v4916 = vunpack.c.h.b16 %v4668
      %v4917 = vunpack.c.l.b16 %v4669
      %v4918 = vunpack.c.l.b16 %v4670
      %v4919 = vunpack.c.h.b16 %v4670
      %v4920 = vunpack.c.l.b16 %v4671
      %v4921 = vunpack.c.l.b16 %v4672
      %v4922 = vunpack.c.h.b16 %v4672
      %v4923 = vunpack.c.l.b16 %v4673
      %v4924 = vunpack.c.l.b16 %v4674
      %v4925 = vunpack.c.h.b16 %v4674
      %v4926 = vunpack.c.l.b16 %v4675
      %v4927 = vunpack.c.l.b16 %v4676
      %v4928 = vunpack.c.h.b16 %v4676
      %v4929 = vunpack.c.l.b16 %v4677
      %v4930 = vunpack.c.l.b16 %v4678
      %v4931 = vunpack.c.h.b16 %v4678
      %v4932 = vunpack.c.l.b16 %v4679
      %v4933 = vunpack.c.l.b16 %v4680
      %v4934 = vunpack.c.h.b16 %v4680
      %v4935 = vunpack.c.l.b16 %v4681
      %v4936 = vunpack.c.l.b16 %v4682
      %v4937 = vunpack.c.h.b16 %v4682
      %v4938 = vunpack.c.l.b16 %v4683
      %v4939 = vunpack.c.l.b16 %v4684
      %v4940 = vunpack.c.h.b16 %v4684
      %v4941 = vunpack.c.l.b16 %v4685
      %v4942 = vunpack.c.l.b16 %v4686
      %v4943 = vunpack.c.h.b16 %v4686
      %v4944 = vunpack.c.l.b16 %v4687
      %v4945 = vunpack.c.l.b16 %v4688
      %v4946 = vunpack.c.h.b16 %v4688
      %v4947 = vunpack.c.l.b16 %v4689
      %v4948 = vunpack.c.l.b16 %v4690
      %v4949 = vunpack.c.h.b16 %v4690
      %v4950 = vunpack.c.l.b16 %v4691
      %v4951 = vunpack.c.l.b16 %v4692
      %v4952 = vunpack.c.h.b16 %v4692
      %v4953 = vunpack.c.l.b16 %v4693
      %v4954 = vunpack.c.l.b16 %v4694
      %v4955 = vunpack.c.h.b16 %v4694
      %v4956 = vunpack.c.l.b16 %v4695
      %v4957 = vunpack.c.l.b16 %v4696
      %v4958 = vunpack.c.h.b16 %v4696
      %v4959 = vunpack.c.l.b16 %v4697
      %v4960 = vunpack.c.l.b16 %v4698
      %v4961 = vunpack.c.h.b16 %v4698
      %v4962 = vunpack.c.l.b16 %v4699
      %v4963 = vunpack.c.l.b16 %v4700
      %v4964 = vunpack.c.h.b16 %v4700
      %v4965 = vunpack.c.l.b16 %v4701
      %v4966 = vunpack.c.l.b16 %v4702
      %v4967 = vunpack.c.h.b16 %v4702
      %v4968 = vunpack.c.l.b16 %v4703
      %v4969 = vunpack.c.l.b16 %v4704
      %v4970 = vunpack.c.h.b16 %v4704
      %v4971 = vunpack.c.l.b16 %v4705
      %v4972 = vunpack.c.l.b16 %v4706
      %v4973 = vunpack.c.h.b16 %v4706
      %v4974 = vunpack.c.l.b16 %v4707
      %v4975 = vunpack.c.l.b16 %v4708
      %v4976 = vunpack.c.h.b16 %v4708
      %v4977 = vunpack.c.l.b16 %v4709
      %v4978 = vunpack.c.l.b16 %v4710
      %v4979 = vunpack.c.h.b16 %v4710
      %v4980 = vunpack.c.l.b16 %v4711
      %v4981 = vunpack.c.l.b16 %v4712
      %v4982 = vunpack.c.h.b16 %v4712
      %v4983 = vunpack.c.l.b16 %v4713
      %v4984 = vunpack.c.l.b16 %v4714
      %v4985 = vunpack.c.h.b16 %v4714
      %v4986 = vunpack.c.l.b16 %v4715
      %v4987 = vunpack.c.l.b16 %v4716
      %v4988 = vunpack.c.h.b16 %v4716
      %v4989 = vunpack.c.l.b16 %v4717
      %v4990 = vunpack.c.l.b16 %v4718
      %v4991 = vunpack.c.h.b16 %v4718
      %v4992 = vunpack.c.l.b16 %v4719
      %v4993 = vunpack.c.l.b16 %v4720
      %v4994 = vunpack.c.h.b16 %v4720
      %v4995 = vunpack.c.l.b16 %v4721
      %v4996 = vunpack.c.l.b16 %v4722
      %v4997 = vunpack.c.h.b16 %v4722
      %v4998 = vunpack.c.l.b16 %v4723
      %v4999 = vunpack.c.l.b16 %v4724
      %v5000 = vunpack.c.h.b16 %v4724
      %v5001 = vunpack.c.l.b16 %v4725
      %v5002 = vunpack.c.l.b16 %v4726
      %v5003 = vunpack.c.h.b16 %v4726
      %v5004 = vunpack.c.l.b16 %v4727
      %v5005 = vunpack.c.l.b16 %v4728
      %v5006 = vunpack.c.h.b16 %v4728
      %v5007 = vunpack.c.l.b16 %v4729
      %v5008 = vunpack.c.l.b16 %v4730
      %v5009 = vunpack.c.h.b16 %v4730
      %v5010 = vunpack.c.l.b16 %v4731
      %v5011 = vunpack.c.l.b16 %v4732
      %v5012 = vunpack.c.h.b16 %v4732
      %v5013 = vunpack.c.l.b16 %v4733
      %v5014 = vpack.c.b16 %v4849, %v4846
      %v5015 = vpack.c.b16 %v4850, %v4847
      %v5016 = vpack.c.b16 %v4851, %v4848
      %v5017 = vpack.c.b16 %v4855, %v4852
      %v5018 = vpack.c.b16 %v4856, %v4853
      %v5019 = vpack.c.b16 %v4857, %v4854
      %v5020 = vpack.c.b16 %v4861, %v4858
      %v5021 = vpack.c.b16 %v4862, %v4859
      %v5022 = vpack.c.b16 %v4863, %v4860
      %v5023 = vpack.c.b16 %v4867, %v4864
      %v5024 = vpack.c.b16 %v4868, %v4865
      %v5025 = vpack.c.b16 %v4869, %v4866
      %v5026 = vpack.c.b16 %v4873, %v4870
      %v5027 = vpack.c.b16 %v4874, %v4871
      %v5028 = vpack.c.b16 %v4875, %v4872
      %v5029 = vpack.c.b16 %v4879, %v4876
      %v5030 = vpack.c.b16 %v4880, %v4877
      %v5031 = vpack.c.b16 %v4881, %v4878
      %v5032 = vpack.c.b16 %v4885, %v4882
      %v5033 = vpack.c.b16 %v4886, %v4883
      %v5034 = vpack.c.b16 %v4887, %v4884
      %v5035 = vpack.c.b16 %v4891, %v4888
      %v5036 = vpack.c.b16 %v4892, %v4889
      %v5037 = vpack.c.b16 %v4893, %v4890
      %v5038 = vpack.c.b16 %v4897, %v4894
      %v5039 = vpack.c.b16 %v4898, %v4895
      %v5040 = vpack.c.b16 %v4899, %v4896
      %v5041 = vpack.c.b16 %v4903, %v4900
      %v5042 = vpack.c.b16 %v4904, %v4901
      %v5043 = vpack.c.b16 %v4905, %v4902
      %v5044 = vpack.c.b16 %v4909, %v4906
      %v5045 = vpack.c.b16 %v4910, %v4907
      %v5046 = vpack.c.b16 %v4911, %v4908
      %v5047 = vpack.c.b16 %v4915, %v4912
      %v5048 = vpack.c.b16 %v4916, %v4913
      %v5049 = vpack.c.b16 %v4917, %v4914
      %v5050 = vpack.c.b16 %v4921, %v4918
      %v5051 = vpack.c.b16 %v4922, %v4919
      %v5052 = vpack.c.b16 %v4923, %v4920
      %v5053 = vpack.c.b16 %v4927, %v4924
      %v5054 = vpack.c.b16 %v4928, %v4925
      %v5055 = vpack.c.b16 %v4929, %v4926
      %v5056 = vpack.c.b16 %v4933, %v4930
      %v5057 = vpack.c.b16 %v4934, %v4931
      %v5058 = vpack.c.b16 %v4935, %v4932
      %v5059 = vpack.c.b16 %v4939, %v4936
      %v5060 = vpack.c.b16 %v4940, %v4937
      %v5061 = vpack.c.b16 %v4941, %v4938
      %v5062 = vpack.c.b16 %v4945, %v4942
      %v5063 = vpack.c.b16 %v4946, %v4943
      %v5064 = vpack.c.b16 %v4947, %v4944
      %v5065 = vpack.c.b16 %v4951, %v4948
      %v5066 = vpack.c.b16 %v4952, %v4949
      %v5067 = vpack.c.b16 %v4953, %v4950
      %v5068 = vpack.c.b16 %v4957, %v4954
      %v5069 = vpack.c.b16 %v4958, %v4955
      %v5070 = vpack.c.b16 %v4959, %v4956
      %v5071 = vpack.c.b16 %v4963, %v4960
      %v5072 = vpack.c.b16 %v4964, %v4961
      %v5073 = vpack.c.b16 %v4965, %v4962
      %v5074 = vpack.c.b16 %v4969, %v4966
      %v5075 = vpack.c.b16 %v4970, %v4967
      %v5076 = vpack.c.b16 %v4971, %v4968
      %v5077 = vpack.c.b16 %v4975, %v4972
      %v5078 = vpack.c.b16 %v4976, %v4973
      %v5079 = vpack.c.b16 %v4977, %v4974
      %v5080 = vpack.c.b16 %v4981, %v4978
      %v5081 = vpack.c.b16 %v4982, %v4979
      %v5082 = vpack.c.b16 %v4983, %v4980
      %v5083 = vpack.c.b16 %v4987, %v4984
      %v5084 = vpack.c.b16 %v4988, %v4985
      %v5085 = vpack.c.b16 %v4989, %v4986
      %v5086 = vpack.c.b16 %v4993, %v4990
      %v5087 = vpack.c.b16 %v4994, %v4991
      %v5088 = vpack.c.b16 %v4995, %v4992
      %v5089 = vpack.c.b16 %v4999, %v4996
      %v5090 = vpack.c.b16 %v5000, %v4997
      %v5091 = vpack.c.b16 %v5001, %v4998
      %v5092 = vpack.c.b16 %v5005, %v5002
      %v5093 = vpack.c.b16 %v5006, %v5003
      %v5094 = vpack.c.b16 %v5007, %v5004
      %v5095 = vpack.c.b16 %v5011, %v5008
      %v5096 = vpack.c.b16 %v5012, %v5009
      %v5097 = vpack.c.b16 %v5013, %v5010
      %v5183 = vsel %vm2931, %v4620, 0
      %5185 = vmatprep.subr.bf16.mxu0 %v5015
      %5186 = vmatpush1.bf16.msra.mxu0 %v5014
      %5187 = vmatprep.subr.bf16.mxu0 %v5018
      %5188 = vmatpush1.bf16.msra.mxu0 %v5017
      %5189 = vmatprep.subr.bf16.mxu0 %v5021
      %5190 = vmatpush1.bf16.msra.mxu0 %v5020
      %5191 = vmatprep.subr.bf16.mxu0 %v5024
      %5192 = vmatpush1.bf16.msra.mxu0 %v5023
      %5193 = vmatprep.subr.bf16.mxu0 %v5027
      %5194 = vmatpush1.bf16.msra.mxu0 %v5026
      %5195 = vmatprep.subr.bf16.mxu0 %v5030
      %5196 = vmatpush1.bf16.msra.mxu0 %v5029
      %5197 = vmatprep.subr.bf16.mxu0 %v5033
      %5198 = vmatpush1.bf16.msra.mxu0 %v5032
      %5199 = vmatprep.subr.bf16.mxu0 %v5036
      %5200 = vmatpush1.bf16.msra.mxu0 %v5035
      %5201 = vmatprep.subr.bf16.mxu0 %v5039
      %5202 = vmatpush1.bf16.msra.mxu0 %v5038
      %5203 = vmatprep.subr.bf16.mxu0 %v5042
      %5204 = vmatpush1.bf16.msra.mxu0 %v5041
      %5205 = vmatprep.subr.bf16.mxu0 %v5045
      %5206 = vmatpush1.bf16.msra.mxu0 %v5044
      %5207 = vmatprep.subr.bf16.mxu0 %v5048
      %5208 = vmatpush1.bf16.msra.mxu0 %v5047
      %5209 = vmatprep.subr.bf16.mxu0 %v5051
      %5210 = vmatpush1.bf16.msra.mxu0 %v5050
      %5211 = vmatprep.subr.bf16.mxu0 %v5054
      %5212 = vmatpush1.bf16.msra.mxu0 %v5053
      %5213 = vmatprep.subr.bf16.mxu0 %v5057
      %5214 = vmatpush1.bf16.msra.mxu0 %v5056
      %5215 = vmatprep.subr.bf16.mxu0 %v5060
      %5216 = vmatpush1.bf16.msra.mxu0 %v5059
      %5217 = vmatprep.mubr.bf16.mxu0 %v4618
      %5218 = vmatmul.mubr.bf16.gmra.mrb[0].mxu0 %v4617
      %v5219 = vpop.f32.mrb[0].mxu0
      %v5220 = vadd.f32 0.0, %v5219
      %v5221 = vpop.f32.mrb[0].mxu0
      %v5222 = vadd.f32 0.0, %v5221
      %v5223 = vpop.f32.mrb[0].mxu0
      %v5224 = vpop.f32.mrb[0].mxu0
      %5225 = vdwg.mxu0
      %5226 = vmatprep.subr.bf16.mxu0 %v5063
      %5227 = vmatpush1.bf16.msra.mxu0 %v5062
      %5228 = vmatprep.subr.bf16.mxu0 %v5066
      %5229 = vmatpush1.bf16.msra.mxu0 %v5065
      %5230 = vmatprep.subr.bf16.mxu0 %v5069
      %5231 = vmatpush1.bf16.msra.mxu0 %v5068
      %5232 = vmatprep.subr.bf16.mxu0 %v5072
      %5233 = vmatpush1.bf16.msra.mxu0 %v5071
      %5234 = vmatprep.subr.bf16.mxu0 %v5075
      %5235 = vmatpush1.bf16.msra.mxu0 %v5074
      %5236 = vmatprep.subr.bf16.mxu0 %v5078
      %5237 = vmatpush1.bf16.msra.mxu0 %v5077
      %5238 = vmatprep.subr.bf16.mxu0 %v5081
      %5239 = vmatpush1.bf16.msra.mxu0 %v5080
      %5240 = vmatprep.subr.bf16.mxu0 %v5084
      %5241 = vmatpush1.bf16.msra.mxu0 %v5083
      %5242 = vmatprep.subr.bf16.mxu0 %v5087
      %5243 = vmatpush1.bf16.msra.mxu0 %v5086
      %5244 = vmatprep.subr.bf16.mxu0 %v5090
      %5245 = vmatpush1.bf16.msra.mxu0 %v5089
      %5246 = vmatprep.subr.bf16.mxu0 %v5093
      %5247 = vmatpush1.bf16.msra.mxu0 %v5092
      %5248 = vmatprep.subr.bf16.mxu0 %v5096
      %5249 = vmatpush1.bf16.msra.mxu0 %v5095
      %5250 = vmatprep.subr.bf16.mxu0 0
      %5251 = vmatpush1.bf16.msra.mxu0 0
      %5252 = vmatprep.subr.bf16.mxu0 0
      %5253 = vmatpush1.bf16.msra.mxu0 0
      %5254 = vmatprep.subr.bf16.mxu0 0
      %5255 = vmatpush1.bf16.msra.mxu0 0
      %5256 = vmatprep.subr.bf16.mxu0 0
      %5257 = vmatpush1.bf16.msra.mxu0 0
      %5258 = vmatprep.mubr.bf16.mxu0 %v5183
      %5259 = vmatmul.mubr.bf16.gmra.mrb[0].mxu0 %v4619
      %v5260 = vpop.f32.mrb[0].mxu0
      %v5261 = vadd.f32 %v5220, %v5260
      %v5262 = vpop.f32.mrb[0].mxu0
      %v5263 = vadd.f32 %v5222, %v5262
      %v5264 = vpop.f32.mrb[0].mxu0
      %v5265 = vpop.f32.mrb[0].mxu0
      %5266 = vdwg.mxu0
      %5267 = vmatprep.subr.bf16.mxu0 0
      %5268 = vmatpush1.bf16.msra.mxu0 %v5016
      %5269 = vmatprep.subr.bf16.mxu0 0
      %5270 = vmatpush1.bf16.msra.mxu0 %v5019
      %5271 = vmatprep.subr.bf16.mxu0 0
      %5272 = vmatpush1.bf16.msra.mxu0 %v5022
      %5273 = vmatprep.subr.bf16.mxu0 0
      %5274 = vmatpush1.bf16.msra.mxu0 %v5025
      %5275 = vmatprep.subr.bf16.mxu0 0
      %5276 = vmatpush1.bf16.msra.mxu0 %v5028
      %5277 = vmatprep.subr.bf16.mxu0 0
      %5278 = vmatpush1.bf16.msra.mxu0 %v5031
      %5279 = vmatprep.subr.bf16.mxu0 0
      %5280 = vmatpush1.bf16.msra.mxu0 %v5034
      %5281 = vmatprep.subr.bf16.mxu0 0
      %5282 = vmatpush1.bf16.msra.mxu0 %v5037
      %5283 = vmatprep.subr.bf16.mxu0 0
      %5284 = vmatpush1.bf16.msra.mxu0 %v5040
      %5285 = vmatprep.subr.bf16.mxu0 0
      %5286 = vmatpush1.bf16.msra.mxu0 %v5043
      %5287 = vmatprep.subr.bf16.mxu0 0
      %5288 = vmatpush1.bf16.msra.mxu0 %v5046
      %5289 = vmatprep.subr.bf16.mxu0 0
      %5290 = vmatpush1.bf16.msra.mxu0 %v5049
      %5291 = vmatprep.subr.bf16.mxu0 0
      %5292 = vmatpush1.bf16.msra.mxu0 %v5052
      %5293 = vmatprep.subr.bf16.mxu0 0
      %5294 = vmatpush1.bf16.msra.mxu0 %v5055
      %5295 = vmatprep.subr.bf16.mxu0 0
      %5296 = vmatpush1.bf16.msra.mxu0 %v5058
      %5297 = vmatprep.subr.bf16.mxu0 0
      %5298 = vmatpush1.bf16.msra.mxu0 %v5061
      %5299 = vmatprep.mubr.bf16.mxu0 %v4618
      %5300 = vmatmul.mubr.bf16.gmra.mrb[0].mxu0 %v4617
      %v5301 = vpop.f32.mrb[0].mxu0
      %v5302 = vadd.f32 0.0, %v5301
      %v5303 = vpop.f32.mrb[0].mxu0
      %v5304 = vpop.f32.mrb[0].mxu0
      %v5305 = vpop.f32.mrb[0].mxu0
      %5306 = vdwg.mxu0
      %5307 = vmatprep.subr.bf16.mxu0 0
      %5308 = vmatpush1.bf16.msra.mxu0 %v5064
      %5309 = vmatprep.subr.bf16.mxu0 0
      %5310 = vmatpush1.bf16.msra.mxu0 %v5067
      %5311 = vmatprep.subr.bf16.mxu0 0
      %5312 = vmatpush1.bf16.msra.mxu0 %v5070
      %5313 = vmatprep.subr.bf16.mxu0 0
      %5314 = vmatpush1.bf16.msra.mxu0 %v5073
      %5315 = vmatprep.subr.bf16.mxu0 0
      %5316 = vmatpush1.bf16.msra.mxu0 %v5076
      %5317 = vmatprep.subr.bf16.mxu0 0
      %5318 = vmatpush1.bf16.msra.mxu0 %v5079
      %5319 = vmatprep.subr.bf16.mxu0 0
      %5320 = vmatpush1.bf16.msra.mxu0 %v5082
      %5321 = vmatprep.subr.bf16.mxu0 0
      %5322 = vmatpush1.bf16.msra.mxu0 %v5085
      %5323 = vmatprep.subr.bf16.mxu0 0
      %5324 = vmatpush1.bf16.msra.mxu0 %v5088
      %5325 = vmatprep.subr.bf16.mxu0 0
      %5326 = vmatpush1.bf16.msra.mxu0 %v5091
      %5327 = vmatprep.subr.bf16.mxu0 0
      %5328 = vmatpush1.bf16.msra.mxu0 %v5094
      %5329 = vmatprep.subr.bf16.mxu0 0
      %5330 = vmatpush1.bf16.msra.mxu0 %v5097
      %5331 = vmatprep.subr.bf16.mxu0 0
      %5332 = vmatpush1.bf16.msra.mxu0 0
      %5333 = vmatprep.subr.bf16.mxu0 0
      %5334 = vmatpush1.bf16.msra.mxu0 0
      %5335 = vmatprep.subr.bf16.mxu0 0
      %5336 = vmatpush1.bf16.msra.mxu0 0
      %5337 = vmatprep.subr.bf16.mxu0 0
      %5338 = vmatpush1.bf16.msra.mxu0 0
      %5339 = vmatprep.mubr.bf16.mxu0 %v5183
      %5340 = vmatmul.mubr.bf16.gmra.mrb[0].mxu0 %v4619
      %v5341 = vpop.f32.mrb[0].mxu0
      %v5342 = vadd.f32 %v5302, %v5341
      %v5343 = vpop.f32.mrb[0].mxu0
      %v5344 = vpop.f32.mrb[0].mxu0
      %v5345 = vpop.f32.mrb[0].mxu0
      %5346 = vdwg.mxu0
      %v5347 = vadd.f32 %v4527, %v5261
      %v5348 = vadd.f32 %v4528, %v5263
      %v5349 = vadd.f32 %v4529, %v5342
      %s5350 = scalar_lea.vmem %s4, 16
      %v5351 = vld [vmem:[%s5350] sm:$0x7]
      %v5353 = vsel %vm2064, %v5351, 0
      %5355 = vmatprep.subr.bf16.mxu0 %v2073
      %5356 = vmatpush1.bf16.msra.mxu0 %v2070
      %5357 = vmatprep.subr.bf16.mxu0 0
      %5358 = vmatpush1.bf16.msra.mxu0 0
      %5359 = vmatprep.subr.bf16.mxu0 0
      %5360 = vmatpush1.bf16.msra.mxu0 0
      %5361 = vmatprep.subr.bf16.mxu0 0
      %5362 = vmatpush1.bf16.msra.mxu0 0
      %5363 = vmatprep.subr.bf16.mxu0 0
      %5364 = vmatpush1.bf16.msra.mxu0 0
      %5365 = vmatprep.subr.bf16.mxu0 0
      %5366 = vmatpush1.bf16.msra.mxu0 0
      %5367 = vmatprep.subr.bf16.mxu0 0
      %5368 = vmatpush1.bf16.msra.mxu0 0
      %5369 = vmatprep.subr.bf16.mxu0 0
      %5370 = vmatpush1.bf16.msra.mxu0 0
      %5371 = vmatprep.subr.bf16.mxu0 0
      %5372 = vmatpush1.bf16.msra.mxu0 0
      %5373 = vmatprep.subr.bf16.mxu0 0
      %5374 = vmatpush1.bf16.msra.mxu0 0
      %5375 = vmatprep.subr.bf16.mxu0 0
      %5376 = vmatpush1.bf16.msra.mxu0 0
      %5377 = vmatprep.subr.bf16.mxu0 0
      %5378 = vmatpush1.bf16.msra.mxu0 0
      %5379 = vmatprep.subr.bf16.mxu0 0
      %5380 = vmatpush1.bf16.msra.mxu0 0
      %5381 = vmatprep.subr.bf16.mxu0 0
      %5382 = vmatpush1.bf16.msra.mxu0 0
      %5383 = vmatprep.subr.bf16.mxu0 0
      %5384 = vmatpush1.bf16.msra.mxu0 0
      %5385 = vmatprep.subr.bf16.mxu0 0
      %5386 = vmatpush1.bf16.msra.mxu0 0
      %5387 = vmatprep.mubr.bf16.mxu0 0
      %5388 = vmatmul.mubr.bf16.gmra.mrb[0].mxu0 %v5353
      %v5389 = vpop.f32.mrb[0].mxu0
      %v5390 = vadd.f32 0.0, %v5389
      %v5391 = vpop.f32.mrb[0].mxu0
      %v5392 = vadd.f32 0.0, %v5391
      %v5393 = vpop.f32.mrb[0].mxu0
      %v5394 = vpop.f32.mrb[0].mxu0
      %5395 = vdwg.mxu0
      %5396 = vmatprep.subr.bf16.mxu0 %v2079
      %5397 = vmatpush1.bf16.msra.mxu0 %v2076
      %5398 = vmatprep.subr.bf16.mxu0 0
      %5399 = vmatpush1.bf16.msra.mxu0 0
      %5400 = vmatprep.subr.bf16.mxu0 0
      %5401 = vmatpush1.bf16.msra.mxu0 0
      %5402 = vmatprep.subr.bf16.mxu0 0
      %5403 = vmatpush1.bf16.msra.mxu0 0
      %5404 = vmatprep.subr.bf16.mxu0 0
      %5405 = vmatpush1.bf16.msra.mxu0 0
      %5406 = vmatprep.subr.bf16.mxu0 0
      %5407 = vmatpush1.bf16.msra.mxu0 0
      %5408 = vmatprep.subr.bf16.mxu0 0
      %5409 = vmatpush1.bf16.msra.mxu0 0
      %5410 = vmatprep.subr.bf16.mxu0 0
      %5411 = vmatpush1.bf16.msra.mxu0 0
      %5412 = vmatprep.subr.bf16.mxu0 0
      %5413 = vmatpush1.bf16.msra.mxu0 0
      %5414 = vmatprep.subr.bf16.mxu0 0
      %5415 = vmatpush1.bf16.msra.mxu0 0
      %5416 = vmatprep.subr.bf16.mxu0 0
      %5417 = vmatpush1.bf16.msra.mxu0 0
      %5418 = vmatprep.subr.bf16.mxu0 0
      %5419 = vmatpush1.bf16.msra.mxu0 0
      %5420 = vmatprep.subr.bf16.mxu0 0
      %5421 = vmatpush1.bf16.msra.mxu0 0
      %5422 = vmatprep.subr.bf16.mxu0 0
      %5423 = vmatpush1.bf16.msra.mxu0 0
      %5424 = vmatprep.subr.bf16.mxu0 0
      %5425 = vmatpush1.bf16.msra.mxu0 0
      %5426 = vmatprep.subr.bf16.mxu0 0
      %5427 = vmatpush1.bf16.msra.mxu0 0
      %5428 = vmatprep.mubr.bf16.mxu0 0
      %5429 = vmatmul.mubr.bf16.gmra.mrb[0].mxu0 %v5353
      %v5430 = vpop.f32.mrb[0].mxu0
      %v5431 = vadd.f32 0.0, %v5430
      %v5432 = vpop.f32.mrb[0].mxu0
      %v5433 = vadd.f32 0.0, %v5432
      %v5434 = vpop.f32.mrb[0].mxu0
      %v5435 = vpop.f32.mrb[0].mxu0
      %5436 = vdwg.mxu0
      %v5437 = vpack.c.bf16 %v5390, %v5390
      %v5438 = vpack.c.bf16 %v5392, %v5392
      %v5439 = vpack.c.bf16 %v5431, %v5431
      %v5440 = vpack.c.bf16 %v5433, %v5433
      %s5441 = scalar_lea.vmem %s5, 2688
      %v5442 = vld [vmem:[%s5441] sm:$0xff]
      %v5443 = vld [vmem:[%s5441 + $0x8] sm:$0xf]
      %v5444 = vld [vmem:[%s5441 + $0xc] sm:$0xff]
      %v5445 = vld [vmem:[%s5441 + $0x14] sm:$0xf]
      %v5446 = vld [vmem:[%s5441 + $0x18] sm:$0xff]
      %v5447 = vld [vmem:[%s5441 + $0x20] sm:$0xf]
      %v5448 = vld [vmem:[%s5441 + $0x24] sm:$0xff]
      %v5449 = vld [vmem:[%s5441 + $0x2c] sm:$0xf]
      %v5450 = vld [vmem:[%s5441 + $0x30] sm:$0xff]
      %v5451 = vld [vmem:[%s5441 + $0x38] sm:$0xf]
      %v5452 = vld [vmem:[%s5441 + $0x3c] sm:$0xff]
      %v5453 = vld [vmem:[%s5441 + $0x44] sm:$0xf]
      %v5454 = vld [vmem:[%s5441 + $0x48] sm:$0xff]
      %v5455 = vld [vmem:[%s5441 + $0x50] sm:$0xf]
      %v5456 = vld [vmem:[%s5441 + $0x54] sm:$0xff]
      %v5457 = vld [vmem:[%s5441 + $0x5c] sm:$0xf]
      %v5458 = vld [vmem:[%s5441 + $0x60] sm:$0xff]
      %v5459 = vld [vmem:[%s5441 + $0x68] sm:$0xf]
      %v5460 = vld [vmem:[%s5441 + $0x6c] sm:$0xff]
      %v5461 = vld [vmem:[%s5441 + $0x74] sm:$0xf]
      %v5462 = vld [vmem:[%s5441 + $0x78] sm:$0xff]
      %v5463 = vld [vmem:[%s5441 + $0x80] sm:$0xf]
      %v5464 = vld [vmem:[%s5441 + $0x84] sm:$0xff]
      %v5465 = vld [vmem:[%s5441 + $0x8c] sm:$0xf]
      %v5466 = vld [vmem:[%s5441 + $0x90] sm:$0xff]
      %v5467 = vld [vmem:[%s5441 + $0x98] sm:$0xf]
      %v5468 = vld [vmem:[%s5441 + $0x9c] sm:$0xff]
      %v5469 = vld [vmem:[%s5441 + $0xa4] sm:$0xf]
      %v5470 = vld [vmem:[%s5441 + $0xa8] sm:$0xff]
      %v5471 = vld [vmem:[%s5441 + $0xb0] sm:$0xf]
      %v5472 = vld [vmem:[%s5441 + $0xb4] sm:$0xff]
      %v5473 = vld [vmem:[%s5441 + $0xbc] sm:$0xf]
      %v5474 = vld [vmem:[%s5441 + $0xc0] sm:$0xff]
      %v5475 = vld [vmem:[%s5441 + $0xc8] sm:$0xf]
      %v5476 = vld [vmem:[%s5441 + $0xcc] sm:$0xff]
      %v5477 = vld [vmem:[%s5441 + $0xd4] sm:$0xf]
      %v5478 = vld [vmem:[%s5441 + $0xd8] sm:$0xff]
      %v5479 = vld [vmem:[%s5441 + $0xe0] sm:$0xf]
      %v5480 = vld [vmem:[%s5441 + $0xe4] sm:$0xff]
      %v5481 = vld [vmem:[%s5441 + $0xec] sm:$0xf]
      %v5482 = vld [vmem:[%s5441 + $0xf0] sm:$0xff]
      %v5483 = vld [vmem:[%s5441 + $0xf8] sm:$0xf]
      %v5484 = vld [vmem:[%s5441 + $0xfc] sm:$0xff]
      %v5485 = vld [vmem:[%s5441 + $0x104] sm:$0xf]
      %v5486 = vld [vmem:[%s5441 + $0x108] sm:$0xff]
      %v5487 = vld [vmem:[%s5441 + $0x110] sm:$0xf]
      %v5488 = vld [vmem:[%s5441 + $0x114] sm:$0xff]
      %v5489 = vld [vmem:[%s5441 + $0x11c] sm:$0xf]
      %v5490 = vld [vmem:[%s5441 + $0x120] sm:$0xff]
      %v5491 = vld [vmem:[%s5441 + $0x128] sm:$0xf]
      %v5492 = vld [vmem:[%s5441 + $0x12c] sm:$0xff]
      %v5493 = vld [vmem:[%s5441 + $0x134] sm:$0xf]
      %v5494 = vld [vmem:[%s5441 + $0x138] sm:$0xff]
      %v5495 = vld [vmem:[%s5441 + $0x140] sm:$0xf]
      %v5496 = vld [vmem:[%s5441 + $0x144] sm:$0xff]
      %v5497 = vld [vmem:[%s5441 + $0x14c] sm:$0xf]
      %v5498 = vld [vmem:[%s5441 + $0x150] sm:$0xff]
      %v5499 = vld [vmem:[%s5441 + $0x158] sm:$0xf]
      %v5500 = vld [vmem:[%s5441 + $0x15c] sm:$0xff]
      %v5501 = vld [vmem:[%s5441 + $0x164] sm:$0xf]
      %v5502 = vld [vmem:[%s5441 + $0x168] sm:$0xff]
      %v5503 = vld [vmem:[%s5441 + $0x170] sm:$0xf]
      %v5504 = vld [vmem:[%s5441 + $0x174] sm:$0xff]
      %v5505 = vld [vmem:[%s5441 + $0x17c] sm:$0xf]
      %v5506 = vld [vmem:[%s5441 + $0x180] sm:$0xff]
      %v5507 = vld [vmem:[%s5441 + $0x188] sm:$0xf]
      %v5508 = vld [vmem:[%s5441 + $0x18c] sm:$0xff]
      %v5509 = vld [vmem:[%s5441 + $0x194] sm:$0xf]
      %v5510 = vld [vmem:[%s5441 + $0x198] sm:$0xff]
      %v5511 = vld [vmem:[%s5441 + $0x1a0] sm:$0xf]
      %v5512 = vld [vmem:[%s5441 + $0x1a4] sm:$0xff]
      %v5513 = vld [vmem:[%s5441 + $0x1ac] sm:$0xf]
      %v5514 = vld [vmem:[%s5441 + $0x1b0] sm:$0xff]
      %v5515 = vld [vmem:[%s5441 + $0x1b8] sm:$0xf]
      %v5516 = vld [vmem:[%s5441 + $0x1bc] sm:$0xff]
      %v5517 = vld [vmem:[%s5441 + $0x1c4] sm:$0xf]
      %v5518 = vld [vmem:[%s5441 + $0x1c8] sm:$0xff]
      %v5519 = vld [vmem:[%s5441 + $0x1d0] sm:$0xf]
      %v5520 = vld [vmem:[%s5441 + $0x1d4] sm:$0xff]
      %v5521 = vld [vmem:[%s5441 + $0x1dc] sm:$0xf]
      %v5522 = vld [vmem:[%s5441 + $0x1e0] sm:$0xff]
      %v5523 = vld [vmem:[%s5441 + $0x1e8] sm:$0xf]
      %v5524 = vld [vmem:[%s5441 + $0x1ec] sm:$0xff]
      %v5525 = vld [vmem:[%s5441 + $0x1f4] sm:$0xf]
      %v5526 = vld [vmem:[%s5441 + $0x1f8] sm:$0xff]
      %v5527 = vld [vmem:[%s5441 + $0x200] sm:$0xf]
      %v5528 = vld [vmem:[%s5441 + $0x204] sm:$0xff]
      %v5529 = vld [vmem:[%s5441 + $0x20c] sm:$0xf]
      %v5530 = vld [vmem:[%s5441 + $0x210] sm:$0xff]
      %v5531 = vld [vmem:[%s5441 + $0x218] sm:$0xf]
      %v5532 = vld [vmem:[%s5441 + $0x21c] sm:$0xff]
      %v5533 = vld [vmem:[%s5441 + $0x224] sm:$0xf]
      %v5534 = vld [vmem:[%s5441 + $0x228] sm:$0xff]
      %v5535 = vld [vmem:[%s5441 + $0x230] sm:$0xf]
      %v5536 = vld [vmem:[%s5441 + $0x234] sm:$0xff]
      %v5537 = vld [vmem:[%s5441 + $0x23c] sm:$0xf]
      %v5538 = vld [vmem:[%s5441 + $0x240] sm:$0xff]
      %v5539 = vld [vmem:[%s5441 + $0x248] sm:$0xf]
      %v5540 = vld [vmem:[%s5441 + $0x24c] sm:$0xff]
      %v5541 = vld [vmem:[%s5441 + $0x254] sm:$0xf]
      %v5542 = vld [vmem:[%s5441 + $0x258] sm:$0xff]
      %v5543 = vld [vmem:[%s5441 + $0x260] sm:$0xf]
      %v5544 = vld [vmem:[%s5441 + $0x264] sm:$0xff]
      %v5545 = vld [vmem:[%s5441 + $0x26c] sm:$0xf]
      %v5546 = vld [vmem:[%s5441 + $0x270] sm:$0xff]
      %v5547 = vld [vmem:[%s5441 + $0x278] sm:$0xf]
      %v5548 = vld [vmem:[%s5441 + $0x27c] sm:$0xff]
      %v5549 = vld [vmem:[%s5441 + $0x284] sm:$0xf]
      %v5550 = vld [vmem:[%s5441 + $0x288] sm:$0xff]
      %v5551 = vld [vmem:[%s5441 + $0x290] sm:$0xf]
      %v5552 = vld [vmem:[%s5441 + $0x294] sm:$0xff]
      %v5553 = vld [vmem:[%s5441 + $0x29c] sm:$0xf]
      %v5666 = vunpack.c.l.b16 %v5442
      %v5667 = vunpack.c.h.b16 %v5442
      %v5668 = vunpack.c.l.b16 %v5443
      %v5669 = vunpack.c.l.b16 %v5444
      %v5670 = vunpack.c.h.b16 %v5444
      %v5671 = vunpack.c.l.b16 %v5445
      %v5672 = vunpack.c.l.b16 %v5446
      %v5673 = vunpack.c.h.b16 %v5446
      %v5674 = vunpack.c.l.b16 %v5447
      %v5675 = vunpack.c.l.b16 %v5448
      %v5676 = vunpack.c.h.b16 %v5448
      %v5677 = vunpack.c.l.b16 %v5449
      %v5678 = vunpack.c.l.b16 %v5450
      %v5679 = vunpack.c.h.b16 %v5450
      %v5680 = vunpack.c.l.b16 %v5451
      %v5681 = vunpack.c.l.b16 %v5452
      %v5682 = vunpack.c.h.b16 %v5452
      %v5683 = vunpack.c.l.b16 %v5453
      %v5684 = vunpack.c.l.b16 %v5454
      %v5685 = vunpack.c.h.b16 %v5454
      %v5686 = vunpack.c.l.b16 %v5455
      %v5687 = vunpack.c.l.b16 %v5456
      %v5688 = vunpack.c.h.b16 %v5456
      %v5689 = vunpack.c.l.b16 %v5457
      %v5690 = vunpack.c.l.b16 %v5458
      %v5691 = vunpack.c.h.b16 %v5458
      %v5692 = vunpack.c.l.b16 %v5459
      %v5693 = vunpack.c.l.b16 %v5460
      %v5694 = vunpack.c.h.b16 %v5460
      %v5695 = vunpack.c.l.b16 %v5461
      %v5696 = vunpack.c.l.b16 %v5462
      %v5697 = vunpack.c.h.b16 %v5462
      %v5698 = vunpack.c.l.b16 %v5463
      %v5699 = vunpack.c.l.b16 %v5464
      %v5700 = vunpack.c.h.b16 %v5464
      %v5701 = vunpack.c.l.b16 %v5465
      %v5702 = vunpack.c.l.b16 %v5466
      %v5703 = vunpack.c.h.b16 %v5466
      %v5704 = vunpack.c.l.b16 %v5467
      %v5705 = vunpack.c.l.b16 %v5468
      %v5706 = vunpack.c.h.b16 %v5468
      %v5707 = vunpack.c.l.b16 %v5469
      %v5708 = vunpack.c.l.b16 %v5470
      %v5709 = vunpack.c.h.b16 %v5470
      %v5710 = vunpack.c.l.b16 %v5471
      %v5711 = vunpack.c.l.b16 %v5472
      %v5712 = vunpack.c.h.b16 %v5472
      %v5713 = vunpack.c.l.b16 %v5473
      %v5714 = vunpack.c.l.b16 %v5474
      %v5715 = vunpack.c.h.b16 %v5474
      %v5716 = vunpack.c.l.b16 %v5475
      %v5717 = vunpack.c.l.b16 %v5476
      %v5718 = vunpack.c.h.b16 %v5476
      %v5719 = vunpack.c.l.b16 %v5477
      %v5720 = vunpack.c.l.b16 %v5478
      %v5721 = vunpack.c.h.b16 %v5478
      %v5722 = vunpack.c.l.b16 %v5479
      %v5723 = vunpack.c.l.b16 %v5480
      %v5724 = vunpack.c.h.b16 %v5480
      %v5725 = vunpack.c.l.b16 %v5481
      %v5726 = vunpack.c.l.b16 %v5482
      %v5727 = vunpack.c.h.b16 %v5482
      %v5728 = vunpack.c.l.b16 %v5483
      %v5729 = vunpack.c.l.b16 %v5484
      %v5730 = vunpack.c.h.b16 %v5484
      %v5731 = vunpack.c.l.b16 %v5485
      %v5732 = vunpack.c.l.b16 %v5486
      %v5733 = vunpack.c.h.b16 %v5486
      %v5734 = vunpack.c.l.b16 %v5487
      %v5735 = vunpack.c.l.b16 %v5488
      %v5736 = vunpack.c.h.b16 %v5488
      %v5737 = vunpack.c.l.b16 %v5489
      %v5738 = vunpack.c.l.b16 %v5490
      %v5739 = vunpack.c.h.b16 %v5490
      %v5740 = vunpack.c.l.b16 %v5491
      %v5741 = vunpack.c.l.b16 %v5492
      %v5742 = vunpack.c.h.b16 %v5492
      %v5743 = vunpack.c.l.b16 %v5493
      %v5744 = vunpack.c.l.b16 %v5494
      %v5745 = vunpack.c.h.b16 %v5494
      %v5746 = vunpack.c.l.b16 %v5495
      %v5747 = vunpack.c.l.b16 %v5496
      %v5748 = vunpack.c.h.b16 %v5496
      %v5749 = vunpack.c.l.b16 %v5497
      %v5750 = vunpack.c.l.b16 %v5498
      %v5751 = vunpack.c.h.b16 %v5498
      %v5752 = vunpack.c.l.b16 %v5499
      %v5753 = vunpack.c.l.b16 %v5500
      %v5754 = vunpack.c.h.b16 %v5500
      %v5755 = vunpack.c.l.b16 %v5501
      %v5756 = vunpack.c.l.b16 %v5502
      %v5757 = vunpack.c.h.b16 %v5502
      %v5758 = vunpack.c.l.b16 %v5503
      %v5759 = vunpack.c.l.b16 %v5504
      %v5760 = vunpack.c.h.b16 %v5504
      %v5761 = vunpack.c.l.b16 %v5505
      %v5762 = vunpack.c.l.b16 %v5506
      %v5763 = vunpack.c.h.b16 %v5506
      %v5764 = vunpack.c.l.b16 %v5507
      %v5765 = vunpack.c.l.b16 %v5508
      %v5766 = vunpack.c.h.b16 %v5508
      %v5767 = vunpack.c.l.b16 %v5509
      %v5768 = vunpack.c.l.b16 %v5510
      %v5769 = vunpack.c.h.b16 %v5510
      %v5770 = vunpack.c.l.b16 %v5511
      %v5771 = vunpack.c.l.b16 %v5512
      %v5772 = vunpack.c.h.b16 %v5512
      %v5773 = vunpack.c.l.b16 %v5513
      %v5774 = vunpack.c.l.b16 %v5514
      %v5775 = vunpack.c.h.b16 %v5514
      %v5776 = vunpack.c.l.b16 %v5515
      %v5777 = vunpack.c.l.b16 %v5516
      %v5778 = vunpack.c.h.b16 %v5516
      %v5779 = vunpack.c.l.b16 %v5517
      %v5780 = vunpack.c.l.b16 %v5518
      %v5781 = vunpack.c.h.b16 %v5518
      %v5782 = vunpack.c.l.b16 %v5519
      %v5783 = vunpack.c.l.b16 %v5520
      %v5784 = vunpack.c.h.b16 %v5520
      %v5785 = vunpack.c.l.b16 %v5521
      %v5786 = vunpack.c.l.b16 %v5522
      %v5787 = vunpack.c.h.b16 %v5522
      %v5788 = vunpack.c.l.b16 %v5523
      %v5789 = vunpack.c.l.b16 %v5524
      %v5790 = vunpack.c.h.b16 %v5524
      %v5791 = vunpack.c.l.b16 %v5525
      %v5792 = vunpack.c.l.b16 %v5526
      %v5793 = vunpack.c.h.b16 %v5526
      %v5794 = vunpack.c.l.b16 %v5527
      %v5795 = vunpack.c.l.b16 %v5528
      %v5796 = vunpack.c.h.b16 %v5528
      %v5797 = vunpack.c.l.b16 %v5529
      %v5798 = vunpack.c.l.b16 %v5530
      %v5799 = vunpack.c.h.b16 %v5530
      %v5800 = vunpack.c.l.b16 %v5531
      %v5801 = vunpack.c.l.b16 %v5532
      %v5802 = vunpack.c.h.b16 %v5532
      %v5803 = vunpack.c.l.b16 %v5533
      %v5804 = vunpack.c.l.b16 %v5534
      %v5805 = vunpack.c.h.b16 %v5534
      %v5806 = vunpack.c.l.b16 %v5535
      %v5807 = vunpack.c.l.b16 %v5536
      %v5808 = vunpack.c.h.b16 %v5536
      %v5809 = vunpack.c.l.b16 %v5537
      %v5810 = vunpack.c.l.b16 %v5538
      %v5811 = vunpack.c.h.b16 %v5538
      %v5812 = vunpack.c.l.b16 %v5539
      %v5813 = vunpack.c.l.b16 %v5540
      %v5814 = vunpack.c.h.b16 %v5540
      %v5815 = vunpack.c.l.b16 %v5541
      %v5816 = vunpack.c.l.b16 %v5542
      %v5817 = vunpack.c.h.b16 %v5542
      %v5818 = vunpack.c.l.b16 %v5543
      %v5819 = vunpack.c.l.b16 %v5544
      %v5820 = vunpack.c.h.b16 %v5544
      %v5821 = vunpack.c.l.b16 %v5545
      %v5822 = vunpack.c.l.b16 %v5546
      %v5823 = vunpack.c.h.b16 %v5546
      %v5824 = vunpack.c.l.b16 %v5547
      %v5825 = vunpack.c.l.b16 %v5548
      %v5826 = vunpack.c.h.b16 %v5548
      %v5827 = vunpack.c.l.b16 %v5549
      %v5828 = vunpack.c.l.b16 %v5550
      %v5829 = vunpack.c.h.b16 %v5550
      %v5830 = vunpack.c.l.b16 %v5551
      %v5831 = vunpack.c.l.b16 %v5552
      %v5832 = vunpack.c.h.b16 %v5552
      %v5833 = vunpack.c.l.b16 %v5553
      %v5834 = vpack.c.b16 %v5669, %v5666
      %v5835 = vpack.c.b16 %v5670, %v5667
      %v5836 = vpack.c.b16 %v5671, %v5668
      %v5837 = vpack.c.b16 %v5675, %v5672
      %v5838 = vpack.c.b16 %v5676, %v5673
      %v5839 = vpack.c.b16 %v5677, %v5674
      %v5840 = vpack.c.b16 %v5681, %v5678
      %v5841 = vpack.c.b16 %v5682, %v5679
      %v5842 = vpack.c.b16 %v5683, %v5680
      %v5843 = vpack.c.b16 %v5687, %v5684
      %v5844 = vpack.c.b16 %v5688, %v5685
      %v5845 = vpack.c.b16 %v5689, %v5686
      %v5846 = vpack.c.b16 %v5693, %v5690
      %v5847 = vpack.c.b16 %v5694, %v5691
      %v5848 = vpack.c.b16 %v5695, %v5692
      %v5849 = vpack.c.b16 %v5699, %v5696
      %v5850 = vpack.c.b16 %v5700, %v5697
      %v5851 = vpack.c.b16 %v5701, %v5698
      %v5852 = vpack.c.b16 %v5705, %v5702
      %v5853 = vpack.c.b16 %v5706, %v5703
      %v5854 = vpack.c.b16 %v5707, %v5704
      %v5855 = vpack.c.b16 %v5711, %v5708
      %v5856 = vpack.c.b16 %v5712, %v5709
      %v5857 = vpack.c.b16 %v5713, %v5710
      %v5858 = vpack.c.b16 %v5717, %v5714
      %v5859 = vpack.c.b16 %v5718, %v5715
      %v5860 = vpack.c.b16 %v5719, %v5716
      %v5861 = vpack.c.b16 %v5723, %v5720
      %v5862 = vpack.c.b16 %v5724, %v5721
      %v5863 = vpack.c.b16 %v5725, %v5722
      %v5864 = vpack.c.b16 %v5729, %v5726
      %v5865 = vpack.c.b16 %v5730, %v5727
      %v5866 = vpack.c.b16 %v5731, %v5728
      %v5867 = vpack.c.b16 %v5735, %v5732
      %v5868 = vpack.c.b16 %v5736, %v5733
      %v5869 = vpack.c.b16 %v5737, %v5734
      %v5870 = vpack.c.b16 %v5741, %v5738
      %v5871 = vpack.c.b16 %v5742, %v5739
      %v5872 = vpack.c.b16 %v5743, %v5740
      %v5873 = vpack.c.b16 %v5747, %v5744
      %v5874 = vpack.c.b16 %v5748, %v5745
      %v5875 = vpack.c.b16 %v5749, %v5746
      %v5876 = vpack.c.b16 %v5753, %v5750
      %v5877 = vpack.c.b16 %v5754, %v5751
      %v5878 = vpack.c.b16 %v5755, %v5752
      %v5879 = vpack.c.b16 %v5759, %v5756
      %v5880 = vpack.c.b16 %v5760, %v5757
      %v5881 = vpack.c.b16 %v5761, %v5758
      %v5882 = vpack.c.b16 %v5765, %v5762
      %v5883 = vpack.c.b16 %v5766, %v5763
      %v5884 = vpack.c.b16 %v5767, %v5764
      %v5885 = vpack.c.b16 %v5771, %v5768
      %v5886 = vpack.c.b16 %v5772, %v5769
      %v5887 = vpack.c.b16 %v5773, %v5770
      %v5888 = vpack.c.b16 %v5777, %v5774
      %v5889 = vpack.c.b16 %v5778, %v5775
      %v5890 = vpack.c.b16 %v5779, %v5776
      %v5891 = vpack.c.b16 %v5783, %v5780
      %v5892 = vpack.c.b16 %v5784, %v5781
      %v5893 = vpack.c.b16 %v5785, %v5782
      %v5894 = vpack.c.b16 %v5789, %v5786
      %v5895 = vpack.c.b16 %v5790, %v5787
      %v5896 = vpack.c.b16 %v5791, %v5788
      %v5897 = vpack.c.b16 %v5795, %v5792
      %v5898 = vpack.c.b16 %v5796, %v5793
      %v5899 = vpack.c.b16 %v5797, %v5794
      %v5900 = vpack.c.b16 %v5801, %v5798
      %v5901 = vpack.c.b16 %v5802, %v5799
      %v5902 = vpack.c.b16 %v5803, %v5800
      %v5903 = vpack.c.b16 %v5807, %v5804
      %v5904 = vpack.c.b16 %v5808, %v5805
      %v5905 = vpack.c.b16 %v5809, %v5806
      %v5906 = vpack.c.b16 %v5813, %v5810
      %v5907 = vpack.c.b16 %v5814, %v5811
      %v5908 = vpack.c.b16 %v5815, %v5812
      %v5909 = vpack.c.b16 %v5819, %v5816
      %v5910 = vpack.c.b16 %v5820, %v5817
      %v5911 = vpack.c.b16 %v5821, %v5818
      %v5912 = vpack.c.b16 %v5825, %v5822
      %v5913 = vpack.c.b16 %v5826, %v5823
      %v5914 = vpack.c.b16 %v5827, %v5824
      %v5915 = vpack.c.b16 %v5831, %v5828
      %v5916 = vpack.c.b16 %v5832, %v5829
      %v5917 = vpack.c.b16 %v5833, %v5830
      %v6003 = vsel %vm2931, %v5440, 0
      %6005 = vmatprep.subr.bf16.mxu0 %v5835
      %6006 = vmatpush1.bf16.msra.mxu0 %v5834
      %6007 = vmatprep.subr.bf16.mxu0 %v5838
      %6008 = vmatpush1.bf16.msra.mxu0 %v5837
      %6009 = vmatprep.subr.bf16.mxu0 %v5841
      %6010 = vmatpush1.bf16.msra.mxu0 %v5840
      %6011 = vmatprep.subr.bf16.mxu0 %v5844
      %6012 = vmatpush1.bf16.msra.mxu0 %v5843
      %6013 = vmatprep.subr.bf16.mxu0 %v5847
      %6014 = vmatpush1.bf16.msra.mxu0 %v5846
      %6015 = vmatprep.subr.bf16.mxu0 %v5850
      %6016 = vmatpush1.bf16.msra.mxu0 %v5849
      %6017 = vmatprep.subr.bf16.mxu0 %v5853
      %6018 = vmatpush1.bf16.msra.mxu0 %v5852
      %6019 = vmatprep.subr.bf16.mxu0 %v5856
      %6020 = vmatpush1.bf16.msra.mxu0 %v5855
      %6021 = vmatprep.subr.bf16.mxu0 %v5859
      %6022 = vmatpush1.bf16.msra.mxu0 %v5858
      %6023 = vmatprep.subr.bf16.mxu0 %v5862
      %6024 = vmatpush1.bf16.msra.mxu0 %v5861
      %6025 = vmatprep.subr.bf16.mxu0 %v5865
      %6026 = vmatpush1.bf16.msra.mxu0 %v5864
      %6027 = vmatprep.subr.bf16.mxu0 %v5868
      %6028 = vmatpush1.bf16.msra.mxu0 %v5867
      %6029 = vmatprep.subr.bf16.mxu0 %v5871
      %6030 = vmatpush1.bf16.msra.mxu0 %v5870
      %6031 = vmatprep.subr.bf16.mxu0 %v5874
      %6032 = vmatpush1.bf16.msra.mxu0 %v5873
      %6033 = vmatprep.subr.bf16.mxu0 %v5877
      %6034 = vmatpush1.bf16.msra.mxu0 %v5876
      %6035 = vmatprep.subr.bf16.mxu0 %v5880
      %6036 = vmatpush1.bf16.msra.mxu0 %v5879
      %6037 = vmatprep.mubr.bf16.mxu0 %v5438
      %6038 = vmatmul.mubr.bf16.gmra.mrb[0].mxu0 %v5437
      %v6039 = vpop.f32.mrb[0].mxu0
      %v6040 = vadd.f32 0.0, %v6039
      %v6041 = vpop.f32.mrb[0].mxu0
      %v6042 = vadd.f32 0.0, %v6041
      %v6043 = vpop.f32.mrb[0].mxu0
      %v6044 = vpop.f32.mrb[0].mxu0
      %6045 = vdwg.mxu0
      %6046 = vmatprep.subr.bf16.mxu0 %v5883
      %6047 = vmatpush1.bf16.msra.mxu0 %v5882
      %6048 = vmatprep.subr.bf16.mxu0 %v5886
      %6049 = vmatpush1.bf16.msra.mxu0 %v5885
      %6050 = vmatprep.subr.bf16.mxu0 %v5889
      %6051 = vmatpush1.bf16.msra.mxu0 %v5888
      %6052 = vmatprep.subr.bf16.mxu0 %v5892
      %6053 = vmatpush1.bf16.msra.mxu0 %v5891
      %6054 = vmatprep.subr.bf16.mxu0 %v5895
      %6055 = vmatpush1.bf16.msra.mxu0 %v5894
      %6056 = vmatprep.subr.bf16.mxu0 %v5898
      %6057 = vmatpush1.bf16.msra.mxu0 %v5897
      %6058 = vmatprep.subr.bf16.mxu0 %v5901
      %6059 = vmatpush1.bf16.msra.mxu0 %v5900
      %6060 = vmatprep.subr.bf16.mxu0 %v5904
      %6061 = vmatpush1.bf16.msra.mxu0 %v5903
      %6062 = vmatprep.subr.bf16.mxu0 %v5907
      %6063 = vmatpush1.bf16.msra.mxu0 %v5906
      %6064 = vmatprep.subr.bf16.mxu0 %v5910
      %6065 = vmatpush1.bf16.msra.mxu0 %v5909
      %6066 = vmatprep.subr.bf16.mxu0 %v5913
      %6067 = vmatpush1.bf16.msra.mxu0 %v5912
      %6068 = vmatprep.subr.bf16.mxu0 %v5916
      %6069 = vmatpush1.bf16.msra.mxu0 %v5915
      %6070 = vmatprep.subr.bf16.mxu0 0
      %6071 = vmatpush1.bf16.msra.mxu0 0
      %6072 = vmatprep.subr.bf16.mxu0 0
      %6073 = vmatpush1.bf16.msra.mxu0 0
      %6074 = vmatprep.subr.bf16.mxu0 0
      %6075 = vmatpush1.bf16.msra.mxu0 0
      %6076 = vmatprep.subr.bf16.mxu0 0
      %6077 = vmatpush1.bf16.msra.mxu0 0
      %6078 = vmatprep.mubr.bf16.mxu0 %v6003
      %6079 = vmatmul.mubr.bf16.gmra.mrb[0].mxu0 %v5439
      %v6080 = vpop.f32.mrb[0].mxu0
      %v6081 = vadd.f32 %v6040, %v6080
      %v6082 = vpop.f32.mrb[0].mxu0
      %v6083 = vadd.f32 %v6042, %v6082
      %v6084 = vpop.f32.mrb[0].mxu0
      %v6085 = vpop.f32.mrb[0].mxu0
      %6086 = vdwg.mxu0
      %6087 = vmatprep.subr.bf16.mxu0 0
      %6088 = vmatpush1.bf16.msra.mxu0 %v5836
      %6089 = vmatprep.subr.bf16.mxu0 0
      %6090 = vmatpush1.bf16.msra.mxu0 %v5839
      %6091 = vmatprep.subr.bf16.mxu0 0
      %6092 = vmatpush1.bf16.msra.mxu0 %v5842
      %6093 = vmatprep.subr.bf16.mxu0 0
      %6094 = vmatpush1.bf16.msra.mxu0 %v5845
      %6095 = vmatprep.subr.bf16.mxu0 0
      %6096 = vmatpush1.bf16.msra.mxu0 %v5848
      %6097 = vmatprep.subr.bf16.mxu0 0
      %6098 = vmatpush1.bf16.msra.mxu0 %v5851
      %6099 = vmatprep.subr.bf16.mxu0 0
      %6100 = vmatpush1.bf16.msra.mxu0 %v5854
      %6101 = vmatprep.subr.bf16.mxu0 0
      %6102 = vmatpush1.bf16.msra.mxu0 %v5857
      %6103 = vmatprep.subr.bf16.mxu0 0
      %6104 = vmatpush1.bf16.msra.mxu0 %v5860
      %6105 = vmatprep.subr.bf16.mxu0 0
      %6106 = vmatpush1.bf16.msra.mxu0 %v5863
      %6107 = vmatprep.subr.bf16.mxu0 0
      %6108 = vmatpush1.bf16.msra.mxu0 %v5866
      %6109 = vmatprep.subr.bf16.mxu0 0
      %6110 = vmatpush1.bf16.msra.mxu0 %v5869
      %6111 = vmatprep.subr.bf16.mxu0 0
      %6112 = vmatpush1.bf16.msra.mxu0 %v5872
      %6113 = vmatprep.subr.bf16.mxu0 0
      %6114 = vmatpush1.bf16.msra.mxu0 %v5875
      %6115 = vmatprep.subr.bf16.mxu0 0
      %6116 = vmatpush1.bf16.msra.mxu0 %v5878
      %6117 = vmatprep.subr.bf16.mxu0 0
      %6118 = vmatpush1.bf16.msra.mxu0 %v5881
      %6119 = vmatprep.mubr.bf16.mxu0 %v5438
      %6120 = vmatmul.mubr.bf16.gmra.mrb[0].mxu0 %v5437
      %v6121 = vpop.f32.mrb[0].mxu0
      %v6122 = vadd.f32 0.0, %v6121
      %v6123 = vpop.f32.mrb[0].mxu0
      %v6124 = vpop.f32.mrb[0].mxu0
      %v6125 = vpop.f32.mrb[0].mxu0
      %6126 = vdwg.mxu0
      %6127 = vmatprep.subr.bf16.mxu0 0
      %6128 = vmatpush1.bf16.msra.mxu0 %v5884
      %6129 = vmatprep.subr.bf16.mxu0 0
      %6130 = vmatpush1.bf16.msra.mxu0 %v5887
      %6131 = vmatprep.subr.bf16.mxu0 0
      %6132 = vmatpush1.bf16.msra.mxu0 %v5890
      %6133 = vmatprep.subr.bf16.mxu0 0
      %6134 = vmatpush1.bf16.msra.mxu0 %v5893
      %6135 = vmatprep.subr.bf16.mxu0 0
      %6136 = vmatpush1.bf16.msra.mxu0 %v5896
      %6137 = vmatprep.subr.bf16.mxu0 0
      %6138 = vmatpush1.bf16.msra.mxu0 %v5899
      %6139 = vmatprep.subr.bf16.mxu0 0
      %6140 = vmatpush1.bf16.msra.mxu0 %v5902
      %6141 = vmatprep.subr.bf16.mxu0 0
      %6142 = vmatpush1.bf16.msra.mxu0 %v5905
      %6143 = vmatprep.subr.bf16.mxu0 0
      %6144 = vmatpush1.bf16.msra.mxu0 %v5908
      %6145 = vmatprep.subr.bf16.mxu0 0
      %6146 = vmatpush1.bf16.msra.mxu0 %v5911
      %6147 = vmatprep.subr.bf16.mxu0 0
      %6148 = vmatpush1.bf16.msra.mxu0 %v5914
      %6149 = vmatprep.subr.bf16.mxu0 0
      %6150 = vmatpush1.bf16.msra.mxu0 %v5917
      %6151 = vmatprep.subr.bf16.mxu0 0
      %6152 = vmatpush1.bf16.msra.mxu0 0
      %6153 = vmatprep.subr.bf16.mxu0 0
      %6154 = vmatpush1.bf16.msra.mxu0 0
      %6155 = vmatprep.subr.bf16.mxu0 0
      %6156 = vmatpush1.bf16.msra.mxu0 0
      %6157 = vmatprep.subr.bf16.mxu0 0
      %6158 = vmatpush1.bf16.msra.mxu0 0
      %6159 = vmatprep.mubr.bf16.mxu0 %v6003
      %6160 = vmatmul.mubr.bf16.gmra.mrb[0].mxu0 %v5439
      %v6161 = vpop.f32.mrb[0].mxu0
      %v6162 = vadd.f32 %v6122, %v6161
      %v6163 = vpop.f32.mrb[0].mxu0
      %v6164 = vpop.f32.mrb[0].mxu0
      %v6165 = vpop.f32.mrb[0].mxu0
      %6166 = vdwg.mxu0
      %v6167 = vadd.f32 %v5347, %v6081
      %v6168 = vadd.f32 %v5348, %v6083
      %v6169 = vadd.f32 %v5349, %v6162
      %v6170 = vld [vmem:[%s6] sm:$0x7]
      %v6172 = vlaneseq
      %v6173 = vshrl.u32 %v6172, 7
      %v6174 = vsub.s32 0, %v6173
      %v6175 = vrot.slane %v6170, %v6174
      %v6176 = vlaneseq
      %v6177 = vshrl.u32 %v6176, 7
      %v6178 = vsub.s32 1, %v6177
      %v6179 = vrot.slane %v6170, %v6178
      %v6180 = vlaneseq
      %v6181 = vshrl.u32 %v6180, 7
      %v6182 = vsub.s32 2, %v6181
      %v6183 = vrot.slane %v6170, %v6182
      %v6187 = vadd.f32 %v6167, %v6175
      %v6188 = vadd.f32 %v6168, %v6179
      %v6189 = vadd.f32 %v6169, %v6183
      %v6190 = vmax.f32 %v6187, 0.0
      %v6191 = vmax.f32 %v6188, 0.0
      %v6192 = vmax.f32 %v6189, 0.0
      %v6193 = vpack.c.bf16 %v6190, %v6190
      %v6194 = vpack.c.bf16 %v6191, %v6191
      %v6195 = vpack.c.bf16 %v6192, %v6192
      %v6196 = vld [vmem:[%s7] sm:$0x1]
      %vm6197 = vcmask 39936
      %v6199 = vsel %vm6197, %v6196, 0
      %vm6201 = vcmask 1041408
      %vm6202 = vcmask 1042432
      %v6203 = vsel %vm6201, 4294967295, 65535
      %v6204 = vsel %vm6202, %v6203, 0
      %v6206 = vand.u32 %v6193, %v6204
      %v6209 = vand.u32 %v6194, %v6204
      %v6212 = vand.u32 %v6195, %v6204
      %6214 = vmatprep.subr.bf16.mxu0 %v6209
      %6215 = vmatpush1.bf16.msra.mxu0 %v6206
      %6216 = vmatprep.subr.bf16.mxu0 0
      %6217 = vmatpush1.bf16.msra.mxu0 0
      %6218 = vmatprep.subr.bf16.mxu0 0
      %6219 = vmatpush1.bf16.msra.mxu0 0
      %6220 = vmatprep.subr.bf16.mxu0 0
      %6221 = vmatpush1.bf16.msra.mxu0 0
      %6222 = vmatprep.subr.bf16.mxu0 0
      %6223 = vmatpush1.bf16.msra.mxu0 0
      %6224 = vmatprep.subr.bf16.mxu0 0
      %6225 = vmatpush1.bf16.msra.mxu0 0
      %6226 = vmatprep.subr.bf16.mxu0 0
      %6227 = vmatpush1.bf16.msra.mxu0 0
      %6228 = vmatprep.subr.bf16.mxu0 0
      %6229 = vmatpush1.bf16.msra.mxu0 0
      %6230 = vmatprep.subr.bf16.mxu0 0
      %6231 = vmatpush1.bf16.msra.mxu0 0
      %6232 = vmatprep.subr.bf16.mxu0 0
      %6233 = vmatpush1.bf16.msra.mxu0 0
      %6234 = vmatprep.subr.bf16.mxu0 0
      %6235 = vmatpush1.bf16.msra.mxu0 0
      %6236 = vmatprep.subr.bf16.mxu0 0
      %6237 = vmatpush1.bf16.msra.mxu0 0
      %6238 = vmatprep.subr.bf16.mxu0 0
      %6239 = vmatpush1.bf16.msra.mxu0 0
      %6240 = vmatprep.subr.bf16.mxu0 0
      %6241 = vmatpush1.bf16.msra.mxu0 0
      %6242 = vmatprep.subr.bf16.mxu0 0
      %6243 = vmatpush1.bf16.msra.mxu0 0
      %6244 = vmatprep.subr.bf16.mxu0 0
      %6245 = vmatpush1.bf16.msra.mxu0 0
      %6246 = vmatprep.mubr.bf16.mxu0 0
      %6247 = vmatmul.mubr.bf16.gmra.mrb[0].mxu0 %v6199
      %v6248 = vpop.f32.mrb[0].mxu0
      %v6249 = vadd.f32 0.0, %v6248
      %v6250 = vpop.f32.mrb[0].mxu0
      %v6251 = vadd.f32 0.0, %v6250
      %v6252 = vpop.f32.mrb[0].mxu0
      %v6253 = vpop.f32.mrb[0].mxu0
      %6254 = vdwg.mxu0
      %6255 = vmatprep.subr.bf16.mxu0 0
      %6256 = vmatpush1.bf16.msra.mxu0 %v6212
      %6257 = vmatprep.subr.bf16.mxu0 0
      %6258 = vmatpush1.bf16.msra.mxu0 0
      %6259 = vmatprep.subr.bf16.mxu0 0
      %6260 = vmatpush1.bf16.msra.mxu0 0
      %6261 = vmatprep.subr.bf16.mxu0 0
      %6262 = vmatpush1.bf16.msra.mxu0 0
      %6263 = vmatprep.subr.bf16.mxu0 0
      %6264 = vmatpush1.bf16.msra.mxu0 0
      %6265 = vmatprep.subr.bf16.mxu0 0
      %6266 = vmatpush1.bf16.msra.mxu0 0
      %6267 = vmatprep.subr.bf16.mxu0 0
      %6268 = vmatpush1.bf16.msra.mxu0 0
      %6269 = vmatprep.subr.bf16.mxu0 0
      %6270 = vmatpush1.bf16.msra.mxu0 0
      %6271 = vmatprep.subr.bf16.mxu0 0
      %6272 = vmatpush1.bf16.msra.mxu0 0
      %6273 = vmatprep.subr.bf16.mxu0 0
      %6274 = vmatpush1.bf16.msra.mxu0 0
      %6275 = vmatprep.subr.bf16.mxu0 0
      %6276 = vmatpush1.bf16.msra.mxu0 0
      %6277 = vmatprep.subr.bf16.mxu0 0
      %6278 = vmatpush1.bf16.msra.mxu0 0
      %6279 = vmatprep.subr.bf16.mxu0 0
      %6280 = vmatpush1.bf16.msra.mxu0 0
      %6281 = vmatprep.subr.bf16.mxu0 0
      %6282 = vmatpush1.bf16.msra.mxu0 0
      %6283 = vmatprep.subr.bf16.mxu0 0
      %6284 = vmatpush1.bf16.msra.mxu0 0
      %6285 = vmatprep.subr.bf16.mxu0 0
      %6286 = vmatpush1.bf16.msra.mxu0 0
      %6287 = vmatprep.mubr.bf16.mxu0 0
      %6288 = vmatmul.mubr.bf16.gmra.mrb[0].mxu0 %v6199
      %v6289 = vpop.f32.mrb[0].mxu0
      %v6290 = vadd.f32 0.0, %v6289
      %v6291 = vpop.f32.mrb[0].mxu0
      %v6292 = vpop.f32.mrb[0].mxu0
      %v6293 = vpop.f32.mrb[0].mxu0
      %6294 = vdwg.mxu0
      %v6295 = vpack.c.bf16 %v6249, %v6249
      %v6296 = vpack.c.bf16 %v6251, %v6251
      %v6297 = vpack.c.bf16 %v6290, %v6290
      %v6298 = vld [vmem:[%s8] sm:$0xff]
      %v6299 = vld [vmem:[%s8 + $0x8] sm:$0xff]
      %v6300 = vld [vmem:[%s8 + $0x10] sm:$0xff]
      %v6301 = vld [vmem:[%s8 + $0x18] sm:$0xff]
      %v6302 = vld [vmem:[%s8 + $0x20] sm:$0xff]
      %v6303 = vld [vmem:[%s8 + $0x28] sm:$0xff]
      %v6304 = vld [vmem:[%s8 + $0x30] sm:$0xff]
      %v6305 = vld [vmem:[%s8 + $0x38] sm:$0xff]
      %v6306 = vld [vmem:[%s8 + $0x40] sm:$0xff]
      %v6307 = vld [vmem:[%s8 + $0x48] sm:$0xff]
      %v6308 = vld [vmem:[%s8 + $0x50] sm:$0xff]
      %v6309 = vld [vmem:[%s8 + $0x58] sm:$0xff]
      %v6310 = vld [vmem:[%s8 + $0x60] sm:$0xff]
      %v6311 = vld [vmem:[%s8 + $0x68] sm:$0xff]
      %v6312 = vld [vmem:[%s8 + $0x70] sm:$0xff]
      %v6313 = vld [vmem:[%s8 + $0x78] sm:$0xff]
      %v6314 = vld [vmem:[%s8 + $0x80] sm:$0xff]
      %v6315 = vld [vmem:[%s8 + $0x88] sm:$0xff]
      %v6316 = vld [vmem:[%s8 + $0x90] sm:$0xff]
      %v6317 = vld [vmem:[%s8 + $0x98] sm:$0xff]
      %v6318 = vld [vmem:[%s8 + $0xa0] sm:$0xff]
      %v6319 = vld [vmem:[%s8 + $0xa8] sm:$0xff]
      %v6320 = vld [vmem:[%s8 + $0xb0] sm:$0xff]
      %v6321 = vld [vmem:[%s8 + $0xb8] sm:$0xff]
      %v6322 = vld [vmem:[%s8 + $0xc0] sm:$0xff]
      %v6323 = vld [vmem:[%s8 + $0xc8] sm:$0xff]
      %v6324 = vld [vmem:[%s8 + $0xd0] sm:$0xff]
      %v6325 = vld [vmem:[%s8 + $0xd8] sm:$0xff]
      %v6326 = vld [vmem:[%s8 + $0xe0] sm:$0xff]
      %v6327 = vld [vmem:[%s8 + $0xe8] sm:$0xff]
      %v6328 = vld [vmem:[%s8 + $0xf0] sm:$0xff]
      %v6329 = vld [vmem:[%s8 + $0xf8] sm:$0xff]
      %v6330 = vld [vmem:[%s8 + $0x100] sm:$0xff]
      %v6331 = vld [vmem:[%s8 + $0x108] sm:$0xff]
      %v6332 = vld [vmem:[%s8 + $0x110] sm:$0xff]
      %v6333 = vld [vmem:[%s8 + $0x118] sm:$0xff]
      %v6334 = vld [vmem:[%s8 + $0x120] sm:$0xff]
      %v6335 = vld [vmem:[%s8 + $0x128] sm:$0xff]
      %v6336 = vld [vmem:[%s8 + $0x130] sm:$0xff]
      %v6337 = vld [vmem:[%s8 + $0x138] sm:$0xff]
      %s6338 = scalar_lea.vmem %s7, 1
      %v6339 = vld [vmem:[%s6338] sm:$0x1]
      %v6341 = vsel %vm6197, %v6339, 0
      %6343 = vmatprep.subr.bf16.mxu0 %v6209
      %6344 = vmatpush1.bf16.msra.mxu0 %v6206
      %6345 = vmatprep.subr.bf16.mxu0 0
      %6346 = vmatpush1.bf16.msra.mxu0 0
      %6347 = vmatprep.subr.bf16.mxu0 0
      %6348 = vmatpush1.bf16.msra.mxu0 0
      %6349 = vmatprep.subr.bf16.mxu0 0
      %6350 = vmatpush1.bf16.msra.mxu0 0
      %6351 = vmatprep.subr.bf16.mxu0 0
      %6352 = vmatpush1.bf16.msra.mxu0 0
      %6353 = vmatprep.subr.bf16.mxu0 0
      %6354 = vmatpush1.bf16.msra.mxu0 0
      %6355 = vmatprep.subr.bf16.mxu0 0
      %6356 = vmatpush1.bf16.msra.mxu0 0
      %6357 = vmatprep.subr.bf16.mxu0 0
      %6358 = vmatpush1.bf16.msra.mxu0 0
      %6359 = vmatprep.subr.bf16.mxu0 0
      %6360 = vmatpush1.bf16.msra.mxu0 0
      %6361 = vmatprep.subr.bf16.mxu0 0
      %6362 = vmatpush1.bf16.msra.mxu0 0
      %6363 = vmatprep.subr.bf16.mxu0 0
      %6364 = vmatpush1.bf16.msra.mxu0 0
      %6365 = vmatprep.subr.bf16.mxu0 0
      %6366 = vmatpush1.bf16.msra.mxu0 0
      %6367 = vmatprep.subr.bf16.mxu0 0
      %6368 = vmatpush1.bf16.msra.mxu0 0
      %6369 = vmatprep.subr.bf16.mxu0 0
      %6370 = vmatpush1.bf16.msra.mxu0 0
      %6371 = vmatprep.subr.bf16.mxu0 0
      %6372 = vmatpush1.bf16.msra.mxu0 0
      %6373 = vmatprep.subr.bf16.mxu0 0
      %6374 = vmatpush1.bf16.msra.mxu0 0
      %6375 = vmatprep.mubr.bf16.mxu0 0
      %6376 = vmatmul.mubr.bf16.gmra.mrb[0].mxu0 %v6341
      %v6377 = vpop.f32.mrb[0].mxu0
      %v6378 = vadd.f32 0.0, %v6377
      %v6379 = vpop.f32.mrb[0].mxu0
      %v6380 = vadd.f32 0.0, %v6379
      %v6381 = vpop.f32.mrb[0].mxu0
      %v6382 = vpop.f32.mrb[0].mxu0
      %6383 = vdwg.mxu0
      %6384 = vmatprep.subr.bf16.mxu0 0
      %6385 = vmatpush1.bf16.msra.mxu0 %v6212
      %6386 = vmatprep.subr.bf16.mxu0 0
      %6387 = vmatpush1.bf16.msra.mxu0 0
      %6388 = vmatprep.subr.bf16.mxu0 0
      %6389 = vmatpush1.bf16.msra.mxu0 0
      %6390 = vmatprep.subr.bf16.mxu0 0
      %6391 = vmatpush1.bf16.msra.mxu0 0
      %6392 = vmatprep.subr.bf16.mxu0 0
      %6393 = vmatpush1.bf16.msra.mxu0 0
      %6394 = vmatprep.subr.bf16.mxu0 0
      %6395 = vmatpush1.bf16.msra.mxu0 0
      %6396 = vmatprep.subr.bf16.mxu0 0
      %6397 = vmatpush1.bf16.msra.mxu0 0
      %6398 = vmatprep.subr.bf16.mxu0 0
      %6399 = vmatpush1.bf16.msra.mxu0 0
      %6400 = vmatprep.subr.bf16.mxu0 0
      %6401 = vmatpush1.bf16.msra.mxu0 0
      %6402 = vmatprep.subr.bf16.mxu0 0
      %6403 = vmatpush1.bf16.msra.mxu0 0
      %6404 = vmatprep.subr.bf16.mxu0 0
      %6405 = vmatpush1.bf16.msra.mxu0 0
      %6406 = vmatprep.subr.bf16.mxu0 0
      %6407 = vmatpush1.bf16.msra.mxu0 0
      %6408 = vmatprep.subr.bf16.mxu0 0
      %6409 = vmatpush1.bf16.msra.mxu0 0
      %6410 = vmatprep.subr.bf16.mxu0 0
      %6411 = vmatpush1.bf16.msra.mxu0 0
      %6412 = vmatprep.subr.bf16.mxu0 0
      %6413 = vmatpush1.bf16.msra.mxu0 0
      %6414 = vmatprep.subr.bf16.mxu0 0
      %6415 = vmatpush1.bf16.msra.mxu0 0
      %6416 = vmatprep.mubr.bf16.mxu0 0
      %6417 = vmatmul.mubr.bf16.gmra.mrb[0].mxu0 %v6341
      %v6418 = vpop.f32.mrb[0].mxu0
      %v6419 = vadd.f32 0.0, %v6418
      %v6420 = vpop.f32.mrb[0].mxu0
      %v6421 = vpop.f32.mrb[0].mxu0
      %v6422 = vpop.f32.mrb[0].mxu0
      %6423 = vdwg.mxu0
      %v6424 = vpack.c.bf16 %v6378, %v6378
      %v6425 = vpack.c.bf16 %v6380, %v6380
      %v6426 = vpack.c.bf16 %v6419, %v6419
      %s6427 = scalar_lea.vmem %s8, 320
      %v6428 = vld [vmem:[%s6427] sm:$0xff]
      %v6429 = vld [vmem:[%s6427 + $0x8] sm:$0xff]
      %v6430 = vld [vmem:[%s6427 + $0x10] sm:$0xff]
      %v6431 = vld [vmem:[%s6427 + $0x18] sm:$0xff]
      %v6432 = vld [vmem:[%s6427 + $0x20] sm:$0xff]
      %v6433 = vld [vmem:[%s6427 + $0x28] sm:$0xff]
      %v6434 = vld [vmem:[%s6427 + $0x30] sm:$0xff]
      %v6435 = vld [vmem:[%s6427 + $0x38] sm:$0xff]
      %v6436 = vld [vmem:[%s6427 + $0x40] sm:$0xff]
      %v6437 = vld [vmem:[%s6427 + $0x48] sm:$0xff]
      %v6438 = vld [vmem:[%s6427 + $0x50] sm:$0xff]
      %v6439 = vld [vmem:[%s6427 + $0x58] sm:$0xff]
      %v6440 = vld [vmem:[%s6427 + $0x60] sm:$0xff]
      %v6441 = vld [vmem:[%s6427 + $0x68] sm:$0xff]
      %v6442 = vld [vmem:[%s6427 + $0x70] sm:$0xff]
      %v6443 = vld [vmem:[%s6427 + $0x78] sm:$0xff]
      %v6444 = vld [vmem:[%s6427 + $0x80] sm:$0xff]
      %v6445 = vld [vmem:[%s6427 + $0x88] sm:$0xff]
      %v6446 = vld [vmem:[%s6427 + $0x90] sm:$0xff]
      %v6447 = vld [vmem:[%s6427 + $0x98] sm:$0xff]
      %v6448 = vld [vmem:[%s6427 + $0xa0] sm:$0xff]
      %v6449 = vld [vmem:[%s6427 + $0xa8] sm:$0xff]
      %v6450 = vld [vmem:[%s6427 + $0xb0] sm:$0xff]
      %v6451 = vld [vmem:[%s6427 + $0xb8] sm:$0xff]
      %v6452 = vld [vmem:[%s6427 + $0xc0] sm:$0xff]
      %v6453 = vld [vmem:[%s6427 + $0xc8] sm:$0xff]
      %v6454 = vld [vmem:[%s6427 + $0xd0] sm:$0xff]
      %v6455 = vld [vmem:[%s6427 + $0xd8] sm:$0xff]
      %v6456 = vld [vmem:[%s6427 + $0xe0] sm:$0xff]
      %v6457 = vld [vmem:[%s6427 + $0xe8] sm:$0xff]
      %v6458 = vld [vmem:[%s6427 + $0xf0] sm:$0xff]
      %v6459 = vld [vmem:[%s6427 + $0xf8] sm:$0xff]
      %v6460 = vld [vmem:[%s6427 + $0x100] sm:$0xff]
      %v6461 = vld [vmem:[%s6427 + $0x108] sm:$0xff]
      %v6462 = vld [vmem:[%s6427 + $0x110] sm:$0xff]
      %v6463 = vld [vmem:[%s6427 + $0x118] sm:$0xff]
      %v6464 = vld [vmem:[%s6427 + $0x120] sm:$0xff]
      %v6465 = vld [vmem:[%s6427 + $0x128] sm:$0xff]
      %v6466 = vld [vmem:[%s6427 + $0x130] sm:$0xff]
      %v6467 = vld [vmem:[%s6427 + $0x138] sm:$0xff]
      %v6508 = vunpack.c.l.b16 %v6428
      %v6509 = vunpack.c.h.b16 %v6428
      %v6510 = vunpack.c.l.b16 %v6429
      %v6511 = vunpack.c.h.b16 %v6429
      %v6512 = vunpack.c.l.b16 %v6430
      %v6513 = vunpack.c.h.b16 %v6430
      %v6514 = vunpack.c.l.b16 %v6431
      %v6515 = vunpack.c.h.b16 %v6431
      %v6516 = vunpack.c.l.b16 %v6432
      %v6517 = vunpack.c.h.b16 %v6432
      %v6518 = vunpack.c.l.b16 %v6433
      %v6519 = vunpack.c.h.b16 %v6433
      %v6520 = vunpack.c.l.b16 %v6434
      %v6521 = vunpack.c.h.b16 %v6434
      %v6522 = vunpack.c.l.b16 %v6435
      %v6523 = vunpack.c.h.b16 %v6435
      %v6524 = vunpack.c.l.b16 %v6436
      %v6525 = vunpack.c.h.b16 %v6436
      %v6526 = vunpack.c.l.b16 %v6437
      %v6527 = vunpack.c.h.b16 %v6437
      %v6528 = vunpack.c.l.b16 %v6438
      %v6529 = vunpack.c.h.b16 %v6438
      %v6530 = vunpack.c.l.b16 %v6439
      %v6531 = vunpack.c.h.b16 %v6439
      %v6532 = vunpack.c.l.b16 %v6440
      %v6533 = vunpack.c.h.b16 %v6440
      %v6534 = vunpack.c.l.b16 %v6441
      %v6535 = vunpack.c.h.b16 %v6441
      %v6536 = vunpack.c.l.b16 %v6442
      %v6537 = vunpack.c.h.b16 %v6442
      %v6538 = vunpack.c.l.b16 %v6443
      %v6539 = vunpack.c.h.b16 %v6443
      %v6540 = vunpack.c.l.b16 %v6444
      %v6541 = vunpack.c.h.b16 %v6444
      %v6542 = vunpack.c.l.b16 %v6445
      %v6543 = vunpack.c.h.b16 %v6445
      %v6544 = vunpack.c.l.b16 %v6446
      %v6545 = vunpack.c.h.b16 %v6446
      %v6546 = vunpack.c.l.b16 %v6447
      %v6547 = vunpack.c.h.b16 %v6447
      %v6548 = vunpack.c.l.b16 %v6448
      %v6549 = vunpack.c.h.b16 %v6448
      %v6550 = vunpack.c.l.b16 %v6449
      %v6551 = vunpack.c.h.b16 %v6449
      %v6552 = vunpack.c.l.b16 %v6450
      %v6553 = vunpack.c.h.b16 %v6450
      %v6554 = vunpack.c.l.b16 %v6451
      %v6555 = vunpack.c.h.b16 %v6451
      %v6556 = vunpack.c.l.b16 %v6452
      %v6557 = vunpack.c.h.b16 %v6452
      %v6558 = vunpack.c.l.b16 %v6453
      %v6559 = vunpack.c.h.b16 %v6453
      %v6560 = vunpack.c.l.b16 %v6454
      %v6561 = vunpack.c.h.b16 %v6454
      %v6562 = vunpack.c.l.b16 %v6455
      %v6563 = vunpack.c.h.b16 %v6455
      %v6564 = vunpack.c.l.b16 %v6456
      %v6565 = vunpack.c.h.b16 %v6456
      %v6566 = vunpack.c.l.b16 %v6457
      %v6567 = vunpack.c.h.b16 %v6457
      %v6568 = vunpack.c.l.b16 %v6458
      %v6569 = vunpack.c.h.b16 %v6458
      %v6570 = vunpack.c.l.b16 %v6459
      %v6571 = vunpack.c.h.b16 %v6459
      %v6572 = vunpack.c.l.b16 %v6460
      %v6573 = vunpack.c.h.b16 %v6460
      %v6574 = vunpack.c.l.b16 %v6461
      %v6575 = vunpack.c.h.b16 %v6461
      %v6576 = vunpack.c.l.b16 %v6462
      %v6577 = vunpack.c.h.b16 %v6462
      %v6578 = vunpack.c.l.b16 %v6463
      %v6579 = vunpack.c.h.b16 %v6463
      %v6580 = vunpack.c.l.b16 %v6464
      %v6581 = vunpack.c.h.b16 %v6464
      %v6582 = vunpack.c.l.b16 %v6465
      %v6583 = vunpack.c.h.b16 %v6465
      %v6584 = vunpack.c.l.b16 %v6466
      %v6585 = vunpack.c.h.b16 %v6466
      %v6586 = vunpack.c.l.b16 %v6467
      %v6587 = vunpack.c.h.b16 %v6467
      %v6588 = vpack.c.b16 %v6510, %v6508
      %v6589 = vpack.c.b16 %v6511, %v6509
      %v6590 = vpack.c.b16 %v6514, %v6512
      %v6591 = vpack.c.b16 %v6515, %v6513
      %v6592 = vpack.c.b16 %v6518, %v6516
      %v6593 = vpack.c.b16 %v6519, %v6517
      %v6594 = vpack.c.b16 %v6522, %v6520
      %v6595 = vpack.c.b16 %v6523, %v6521
      %v6596 = vpack.c.b16 %v6526, %v6524
      %v6597 = vpack.c.b16 %v6527, %v6525
      %v6598 = vpack.c.b16 %v6530, %v6528
      %v6599 = vpack.c.b16 %v6531, %v6529
      %v6600 = vpack.c.b16 %v6534, %v6532
      %v6601 = vpack.c.b16 %v6535, %v6533
      %v6602 = vpack.c.b16 %v6538, %v6536
      %v6603 = vpack.c.b16 %v6539, %v6537
      %v6604 = vpack.c.b16 %v6542, %v6540
      %v6605 = vpack.c.b16 %v6543, %v6541
      %v6606 = vpack.c.b16 %v6546, %v6544
      %v6607 = vpack.c.b16 %v6547, %v6545
      %v6608 = vpack.c.b16 %v6550, %v6548
      %v6609 = vpack.c.b16 %v6551, %v6549
      %v6610 = vpack.c.b16 %v6554, %v6552
      %v6611 = vpack.c.b16 %v6555, %v6553
      %v6612 = vpack.c.b16 %v6558, %v6556
      %v6613 = vpack.c.b16 %v6559, %v6557
      %v6614 = vpack.c.b16 %v6562, %v6560
      %v6615 = vpack.c.b16 %v6563, %v6561
      %v6616 = vpack.c.b16 %v6566, %v6564
      %v6617 = vpack.c.b16 %v6567, %v6565
      %v6618 = vpack.c.b16 %v6570, %v6568
      %v6619 = vpack.c.b16 %v6571, %v6569
      %v6620 = vpack.c.b16 %v6574, %v6572
      %v6621 = vpack.c.b16 %v6575, %v6573
      %v6622 = vpack.c.b16 %v6578, %v6576
      %v6623 = vpack.c.b16 %v6579, %v6577
      %v6624 = vpack.c.b16 %v6582, %v6580
      %v6625 = vpack.c.b16 %v6583, %v6581
      %v6626 = vpack.c.b16 %v6586, %v6584
      %v6627 = vpack.c.b16 %v6587, %v6585
      %v6669 = vsel %vm2931, %v6426, 0
      %6671 = vmatprep.subr.bf16.mxu0 %v6589
      %6672 = vmatpush1.bf16.msra.mxu0 %v6588
      %6673 = vmatprep.subr.bf16.mxu0 %v6591
      %6674 = vmatpush1.bf16.msra.mxu0 %v6590
      %6675 = vmatprep.subr.bf16.mxu0 %v6593
      %6676 = vmatpush1.bf16.msra.mxu0 %v6592
      %6677 = vmatprep.subr.bf16.mxu0 %v6595
      %6678 = vmatpush1.bf16.msra.mxu0 %v6594
      %6679 = vmatprep.subr.bf16.mxu0 %v6597
      %6680 = vmatpush1.bf16.msra.mxu0 %v6596
      %6681 = vmatprep.subr.bf16.mxu0 %v6599
      %6682 = vmatpush1.bf16.msra.mxu0 %v6598
      %6683 = vmatprep.subr.bf16.mxu0 %v6601
      %6684 = vmatpush1.bf16.msra.mxu0 %v6600
      %6685 = vmatprep.subr.bf16.mxu0 %v6603
      %6686 = vmatpush1.bf16.msra.mxu0 %v6602
      %6687 = vmatprep.subr.bf16.mxu0 %v6605
      %6688 = vmatpush1.bf16.msra.mxu0 %v6604
      %6689 = vmatprep.subr.bf16.mxu0 %v6607
      %6690 = vmatpush1.bf16.msra.mxu0 %v6606
      %6691 = vmatprep.subr.bf16.mxu0 %v6609
      %6692 = vmatpush1.bf16.msra.mxu0 %v6608
      %6693 = vmatprep.subr.bf16.mxu0 %v6611
      %6694 = vmatpush1.bf16.msra.mxu0 %v6610
      %6695 = vmatprep.subr.bf16.mxu0 %v6613
      %6696 = vmatpush1.bf16.msra.mxu0 %v6612
      %6697 = vmatprep.subr.bf16.mxu0 %v6615
      %6698 = vmatpush1.bf16.msra.mxu0 %v6614
      %6699 = vmatprep.subr.bf16.mxu0 %v6617
      %6700 = vmatpush1.bf16.msra.mxu0 %v6616
      %6701 = vmatprep.subr.bf16.mxu0 %v6619
      %6702 = vmatpush1.bf16.msra.mxu0 %v6618
      %6703 = vmatprep.mubr.bf16.mxu0 %v6425
      %6704 = vmatmul.mubr.bf16.gmra.mrb[0].mxu0 %v6424
      %v6705 = vpop.f32.mrb[0].mxu0
      %v6706 = vadd.f32 0.0, %v6705
      %v6707 = vpop.f32.mrb[0].mxu0
      %v6708 = vadd.f32 0.0, %v6707
      %v6709 = vpop.f32.mrb[0].mxu0
      %v6710 = vpop.f32.mrb[0].mxu0
      %6711 = vdwg.mxu0
      %6712 = vmatprep.subr.bf16.mxu0 %v6621
      %6713 = vmatpush1.bf16.msra.mxu0 %v6620
      %6714 = vmatprep.subr.bf16.mxu0 %v6623
      %6715 = vmatpush1.bf16.msra.mxu0 %v6622
      %6716 = vmatprep.subr.bf16.mxu0 %v6625
      %6717 = vmatpush1.bf16.msra.mxu0 %v6624
      %6718 = vmatprep.subr.bf16.mxu0 %v6627
      %6719 = vmatpush1.bf16.msra.mxu0 %v6626
      %6720 = vmatprep.subr.bf16.mxu0 0
      %6721 = vmatpush1.bf16.msra.mxu0 0
      %6722 = vmatprep.subr.bf16.mxu0 0
      %6723 = vmatpush1.bf16.msra.mxu0 0
      %6724 = vmatprep.subr.bf16.mxu0 0
      %6725 = vmatpush1.bf16.msra.mxu0 0
      %6726 = vmatprep.subr.bf16.mxu0 0
      %6727 = vmatpush1.bf16.msra.mxu0 0
      %6728 = vmatprep.subr.bf16.mxu0 0
      %6729 = vmatpush1.bf16.msra.mxu0 0
      %6730 = vmatprep.subr.bf16.mxu0 0
      %6731 = vmatpush1.bf16.msra.mxu0 0
      %6732 = vmatprep.subr.bf16.mxu0 0
      %6733 = vmatpush1.bf16.msra.mxu0 0
      %6734 = vmatprep.subr.bf16.mxu0 0
      %6735 = vmatpush1.bf16.msra.mxu0 0
      %6736 = vmatprep.subr.bf16.mxu0 0
      %6737 = vmatpush1.bf16.msra.mxu0 0
      %6738 = vmatprep.subr.bf16.mxu0 0
      %6739 = vmatpush1.bf16.msra.mxu0 0
      %6740 = vmatprep.subr.bf16.mxu0 0
      %6741 = vmatpush1.bf16.msra.mxu0 0
      %6742 = vmatprep.subr.bf16.mxu0 0
      %6743 = vmatpush1.bf16.msra.mxu0 0
      %6744 = vmatprep.mubr.bf16.mxu0 0
      %6745 = vmatmul.mubr.bf16.gmra.mrb[0].mxu0 %v6669
      %v6746 = vpop.f32.mrb[0].mxu0
      %v6747 = vadd.f32 %v6706, %v6746
      %v6748 = vpop.f32.mrb[0].mxu0
      %v6749 = vadd.f32 %v6708, %v6748
      %v6750 = vpop.f32.mrb[0].mxu0
      %v6751 = vpop.f32.mrb[0].mxu0
      %6752 = vdwg.mxu0
      %v6793 = vunpack.c.l.b16 %v6298
      %v6794 = vunpack.c.h.b16 %v6298
      %v6795 = vunpack.c.l.b16 %v6299
      %v6796 = vunpack.c.h.b16 %v6299
      %v6797 = vunpack.c.l.b16 %v6300
      %v6798 = vunpack.c.h.b16 %v6300
      %v6799 = vunpack.c.l.b16 %v6301
      %v6800 = vunpack.c.h.b16 %v6301
      %v6801 = vunpack.c.l.b16 %v6302
      %v6802 = vunpack.c.h.b16 %v6302
      %v6803 = vunpack.c.l.b16 %v6303
      %v6804 = vunpack.c.h.b16 %v6303
      %v6805 = vunpack.c.l.b16 %v6304
      %v6806 = vunpack.c.h.b16 %v6304
      %v6807 = vunpack.c.l.b16 %v6305
      %v6808 = vunpack.c.h.b16 %v6305
      %v6809 = vunpack.c.l.b16 %v6306
      %v6810 = vunpack.c.h.b16 %v6306
      %v6811 = vunpack.c.l.b16 %v6307
      %v6812 = vunpack.c.h.b16 %v6307
      %v6813 = vunpack.c.l.b16 %v6308
      %v6814 = vunpack.c.h.b16 %v6308
      %v6815 = vunpack.c.l.b16 %v6309
      %v6816 = vunpack.c.h.b16 %v6309
      %v6817 = vunpack.c.l.b16 %v6310
      %v6818 = vunpack.c.h.b16 %v6310
      %v6819 = vunpack.c.l.b16 %v6311
      %v6820 = vunpack.c.h.b16 %v6311
      %v6821 = vunpack.c.l.b16 %v6312
      %v6822 = vunpack.c.h.b16 %v6312
      %v6823 = vunpack.c.l.b16 %v6313
      %v6824 = vunpack.c.h.b16 %v6313
      %v6825 = vunpack.c.l.b16 %v6314
      %v6826 = vunpack.c.h.b16 %v6314
      %v6827 = vunpack.c.l.b16 %v6315
      %v6828 = vunpack.c.h.b16 %v6315
      %v6829 = vunpack.c.l.b16 %v6316
      %v6830 = vunpack.c.h.b16 %v6316
      %v6831 = vunpack.c.l.b16 %v6317
      %v6832 = vunpack.c.h.b16 %v6317
      %v6833 = vunpack.c.l.b16 %v6318
      %v6834 = vunpack.c.h.b16 %v6318
      %v6835 = vunpack.c.l.b16 %v6319
      %v6836 = vunpack.c.h.b16 %v6319
      %v6837 = vunpack.c.l.b16 %v6320
      %v6838 = vunpack.c.h.b16 %v6320
      %v6839 = vunpack.c.l.b16 %v6321
      %v6840 = vunpack.c.h.b16 %v6321
      %v6841 = vunpack.c.l.b16 %v6322
      %v6842 = vunpack.c.h.b16 %v6322
      %v6843 = vunpack.c.l.b16 %v6323
      %v6844 = vunpack.c.h.b16 %v6323
      %v6845 = vunpack.c.l.b16 %v6324
      %v6846 = vunpack.c.h.b16 %v6324
      %v6847 = vunpack.c.l.b16 %v6325
      %v6848 = vunpack.c.h.b16 %v6325
      %v6849 = vunpack.c.l.b16 %v6326
      %v6850 = vunpack.c.h.b16 %v6326
      %v6851 = vunpack.c.l.b16 %v6327
      %v6852 = vunpack.c.h.b16 %v6327
      %v6853 = vunpack.c.l.b16 %v6328
      %v6854 = vunpack.c.h.b16 %v6328
      %v6855 = vunpack.c.l.b16 %v6329
      %v6856 = vunpack.c.h.b16 %v6329
      %v6857 = vunpack.c.l.b16 %v6330
      %v6858 = vunpack.c.h.b16 %v6330
      %v6859 = vunpack.c.l.b16 %v6331
      %v6860 = vunpack.c.h.b16 %v6331
      %v6861 = vunpack.c.l.b16 %v6332
      %v6862 = vunpack.c.h.b16 %v6332
      %v6863 = vunpack.c.l.b16 %v6333
      %v6864 = vunpack.c.h.b16 %v6333
      %v6865 = vunpack.c.l.b16 %v6334
      %v6866 = vunpack.c.h.b16 %v6334
      %v6867 = vunpack.c.l.b16 %v6335
      %v6868 = vunpack.c.h.b16 %v6335
      %v6869 = vunpack.c.l.b16 %v6336
      %v6870 = vunpack.c.h.b16 %v6336
      %v6871 = vunpack.c.l.b16 %v6337
      %v6872 = vunpack.c.h.b16 %v6337
      %v6873 = vpack.c.b16 %v6795, %v6793
      %v6874 = vpack.c.b16 %v6796, %v6794
      %v6875 = vpack.c.b16 %v6799, %v6797
      %v6876 = vpack.c.b16 %v6800, %v6798
      %v6877 = vpack.c.b16 %v6803, %v6801
      %v6878 = vpack.c.b16 %v6804, %v6802
      %v6879 = vpack.c.b16 %v6807, %v6805
      %v6880 = vpack.c.b16 %v6808, %v6806
      %v6881 = vpack.c.b16 %v6811, %v6809
      %v6882 = vpack.c.b16 %v6812, %v6810
      %v6883 = vpack.c.b16 %v6815, %v6813
      %v6884 = vpack.c.b16 %v6816, %v6814
      %v6885 = vpack.c.b16 %v6819, %v6817
      %v6886 = vpack.c.b16 %v6820, %v6818
      %v6887 = vpack.c.b16 %v6823, %v6821
      %v6888 = vpack.c.b16 %v6824, %v6822
      %v6889 = vpack.c.b16 %v6827, %v6825
      %v6890 = vpack.c.b16 %v6828, %v6826
      %v6891 = vpack.c.b16 %v6831, %v6829
      %v6892 = vpack.c.b16 %v6832, %v6830
      %v6893 = vpack.c.b16 %v6835, %v6833
      %v6894 = vpack.c.b16 %v6836, %v6834
      %v6895 = vpack.c.b16 %v6839, %v6837
      %v6896 = vpack.c.b16 %v6840, %v6838
      %v6897 = vpack.c.b16 %v6843, %v6841
      %v6898 = vpack.c.b16 %v6844, %v6842
      %v6899 = vpack.c.b16 %v6847, %v6845
      %v6900 = vpack.c.b16 %v6848, %v6846
      %v6901 = vpack.c.b16 %v6851, %v6849
      %v6902 = vpack.c.b16 %v6852, %v6850
      %v6903 = vpack.c.b16 %v6855, %v6853
      %v6904 = vpack.c.b16 %v6856, %v6854
      %v6905 = vpack.c.b16 %v6859, %v6857
      %v6906 = vpack.c.b16 %v6860, %v6858
      %v6907 = vpack.c.b16 %v6863, %v6861
      %v6908 = vpack.c.b16 %v6864, %v6862
      %v6909 = vpack.c.b16 %v6867, %v6865
      %v6910 = vpack.c.b16 %v6868, %v6866
      %v6911 = vpack.c.b16 %v6871, %v6869
      %v6912 = vpack.c.b16 %v6872, %v6870
      %v6954 = vsel %vm2931, %v6297, 0
      %6956 = vmatprep.subr.bf16.mxu0 %v6874
      %6957 = vmatpush1.bf16.msra.mxu0 %v6873
      %6958 = vmatprep.subr.bf16.mxu0 %v6876
      %6959 = vmatpush1.bf16.msra.mxu0 %v6875
      %6960 = vmatprep.subr.bf16.mxu0 %v6878
      %6961 = vmatpush1.bf16.msra.mxu0 %v6877
      %6962 = vmatprep.subr.bf16.mxu0 %v6880
      %6963 = vmatpush1.bf16.msra.mxu0 %v6879
      %6964 = vmatprep.subr.bf16.mxu0 %v6882
      %6965 = vmatpush1.bf16.msra.mxu0 %v6881
      %6966 = vmatprep.subr.bf16.mxu0 %v6884
      %6967 = vmatpush1.bf16.msra.mxu0 %v6883
      %6968 = vmatprep.subr.bf16.mxu0 %v6886
      %6969 = vmatpush1.bf16.msra.mxu0 %v6885
      %6970 = vmatprep.subr.bf16.mxu0 %v6888
      %6971 = vmatpush1.bf16.msra.mxu0 %v6887
      %6972 = vmatprep.subr.bf16.mxu0 %v6890
      %6973 = vmatpush1.bf16.msra.mxu0 %v6889
      %6974 = vmatprep.subr.bf16.mxu0 %v6892
      %6975 = vmatpush1.bf16.msra.mxu0 %v6891
      %6976 = vmatprep.subr.bf16.mxu0 %v6894
      %6977 = vmatpush1.bf16.msra.mxu0 %v6893
      %6978 = vmatprep.subr.bf16.mxu0 %v6896
      %6979 = vmatpush1.bf16.msra.mxu0 %v6895
      %6980 = vmatprep.subr.bf16.mxu0 %v6898
      %6981 = vmatpush1.bf16.msra.mxu0 %v6897
      %6982 = vmatprep.subr.bf16.mxu0 %v6900
      %6983 = vmatpush1.bf16.msra.mxu0 %v6899
      %6984 = vmatprep.subr.bf16.mxu0 %v6902
      %6985 = vmatpush1.bf16.msra.mxu0 %v6901
      %6986 = vmatprep.subr.bf16.mxu0 %v6904
      %6987 = vmatpush1.bf16.msra.mxu0 %v6903
      %6988 = vmatprep.mubr.bf16.mxu0 %v6296
      %6989 = vmatmul.mubr.bf16.gmra.mrb[0].mxu0 %v6295
      %v6990 = vpop.f32.mrb[0].mxu0
      %v6991 = vadd.f32 %v6747, %v6990
      %v6992 = vpop.f32.mrb[0].mxu0
      %v6993 = vadd.f32 %v6749, %v6992
      %v6994 = vpop.f32.mrb[0].mxu0
      %v6995 = vpop.f32.mrb[0].mxu0
      %6996 = vdwg.mxu0
      %6997 = vmatprep.subr.bf16.mxu0 %v6906
      %6998 = vmatpush1.bf16.msra.mxu0 %v6905
      %6999 = vmatprep.subr.bf16.mxu0 %v6908
      %7000 = vmatpush1.bf16.msra.mxu0 %v6907
      %7001 = vmatprep.subr.bf16.mxu0 %v6910
      %7002 = vmatpush1.bf16.msra.mxu0 %v6909
      %7003 = vmatprep.subr.bf16.mxu0 %v6912
      %7004 = vmatpush1.bf16.msra.mxu0 %v6911
      %7005 = vmatprep.subr.bf16.mxu0 0
      %7006 = vmatpush1.bf16.msra.mxu0 0
      %7007 = vmatprep.subr.bf16.mxu0 0
      %7008 = vmatpush1.bf16.msra.mxu0 0
      %7009 = vmatprep.subr.bf16.mxu0 0
      %7010 = vmatpush1.bf16.msra.mxu0 0
      %7011 = vmatprep.subr.bf16.mxu0 0
      %7012 = vmatpush1.bf16.msra.mxu0 0
      %7013 = vmatprep.subr.bf16.mxu0 0
      %7014 = vmatpush1.bf16.msra.mxu0 0
      %7015 = vmatprep.subr.bf16.mxu0 0
      %7016 = vmatpush1.bf16.msra.mxu0 0
      %7017 = vmatprep.subr.bf16.mxu0 0
      %7018 = vmatpush1.bf16.msra.mxu0 0
      %7019 = vmatprep.subr.bf16.mxu0 0
      %7020 = vmatpush1.bf16.msra.mxu0 0
      %7021 = vmatprep.subr.bf16.mxu0 0
      %7022 = vmatpush1.bf16.msra.mxu0 0
      %7023 = vmatprep.subr.bf16.mxu0 0
      %7024 = vmatpush1.bf16.msra.mxu0 0
      %7025 = vmatprep.subr.bf16.mxu0 0
      %7026 = vmatpush1.bf16.msra.mxu0 0
      %7027 = vmatprep.subr.bf16.mxu0 0
      %7028 = vmatpush1.bf16.msra.mxu0 0
      %7029 = vmatprep.mubr.bf16.mxu0 0
      %7030 = vmatmul.mubr.bf16.gmra.mrb[0].mxu0 %v6954
      %v7031 = vpop.f32.mrb[0].mxu0
      %v7032 = vadd.f32 %v6991, %v7031
      %v7033 = vpop.f32.mrb[0].mxu0
      %v7034 = vadd.f32 %v6993, %v7033
      %v7035 = vpop.f32.mrb[0].mxu0
      %v7036 = vpop.f32.mrb[0].mxu0
      %7037 = vdwg.mxu0
      %s7038 = scalar_lea.vmem %s7, 2
      %v7039 = vld [vmem:[%s7038] sm:$0x1]
      %v7041 = vsel %vm6197, %v7039, 0
      %7043 = vmatprep.subr.bf16.mxu0 %v6209
      %7044 = vmatpush1.bf16.msra.mxu0 %v6206
      %7045 = vmatprep.subr.bf16.mxu0 0
      %7046 = vmatpush1.bf16.msra.mxu0 0
      %7047 = vmatprep.subr.bf16.mxu0 0
      %7048 = vmatpush1.bf16.msra.mxu0 0
      %7049 = vmatprep.subr.bf16.mxu0 0
      %7050 = vmatpush1.bf16.msra.mxu0 0
      %7051 = vmatprep.subr.bf16.mxu0 0
      %7052 = vmatpush1.bf16.msra.mxu0 0
      %7053 = vmatprep.subr.bf16.mxu0 0
      %7054 = vmatpush1.bf16.msra.mxu0 0
      %7055 = vmatprep.subr.bf16.mxu0 0
      %7056 = vmatpush1.bf16.msra.mxu0 0
      %7057 = vmatprep.subr.bf16.mxu0 0
      %7058 = vmatpush1.bf16.msra.mxu0 0
      %7059 = vmatprep.subr.bf16.mxu0 0
      %7060 = vmatpush1.bf16.msra.mxu0 0
      %7061 = vmatprep.subr.bf16.mxu0 0
      %7062 = vmatpush1.bf16.msra.mxu0 0
      %7063 = vmatprep.subr.bf16.mxu0 0
      %7064 = vmatpush1.bf16.msra.mxu0 0
      %7065 = vmatprep.subr.bf16.mxu0 0
      %7066 = vmatpush1.bf16.msra.mxu0 0
      %7067 = vmatprep.subr.bf16.mxu0 0
      %7068 = vmatpush1.bf16.msra.mxu0 0
      %7069 = vmatprep.subr.bf16.mxu0 0
      %7070 = vmatpush1.bf16.msra.mxu0 0
      %7071 = vmatprep.subr.bf16.mxu0 0
      %7072 = vmatpush1.bf16.msra.mxu0 0
      %7073 = vmatprep.subr.bf16.mxu0 0
      %7074 = vmatpush1.bf16.msra.mxu0 0
      %7075 = vmatprep.mubr.bf16.mxu0 0
      %7076 = vmatmul.mubr.bf16.gmra.mrb[0].mxu0 %v7041
      %v7077 = vpop.f32.mrb[0].mxu0
      %v7078 = vadd.f32 0.0, %v7077
      %v7079 = vpop.f32.mrb[0].mxu0
      %v7080 = vadd.f32 0.0, %v7079
      %v7081 = vpop.f32.mrb[0].mxu0
      %v7082 = vpop.f32.mrb[0].mxu0
      %7083 = vdwg.mxu0
      %7084 = vmatprep.subr.bf16.mxu0 0
      %7085 = vmatpush1.bf16.msra.mxu0 %v6212
      %7086 = vmatprep.subr.bf16.mxu0 0
      %7087 = vmatpush1.bf16.msra.mxu0 0
      %7088 = vmatprep.subr.bf16.mxu0 0
      %7089 = vmatpush1.bf16.msra.mxu0 0
      %7090 = vmatprep.subr.bf16.mxu0 0
      %7091 = vmatpush1.bf16.msra.mxu0 0
      %7092 = vmatprep.subr.bf16.mxu0 0
      %7093 = vmatpush1.bf16.msra.mxu0 0
      %7094 = vmatprep.subr.bf16.mxu0 0
      %7095 = vmatpush1.bf16.msra.mxu0 0
      %7096 = vmatprep.subr.bf16.mxu0 0
      %7097 = vmatpush1.bf16.msra.mxu0 0
      %7098 = vmatprep.subr.bf16.mxu0 0
      %7099 = vmatpush1.bf16.msra.mxu0 0
      %7100 = vmatprep.subr.bf16.mxu0 0
      %7101 = vmatpush1.bf16.msra.mxu0 0
      %7102 = vmatprep.subr.bf16.mxu0 0
      %7103 = vmatpush1.bf16.msra.mxu0 0
      %7104 = vmatprep.subr.bf16.mxu0 0
      %7105 = vmatpush1.bf16.msra.mxu0 0
      %7106 = vmatprep.subr.bf16.mxu0 0
      %7107 = vmatpush1.bf16.msra.mxu0 0
      %7108 = vmatprep.subr.bf16.mxu0 0
      %7109 = vmatpush1.bf16.msra.mxu0 0
      %7110 = vmatprep.subr.bf16.mxu0 0
      %7111 = vmatpush1.bf16.msra.mxu0 0
      %7112 = vmatprep.subr.bf16.mxu0 0
      %7113 = vmatpush1.bf16.msra.mxu0 0
      %7114 = vmatprep.subr.bf16.mxu0 0
      %7115 = vmatpush1.bf16.msra.mxu0 0
      %7116 = vmatprep.mubr.bf16.mxu0 0
      %7117 = vmatmul.mubr.bf16.gmra.mrb[0].mxu0 %v7041
      %v7118 = vpop.f32.mrb[0].mxu0
      %v7119 = vadd.f32 0.0, %v7118
      %v7120 = vpop.f32.mrb[0].mxu0
      %v7121 = vpop.f32.mrb[0].mxu0
      %v7122 = vpop.f32.mrb[0].mxu0
      %7123 = vdwg.mxu0
      %v7124 = vpack.c.bf16 %v7078, %v7078
      %v7125 = vpack.c.bf16 %v7080, %v7080
      %v7126 = vpack.c.bf16 %v7119, %v7119
      %s7127 = scalar_lea.vmem %s8, 640
      %v7128 = vld [vmem:[%s7127] sm:$0xff]
      %v7129 = vld [vmem:[%s7127 + $0x8] sm:$0xff]
      %v7130 = vld [vmem:[%s7127 + $0x10] sm:$0xff]
      %v7131 = vld [vmem:[%s7127 + $0x18] sm:$0xff]
      %v7132 = vld [vmem:[%s7127 + $0x20] sm:$0xff]
      %v7133 = vld [vmem:[%s7127 + $0x28] sm:$0xff]
      %v7134 = vld [vmem:[%s7127 + $0x30] sm:$0xff]
      %v7135 = vld [vmem:[%s7127 + $0x38] sm:$0xff]
      %v7136 = vld [vmem:[%s7127 + $0x40] sm:$0xff]
      %v7137 = vld [vmem:[%s7127 + $0x48] sm:$0xff]
      %v7138 = vld [vmem:[%s7127 + $0x50] sm:$0xff]
      %v7139 = vld [vmem:[%s7127 + $0x58] sm:$0xff]
      %v7140 = vld [vmem:[%s7127 + $0x60] sm:$0xff]
      %v7141 = vld [vmem:[%s7127 + $0x68] sm:$0xff]
      %v7142 = vld [vmem:[%s7127 + $0x70] sm:$0xff]
      %v7143 = vld [vmem:[%s7127 + $0x78] sm:$0xff]
      %v7144 = vld [vmem:[%s7127 + $0x80] sm:$0xff]
      %v7145 = vld [vmem:[%s7127 + $0x88] sm:$0xff]
      %v7146 = vld [vmem:[%s7127 + $0x90] sm:$0xff]
      %v7147 = vld [vmem:[%s7127 + $0x98] sm:$0xff]
      %v7148 = vld [vmem:[%s7127 + $0xa0] sm:$0xff]
      %v7149 = vld [vmem:[%s7127 + $0xa8] sm:$0xff]
      %v7150 = vld [vmem:[%s7127 + $0xb0] sm:$0xff]
      %v7151 = vld [vmem:[%s7127 + $0xb8] sm:$0xff]
      %v7152 = vld [vmem:[%s7127 + $0xc0] sm:$0xff]
      %v7153 = vld [vmem:[%s7127 + $0xc8] sm:$0xff]
      %v7154 = vld [vmem:[%s7127 + $0xd0] sm:$0xff]
      %v7155 = vld [vmem:[%s7127 + $0xd8] sm:$0xff]
      %v7156 = vld [vmem:[%s7127 + $0xe0] sm:$0xff]
      %v7157 = vld [vmem:[%s7127 + $0xe8] sm:$0xff]
      %v7158 = vld [vmem:[%s7127 + $0xf0] sm:$0xff]
      %v7159 = vld [vmem:[%s7127 + $0xf8] sm:$0xff]
      %v7160 = vld [vmem:[%s7127 + $0x100] sm:$0xff]
      %v7161 = vld [vmem:[%s7127 + $0x108] sm:$0xff]
      %v7162 = vld [vmem:[%s7127 + $0x110] sm:$0xff]
      %v7163 = vld [vmem:[%s7127 + $0x118] sm:$0xff]
      %v7164 = vld [vmem:[%s7127 + $0x120] sm:$0xff]
      %v7165 = vld [vmem:[%s7127 + $0x128] sm:$0xff]
      %v7166 = vld [vmem:[%s7127 + $0x130] sm:$0xff]
      %v7167 = vld [vmem:[%s7127 + $0x138] sm:$0xff]
      %v7208 = vunpack.c.l.b16 %v7128
      %v7209 = vunpack.c.h.b16 %v7128
      %v7210 = vunpack.c.l.b16 %v7129
      %v7211 = vunpack.c.h.b16 %v7129
      %v7212 = vunpack.c.l.b16 %v7130
      %v7213 = vunpack.c.h.b16 %v7130
      %v7214 = vunpack.c.l.b16 %v7131
      %v7215 = vunpack.c.h.b16 %v7131
      %v7216 = vunpack.c.l.b16 %v7132
      %v7217 = vunpack.c.h.b16 %v7132
      %v7218 = vunpack.c.l.b16 %v7133
      %v7219 = vunpack.c.h.b16 %v7133
      %v7220 = vunpack.c.l.b16 %v7134
      %v7221 = vunpack.c.h.b16 %v7134
      %v7222 = vunpack.c.l.b16 %v7135
      %v7223 = vunpack.c.h.b16 %v7135
      %v7224 = vunpack.c.l.b16 %v7136
      %v7225 = vunpack.c.h.b16 %v7136
      %v7226 = vunpack.c.l.b16 %v7137
      %v7227 = vunpack.c.h.b16 %v7137
      %v7228 = vunpack.c.l.b16 %v7138
      %v7229 = vunpack.c.h.b16 %v7138
      %v7230 = vunpack.c.l.b16 %v7139
      %v7231 = vunpack.c.h.b16 %v7139
      %v7232 = vunpack.c.l.b16 %v7140
      %v7233 = vunpack.c.h.b16 %v7140
      %v7234 = vunpack.c.l.b16 %v7141
      %v7235 = vunpack.c.h.b16 %v7141
      %v7236 = vunpack.c.l.b16 %v7142
      %v7237 = vunpack.c.h.b16 %v7142
      %v7238 = vunpack.c.l.b16 %v7143
      %v7239 = vunpack.c.h.b16 %v7143
      %v7240 = vunpack.c.l.b16 %v7144
      %v7241 = vunpack.c.h.b16 %v7144
      %v7242 = vunpack.c.l.b16 %v7145
      %v7243 = vunpack.c.h.b16 %v7145
      %v7244 = vunpack.c.l.b16 %v7146
      %v7245 = vunpack.c.h.b16 %v7146
      %v7246 = vunpack.c.l.b16 %v7147
      %v7247 = vunpack.c.h.b16 %v7147
      %v7248 = vunpack.c.l.b16 %v7148
      %v7249 = vunpack.c.h.b16 %v7148
      %v7250 = vunpack.c.l.b16 %v7149
      %v7251 = vunpack.c.h.b16 %v7149
      %v7252 = vunpack.c.l.b16 %v7150
      %v7253 = vunpack.c.h.b16 %v7150
      %v7254 = vunpack.c.l.b16 %v7151
      %v7255 = vunpack.c.h.b16 %v7151
      %v7256 = vunpack.c.l.b16 %v7152
      %v7257 = vunpack.c.h.b16 %v7152
      %v7258 = vunpack.c.l.b16 %v7153
      %v7259 = vunpack.c.h.b16 %v7153
      %v7260 = vunpack.c.l.b16 %v7154
      %v7261 = vunpack.c.h.b16 %v7154
      %v7262 = vunpack.c.l.b16 %v7155
      %v7263 = vunpack.c.h.b16 %v7155
      %v7264 = vunpack.c.l.b16 %v7156
      %v7265 = vunpack.c.h.b16 %v7156
      %v7266 = vunpack.c.l.b16 %v7157
      %v7267 = vunpack.c.h.b16 %v7157
      %v7268 = vunpack.c.l.b16 %v7158
      %v7269 = vunpack.c.h.b16 %v7158
      %v7270 = vunpack.c.l.b16 %v7159
      %v7271 = vunpack.c.h.b16 %v7159
      %v7272 = vunpack.c.l.b16 %v7160
      %v7273 = vunpack.c.h.b16 %v7160
      %v7274 = vunpack.c.l.b16 %v7161
      %v7275 = vunpack.c.h.b16 %v7161
      %v7276 = vunpack.c.l.b16 %v7162
      %v7277 = vunpack.c.h.b16 %v7162
      %v7278 = vunpack.c.l.b16 %v7163
      %v7279 = vunpack.c.h.b16 %v7163
      %v7280 = vunpack.c.l.b16 %v7164
      %v7281 = vunpack.c.h.b16 %v7164
      %v7282 = vunpack.c.l.b16 %v7165
      %v7283 = vunpack.c.h.b16 %v7165
      %v7284 = vunpack.c.l.b16 %v7166
      %v7285 = vunpack.c.h.b16 %v7166
      %v7286 = vunpack.c.l.b16 %v7167
      %v7287 = vunpack.c.h.b16 %v7167
      %v7288 = vpack.c.b16 %v7210, %v7208
      %v7289 = vpack.c.b16 %v7211, %v7209
      %v7290 = vpack.c.b16 %v7214, %v7212
      %v7291 = vpack.c.b16 %v7215, %v7213
      %v7292 = vpack.c.b16 %v7218, %v7216
      %v7293 = vpack.c.b16 %v7219, %v7217
      %v7294 = vpack.c.b16 %v7222, %v7220
      %v7295 = vpack.c.b16 %v7223, %v7221
      %v7296 = vpack.c.b16 %v7226, %v7224
      %v7297 = vpack.c.b16 %v7227, %v7225
      %v7298 = vpack.c.b16 %v7230, %v7228
      %v7299 = vpack.c.b16 %v7231, %v7229
      %v7300 = vpack.c.b16 %v7234, %v7232
      %v7301 = vpack.c.b16 %v7235, %v7233
      %v7302 = vpack.c.b16 %v7238, %v7236
      %v7303 = vpack.c.b16 %v7239, %v7237
      %v7304 = vpack.c.b16 %v7242, %v7240
      %v7305 = vpack.c.b16 %v7243, %v7241
      %v7306 = vpack.c.b16 %v7246, %v7244
      %v7307 = vpack.c.b16 %v7247, %v7245
      %v7308 = vpack.c.b16 %v7250, %v7248
      %v7309 = vpack.c.b16 %v7251, %v7249
      %v7310 = vpack.c.b16 %v7254, %v7252
      %v7311 = vpack.c.b16 %v7255, %v7253
      %v7312 = vpack.c.b16 %v7258, %v7256
      %v7313 = vpack.c.b16 %v7259, %v7257
      %v7314 = vpack.c.b16 %v7262, %v7260
      %v7315 = vpack.c.b16 %v7263, %v7261
      %v7316 = vpack.c.b16 %v7266, %v7264
      %v7317 = vpack.c.b16 %v7267, %v7265
      %v7318 = vpack.c.b16 %v7270, %v7268
      %v7319 = vpack.c.b16 %v7271, %v7269
      %v7320 = vpack.c.b16 %v7274, %v7272
      %v7321 = vpack.c.b16 %v7275, %v7273
      %v7322 = vpack.c.b16 %v7278, %v7276
      %v7323 = vpack.c.b16 %v7279, %v7277
      %v7324 = vpack.c.b16 %v7282, %v7280
      %v7325 = vpack.c.b16 %v7283, %v7281
      %v7326 = vpack.c.b16 %v7286, %v7284
      %v7327 = vpack.c.b16 %v7287, %v7285
      %v7369 = vsel %vm2931, %v7126, 0
      %7371 = vmatprep.subr.bf16.mxu0 %v7289
      %7372 = vmatpush1.bf16.msra.mxu0 %v7288
      %7373 = vmatprep.subr.bf16.mxu0 %v7291
      %7374 = vmatpush1.bf16.msra.mxu0 %v7290
      %7375 = vmatprep.subr.bf16.mxu0 %v7293
      %7376 = vmatpush1.bf16.msra.mxu0 %v7292
      %7377 = vmatprep.subr.bf16.mxu0 %v7295
      %7378 = vmatpush1.bf16.msra.mxu0 %v7294
      %7379 = vmatprep.subr.bf16.mxu0 %v7297
      %7380 = vmatpush1.bf16.msra.mxu0 %v7296
      %7381 = vmatprep.subr.bf16.mxu0 %v7299
      %7382 = vmatpush1.bf16.msra.mxu0 %v7298
      %7383 = vmatprep.subr.bf16.mxu0 %v7301
      %7384 = vmatpush1.bf16.msra.mxu0 %v7300
      %7385 = vmatprep.subr.bf16.mxu0 %v7303
      %7386 = vmatpush1.bf16.msra.mxu0 %v7302
      %7387 = vmatprep.subr.bf16.mxu0 %v7305
      %7388 = vmatpush1.bf16.msra.mxu0 %v7304
      %7389 = vmatprep.subr.bf16.mxu0 %v7307
      %7390 = vmatpush1.bf16.msra.mxu0 %v7306
      %7391 = vmatprep.subr.bf16.mxu0 %v7309
      %7392 = vmatpush1.bf16.msra.mxu0 %v7308
      %7393 = vmatprep.subr.bf16.mxu0 %v7311
      %7394 = vmatpush1.bf16.msra.mxu0 %v7310
      %7395 = vmatprep.subr.bf16.mxu0 %v7313
      %7396 = vmatpush1.bf16.msra.mxu0 %v7312
      %7397 = vmatprep.subr.bf16.mxu0 %v7315
      %7398 = vmatpush1.bf16.msra.mxu0 %v7314
      %7399 = vmatprep.subr.bf16.mxu0 %v7317
      %7400 = vmatpush1.bf16.msra.mxu0 %v7316
      %7401 = vmatprep.subr.bf16.mxu0 %v7319
      %7402 = vmatpush1.bf16.msra.mxu0 %v7318
      %7403 = vmatprep.mubr.bf16.mxu0 %v7125
      %7404 = vmatmul.mubr.bf16.gmra.mrb[0].mxu0 %v7124
      %v7405 = vpop.f32.mrb[0].mxu0
      %v7406 = vadd.f32 0.0, %v7405
      %v7407 = vpop.f32.mrb[0].mxu0
      %v7408 = vadd.f32 0.0, %v7407
      %v7409 = vpop.f32.mrb[0].mxu0
      %v7410 = vpop.f32.mrb[0].mxu0
      %7411 = vdwg.mxu0
      %7412 = vmatprep.subr.bf16.mxu0 %v7321
      %7413 = vmatpush1.bf16.msra.mxu0 %v7320
      %7414 = vmatprep.subr.bf16.mxu0 %v7323
      %7415 = vmatpush1.bf16.msra.mxu0 %v7322
      %7416 = vmatprep.subr.bf16.mxu0 %v7325
      %7417 = vmatpush1.bf16.msra.mxu0 %v7324
      %7418 = vmatprep.subr.bf16.mxu0 %v7327
      %7419 = vmatpush1.bf16.msra.mxu0 %v7326
      %7420 = vmatprep.subr.bf16.mxu0 0
      %7421 = vmatpush1.bf16.msra.mxu0 0
      %7422 = vmatprep.subr.bf16.mxu0 0
      %7423 = vmatpush1.bf16.msra.mxu0 0
      %7424 = vmatprep.subr.bf16.mxu0 0
      %7425 = vmatpush1.bf16.msra.mxu0 0
      %7426 = vmatprep.subr.bf16.mxu0 0
      %7427 = vmatpush1.bf16.msra.mxu0 0
      %7428 = vmatprep.subr.bf16.mxu0 0
      %7429 = vmatpush1.bf16.msra.mxu0 0
      %7430 = vmatprep.subr.bf16.mxu0 0
      %7431 = vmatpush1.bf16.msra.mxu0 0
      %7432 = vmatprep.subr.bf16.mxu0 0
      %7433 = vmatpush1.bf16.msra.mxu0 0
      %7434 = vmatprep.subr.bf16.mxu0 0
      %7435 = vmatpush1.bf16.msra.mxu0 0
      %7436 = vmatprep.subr.bf16.mxu0 0
      %7437 = vmatpush1.bf16.msra.mxu0 0
      %7438 = vmatprep.subr.bf16.mxu0 0
      %7439 = vmatpush1.bf16.msra.mxu0 0
      %7440 = vmatprep.subr.bf16.mxu0 0
      %7441 = vmatpush1.bf16.msra.mxu0 0
      %7442 = vmatprep.subr.bf16.mxu0 0
      %7443 = vmatpush1.bf16.msra.mxu0 0
      %7444 = vmatprep.mubr.bf16.mxu0 0
      %7445 = vmatmul.mubr.bf16.gmra.mrb[0].mxu0 %v7369
      %v7446 = vpop.f32.mrb[0].mxu0
      %v7447 = vadd.f32 %v7406, %v7446
      %v7448 = vpop.f32.mrb[0].mxu0
      %v7449 = vadd.f32 %v7408, %v7448
      %v7450 = vpop.f32.mrb[0].mxu0
      %v7451 = vpop.f32.mrb[0].mxu0
      %7452 = vdwg.mxu0
      %v7453 = vadd.f32 %v7032, %v7447
      %v7454 = vadd.f32 %v7034, %v7449
      %v7455 = vld [vmem:[%s9] sm:$0x3]
      %v7457 = vlaneseq
      %v7458 = vshrl.u32 %v7457, 7
      %v7459 = vsub.s32 0, %v7458
      %v7460 = vrot.slane %v7455, %v7459
      %v7461 = vlaneseq
      %v7462 = vshrl.u32 %v7461, 7
      %v7463 = vsub.s32 1, %v7462
      %v7464 = vrot.slane %v7455, %v7463
      %v7467 = vadd.f32 %v7453, %v7460
      %v7468 = vadd.f32 %v7454, %v7464
      %v7469 = vmax.f32 %v7467, 0.0
      %v7470 = vmax.f32 %v7468, 0.0
      %v7471 = vpack.c.bf16 %v7469, %v7469
      %v7472 = vpack.c.bf16 %v7470, %v7470
      %v7473 = vld [vmem:[%s10] sm:$0x1]
      %vm7474 = vcmask 15360
      %v7476 = vsel %vm7474, %v7473, 0
      %vm7478 = vcmask 1040384
      %v7480 = vsel %vm7478, %v7471, 0
      %v7483 = vsel %vm7478, %v7472, 0
      %7485 = vmatprep.subr.bf16.mxu0 %v7483
      %7486 = vmatpush1.bf16.msra.mxu0 %v7480
      %7487 = vmatprep.subr.bf16.mxu0 0
      %7488 = vmatpush1.bf16.msra.mxu0 0
      %7489 = vmatprep.subr.bf16.mxu0 0
      %7490 = vmatpush1.bf16.msra.mxu0 0
      %7491 = vmatprep.subr.bf16.mxu0 0
      %7492 = vmatpush1.bf16.msra.mxu0 0
      %7493 = vmatprep.subr.bf16.mxu0 0
      %7494 = vmatpush1.bf16.msra.mxu0 0
      %7495 = vmatprep.subr.bf16.mxu0 0
      %7496 = vmatpush1.bf16.msra.mxu0 0
      %7497 = vmatprep.subr.bf16.mxu0 0
      %7498 = vmatpush1.bf16.msra.mxu0 0
      %7499 = vmatprep.subr.bf16.mxu0 0
      %7500 = vmatpush1.bf16.msra.mxu0 0
      %7501 = vmatprep.subr.bf16.mxu0 0
      %7502 = vmatpush1.bf16.msra.mxu0 0
      %7503 = vmatprep.subr.bf16.mxu0 0
      %7504 = vmatpush1.bf16.msra.mxu0 0
      %7505 = vmatprep.subr.bf16.mxu0 0
      %7506 = vmatpush1.bf16.msra.mxu0 0
      %7507 = vmatprep.subr.bf16.mxu0 0
      %7508 = vmatpush1.bf16.msra.mxu0 0
      %7509 = vmatprep.subr.bf16.mxu0 0
      %7510 = vmatpush1.bf16.msra.mxu0 0
      %7511 = vmatprep.subr.bf16.mxu0 0
      %7512 = vmatpush1.bf16.msra.mxu0 0
      %7513 = vmatprep.subr.bf16.mxu0 0
      %7514 = vmatpush1.bf16.msra.mxu0 0
      %7515 = vmatprep.subr.bf16.mxu0 0
      %7516 = vmatpush1.bf16.msra.mxu0 0
      %7517 = vmatprep.mubr.bf16.mxu0 0
      %7518 = vmatmul.mubr.bf16.gmra.mrb[0].mxu0 %v7476
      %v7519 = vpop.f32.mrb[0].mxu0
      %v7520 = vadd.f32 0.0, %v7519
      %v7521 = vpop.f32.mrb[0].mxu0
      %v7522 = vadd.f32 0.0, %v7521
      %v7523 = vpop.f32.mrb[0].mxu0
      %v7524 = vpop.f32.mrb[0].mxu0
      %7525 = vdwg.mxu0
      %v7526 = vpack.c.bf16 %v7520, %v7520
      %v7527 = vpack.c.bf16 %v7522, %v7522
      %v7528 = vld [vmem:[%s11] sm:$0xff]
      %v7529 = vld [vmem:[%s11 + $0x8] sm:$0xff]
      %v7530 = vld [vmem:[%s11 + $0x10] sm:$0xff]
      %v7531 = vld [vmem:[%s11 + $0x18] sm:$0xff]
      %v7532 = vld [vmem:[%s11 + $0x20] sm:$0xff]
      %v7533 = vld [vmem:[%s11 + $0x28] sm:$0xff]
      %v7534 = vld [vmem:[%s11 + $0x30] sm:$0xff]
      %v7535 = vld [vmem:[%s11 + $0x38] sm:$0xff]
      %v7536 = vld [vmem:[%s11 + $0x40] sm:$0xff]
      %v7537 = vld [vmem:[%s11 + $0x48] sm:$0xff]
      %v7538 = vld [vmem:[%s11 + $0x50] sm:$0xff]
      %v7539 = vld [vmem:[%s11 + $0x58] sm:$0xff]
      %v7540 = vld [vmem:[%s11 + $0x60] sm:$0xff]
      %v7541 = vld [vmem:[%s11 + $0x68] sm:$0xff]
      %v7542 = vld [vmem:[%s11 + $0x70] sm:$0xff]
      %v7543 = vld [vmem:[%s11 + $0x78] sm:$0xff]
      %v7544 = vld [vmem:[%s11 + $0x80] sm:$0xff]
      %v7545 = vld [vmem:[%s11 + $0x88] sm:$0xff]
      %v7546 = vld [vmem:[%s11 + $0x90] sm:$0xff]
      %v7547 = vld [vmem:[%s11 + $0x98] sm:$0xff]
      %v7548 = vld [vmem:[%s11 + $0xa0] sm:$0xff]
      %v7549 = vld [vmem:[%s11 + $0xa8] sm:$0xff]
      %v7550 = vld [vmem:[%s11 + $0xb0] sm:$0xff]
      %v7551 = vld [vmem:[%s11 + $0xb8] sm:$0xff]
      %v7552 = vld [vmem:[%s11 + $0xc0] sm:$0xff]
      %v7553 = vld [vmem:[%s11 + $0xc8] sm:$0xff]
      %v7554 = vld [vmem:[%s11 + $0xd0] sm:$0xff]
      %v7555 = vld [vmem:[%s11 + $0xd8] sm:$0xff]
      %v7556 = vld [vmem:[%s11 + $0xe0] sm:$0xff]
      %v7557 = vld [vmem:[%s11 + $0xe8] sm:$0xff]
      %v7558 = vld [vmem:[%s11 + $0xf0] sm:$0xff]
      %v7559 = vld [vmem:[%s11 + $0xf8] sm:$0xff]
      %s7560 = scalar_lea.vmem %s10, 1
      %v7561 = vld [vmem:[%s7560] sm:$0x1]
      %v7563 = vsel %vm7474, %v7561, 0
      %7565 = vmatprep.subr.bf16.mxu0 %v7483
      %7566 = vmatpush1.bf16.msra.mxu0 %v7480
      %7567 = vmatprep.subr.bf16.mxu0 0
      %7568 = vmatpush1.bf16.msra.mxu0 0
      %7569 = vmatprep.subr.bf16.mxu0 0
      %7570 = vmatpush1.bf16.msra.mxu0 0
      %7571 = vmatprep.subr.bf16.mxu0 0
      %7572 = vmatpush1.bf16.msra.mxu0 0
      %7573 = vmatprep.subr.bf16.mxu0 0
      %7574 = vmatpush1.bf16.msra.mxu0 0
      %7575 = vmatprep.subr.bf16.mxu0 0
      %7576 = vmatpush1.bf16.msra.mxu0 0
      %7577 = vmatprep.subr.bf16.mxu0 0
      %7578 = vmatpush1.bf16.msra.mxu0 0
      %7579 = vmatprep.subr.bf16.mxu0 0
      %7580 = vmatpush1.bf16.msra.mxu0 0
      %7581 = vmatprep.subr.bf16.mxu0 0
      %7582 = vmatpush1.bf16.msra.mxu0 0
      %7583 = vmatprep.subr.bf16.mxu0 0
      %7584 = vmatpush1.bf16.msra.mxu0 0
      %7585 = vmatprep.subr.bf16.mxu0 0
      %7586 = vmatpush1.bf16.msra.mxu0 0
      %7587 = vmatprep.subr.bf16.mxu0 0
      %7588 = vmatpush1.bf16.msra.mxu0 0
      %7589 = vmatprep.subr.bf16.mxu0 0
      %7590 = vmatpush1.bf16.msra.mxu0 0
      %7591 = vmatprep.subr.bf16.mxu0 0
      %7592 = vmatpush1.bf16.msra.mxu0 0
      %7593 = vmatprep.subr.bf16.mxu0 0
      %7594 = vmatpush1.bf16.msra.mxu0 0
      %7595 = vmatprep.subr.bf16.mxu0 0
      %7596 = vmatpush1.bf16.msra.mxu0 0
      %7597 = vmatprep.mubr.bf16.mxu0 0
      %7598 = vmatmul.mubr.bf16.gmra.mrb[0].mxu0 %v7563
      %v7599 = vpop.f32.mrb[0].mxu0
      %v7600 = vadd.f32 0.0, %v7599
      %v7601 = vpop.f32.mrb[0].mxu0
      %v7602 = vadd.f32 0.0, %v7601
      %v7603 = vpop.f32.mrb[0].mxu0
      %v7604 = vpop.f32.mrb[0].mxu0
      %7605 = vdwg.mxu0
      %v7606 = vpack.c.bf16 %v7600, %v7600
      %v7607 = vpack.c.bf16 %v7602, %v7602
      %s7608 = scalar_lea.vmem %s11, 256
      %v7609 = vld [vmem:[%s7608] sm:$0xff]
      %v7610 = vld [vmem:[%s7608 + $0x8] sm:$0xff]
      %v7611 = vld [vmem:[%s7608 + $0x10] sm:$0xff]
      %v7612 = vld [vmem:[%s7608 + $0x18] sm:$0xff]
      %v7613 = vld [vmem:[%s7608 + $0x20] sm:$0xff]
      %v7614 = vld [vmem:[%s7608 + $0x28] sm:$0xff]
      %v7615 = vld [vmem:[%s7608 + $0x30] sm:$0xff]
      %v7616 = vld [vmem:[%s7608 + $0x38] sm:$0xff]
      %v7617 = vld [vmem:[%s7608 + $0x40] sm:$0xff]
      %v7618 = vld [vmem:[%s7608 + $0x48] sm:$0xff]
      %v7619 = vld [vmem:[%s7608 + $0x50] sm:$0xff]
      %v7620 = vld [vmem:[%s7608 + $0x58] sm:$0xff]
      %v7621 = vld [vmem:[%s7608 + $0x60] sm:$0xff]
      %v7622 = vld [vmem:[%s7608 + $0x68] sm:$0xff]
      %v7623 = vld [vmem:[%s7608 + $0x70] sm:$0xff]
      %v7624 = vld [vmem:[%s7608 + $0x78] sm:$0xff]
      %v7625 = vld [vmem:[%s7608 + $0x80] sm:$0xff]
      %v7626 = vld [vmem:[%s7608 + $0x88] sm:$0xff]
      %v7627 = vld [vmem:[%s7608 + $0x90] sm:$0xff]
      %v7628 = vld [vmem:[%s7608 + $0x98] sm:$0xff]
      %v7629 = vld [vmem:[%s7608 + $0xa0] sm:$0xff]
      %v7630 = vld [vmem:[%s7608 + $0xa8] sm:$0xff]
      %v7631 = vld [vmem:[%s7608 + $0xb0] sm:$0xff]
      %v7632 = vld [vmem:[%s7608 + $0xb8] sm:$0xff]
      %v7633 = vld [vmem:[%s7608 + $0xc0] sm:$0xff]
      %v7634 = vld [vmem:[%s7608 + $0xc8] sm:$0xff]
      %v7635 = vld [vmem:[%s7608 + $0xd0] sm:$0xff]
      %v7636 = vld [vmem:[%s7608 + $0xd8] sm:$0xff]
      %v7637 = vld [vmem:[%s7608 + $0xe0] sm:$0xff]
      %v7638 = vld [vmem:[%s7608 + $0xe8] sm:$0xff]
      %v7639 = vld [vmem:[%s7608 + $0xf0] sm:$0xff]
      %v7640 = vld [vmem:[%s7608 + $0xf8] sm:$0xff]
      %v7673 = vunpack.c.l.b16 %v7609
      %v7674 = vunpack.c.h.b16 %v7609
      %v7675 = vunpack.c.l.b16 %v7610
      %v7676 = vunpack.c.h.b16 %v7610
      %v7677 = vunpack.c.l.b16 %v7611
      %v7678 = vunpack.c.h.b16 %v7611
      %v7679 = vunpack.c.l.b16 %v7612
      %v7680 = vunpack.c.h.b16 %v7612
      %v7681 = vunpack.c.l.b16 %v7613
      %v7682 = vunpack.c.h.b16 %v7613
      %v7683 = vunpack.c.l.b16 %v7614
      %v7684 = vunpack.c.h.b16 %v7614
      %v7685 = vunpack.c.l.b16 %v7615
      %v7686 = vunpack.c.h.b16 %v7615
      %v7687 = vunpack.c.l.b16 %v7616
      %v7688 = vunpack.c.h.b16 %v7616
      %v7689 = vunpack.c.l.b16 %v7617
      %v7690 = vunpack.c.h.b16 %v7617
      %v7691 = vunpack.c.l.b16 %v7618
      %v7692 = vunpack.c.h.b16 %v7618
      %v7693 = vunpack.c.l.b16 %v7619
      %v7694 = vunpack.c.h.b16 %v7619
      %v7695 = vunpack.c.l.b16 %v7620
      %v7696 = vunpack.c.h.b16 %v7620
      %v7697 = vunpack.c.l.b16 %v7621
      %v7698 = vunpack.c.h.b16 %v7621
      %v7699 = vunpack.c.l.b16 %v7622
      %v7700 = vunpack.c.h.b16 %v7622
      %v7701 = vunpack.c.l.b16 %v7623
      %v7702 = vunpack.c.h.b16 %v7623
      %v7703 = vunpack.c.l.b16 %v7624
      %v7704 = vunpack.c.h.b16 %v7624
      %v7705 = vunpack.c.l.b16 %v7625
      %v7706 = vunpack.c.h.b16 %v7625
      %v7707 = vunpack.c.l.b16 %v7626
      %v7708 = vunpack.c.h.b16 %v7626
      %v7709 = vunpack.c.l.b16 %v7627
      %v7710 = vunpack.c.h.b16 %v7627
      %v7711 = vunpack.c.l.b16 %v7628
      %v7712 = vunpack.c.h.b16 %v7628
      %v7713 = vunpack.c.l.b16 %v7629
      %v7714 = vunpack.c.h.b16 %v7629
      %v7715 = vunpack.c.l.b16 %v7630
      %v7716 = vunpack.c.h.b16 %v7630
      %v7717 = vunpack.c.l.b16 %v7631
      %v7718 = vunpack.c.h.b16 %v7631
      %v7719 = vunpack.c.l.b16 %v7632
      %v7720 = vunpack.c.h.b16 %v7632
      %v7721 = vunpack.c.l.b16 %v7633
      %v7722 = vunpack.c.h.b16 %v7633
      %v7723 = vunpack.c.l.b16 %v7634
      %v7724 = vunpack.c.h.b16 %v7634
      %v7725 = vunpack.c.l.b16 %v7635
      %v7726 = vunpack.c.h.b16 %v7635
      %v7727 = vunpack.c.l.b16 %v7636
      %v7728 = vunpack.c.h.b16 %v7636
      %v7729 = vunpack.c.l.b16 %v7637
      %v7730 = vunpack.c.h.b16 %v7637
      %v7731 = vunpack.c.l.b16 %v7638
      %v7732 = vunpack.c.h.b16 %v7638
      %v7733 = vunpack.c.l.b16 %v7639
      %v7734 = vunpack.c.h.b16 %v7639
      %v7735 = vunpack.c.l.b16 %v7640
      %v7736 = vunpack.c.h.b16 %v7640
      %v7737 = vpack.c.b16 %v7675, %v7673
      %v7738 = vpack.c.b16 %v7676, %v7674
      %v7739 = vpack.c.b16 %v7679, %v7677
      %v7740 = vpack.c.b16 %v7680, %v7678
      %v7741 = vpack.c.b16 %v7683, %v7681
      %v7742 = vpack.c.b16 %v7684, %v7682
      %v7743 = vpack.c.b16 %v7687, %v7685
      %v7744 = vpack.c.b16 %v7688, %v7686
      %v7745 = vpack.c.b16 %v7691, %v7689
      %v7746 = vpack.c.b16 %v7692, %v7690
      %v7747 = vpack.c.b16 %v7695, %v7693
      %v7748 = vpack.c.b16 %v7696, %v7694
      %v7749 = vpack.c.b16 %v7699, %v7697
      %v7750 = vpack.c.b16 %v7700, %v7698
      %v7751 = vpack.c.b16 %v7703, %v7701
      %v7752 = vpack.c.b16 %v7704, %v7702
      %v7753 = vpack.c.b16 %v7707, %v7705
      %v7754 = vpack.c.b16 %v7708, %v7706
      %v7755 = vpack.c.b16 %v7711, %v7709
      %v7756 = vpack.c.b16 %v7712, %v7710
      %v7757 = vpack.c.b16 %v7715, %v7713
      %v7758 = vpack.c.b16 %v7716, %v7714
      %v7759 = vpack.c.b16 %v7719, %v7717
      %v7760 = vpack.c.b16 %v7720, %v7718
      %v7761 = vpack.c.b16 %v7723, %v7721
      %v7762 = vpack.c.b16 %v7724, %v7722
      %v7763 = vpack.c.b16 %v7727, %v7725
      %v7764 = vpack.c.b16 %v7728, %v7726
      %v7765 = vpack.c.b16 %v7731, %v7729
      %v7766 = vpack.c.b16 %v7732, %v7730
      %v7767 = vpack.c.b16 %v7735, %v7733
      %v7768 = vpack.c.b16 %v7736, %v7734
      %7801 = vmatprep.subr.bf16.mxu0 %v7738
      %7802 = vmatpush1.bf16.msra.mxu0 %v7737
      %7803 = vmatprep.subr.bf16.mxu0 %v7740
      %7804 = vmatpush1.bf16.msra.mxu0 %v7739
      %7805 = vmatprep.subr.bf16.mxu0 %v7742
      %7806 = vmatpush1.bf16.msra.mxu0 %v7741
      %7807 = vmatprep.subr.bf16.mxu0 %v7744
      %7808 = vmatpush1.bf16.msra.mxu0 %v7743
      %7809 = vmatprep.subr.bf16.mxu0 %v7746
      %7810 = vmatpush1.bf16.msra.mxu0 %v7745
      %7811 = vmatprep.subr.bf16.mxu0 %v7748
      %7812 = vmatpush1.bf16.msra.mxu0 %v7747
      %7813 = vmatprep.subr.bf16.mxu0 %v7750
      %7814 = vmatpush1.bf16.msra.mxu0 %v7749
      %7815 = vmatprep.subr.bf16.mxu0 %v7752
      %7816 = vmatpush1.bf16.msra.mxu0 %v7751
      %7817 = vmatprep.subr.bf16.mxu0 %v7754
      %7818 = vmatpush1.bf16.msra.mxu0 %v7753
      %7819 = vmatprep.subr.bf16.mxu0 %v7756
      %7820 = vmatpush1.bf16.msra.mxu0 %v7755
      %7821 = vmatprep.subr.bf16.mxu0 %v7758
      %7822 = vmatpush1.bf16.msra.mxu0 %v7757
      %7823 = vmatprep.subr.bf16.mxu0 %v7760
      %7824 = vmatpush1.bf16.msra.mxu0 %v7759
      %7825 = vmatprep.subr.bf16.mxu0 %v7762
      %7826 = vmatpush1.bf16.msra.mxu0 %v7761
      %7827 = vmatprep.subr.bf16.mxu0 %v7764
      %7828 = vmatpush1.bf16.msra.mxu0 %v7763
      %7829 = vmatprep.subr.bf16.mxu0 %v7766
      %7830 = vmatpush1.bf16.msra.mxu0 %v7765
      %7831 = vmatprep.subr.bf16.mxu0 %v7768
      %7832 = vmatpush1.bf16.msra.mxu0 %v7767
      %7833 = vmatprep.mubr.bf16.mxu0 %v7607
      %7834 = vmatmul.mubr.bf16.gmra.mrb[0].mxu0 %v7606
      %v7835 = vpop.f32.mrb[0].mxu0
      %v7836 = vadd.f32 0.0, %v7835
      %v7837 = vpop.f32.mrb[0].mxu0
      %v7838 = vadd.f32 0.0, %v7837
      %v7839 = vpop.f32.mrb[0].mxu0
      %v7840 = vpop.f32.mrb[0].mxu0
      %7841 = vdwg.mxu0
      %v7874 = vunpack.c.l.b16 %v7528
      %v7875 = vunpack.c.h.b16 %v7528
      %v7876 = vunpack.c.l.b16 %v7529
      %v7877 = vunpack.c.h.b16 %v7529
      %v7878 = vunpack.c.l.b16 %v7530
      %v7879 = vunpack.c.h.b16 %v7530
      %v7880 = vunpack.c.l.b16 %v7531
      %v7881 = vunpack.c.h.b16 %v7531
      %v7882 = vunpack.c.l.b16 %v7532
      %v7883 = vunpack.c.h.b16 %v7532
      %v7884 = vunpack.c.l.b16 %v7533
      %v7885 = vunpack.c.h.b16 %v7533
      %v7886 = vunpack.c.l.b16 %v7534
      %v7887 = vunpack.c.h.b16 %v7534
      %v7888 = vunpack.c.l.b16 %v7535
      %v7889 = vunpack.c.h.b16 %v7535
      %v7890 = vunpack.c.l.b16 %v7536
      %v7891 = vunpack.c.h.b16 %v7536
      %v7892 = vunpack.c.l.b16 %v7537
      %v7893 = vunpack.c.h.b16 %v7537
      %v7894 = vunpack.c.l.b16 %v7538
      %v7895 = vunpack.c.h.b16 %v7538
      %v7896 = vunpack.c.l.b16 %v7539
      %v7897 = vunpack.c.h.b16 %v7539
      %v7898 = vunpack.c.l.b16 %v7540
      %v7899 = vunpack.c.h.b16 %v7540
      %v7900 = vunpack.c.l.b16 %v7541
      %v7901 = vunpack.c.h.b16 %v7541
      %v7902 = vunpack.c.l.b16 %v7542
      %v7903 = vunpack.c.h.b16 %v7542
      %v7904 = vunpack.c.l.b16 %v7543
      %v7905 = vunpack.c.h.b16 %v7543
      %v7906 = vunpack.c.l.b16 %v7544
      %v7907 = vunpack.c.h.b16 %v7544
      %v7908 = vunpack.c.l.b16 %v7545
      %v7909 = vunpack.c.h.b16 %v7545
      %v7910 = vunpack.c.l.b16 %v7546
      %v7911 = vunpack.c.h.b16 %v7546
      %v7912 = vunpack.c.l.b16 %v7547
      %v7913 = vunpack.c.h.b16 %v7547
      %v7914 = vunpack.c.l.b16 %v7548
      %v7915 = vunpack.c.h.b16 %v7548
      %v7916 = vunpack.c.l.b16 %v7549
      %v7917 = vunpack.c.h.b16 %v7549
      %v7918 = vunpack.c.l.b16 %v7550
      %v7919 = vunpack.c.h.b16 %v7550
      %v7920 = vunpack.c.l.b16 %v7551
      %v7921 = vunpack.c.h.b16 %v7551
      %v7922 = vunpack.c.l.b16 %v7552
      %v7923 = vunpack.c.h.b16 %v7552
      %v7924 = vunpack.c.l.b16 %v7553
      %v7925 = vunpack.c.h.b16 %v7553
      %v7926 = vunpack.c.l.b16 %v7554
      %v7927 = vunpack.c.h.b16 %v7554
      %v7928 = vunpack.c.l.b16 %v7555
      %v7929 = vunpack.c.h.b16 %v7555
      %v7930 = vunpack.c.l.b16 %v7556
      %v7931 = vunpack.c.h.b16 %v7556
      %v7932 = vunpack.c.l.b16 %v7557
      %v7933 = vunpack.c.h.b16 %v7557
      %v7934 = vunpack.c.l.b16 %v7558
      %v7935 = vunpack.c.h.b16 %v7558
      %v7936 = vunpack.c.l.b16 %v7559
      %v7937 = vunpack.c.h.b16 %v7559
      %v7938 = vpack.c.b16 %v7876, %v7874
      %v7939 = vpack.c.b16 %v7877, %v7875
      %v7940 = vpack.c.b16 %v7880, %v7878
      %v7941 = vpack.c.b16 %v7881, %v7879
      %v7942 = vpack.c.b16 %v7884, %v7882
      %v7943 = vpack.c.b16 %v7885, %v7883
      %v7944 = vpack.c.b16 %v7888, %v7886
      %v7945 = vpack.c.b16 %v7889, %v7887
      %v7946 = vpack.c.b16 %v7892, %v7890
      %v7947 = vpack.c.b16 %v7893, %v7891
      %v7948 = vpack.c.b16 %v7896, %v7894
      %v7949 = vpack.c.b16 %v7897, %v7895
      %v7950 = vpack.c.b16 %v7900, %v7898
      %v7951 = vpack.c.b16 %v7901, %v7899
      %v7952 = vpack.c.b16 %v7904, %v7902
      %v7953 = vpack.c.b16 %v7905, %v7903
      %v7954 = vpack.c.b16 %v7908, %v7906
      %v7955 = vpack.c.b16 %v7909, %v7907
      %v7956 = vpack.c.b16 %v7912, %v7910
      %v7957 = vpack.c.b16 %v7913, %v7911
      %v7958 = vpack.c.b16 %v7916, %v7914
      %v7959 = vpack.c.b16 %v7917, %v7915
      %v7960 = vpack.c.b16 %v7920, %v7918
      %v7961 = vpack.c.b16 %v7921, %v7919
      %v7962 = vpack.c.b16 %v7924, %v7922
      %v7963 = vpack.c.b16 %v7925, %v7923
      %v7964 = vpack.c.b16 %v7928, %v7926
      %v7965 = vpack.c.b16 %v7929, %v7927
      %v7966 = vpack.c.b16 %v7932, %v7930
      %v7967 = vpack.c.b16 %v7933, %v7931
      %v7968 = vpack.c.b16 %v7936, %v7934
      %v7969 = vpack.c.b16 %v7937, %v7935
      %8002 = vmatprep.subr.bf16.mxu0 %v7939
      %8003 = vmatpush1.bf16.msra.mxu0 %v7938
      %8004 = vmatprep.subr.bf16.mxu0 %v7941
      %8005 = vmatpush1.bf16.msra.mxu0 %v7940
      %8006 = vmatprep.subr.bf16.mxu0 %v7943
      %8007 = vmatpush1.bf16.msra.mxu0 %v7942
      %8008 = vmatprep.subr.bf16.mxu0 %v7945
      %8009 = vmatpush1.bf16.msra.mxu0 %v7944
      %8010 = vmatprep.subr.bf16.mxu0 %v7947
      %8011 = vmatpush1.bf16.msra.mxu0 %v7946
      %8012 = vmatprep.subr.bf16.mxu0 %v7949
      %8013 = vmatpush1.bf16.msra.mxu0 %v7948
      %8014 = vmatprep.subr.bf16.mxu0 %v7951
      %8015 = vmatpush1.bf16.msra.mxu0 %v7950
      %8016 = vmatprep.subr.bf16.mxu0 %v7953
      %8017 = vmatpush1.bf16.msra.mxu0 %v7952
      %8018 = vmatprep.subr.bf16.mxu0 %v7955
      %8019 = vmatpush1.bf16.msra.mxu0 %v7954
      %8020 = vmatprep.subr.bf16.mxu0 %v7957
      %8021 = vmatpush1.bf16.msra.mxu0 %v7956
      %8022 = vmatprep.subr.bf16.mxu0 %v7959
      %8023 = vmatpush1.bf16.msra.mxu0 %v7958
      %8024 = vmatprep.subr.bf16.mxu0 %v7961
      %8025 = vmatpush1.bf16.msra.mxu0 %v7960
      %8026 = vmatprep.subr.bf16.mxu0 %v7963
      %8027 = vmatpush1.bf16.msra.mxu0 %v7962
      %8028 = vmatprep.subr.bf16.mxu0 %v7965
      %8029 = vmatpush1.bf16.msra.mxu0 %v7964
      %8030 = vmatprep.subr.bf16.mxu0 %v7967
      %8031 = vmatpush1.bf16.msra.mxu0 %v7966
      %8032 = vmatprep.subr.bf16.mxu0 %v7969
      %8033 = vmatpush1.bf16.msra.mxu0 %v7968
      %8034 = vmatprep.mubr.bf16.mxu0 %v7527
      %8035 = vmatmul.mubr.bf16.gmra.mrb[0].mxu0 %v7526
      %v8036 = vpop.f32.mrb[0].mxu0
      %v8037 = vadd.f32 %v7836, %v8036
      %v8038 = vpop.f32.mrb[0].mxu0
      %v8039 = vadd.f32 %v7838, %v8038
      %v8040 = vpop.f32.mrb[0].mxu0
      %v8041 = vpop.f32.mrb[0].mxu0
      %8042 = vdwg.mxu0
      %v8043 = vld [vmem:[%s12] sm:$0x3]
      %v8045 = vlaneseq
      %v8046 = vshrl.u32 %v8045, 7
      %v8047 = vsub.s32 0, %v8046
      %v8048 = vrot.slane %v8043, %v8047
      %v8049 = vlaneseq
      %v8050 = vshrl.u32 %v8049, 7
      %v8051 = vsub.s32 1, %v8050
      %v8052 = vrot.slane %v8043, %v8051
      %v8055 = vadd.f32 %v8037, %v8048
      %v8056 = vadd.f32 %v8039, %v8052
      %v8057 = vmax.f32 %v8055, 0.0
      %v8058 = vmax.f32 %v8056, 0.0
      %v8059 = vpack.c.bf16 %v8057, %v8057
      %v8060 = vpack.c.bf16 %v8058, %v8058
      %v8061 = vld [vmem:[%s13] sm:$0xf]
      %v8062 = vld [vmem:[%s13 + $0x4] sm:$0xf]
      %v8063 = vld [vmem:[%s13 + $0x8] sm:$0xf]
      %v8064 = vld [vmem:[%s13 + $0xc] sm:$0xf]
      %v8065 = vld [vmem:[%s13 + $0x10] sm:$0xf]
      %v8066 = vld [vmem:[%s13 + $0x14] sm:$0xf]
      %v8067 = vld [vmem:[%s13 + $0x18] sm:$0xf]
      %v8068 = vld [vmem:[%s13 + $0x1c] sm:$0xf]
      %v8069 = vld [vmem:[%s13 + $0x20] sm:$0xf]
      %v8070 = vld [vmem:[%s13 + $0x24] sm:$0xf]
      %v8071 = vld [vmem:[%s13 + $0x28] sm:$0xf]
      %v8072 = vld [vmem:[%s13 + $0x2c] sm:$0xf]
      %v8073 = vld [vmem:[%s13 + $0x30] sm:$0xf]
      %v8074 = vld [vmem:[%s13 + $0x34] sm:$0xf]
      %v8075 = vld [vmem:[%s13 + $0x38] sm:$0xf]
      %v8076 = vld [vmem:[%s13 + $0x3c] sm:$0xf]
      %v8077 = vld [vmem:[%s13 + $0x40] sm:$0xf]
      %v8078 = vld [vmem:[%s13 + $0x44] sm:$0xf]
      %v8079 = vld [vmem:[%s13 + $0x48] sm:$0xf]
      %v8080 = vld [vmem:[%s13 + $0x4c] sm:$0xf]
      %v8081 = vld [vmem:[%s13 + $0x50] sm:$0xf]
      %v8082 = vld [vmem:[%s13 + $0x54] sm:$0xf]
      %v8083 = vld [vmem:[%s13 + $0x58] sm:$0xf]
      %v8084 = vld [vmem:[%s13 + $0x5c] sm:$0xf]
      %v8085 = vld [vmem:[%s13 + $0x60] sm:$0xf]
      %v8086 = vld [vmem:[%s13 + $0x64] sm:$0xf]
      %v8087 = vld [vmem:[%s13 + $0x68] sm:$0xf]
      %v8088 = vld [vmem:[%s13 + $0x6c] sm:$0xf]
      %v8089 = vld [vmem:[%s13 + $0x70] sm:$0xf]
      %v8090 = vld [vmem:[%s13 + $0x74] sm:$0xf]
      %v8091 = vld [vmem:[%s13 + $0x78] sm:$0xf]
      %v8092 = vld [vmem:[%s13 + $0x7c] sm:$0xf]
      %v8093 = vld [vmem:[%s14] sm:$0x1]
      %v8126 = vunpack.c.l.b16 %v8061
      %v8127 = vunpack.c.l.b16 %v8062
      %v8128 = vunpack.c.l.b16 %v8063
      %v8129 = vunpack.c.l.b16 %v8064
      %v8130 = vunpack.c.l.b16 %v8065
      %v8131 = vunpack.c.l.b16 %v8066
      %v8132 = vunpack.c.l.b16 %v8067
      %v8133 = vunpack.c.l.b16 %v8068
      %v8134 = vunpack.c.l.b16 %v8069
      %v8135 = vunpack.c.l.b16 %v8070
      %v8136 = vunpack.c.l.b16 %v8071
      %v8137 = vunpack.c.l.b16 %v8072
      %v8138 = vunpack.c.l.b16 %v8073
      %v8139 = vunpack.c.l.b16 %v8074
      %v8140 = vunpack.c.l.b16 %v8075
      %v8141 = vunpack.c.l.b16 %v8076
      %v8142 = vunpack.c.l.b16 %v8077
      %v8143 = vunpack.c.l.b16 %v8078
      %v8144 = vunpack.c.l.b16 %v8079
      %v8145 = vunpack.c.l.b16 %v8080
      %v8146 = vunpack.c.l.b16 %v8081
      %v8147 = vunpack.c.l.b16 %v8082
      %v8148 = vunpack.c.l.b16 %v8083
      %v8149 = vunpack.c.l.b16 %v8084
      %v8150 = vunpack.c.l.b16 %v8085
      %v8151 = vunpack.c.l.b16 %v8086
      %v8152 = vunpack.c.l.b16 %v8087
      %v8153 = vunpack.c.l.b16 %v8088
      %v8154 = vunpack.c.l.b16 %v8089
      %v8155 = vunpack.c.l.b16 %v8090
      %v8156 = vunpack.c.l.b16 %v8091
      %v8157 = vunpack.c.l.b16 %v8092
      %v8158 = vpack.c.b16 %v8127, %v8126
      %v8159 = vpack.c.b16 %v8129, %v8128
      %v8160 = vpack.c.b16 %v8131, %v8130
      %v8161 = vpack.c.b16 %v8133, %v8132
      %v8162 = vpack.c.b16 %v8135, %v8134
      %v8163 = vpack.c.b16 %v8137, %v8136
      %v8164 = vpack.c.b16 %v8139, %v8138
      %v8165 = vpack.c.b16 %v8141, %v8140
      %v8166 = vpack.c.b16 %v8143, %v8142
      %v8167 = vpack.c.b16 %v8145, %v8144
      %v8168 = vpack.c.b16 %v8147, %v8146
      %v8169 = vpack.c.b16 %v8149, %v8148
      %v8170 = vpack.c.b16 %v8151, %v8150
      %v8171 = vpack.c.b16 %v8153, %v8152
      %v8172 = vpack.c.b16 %v8155, %v8154
      %v8173 = vpack.c.b16 %v8157, %v8156
      %8190 = vmatprep.subr.bf16.mxu0 0
      %8191 = vmatpush1.bf16.msra.mxu0 %v8158
      %8192 = vmatprep.subr.bf16.mxu0 0
      %8193 = vmatpush1.bf16.msra.mxu0 %v8159
      %8194 = vmatprep.subr.bf16.mxu0 0
      %8195 = vmatpush1.bf16.msra.mxu0 %v8160
      %8196 = vmatprep.subr.bf16.mxu0 0
      %8197 = vmatpush1.bf16.msra.mxu0 %v8161
      %8198 = vmatprep.subr.bf16.mxu0 0
      %8199 = vmatpush1.bf16.msra.mxu0 %v8162
      %8200 = vmatprep.subr.bf16.mxu0 0
      %8201 = vmatpush1.bf16.msra.mxu0 %v8163
      %8202 = vmatprep.subr.bf16.mxu0 0
      %8203 = vmatpush1.bf16.msra.mxu0 %v8164
      %8204 = vmatprep.subr.bf16.mxu0 0
      %8205 = vmatpush1.bf16.msra.mxu0 %v8165
      %8206 = vmatprep.subr.bf16.mxu0 0
      %8207 = vmatpush1.bf16.msra.mxu0 %v8166
      %8208 = vmatprep.subr.bf16.mxu0 0
      %8209 = vmatpush1.bf16.msra.mxu0 %v8167
      %8210 = vmatprep.subr.bf16.mxu0 0
      %8211 = vmatpush1.bf16.msra.mxu0 %v8168
      %8212 = vmatprep.subr.bf16.mxu0 0
      %8213 = vmatpush1.bf16.msra.mxu0 %v8169
      %8214 = vmatprep.subr.bf16.mxu0 0
      %8215 = vmatpush1.bf16.msra.mxu0 %v8170
      %8216 = vmatprep.subr.bf16.mxu0 0
      %8217 = vmatpush1.bf16.msra.mxu0 %v8171
      %8218 = vmatprep.subr.bf16.mxu0 0
      %8219 = vmatpush1.bf16.msra.mxu0 %v8172
      %8220 = vmatprep.subr.bf16.mxu0 0
      %8221 = vmatpush1.bf16.msra.mxu0 %v8173
      %8222 = vmatprep.mubr.bf16.mxu0 %v8060
      %8223 = vmatmul.mubr.bf16.gmra.mrb[0].mxu0 %v8059
      %v8224 = vpop.f32.mrb[0].mxu0
      %v8225 = vadd.f32 %v8093, %v8224
      %v8226 = vpop.f32.mrb[0].mxu0
      %v8227 = vpop.f32.mrb[0].mxu0
      %v8228 = vpop.f32.mrb[0].mxu0
      %8229 = vdwg.mxu0
      %v8230 = vmax.f32 %v8225, 0.0
      %v8231 = vpack.c.bf16 %v8230, %v8230
      %v8232 = vld [vmem:[%s15] sm:$0xf]
      %v8233 = vld [vmem:[%s15 + $0x4] sm:$0xf]
      %v8234 = vld [vmem:[%s15 + $0x8] sm:$0xf]
      %v8235 = vld [vmem:[%s15 + $0xc] sm:$0xf]
      %v8236 = vld [vmem:[%s15 + $0x10] sm:$0xf]
      %v8237 = vld [vmem:[%s15 + $0x14] sm:$0xf]
      %v8238 = vld [vmem:[%s15 + $0x18] sm:$0xf]
      %v8239 = vld [vmem:[%s15 + $0x1c] sm:$0xf]
      %v8240 = vld [vmem:[%s15 + $0x20] sm:$0xf]
      %v8241 = vld [vmem:[%s15 + $0x24] sm:$0xf]
      %v8242 = vld [vmem:[%s15 + $0x28] sm:$0xf]
      %v8243 = vld [vmem:[%s15 + $0x2c] sm:$0xf]
      %v8244 = vld [vmem:[%s15 + $0x30] sm:$0xf]
      %v8245 = vld [vmem:[%s15 + $0x34] sm:$0xf]
      %v8246 = vld [vmem:[%s15 + $0x38] sm:$0xf]
      %v8247 = vld [vmem:[%s15 + $0x3c] sm:$0xf]
      %v8248 = vld [vmem:[%s16] sm:$0x1]
      %v8265 = vunpack.c.l.b16 %v8232
      %v8266 = vunpack.c.l.b16 %v8233
      %v8267 = vunpack.c.l.b16 %v8234
      %v8268 = vunpack.c.l.b16 %v8235
      %v8269 = vunpack.c.l.b16 %v8236
      %v8270 = vunpack.c.l.b16 %v8237
      %v8271 = vunpack.c.l.b16 %v8238
      %v8272 = vunpack.c.l.b16 %v8239
      %v8273 = vunpack.c.l.b16 %v8240
      %v8274 = vunpack.c.l.b16 %v8241
      %v8275 = vunpack.c.l.b16 %v8242
      %v8276 = vunpack.c.l.b16 %v8243
      %v8277 = vunpack.c.l.b16 %v8244
      %v8278 = vunpack.c.l.b16 %v8245
      %v8279 = vunpack.c.l.b16 %v8246
      %v8280 = vunpack.c.l.b16 %v8247
      %v8281 = vpack.c.b16 %v8266, %v8265
      %v8282 = vpack.c.b16 %v8268, %v8267
      %v8283 = vpack.c.b16 %v8270, %v8269
      %v8284 = vpack.c.b16 %v8272, %v8271
      %v8285 = vpack.c.b16 %v8274, %v8273
      %v8286 = vpack.c.b16 %v8276, %v8275
      %v8287 = vpack.c.b16 %v8278, %v8277
      %v8288 = vpack.c.b16 %v8280, %v8279
      %8297 = vmatprep.subr.bf16.mxu0 0
      %8298 = vmatpush1.bf16.msra.mxu0 %v8281
      %8299 = vmatprep.subr.bf16.mxu0 0
      %8300 = vmatpush1.bf16.msra.mxu0 %v8282
      %8301 = vmatprep.subr.bf16.mxu0 0
      %8302 = vmatpush1.bf16.msra.mxu0 %v8283
      %8303 = vmatprep.subr.bf16.mxu0 0
      %8304 = vmatpush1.bf16.msra.mxu0 %v8284
      %8305 = vmatprep.subr.bf16.mxu0 0
      %8306 = vmatpush1.bf16.msra.mxu0 %v8285
      %8307 = vmatprep.subr.bf16.mxu0 0
      %8308 = vmatpush1.bf16.msra.mxu0 %v8286
      %8309 = vmatprep.subr.bf16.mxu0 0
      %8310 = vmatpush1.bf16.msra.mxu0 %v8287
      %8311 = vmatprep.subr.bf16.mxu0 0
      %8312 = vmatpush1.bf16.msra.mxu0 %v8288
      %8313 = vmatprep.subr.bf16.mxu0 0
      %8314 = vmatpush1.bf16.msra.mxu0 0
      %8315 = vmatprep.subr.bf16.mxu0 0
      %8316 = vmatpush1.bf16.msra.mxu0 0
      %8317 = vmatprep.subr.bf16.mxu0 0
      %8318 = vmatpush1.bf16.msra.mxu0 0
      %8319 = vmatprep.subr.bf16.mxu0 0
      %8320 = vmatpush1.bf16.msra.mxu0 0
      %8321 = vmatprep.subr.bf16.mxu0 0
      %8322 = vmatpush1.bf16.msra.mxu0 0
      %8323 = vmatprep.subr.bf16.mxu0 0
      %8324 = vmatpush1.bf16.msra.mxu0 0
      %8325 = vmatprep.subr.bf16.mxu0 0
      %8326 = vmatpush1.bf16.msra.mxu0 0
      %8327 = vmatprep.subr.bf16.mxu0 0
      %8328 = vmatpush1.bf16.msra.mxu0 0
      %8329 = vmatprep.mubr.bf16.mxu0 0
      %8330 = vmatmul.mubr.bf16.gmra.mrb[0].mxu0 %v8231
      %v8331 = vpop.f32.mrb[0].mxu0
      %v8332 = vadd.f32 %v8248, %v8331
      %v8333 = vpop.f32.mrb[0].mxu0
      %v8334 = vpop.f32.mrb[0].mxu0
      %v8335 = vpop.f32.mrb[0].mxu0
      %8336 = vdwg.mxu0
      %8337 = vst [vmem:[%s544] sm:$0x1] %v8332
      %p8338 = scmp.lt.s32.totalorder %s28, 1
      %s8339 = scalar_select %p8338, %s28, 1
      %s8340 = scalar_lea.vmem %s17, %s8339
      // Predicated region
      $region89: #{actor_critic_forward.1} parent=87 // pred_check
        %p8341 = pneg %p408
      $region90: #{actor_critic_forward.1} parent=87 // pred_check_branch
        %8343 = sbr.rel (%p8341) target = $region92
      $region91: #{actor_critic_forward.1} parent=87 // pred_region
        _
      $region92: #{actor_critic_forward.1} parent=87 // pred_fallthru
        _
    $region88: #{actor_critic_forward.1} parent=5 // pred_fallthru
      _
    %p8344 = scmp.le.s32.totalorder 2, %s23
    // Predicated region
    $region93: #{actor_critic_forward.1} parent=5 // pred_check
      %p8345 = pneg %p8344
    $region94: #{actor_critic_forward.1} parent=5 // pred_check_branch
      %8347 = sbr.rel (%p8345) target = $region96
    $region95: #{actor_critic_forward.1} parent=5 // pred_region
      %s8348 = ssub.s32 %s23, 2
      // Predicated region
      $region97: #{actor_critic_forward.1} parent=95 // pred_check
        %p8349 = pneg %p414
      $region98: #{actor_critic_forward.1} parent=95 // pred_check_branch
        %8351 = sbr.rel (%p8349) target = $region100
      $region99: #{actor_critic_forward.1} parent=95 // pred_region
        %p8352 = scmp.lt.s32.totalorder %s29, 1
        %s8353 = scalar_select %p8352, %s29, 1
        %s8354 = scalar_lea.vmem %s17, %s8353
      $region100: #{actor_critic_forward.1} parent=95 // pred_fallthru
        _
    $region96: #{actor_critic_forward.1} parent=5 // pred_fallthru
      _
  $region6: #{actor_critic_forward.1} parent=0 // loop_footer
    %s27 = sadd.s32 1, %s23
  $region7: #{actor_critic_forward.1} parent=0 // loop_footer_branch
    %22 = sbr.rel target = $region3
  $region8: #{actor_critic_forward.1} parent=0 // loop_exit
    _

</llo_original>
